<compile_context>
chip_gen: v7x
topology: tpu7x:2x2x1
jax: 0.10.0
libtpu: 0.0.40
codegen_flags: <defaults>
</compile_context>

<pallas_src>
import jax
import jax.numpy as jnp
from jax import lax
from jax.experimental import pallas as pl
from jax.experimental.pallas import tpu as pltpu

EPS = 1e-5
PREC = lax.Precision.HIGHEST      # wrapper-side folding / reference math kept exact


def bn_affine(bn):
    scale = bn['gamma'] / jnp.sqrt(bn['var'] + EPS)
    shift = bn['beta'] - bn['mean'] * scale
    return scale, shift


# --------------------------------------------------------------------------
# Fused whole-branch Pallas kernel
#   grid = (N // spb,), one block of spb samples per step ("parallel")
#   per module:
#     SCN:  s = relu(x @ Wg + bg)                one full-width MXU matmul (A + BN folded)
#     TCN:  per-joint tap-stacked im2col value -> (rows, 9*cout)@(9*cout, cout) matmul
#     res:  identity add / block-diagonal 1x1-conv matmul (BN folded), full width
#     out:  relu(... + bt), single lane-dense store only after the last module
# --------------------------------------------------------------------------

def _make_branch_kernel(t, v, metas, spb, mxu_dtype):
    def kernel(x_ref, *refs):
        o_ref = refs[-1]
        wrefs = refs[:-1]
        x = x_ref[...]                                     # (rows, V*cin0) f32
        p = 0
        for meta in metas:
            cout, residual = meta['cout'], meta['residual']
            wg = wrefs[p][...]
            bg = wrefs[p + 1][...]
            wt = wrefs[p + 2][...]
            bt = wrefs[p + 3][...]
            p += 4
            wr = None
            if residual == 'conv':
                wr = wrefs[p][...]
                p += 1

            xm = x.astype(mxu_dtype)                       # MXU operand dtype (f32 / bf16)

            # ---- SCN: graph-aggregated 1x1 conv (+BN folds) + ReLU, one matmul ----
            s = jnp.maximum(
                jnp.dot(xm, wg, preferred_element_type=jnp.float32) + bg, 0.0)

            # ---- TCN: 9-tap temporal conv with per-sample zero halo (value-level pad) ----
            halo = jnp.zeros((4, v * cout), jnp.float32)
            spad = [jnp.concatenate([halo, s[j * t:(j + 1) * t, :], halo], axis=0)
                    for j in range(spb)]                   # (T+8, V*cout) per sample
            cols = []
            for w in range(v):
                pieces = []
                for j in range(spb):
                    sw = spad[j][:, w * cout:(w + 1) * cout]            # (T+8, cout)
                    pieces.append(jnp.concatenate(
                        [sw[d:d + t, :] for d in range(9)], axis=1))    # (T, 9*cout)
                op9 = pieces[0] if spb == 1 else jnp.concatenate(pieces, axis=0)
                cols.append(jnp.dot(op9.astype(mxu_dtype), wt,
                                    preferred_element_type=jnp.float32))
            y = jnp.concatenate(cols, axis=1)              # (rows, V*cout), full width

            # ---- residual (BN folded) + TCN bias + ReLU, full width ----
            if residual == 'identity':
                y = y + x
            elif residual == 'conv':
                y = y + jnp.dot(xm, wr, preferred_element_type=jnp.float32)
            x = jnp.maximum(y + bt, 0.0)

        o_ref[...] = x                                     # single lane-dense store
    return kernel


def pick_samples_per_block(n, t, target_rows=128):
    """Target ~128-row MXU tiles, but keep >=2 'parallel' grid steps for v7x's 2 TCs."""
    spb = max(1, min(n, target_rows // max(t, 1)))
    while n % spb:
        spb -= 1
    if n // spb < 2 and spb > 1:
        spb = max(1, spb // 2)
        while n % spb:
            spb -= 1
    return spb


def res_gcn_input_branch(x_nctv, prep):
    # x: (N, C, T, V) as in PyTorch; returns (N, 32, T, V)
    n, c, t, v = x_nctv.shape
    metas, weights, mxu_dtype = prep['metas'], prep['weights'], prep['mxu_dtype']
    cout_last = metas[-1]['cout']
    spb = pick_samples_per_block(n, t)
    rows = spb * t
    assert (n * t) % rows == 0 and rows % 8 == 0

    kernel = _make_branch_kernel(t, v, metas, spb, mxu_dtype)

    in_specs = [pl.BlockSpec((rows, v * c), lambda i: (i, 0))]
    # Folded weights: full-array blocks with constant index_map -> loaded once, VMEM-resident.
    in_specs += [pl.BlockSpec(w.shape, lambda i: (0, 0)) for w in weights]

    call = pl.pallas_call(
        kernel,
        out_shape=jax.ShapeDtypeStruct((n * t, v * cout_last), jnp.float32),
        grid=(n // spb,),
        in_specs=in_specs,
        out_specs=pl.BlockSpec((rows, v * cout_last), lambda i: (i, 0)),
        compiler_params=pltpu.CompilerParams(
            dimension_semantics=("parallel",),
            vmem_limit_bytes=32 * 1024 * 1024),
    )

    x2 = jnp.transpose(x_nctv, (0, 2, 3, 1)).astype(jnp.float32).reshape(n * t, v * c)
    out2 = call(x2, *weights)
    return jnp.transpose(out2.reshape(n, t, v, cout_last), (0, 3, 1, 2))


# --------------------------------------------------------------------------
# Parameter preparation (plain JAX, runs once): BN folding + graph fusion.
# --------------------------------------------------------------------------

def prepare_params(params, a, mxu_dtype=jnp.float32):
    kg, v, _ = a.shape
    scale0, shift0 = bn_affine(params['bn0'])
    eye_v = jnp.eye(v, dtype=jnp.float32)
    metas, weights = [], []
    for idx, mod in enumerate(params['modules']):
        scn, tcn = mod['scn'], mod['tcn']
        cin = scn['w'].shape[0]
        cout = scn['bn']['gamma'].shape[0]

        # Graph-fused SCN weight/bias:
        #   wg[(v,ci),(w,c)] = sum_k A[k,v,w] * W[ci, k*cout+c]
        #   bg[(w,c)]        = sum_k sum_v A[k,v,w] * b[k*cout+c]
        ws = scn['w'].reshape(cin, kg, cout)
        wg = jnp.einsum('ikc,kvw->viwc', ws, a, precision=PREC).reshape(v * cin, v * cout)
        bg = jnp.einsum('kc,kvw->wc', scn['b'].reshape(kg, cout), a,
                        precision=PREC).reshape(v * cout)

        # Fold SCN BatchNorm (per channel, tiled over output joints).
        s_s, sh_s = bn_affine(scn['bn'])
        wg = wg * jnp.tile(s_s, v)[None, :]
        bg = bg * jnp.tile(s_s, v) + jnp.tile(sh_s, v)

        # Fold the input BatchNorm (bn0) into the first module's SCN (exact).
        if idx == 0:
            row_scale = jnp.tile(scale0, v)
            row_shift = jnp.tile(shift0, v)
            bg = bg + jnp.dot(row_shift, wg, precision=PREC)
            wg = wg * row_scale[:, None]

        # Fold TCN BatchNorm.
        s_t, sh_t = bn_affine(tcn['bn'])
        wt = tcn['w'] * s_t[None, :]            # (9*cout, cout), rows = (tap, ci)
        bt = tcn['b'] * s_t + sh_t              # per channel

        meta = dict(cin=cin, cout=cout, residual=mod['residual'])
        entry = [wg.astype(mxu_dtype), bg[None, :].astype(jnp.float32), wt.astype(mxu_dtype)]

        wr_blk = None
        if mod['residual'] == 'conv':
            rp = mod['res']
            s_r, sh_r = bn_affine(rp['bn'])
            wr = rp['w'] * s_r[None, :]
            # Block-diagonal residual weight -> one full-width matmul in the kernel.
            wr_blk = jnp.einsum('io,vw->viwo', wr, eye_v,
                                precision=PREC).reshape(v * cin, v * cout)
            bt = bt + rp['b'] * s_r + sh_r      # residual bias folded into bt

        entry.append(jnp.tile(bt, v)[None, :].astype(jnp.float32))      # (1, V*cout)
        if wr_blk is not None:
            entry.append(wr_blk.astype(mxu_dtype))
        metas.append(meta)
        weights += entry
    return dict(metas=metas, weights=weights, mxu_dtype=mxu_dtype)


# --------------------------------------------------------------------------
# Deterministic parameter init (mirrors ResGCN_Input_Branch.__init__ shapes)
# --------------------------------------------------------------------------

def init_params(key, num_channel, kg, structure=(1, 2)):
    cfgs = [(num_channel, 64, True)]
    cfgs += [(64, 64, True)] * (structure[0] - 1)
    cfgs += [(64, 64, False)] * (structure[1] - 1)
    cfgs += [(64, 32, False)]

    keys = iter(jax.random.split(key, 16 * (len(cfgs) + 1) * 4))

    def nrm(shape, s=0.1):
        return (s * jax.random.normal(next(keys), shape)).astype(jnp.float32)

    def bn_p(c):
        return dict(gamma=(1.0 + 0.05 * jax.random.normal(next(keys), (c,))).astype(jnp.float32),
                    beta=nrm((c,), 0.05),
                    mean=nrm((c,), 0.05),
                    var=(1.0 + 0.1 * jnp.abs(jax.random.normal(next(keys), (c,)))).astype(jnp.float32))

    params = {'bn0': bn_p(num_channel), 'modules': []}
    for cin, cout, initial in cfgs:
        mod = {
            # SpatialGraphConv: Conv2d(cin, kg*cout, 1) stored as (cin, kg*cout)
            'scn': {'w': nrm((cin, kg * cout)), 'b': nrm((kg * cout,), 0.05), 'bn': bn_p(cout)},
            # Temporal conv: Conv2d(cout, cout, (9,1)) stored as (9*cout, cout), row = dt*cout + ci
            'tcn': {'w': nrm((9 * cout, cout)), 'b': nrm((cout,), 0.05), 'bn': bn_p(cout)},
        }
        if initial:                    # module residual disabled
            mod['residual'] = 'zero'
        elif cin == cout:              # Basic block, stride 1, same channels
            mod['residual'] = 'identity'
        else:                          # Conv2d(cin, cout, 1) + BatchNorm2d
            mod['residual'] = 'conv'
            mod['res'] = {'w': nrm((cin, cout)), 'b': nrm((cout,), 0.05), 'bn': bn_p(cout)}
        params['modules'].append(mod)
    return params


# --------------------------------------------------------------------------
# Pure-JAX reference (NCHW, mirrors the PyTorch forward) for verification
# --------------------------------------------------------------------------

def reference_forward(x, params, a):
    def bn4(z, bn):
        s, sh = bn_affine(bn)
        return z * s[None, :, None, None] + sh[None, :, None, None]

    kg = a.shape[0]
    x = bn4(x, params['bn0'])
    for mod in params['modules']:
        p = mod['scn']
        cout = p['bn']['gamma'].shape[0]
        y = jnp.einsum('nctv,cd->ndtv', x, p['w'], precision=PREC) + p['b'][None, :, None, None]
        n, _, t, v = y.shape
        y = jnp.einsum('nkctv,kvw->nctw', y.reshape(n, kg, cout, t, v), a, precision=PREC)
        s = jax.nn.relu(bn4(y, p['bn']))
        if mod['residual'] == 'zero':
            res = 0.0
        elif mod['residual'] == 'identity':
            res = x
        else:
            rp = mod['res']
            res = bn4(jnp.einsum('nctv,cd->ndtv', x, rp['w'], precision=PREC)
                      + rp['b'][None, :, None, None], rp['bn'])
        tp = mod['tcn']
        sp = jnp.pad(s, ((0, 0), (0, 0), (4, 4), (0, 0)))
        acc = jnp.zeros_like(s) + tp['b'][None, :, None, None]
        for dt in range(9):
            acc = acc + jnp.einsum('nctv,cd->ndtv', sp[:, :, dt:dt + t, :],
                                   tp['w'][dt * cout:(dt + 1) * cout], precision=PREC)
        x = jax.nn.relu(bn4(acc, tp['bn']) + res)
    return x


# --------------------------------------------------------------------------

if __name__ == "__main__":
    key = jax.random.PRNGKey(0)
    N, C, T, V, Kg = 2, 4, 16, 8, 3     # batch, input channels, frames, joints, graph subsets

    kx, ka, kp = jax.random.split(key, 3)
    x = jax.random.normal(kx, (N, C, T, V), jnp.float32)        # PyTorch NCHW (H=T, W=V)
    A = 0.3 * jax.random.normal(ka, (Kg, V, V), jnp.float32)    # graph tensor buffer
    params = init_params(kp, num_channel=C, kg=Kg)

    ref = reference_forward(x, params, A)
    scale = 1.0 + float(jnp.max(jnp.abs(ref)))

    # 1) f32 MXU-operand path: exact refactor of the eval-mode forward (tight check).
    prep32 = prepare_params(params, A, mxu_dtype=jnp.float32)
    fwd32 = jax.jit(lambda xx: res_gcn_input_branch(xx, prep32))
    out32 = jax.block_until_ready(fwd32(x))
    assert out32.shape == (N, 32, T, V), out32.shape
    err32 = float(jnp.max(jnp.abs(out32 - ref)))
    assert bool(jnp.all(jnp.isfinite(out32))) and err32 <= 2e-3 * scale, (err32, scale)

    # 2) bf16 weight / MXU-operand path (f32 accumulation): throughput path for v6e/v7x.
    prep16 = prepare_params(params, A, mxu_dtype=jnp.bfloat16)
    fwd16 = jax.jit(lambda xx: res_gcn_input_branch(xx, prep16))
    out16 = jax.block_until_ready(fwd16(x))
    err16 = float(jnp.max(jnp.abs(out16 - ref)))
    assert bool(jnp.all(jnp.isfinite(out16))) and err16 <= 6e-2 * scale, (err16, scale)

    print("KERNEL_OK")
</pallas_src>

<mosaic_0001>
module attributes {stable_mosaic.version = 11 : i64} {
  func.func @kernel(%arg0: i32, %arg1: memref<16x32xf32, #tpu.memory_space<vmem>>, %arg2: memref<32x512xf32, #tpu.memory_space<vmem>>, %arg3: memref<1x512xf32, #tpu.memory_space<vmem>>, %arg4: memref<576x64xf32, #tpu.memory_space<vmem>>, %arg5: memref<1x512xf32, #tpu.memory_space<vmem>>, %arg6: memref<512x512xf32, #tpu.memory_space<vmem>>, %arg7: memref<1x512xf32, #tpu.memory_space<vmem>>, %arg8: memref<576x64xf32, #tpu.memory_space<vmem>>, %arg9: memref<1x512xf32, #tpu.memory_space<vmem>>, %arg10: memref<512x256xf32, #tpu.memory_space<vmem>>, %arg11: memref<1x256xf32, #tpu.memory_space<vmem>>, %arg12: memref<288x32xf32, #tpu.memory_space<vmem>>, %arg13: memref<1x256xf32, #tpu.memory_space<vmem>>, %arg14: memref<512x256xf32, #tpu.memory_space<vmem>>, %arg15: memref<16x256xf32, #tpu.memory_space<vmem>>) attributes {dimension_semantics = [#tpu.dimension_semantics<parallel>], iteration_bounds = array<i64: 2>, scalar_prefetch = 0 : i64, scratch_operands = 0 : i64, tpu.core_type = #tpu.core_type<tc>, window_params = [{transform_indices = @transform_0, window_bounds = array<i64: 16, 32>}, {pipeline_mode = #tpu.pipeline_mode<synchronous>, transform_indices = @transform_1, window_bounds = array<i64: 32, 512>}, {pipeline_mode = #tpu.pipeline_mode<synchronous>, transform_indices = @transform_2, window_bounds = array<i64: 1, 512>}, {pipeline_mode = #tpu.pipeline_mode<synchronous>, transform_indices = @transform_3, window_bounds = array<i64: 576, 64>}, {pipeline_mode = #tpu.pipeline_mode<synchronous>, transform_indices = @transform_4, window_bounds = array<i64: 1, 512>}, {pipeline_mode = #tpu.pipeline_mode<synchronous>, transform_indices = @transform_5, window_bounds = array<i64: 512, 512>}, {pipeline_mode = #tpu.pipeline_mode<synchronous>, transform_indices = @transform_6, window_bounds = array<i64: 1, 512>}, {pipeline_mode = #tpu.pipeline_mode<synchronous>, transform_indices = @transform_7, window_bounds = array<i64: 576, 64>}, {pipeline_mode = #tpu.pipeline_mode<synchronous>, transform_indices = @transform_8, window_bounds = array<i64: 1, 512>}, {pipeline_mode = #tpu.pipeline_mode<synchronous>, transform_indices = @transform_9, window_bounds = array<i64: 512, 256>}, {pipeline_mode = #tpu.pipeline_mode<synchronous>, transform_indices = @transform_10, window_bounds = array<i64: 1, 256>}, {pipeline_mode = #tpu.pipeline_mode<synchronous>, transform_indices = @transform_11, window_bounds = array<i64: 288, 32>}, {pipeline_mode = #tpu.pipeline_mode<synchronous>, transform_indices = @transform_12, window_bounds = array<i64: 1, 256>}, {pipeline_mode = #tpu.pipeline_mode<synchronous>, transform_indices = @transform_13, window_bounds = array<i64: 512, 256>}, {transform_indices = @transform_14, window_bounds = array<i64: 16, 256>}]} {
    %c0 = arith.constant 0 : index
    %c0_0 = arith.constant 0 : index
    %0 = vector.load %arg1[%c0, %c0_0] : memref<16x32xf32, #tpu.memory_space<vmem>>, vector<16x32xf32>
    %c0_1 = arith.constant 0 : index
    %c0_2 = arith.constant 0 : index
    %1 = vector.load %arg2[%c0_1, %c0_2] : memref<32x512xf32, #tpu.memory_space<vmem>>, vector<32x512xf32>
    %c0_3 = arith.constant 0 : index
    %c0_4 = arith.constant 0 : index
    %2 = vector.load %arg3[%c0_3, %c0_4] : memref<1x512xf32, #tpu.memory_space<vmem>>, vector<1x512xf32>
    %c0_5 = arith.constant 0 : index
    %c0_6 = arith.constant 0 : index
    %3 = vector.load %arg4[%c0_5, %c0_6] : memref<576x64xf32, #tpu.memory_space<vmem>>, vector<576x64xf32>
    %c0_7 = arith.constant 0 : index
    %c0_8 = arith.constant 0 : index
    %4 = vector.load %arg5[%c0_7, %c0_8] : memref<1x512xf32, #tpu.memory_space<vmem>>, vector<1x512xf32>
    %cst = arith.constant dense<0.000000e+00> : vector<16x512xf32>
    %5 = tpu.matmul %0, %1, %cst {dimension_numbers = #tpu.dot_dimension_numbers<[1], [0], [0], [1], [0, 0, 1, 1], [], []>} : vector<16x32xf32>, vector<32x512xf32>, vector<16x512xf32> -> vector<16x512xf32>
    %6 = vector.broadcast %2 : vector<1x512xf32> to vector<16x512xf32>
    %7 = arith.addf %5, %6 : vector<16x512xf32>
    %cst_9 = arith.constant 0.000000e+00 : f32
    %8 = vector.broadcast %cst_9 : f32 to vector<16x512xf32>
    %9 = arith.maximumf %7, %8 : vector<16x512xf32>
    %cst_10 = arith.constant 0.000000e+00 : f32
    %10 = vector.broadcast %cst_10 : f32 to vector<4x512xf32>
    %11 = tpu.concatenate %10, %9, %10 in 0 : vector<4x512xf32>, vector<16x512xf32>, vector<4x512xf32> -> vector<24x512xf32>
    %12 = vector.extract_strided_slice %11 {offsets = [0, 0], sizes = [24, 64], strides = [1, 1]} : vector<24x512xf32> to vector<24x64xf32>
    %13 = vector.extract_strided_slice %12 {offsets = [0, 0], sizes = [16, 64], strides = [1, 1]} : vector<24x64xf32> to vector<16x64xf32>
    %14 = vector.extract_strided_slice %12 {offsets = [1, 0], sizes = [16, 64], strides = [1, 1]} : vector<24x64xf32> to vector<16x64xf32>
    %15 = vector.extract_strided_slice %12 {offsets = [2, 0], sizes = [16, 64], strides = [1, 1]} : vector<24x64xf32> to vector<16x64xf32>
    %16 = vector.extract_strided_slice %12 {offsets = [3, 0], sizes = [16, 64], strides = [1, 1]} : vector<24x64xf32> to vector<16x64xf32>
    %17 = vector.extract_strided_slice %12 {offsets = [4, 0], sizes = [16, 64], strides = [1, 1]} : vector<24x64xf32> to vector<16x64xf32>
    %18 = vector.extract_strided_slice %12 {offsets = [5, 0], sizes = [16, 64], strides = [1, 1]} : vector<24x64xf32> to vector<16x64xf32>
    %19 = vector.extract_strided_slice %12 {offsets = [6, 0], sizes = [16, 64], strides = [1, 1]} : vector<24x64xf32> to vector<16x64xf32>
    %20 = vector.extract_strided_slice %12 {offsets = [7, 0], sizes = [16, 64], strides = [1, 1]} : vector<24x64xf32> to vector<16x64xf32>
    %21 = vector.extract_strided_slice %12 {offsets = [8, 0], sizes = [16, 64], strides = [1, 1]} : vector<24x64xf32> to vector<16x64xf32>
    %22 = tpu.concatenate %13, %14, %15, %16, %17, %18, %19, %20, %21 in 1 : vector<16x64xf32>, vector<16x64xf32>, vector<16x64xf32>, vector<16x64xf32>, vector<16x64xf32>, vector<16x64xf32>, vector<16x64xf32>, vector<16x64xf32>, vector<16x64xf32> -> vector<16x576xf32>
    %cst_11 = arith.constant dense<0.000000e+00> : vector<16x64xf32>
    %23 = tpu.matmul %22, %3, %cst_11 {dimension_numbers = #tpu.dot_dimension_numbers<[1], [0], [0], [1], [0, 0, 1, 1], [], []>} : vector<16x576xf32>, vector<576x64xf32>, vector<16x64xf32> -> vector<16x64xf32>
    %24 = vector.extract_strided_slice %11 {offsets = [0, 64], sizes = [24, 64], strides = [1, 1]} : vector<24x512xf32> to vector<24x64xf32>
    %25 = vector.extract_strided_slice %24 {offsets = [0, 0], sizes = [16, 64], strides = [1, 1]} : vector<24x64xf32> to vector<16x64xf32>
    %26 = vector.extract_strided_slice %24 {offsets = [1, 0], sizes = [16, 64], strides = [1, 1]} : vector<24x64xf32> to vector<16x64xf32>
    %27 = vector.extract_strided_slice %24 {offsets = [2, 0], sizes = [16, 64], strides = [1, 1]} : vector<24x64xf32> to vector<16x64xf32>
    %28 = vector.extract_strided_slice %24 {offsets = [3, 0], sizes = [16, 64], strides = [1, 1]} : vector<24x64xf32> to vector<16x64xf32>
    %29 = vector.extract_strided_slice %24 {offsets = [4, 0], sizes = [16, 64], strides = [1, 1]} : vector<24x64xf32> to vector<16x64xf32>
    %30 = vector.extract_strided_slice %24 {offsets = [5, 0], sizes = [16, 64], strides = [1, 1]} : vector<24x64xf32> to vector<16x64xf32>
    %31 = vector.extract_strided_slice %24 {offsets = [6, 0], sizes = [16, 64], strides = [1, 1]} : vector<24x64xf32> to vector<16x64xf32>
    %32 = vector.extract_strided_slice %24 {offsets = [7, 0], sizes = [16, 64], strides = [1, 1]} : vector<24x64xf32> to vector<16x64xf32>
    %33 = vector.extract_strided_slice %24 {offsets = [8, 0], sizes = [16, 64], strides = [1, 1]} : vector<24x64xf32> to vector<16x64xf32>
    %34 = tpu.concatenate %25, %26, %27, %28, %29, %30, %31, %32, %33 in 1 : vector<16x64xf32>, vector<16x64xf32>, vector<16x64xf32>, vector<16x64xf32>, vector<16x64xf32>, vector<16x64xf32>, vector<16x64xf32>, vector<16x64xf32>, vector<16x64xf32> -> vector<16x576xf32>
    %cst_12 = arith.constant dense<0.000000e+00> : vector<16x64xf32>
    %35 = tpu.matmul %34, %3, %cst_12 {dimension_numbers = #tpu.dot_dimension_numbers<[1], [0], [0], [1], [0, 0, 1, 1], [], []>} : vector<16x576xf32>, vector<576x64xf32>, vector<16x64xf32> -> vector<16x64xf32>
    %36 = vector.extract_strided_slice %11 {offsets = [0, 128], sizes = [24, 64], strides = [1, 1]} : vector<24x512xf32> to vector<24x64xf32>
    %37 = vector.extract_strided_slice %36 {offsets = [0, 0], sizes = [16, 64], strides = [1, 1]} : vector<24x64xf32> to vector<16x64xf32>
    %38 = vector.extract_strided_slice %36 {offsets = [1, 0], sizes = [16, 64], strides = [1, 1]} : vector<24x64xf32> to vector<16x64xf32>
    %39 = vector.extract_strided_slice %36 {offsets = [2, 0], sizes = [16, 64], strides = [1, 1]} : vector<24x64xf32> to vector<16x64xf32>
    %40 = vector.extract_strided_slice %36 {offsets = [3, 0], sizes = [16, 64], strides = [1, 1]} : vector<24x64xf32> to vector<16x64xf32>
    %41 = vector.extract_strided_slice %36 {offsets = [4, 0], sizes = [16, 64], strides = [1, 1]} : vector<24x64xf32> to vector<16x64xf32>
    %42 = vector.extract_strided_slice %36 {offsets = [5, 0], sizes = [16, 64], strides = [1, 1]} : vector<24x64xf32> to vector<16x64xf32>
    %43 = vector.extract_strided_slice %36 {offsets = [6, 0], sizes = [16, 64], strides = [1, 1]} : vector<24x64xf32> to vector<16x64xf32>
    %44 = vector.extract_strided_slice %36 {offsets = [7, 0], sizes = [16, 64], strides = [1, 1]} : vector<24x64xf32> to vector<16x64xf32>
    %45 = vector.extract_strided_slice %36 {offsets = [8, 0], sizes = [16, 64], strides = [1, 1]} : vector<24x64xf32> to vector<16x64xf32>
    %46 = tpu.concatenate %37, %38, %39, %40, %41, %42, %43, %44, %45 in 1 : vector<16x64xf32>, vector<16x64xf32>, vector<16x64xf32>, vector<16x64xf32>, vector<16x64xf32>, vector<16x64xf32>, vector<16x64xf32>, vector<16x64xf32>, vector<16x64xf32> -> vector<16x576xf32>
    %cst_13 = arith.constant dense<0.000000e+00> : vector<16x64xf32>
    %47 = tpu.matmul %46, %3, %cst_13 {dimension_numbers = #tpu.dot_dimension_numbers<[1], [0], [0], [1], [0, 0, 1, 1], [], []>} : vector<16x576xf32>, vector<576x64xf32>, vector<16x64xf32> -> vector<16x64xf32>
    %48 = vector.extract_strided_slice %11 {offsets = [0, 192], sizes = [24, 64], strides = [1, 1]} : vector<24x512xf32> to vector<24x64xf32>
    %49 = vector.extract_strided_slice %48 {offsets = [0, 0], sizes = [16, 64], strides = [1, 1]} : vector<24x64xf32> to vector<16x64xf32>
    %50 = vector.extract_strided_slice %48 {offsets = [1, 0], sizes = [16, 64], strides = [1, 1]} : vector<24x64xf32> to vector<16x64xf32>
    %51 = vector.extract_strided_slice %48 {offsets = [2, 0], sizes = [16, 64], strides = [1, 1]} : vector<24x64xf32> to vector<16x64xf32>
    %52 = vector.extract_strided_slice %48 {offsets = [3, 0], sizes = [16, 64], strides = [1, 1]} : vector<24x64xf32> to vector<16x64xf32>
    %53 = vector.extract_strided_slice %48 {offsets = [4, 0], sizes = [16, 64], strides = [1, 1]} : vector<24x64xf32> to vector<16x64xf32>
    %54 = vector.extract_strided_slice %48 {offsets = [5, 0], sizes = [16, 64], strides = [1, 1]} : vector<24x64xf32> to vector<16x64xf32>
    %55 = vector.extract_strided_slice %48 {offsets = [6, 0], sizes = [16, 64], strides = [1, 1]} : vector<24x64xf32> to vector<16x64xf32>
    %56 = vector.extract_strided_slice %48 {offsets = [7, 0], sizes = [16, 64], strides = [1, 1]} : vector<24x64xf32> to vector<16x64xf32>
    %57 = vector.extract_strided_slice %48 {offsets = [8, 0], sizes = [16, 64], strides = [1, 1]} : vector<24x64xf32> to vector<16x64xf32>
    %58 = tpu.concatenate %49, %50, %51, %52, %53, %54, %55, %56, %57 in 1 : vector<16x64xf32>, vector<16x64xf32>, vector<16x64xf32>, vector<16x64xf32>, vector<16x64xf32>, vector<16x64xf32>, vector<16x64xf32>, vector<16x64xf32>, vector<16x64xf32> -> vector<16x576xf32>
    %cst_14 = arith.constant dense<0.000000e+00> : vector<16x64xf32>
    %59 = tpu.matmul %58, %3, %cst_14 {dimension_numbers = #tpu.dot_dimension_numbers<[1], [0], [0], [1], [0, 0, 1, 1], [], []>} : vector<16x576xf32>, vector<576x64xf32>, vector<16x64xf32> -> vector<16x64xf32>
    %60 = vector.extract_strided_slice %11 {offsets = [0, 256], sizes = [24, 64], strides = [1, 1]} : vector<24x512xf32> to vector<24x64xf32>
    %61 = vector.extract_strided_slice %60 {offsets = [0, 0], sizes = [16, 64], strides = [1, 1]} : vector<24x64xf32> to vector<16x64xf32>
    %62 = vector.extract_strided_slice %60 {offsets = [1, 0], sizes = [16, 64], strides = [1, 1]} : vector<24x64xf32> to vector<16x64xf32>
    %63 = vector.extract_strided_slice %60 {offsets = [2, 0], sizes = [16, 64], strides = [1, 1]} : vector<24x64xf32> to vector<16x64xf32>
    %64 = vector.extract_strided_slice %60 {offsets = [3, 0], sizes = [16, 64], strides = [1, 1]} : vector<24x64xf32> to vector<16x64xf32>
    %65 = vector.extract_strided_slice %60 {offsets = [4, 0], sizes = [16, 64], strides = [1, 1]} : vector<24x64xf32> to vector<16x64xf32>
    %66 = vector.extract_strided_slice %60 {offsets = [5, 0], sizes = [16, 64], strides = [1, 1]} : vector<24x64xf32> to vector<16x64xf32>
    %67 = vector.extract_strided_slice %60 {offsets = [6, 0], sizes = [16, 64], strides = [1, 1]} : vector<24x64xf32> to vector<16x64xf32>
    %68 = vector.extract_strided_slice %60 {offsets = [7, 0], sizes = [16, 64], strides = [1, 1]} : vector<24x64xf32> to vector<16x64xf32>
    %69 = vector.extract_strided_slice %60 {offsets = [8, 0], sizes = [16, 64], strides = [1, 1]} : vector<24x64xf32> to vector<16x64xf32>
    %70 = tpu.concatenate %61, %62, %63, %64, %65, %66, %67, %68, %69 in 1 : vector<16x64xf32>, vector<16x64xf32>, vector<16x64xf32>, vector<16x64xf32>, vector<16x64xf32>, vector<16x64xf32>, vector<16x64xf32>, vector<16x64xf32>, vector<16x64xf32> -> vector<16x576xf32>
    %cst_15 = arith.constant dense<0.000000e+00> : vector<16x64xf32>
    %71 = tpu.matmul %70, %3, %cst_15 {dimension_numbers = #tpu.dot_dimension_numbers<[1], [0], [0], [1], [0, 0, 1, 1], [], []>} : vector<16x576xf32>, vector<576x64xf32>, vector<16x64xf32> -> vector<16x64xf32>
    %72 = vector.extract_strided_slice %11 {offsets = [0, 320], sizes = [24, 64], strides = [1, 1]} : vector<24x512xf32> to vector<24x64xf32>
    %73 = vector.extract_strided_slice %72 {offsets = [0, 0], sizes = [16, 64], strides = [1, 1]} : vector<24x64xf32> to vector<16x64xf32>
    %74 = vector.extract_strided_slice %72 {offsets = [1, 0], sizes = [16, 64], strides = [1, 1]} : vector<24x64xf32> to vector<16x64xf32>
    %75 = vector.extract_strided_slice %72 {offsets = [2, 0], sizes = [16, 64], strides = [1, 1]} : vector<24x64xf32> to vector<16x64xf32>
    %76 = vector.extract_strided_slice %72 {offsets = [3, 0], sizes = [16, 64], strides = [1, 1]} : vector<24x64xf32> to vector<16x64xf32>
    %77 = vector.extract_strided_slice %72 {offsets = [4, 0], sizes = [16, 64], strides = [1, 1]} : vector<24x64xf32> to vector<16x64xf32>
    %78 = vector.extract_strided_slice %72 {offsets = [5, 0], sizes = [16, 64], strides = [1, 1]} : vector<24x64xf32> to vector<16x64xf32>
    %79 = vector.extract_strided_slice %72 {offsets = [6, 0], sizes = [16, 64], strides = [1, 1]} : vector<24x64xf32> to vector<16x64xf32>
    %80 = vector.extract_strided_slice %72 {offsets = [7, 0], sizes = [16, 64], strides = [1, 1]} : vector<24x64xf32> to vector<16x64xf32>
    %81 = vector.extract_strided_slice %72 {offsets = [8, 0], sizes = [16, 64], strides = [1, 1]} : vector<24x64xf32> to vector<16x64xf32>
    %82 = tpu.concatenate %73, %74, %75, %76, %77, %78, %79, %80, %81 in 1 : vector<16x64xf32>, vector<16x64xf32>, vector<16x64xf32>, vector<16x64xf32>, vector<16x64xf32>, vector<16x64xf32>, vector<16x64xf32>, vector<16x64xf32>, vector<16x64xf32> -> vector<16x576xf32>
    %cst_16 = arith.constant dense<0.000000e+00> : vector<16x64xf32>
    %83 = tpu.matmul %82, %3, %cst_16 {dimension_numbers = #tpu.dot_dimension_numbers<[1], [0], [0], [1], [0, 0, 1, 1], [], []>} : vector<16x576xf32>, vector<576x64xf32>, vector<16x64xf32> -> vector<16x64xf32>
    %84 = vector.extract_strided_slice %11 {offsets = [0, 384], sizes = [24, 64], strides = [1, 1]} : vector<24x512xf32> to vector<24x64xf32>
    %85 = vector.extract_strided_slice %84 {offsets = [0, 0], sizes = [16, 64], strides = [1, 1]} : vector<24x64xf32> to vector<16x64xf32>
    %86 = vector.extract_strided_slice %84 {offsets = [1, 0], sizes = [16, 64], strides = [1, 1]} : vector<24x64xf32> to vector<16x64xf32>
    %87 = vector.extract_strided_slice %84 {offsets = [2, 0], sizes = [16, 64], strides = [1, 1]} : vector<24x64xf32> to vector<16x64xf32>
    %88 = vector.extract_strided_slice %84 {offsets = [3, 0], sizes = [16, 64], strides = [1, 1]} : vector<24x64xf32> to vector<16x64xf32>
    %89 = vector.extract_strided_slice %84 {offsets = [4, 0], sizes = [16, 64], strides = [1, 1]} : vector<24x64xf32> to vector<16x64xf32>
    %90 = vector.extract_strided_slice %84 {offsets = [5, 0], sizes = [16, 64], strides = [1, 1]} : vector<24x64xf32> to vector<16x64xf32>
    %91 = vector.extract_strided_slice %84 {offsets = [6, 0], sizes = [16, 64], strides = [1, 1]} : vector<24x64xf32> to vector<16x64xf32>
    %92 = vector.extract_strided_slice %84 {offsets = [7, 0], sizes = [16, 64], strides = [1, 1]} : vector<24x64xf32> to vector<16x64xf32>
    %93 = vector.extract_strided_slice %84 {offsets = [8, 0], sizes = [16, 64], strides = [1, 1]} : vector<24x64xf32> to vector<16x64xf32>
    %94 = tpu.concatenate %85, %86, %87, %88, %89, %90, %91, %92, %93 in 1 : vector<16x64xf32>, vector<16x64xf32>, vector<16x64xf32>, vector<16x64xf32>, vector<16x64xf32>, vector<16x64xf32>, vector<16x64xf32>, vector<16x64xf32>, vector<16x64xf32> -> vector<16x576xf32>
    %cst_17 = arith.constant dense<0.000000e+00> : vector<16x64xf32>
    %95 = tpu.matmul %94, %3, %cst_17 {dimension_numbers = #tpu.dot_dimension_numbers<[1], [0], [0], [1], [0, 0, 1, 1], [], []>} : vector<16x576xf32>, vector<576x64xf32>, vector<16x64xf32> -> vector<16x64xf32>
    %96 = vector.extract_strided_slice %11 {offsets = [0, 448], sizes = [24, 64], strides = [1, 1]} : vector<24x512xf32> to vector<24x64xf32>
    %97 = vector.extract_strided_slice %96 {offsets = [0, 0], sizes = [16, 64], strides = [1, 1]} : vector<24x64xf32> to vector<16x64xf32>
    %98 = vector.extract_strided_slice %96 {offsets = [1, 0], sizes = [16, 64], strides = [1, 1]} : vector<24x64xf32> to vector<16x64xf32>
    %99 = vector.extract_strided_slice %96 {offsets = [2, 0], sizes = [16, 64], strides = [1, 1]} : vector<24x64xf32> to vector<16x64xf32>
    %100 = vector.extract_strided_slice %96 {offsets = [3, 0], sizes = [16, 64], strides = [1, 1]} : vector<24x64xf32> to vector<16x64xf32>
    %101 = vector.extract_strided_slice %96 {offsets = [4, 0], sizes = [16, 64], strides = [1, 1]} : vector<24x64xf32> to vector<16x64xf32>
    %102 = vector.extract_strided_slice %96 {offsets = [5, 0], sizes = [16, 64], strides = [1, 1]} : vector<24x64xf32> to vector<16x64xf32>
    %103 = vector.extract_strided_slice %96 {offsets = [6, 0], sizes = [16, 64], strides = [1, 1]} : vector<24x64xf32> to vector<16x64xf32>
    %104 = vector.extract_strided_slice %96 {offsets = [7, 0], sizes = [16, 64], strides = [1, 1]} : vector<24x64xf32> to vector<16x64xf32>
    %105 = vector.extract_strided_slice %96 {offsets = [8, 0], sizes = [16, 64], strides = [1, 1]} : vector<24x64xf32> to vector<16x64xf32>
    %106 = tpu.concatenate %97, %98, %99, %100, %101, %102, %103, %104, %105 in 1 : vector<16x64xf32>, vector<16x64xf32>, vector<16x64xf32>, vector<16x64xf32>, vector<16x64xf32>, vector<16x64xf32>, vector<16x64xf32>, vector<16x64xf32>, vector<16x64xf32> -> vector<16x576xf32>
    %cst_18 = arith.constant dense<0.000000e+00> : vector<16x64xf32>
    %107 = tpu.matmul %106, %3, %cst_18 {dimension_numbers = #tpu.dot_dimension_numbers<[1], [0], [0], [1], [0, 0, 1, 1], [], []>} : vector<16x576xf32>, vector<576x64xf32>, vector<16x64xf32> -> vector<16x64xf32>
    %108 = tpu.concatenate %23, %35, %47, %59, %71, %83, %95, %107 in 1 : vector<16x64xf32>, vector<16x64xf32>, vector<16x64xf32>, vector<16x64xf32>, vector<16x64xf32>, vector<16x64xf32>, vector<16x64xf32>, vector<16x64xf32> -> vector<16x512xf32>
    %109 = vector.broadcast %4 : vector<1x512xf32> to vector<16x512xf32>
    %110 = arith.addf %108, %109 : vector<16x512xf32>
    %cst_19 = arith.constant 0.000000e+00 : f32
    %111 = vector.broadcast %cst_19 : f32 to vector<16x512xf32>
    %112 = arith.maximumf %110, %111 : vector<16x512xf32>
    %c0_20 = arith.constant 0 : index
    %c0_21 = arith.constant 0 : index
    %113 = vector.load %arg6[%c0_20, %c0_21] : memref<512x512xf32, #tpu.memory_space<vmem>>, vector<512x512xf32>
    %c0_22 = arith.constant 0 : index
    %c0_23 = arith.constant 0 : index
    %114 = vector.load %arg7[%c0_22, %c0_23] : memref<1x512xf32, #tpu.memory_space<vmem>>, vector<1x512xf32>
    %c0_24 = arith.constant 0 : index
    %c0_25 = arith.constant 0 : index
    %115 = vector.load %arg8[%c0_24, %c0_25] : memref<576x64xf32, #tpu.memory_space<vmem>>, vector<576x64xf32>
    %c0_26 = arith.constant 0 : index
    %c0_27 = arith.constant 0 : index
    %116 = vector.load %arg9[%c0_26, %c0_27] : memref<1x512xf32, #tpu.memory_space<vmem>>, vector<1x512xf32>
    %cst_28 = arith.constant dense<0.000000e+00> : vector<16x512xf32>
    %117 = tpu.matmul %112, %113, %cst_28 {dimension_numbers = #tpu.dot_dimension_numbers<[1], [0], [0], [1], [0, 0, 1, 1], [], []>} : vector<16x512xf32>, vector<512x512xf32>, vector<16x512xf32> -> vector<16x512xf32>
    %118 = vector.broadcast %114 : vector<1x512xf32> to vector<16x512xf32>
    %119 = arith.addf %117, %118 : vector<16x512xf32>
    %cst_29 = arith.constant 0.000000e+00 : f32
    %120 = vector.broadcast %cst_29 : f32 to vector<16x512xf32>
    %121 = arith.maximumf %119, %120 : vector<16x512xf32>
    %cst_30 = arith.constant 0.000000e+00 : f32
    %122 = vector.broadcast %cst_30 : f32 to vector<4x512xf32>
    %123 = tpu.concatenate %122, %121, %122 in 0 : vector<4x512xf32>, vector<16x512xf32>, vector<4x512xf32> -> vector<24x512xf32>
    %124 = vector.extract_strided_slice %123 {offsets = [0, 0], sizes = [24, 64], strides = [1, 1]} : vector<24x512xf32> to vector<24x64xf32>
    %125 = vector.extract_strided_slice %124 {offsets = [0, 0], sizes = [16, 64], strides = [1, 1]} : vector<24x64xf32> to vector<16x64xf32>
    %126 = vector.extract_strided_slice %124 {offsets = [1, 0], sizes = [16, 64], strides = [1, 1]} : vector<24x64xf32> to vector<16x64xf32>
    %127 = vector.extract_strided_slice %124 {offsets = [2, 0], sizes = [16, 64], strides = [1, 1]} : vector<24x64xf32> to vector<16x64xf32>
    %128 = vector.extract_strided_slice %124 {offsets = [3, 0], sizes = [16, 64], strides = [1, 1]} : vector<24x64xf32> to vector<16x64xf32>
    %129 = vector.extract_strided_slice %124 {offsets = [4, 0], sizes = [16, 64], strides = [1, 1]} : vector<24x64xf32> to vector<16x64xf32>
    %130 = vector.extract_strided_slice %124 {offsets = [5, 0], sizes = [16, 64], strides = [1, 1]} : vector<24x64xf32> to vector<16x64xf32>
    %131 = vector.extract_strided_slice %124 {offsets = [6, 0], sizes = [16, 64], strides = [1, 1]} : vector<24x64xf32> to vector<16x64xf32>
    %132 = vector.extract_strided_slice %124 {offsets = [7, 0], sizes = [16, 64], strides = [1, 1]} : vector<24x64xf32> to vector<16x64xf32>
    %133 = vector.extract_strided_slice %124 {offsets = [8, 0], sizes = [16, 64], strides = [1, 1]} : vector<24x64xf32> to vector<16x64xf32>
    %134 = tpu.concatenate %125, %126, %127, %128, %129, %130, %131, %132, %133 in 1 : vector<16x64xf32>, vector<16x64xf32>, vector<16x64xf32>, vector<16x64xf32>, vector<16x64xf32>, vector<16x64xf32>, vector<16x64xf32>, vector<16x64xf32>, vector<16x64xf32> -> vector<16x576xf32>
    %cst_31 = arith.constant dense<0.000000e+00> : vector<16x64xf32>
    %135 = tpu.matmul %134, %115, %cst_31 {dimension_numbers = #tpu.dot_dimension_numbers<[1], [0], [0], [1], [0, 0, 1, 1], [], []>} : vector<16x576xf32>, vector<576x64xf32>, vector<16x64xf32> -> vector<16x64xf32>
    %136 = vector.extract_strided_slice %123 {offsets = [0, 64], sizes = [24, 64], strides = [1, 1]} : vector<24x512xf32> to vector<24x64xf32>
    %137 = vector.extract_strided_slice %136 {offsets = [0, 0], sizes = [16, 64], strides = [1, 1]} : vector<24x64xf32> to vector<16x64xf32>
    %138 = vector.extract_strided_slice %136 {offsets = [1, 0], sizes = [16, 64], strides = [1, 1]} : vector<24x64xf32> to vector<16x64xf32>
    %139 = vector.extract_strided_slice %136 {offsets = [2, 0], sizes = [16, 64], strides = [1, 1]} : vector<24x64xf32> to vector<16x64xf32>
    %140 = vector.extract_strided_slice %136 {offsets = [3, 0], sizes = [16, 64], strides = [1, 1]} : vector<24x64xf32> to vector<16x64xf32>
    %141 = vector.extract_strided_slice %136 {offsets = [4, 0], sizes = [16, 64], strides = [1, 1]} : vector<24x64xf32> to vector<16x64xf32>
    %142 = vector.extract_strided_slice %136 {offsets = [5, 0], sizes = [16, 64], strides = [1, 1]} : vector<24x64xf32> to vector<16x64xf32>
    %143 = vector.extract_strided_slice %136 {offsets = [6, 0], sizes = [16, 64], strides = [1, 1]} : vector<24x64xf32> to vector<16x64xf32>
    %144 = vector.extract_strided_slice %136 {offsets = [7, 0], sizes = [16, 64], strides = [1, 1]} : vector<24x64xf32> to vector<16x64xf32>
    %145 = vector.extract_strided_slice %136 {offsets = [8, 0], sizes = [16, 64], strides = [1, 1]} : vector<24x64xf32> to vector<16x64xf32>
    %146 = tpu.concatenate %137, %138, %139, %140, %141, %142, %143, %144, %145 in 1 : vector<16x64xf32>, vector<16x64xf32>, vector<16x64xf32>, vector<16x64xf32>, vector<16x64xf32>, vector<16x64xf32>, vector<16x64xf32>, vector<16x64xf32>, vector<16x64xf32> -> vector<16x576xf32>
    %cst_32 = arith.constant dense<0.000000e+00> : vector<16x64xf32>
    %147 = tpu.matmul %146, %115, %cst_32 {dimension_numbers = #tpu.dot_dimension_numbers<[1], [0], [0], [1], [0, 0, 1, 1], [], []>} : vector<16x576xf32>, vector<576x64xf32>, vector<16x64xf32> -> vector<16x64xf32>
    %148 = vector.extract_strided_slice %123 {offsets = [0, 128], sizes = [24, 64], strides = [1, 1]} : vector<24x512xf32> to vector<24x64xf32>
    %149 = vector.extract_strided_slice %148 {offsets = [0, 0], sizes = [16, 64], strides = [1, 1]} : vector<24x64xf32> to vector<16x64xf32>
    %150 = vector.extract_strided_slice %148 {offsets = [1, 0], sizes = [16, 64], strides = [1, 1]} : vector<24x64xf32> to vector<16x64xf32>
    %151 = vector.extract_strided_slice %148 {offsets = [2, 0], sizes = [16, 64], strides = [1, 1]} : vector<24x64xf32> to vector<16x64xf32>
    %152 = vector.extract_strided_slice %148 {offsets = [3, 0], sizes = [16, 64], strides = [1, 1]} : vector<24x64xf32> to vector<16x64xf32>
    %153 = vector.extract_strided_slice %148 {offsets = [4, 0], sizes = [16, 64], strides = [1, 1]} : vector<24x64xf32> to vector<16x64xf32>
    %154 = vector.extract_strided_slice %148 {offsets = [5, 0], sizes = [16, 64], strides = [1, 1]} : vector<24x64xf32> to vector<16x64xf32>
    %155 = vector.extract_strided_slice %148 {offsets = [6, 0], sizes = [16, 64], strides = [1, 1]} : vector<24x64xf32> to vector<16x64xf32>
    %156 = vector.extract_strided_slice %148 {offsets = [7, 0], sizes = [16, 64], strides = [1, 1]} : vector<24x64xf32> to vector<16x64xf32>
    %157 = vector.extract_strided_slice %148 {offsets = [8, 0], sizes = [16, 64], strides = [1, 1]} : vector<24x64xf32> to vector<16x64xf32>
    %158 = tpu.concatenate %149, %150, %151, %152, %153, %154, %155, %156, %157 in 1 : vector<16x64xf32>, vector<16x64xf32>, vector<16x64xf32>, vector<16x64xf32>, vector<16x64xf32>, vector<16x64xf32>, vector<16x64xf32>, vector<16x64xf32>, vector<16x64xf32> -> vector<16x576xf32>
    %cst_33 = arith.constant dense<0.000000e+00> : vector<16x64xf32>
    %159 = tpu.matmul %158, %115, %cst_33 {dimension_numbers = #tpu.dot_dimension_numbers<[1], [0], [0], [1], [0, 0, 1, 1], [], []>} : vector<16x576xf32>, vector<576x64xf32>, vector<16x64xf32> -> vector<16x64xf32>
    %160 = vector.extract_strided_slice %123 {offsets = [0, 192], sizes = [24, 64], strides = [1, 1]} : vector<24x512xf32> to vector<24x64xf32>
    %161 = vector.extract_strided_slice %160 {offsets = [0, 0], sizes = [16, 64], strides = [1, 1]} : vector<24x64xf32> to vector<16x64xf32>
    %162 = vector.extract_strided_slice %160 {offsets = [1, 0], sizes = [16, 64], strides = [1, 1]} : vector<24x64xf32> to vector<16x64xf32>
    %163 = vector.extract_strided_slice %160 {offsets = [2, 0], sizes = [16, 64], strides = [1, 1]} : vector<24x64xf32> to vector<16x64xf32>
    %164 = vector.extract_strided_slice %160 {offsets = [3, 0], sizes = [16, 64], strides = [1, 1]} : vector<24x64xf32> to vector<16x64xf32>
    %165 = vector.extract_strided_slice %160 {offsets = [4, 0], sizes = [16, 64], strides = [1, 1]} : vector<24x64xf32> to vector<16x64xf32>
    %166 = vector.extract_strided_slice %160 {offsets = [5, 0], sizes = [16, 64], strides = [1, 1]} : vector<24x64xf32> to vector<16x64xf32>
    %167 = vector.extract_strided_slice %160 {offsets = [6, 0], sizes = [16, 64], strides = [1, 1]} : vector<24x64xf32> to vector<16x64xf32>
    %168 = vector.extract_strided_slice %160 {offsets = [7, 0], sizes = [16, 64], strides = [1, 1]} : vector<24x64xf32> to vector<16x64xf32>
    %169 = vector.extract_strided_slice %160 {offsets = [8, 0], sizes = [16, 64], strides = [1, 1]} : vector<24x64xf32> to vector<16x64xf32>
    %170 = tpu.concatenate %161, %162, %163, %164, %165, %166, %167, %168, %169 in 1 : vector<16x64xf32>, vector<16x64xf32>, vector<16x64xf32>, vector<16x64xf32>, vector<16x64xf32>, vector<16x64xf32>, vector<16x64xf32>, vector<16x64xf32>, vector<16x64xf32> -> vector<16x576xf32>
    %cst_34 = arith.constant dense<0.000000e+00> : vector<16x64xf32>
    %171 = tpu.matmul %170, %115, %cst_34 {dimension_numbers = #tpu.dot_dimension_numbers<[1], [0], [0], [1], [0, 0, 1, 1], [], []>} : vector<16x576xf32>, vector<576x64xf32>, vector<16x64xf32> -> vector<16x64xf32>
    %172 = vector.extract_strided_slice %123 {offsets = [0, 256], sizes = [24, 64], strides = [1, 1]} : vector<24x512xf32> to vector<24x64xf32>
    %173 = vector.extract_strided_slice %172 {offsets = [0, 0], sizes = [16, 64], strides = [1, 1]} : vector<24x64xf32> to vector<16x64xf32>
    %174 = vector.extract_strided_slice %172 {offsets = [1, 0], sizes = [16, 64], strides = [1, 1]} : vector<24x64xf32> to vector<16x64xf32>
    %175 = vector.extract_strided_slice %172 {offsets = [2, 0], sizes = [16, 64], strides = [1, 1]} : vector<24x64xf32> to vector<16x64xf32>
    %176 = vector.extract_strided_slice %172 {offsets = [3, 0], sizes = [16, 64], strides = [1, 1]} : vector<24x64xf32> to vector<16x64xf32>
    %177 = vector.extract_strided_slice %172 {offsets = [4, 0], sizes = [16, 64], strides = [1, 1]} : vector<24x64xf32> to vector<16x64xf32>
    %178 = vector.extract_strided_slice %172 {offsets = [5, 0], sizes = [16, 64], strides = [1, 1]} : vector<24x64xf32> to vector<16x64xf32>
    %179 = vector.extract_strided_slice %172 {offsets = [6, 0], sizes = [16, 64], strides = [1, 1]} : vector<24x64xf32> to vector<16x64xf32>
    %180 = vector.extract_strided_slice %172 {offsets = [7, 0], sizes = [16, 64], strides = [1, 1]} : vector<24x64xf32> to vector<16x64xf32>
    %181 = vector.extract_strided_slice %172 {offsets = [8, 0], sizes = [16, 64], strides = [1, 1]} : vector<24x64xf32> to vector<16x64xf32>
    %182 = tpu.concatenate %173, %174, %175, %176, %177, %178, %179, %180, %181 in 1 : vector<16x64xf32>, vector<16x64xf32>, vector<16x64xf32>, vector<16x64xf32>, vector<16x64xf32>, vector<16x64xf32>, vector<16x64xf32>, vector<16x64xf32>, vector<16x64xf32> -> vector<16x576xf32>
    %cst_35 = arith.constant dense<0.000000e+00> : vector<16x64xf32>
    %183 = tpu.matmul %182, %115, %cst_35 {dimension_numbers = #tpu.dot_dimension_numbers<[1], [0], [0], [1], [0, 0, 1, 1], [], []>} : vector<16x576xf32>, vector<576x64xf32>, vector<16x64xf32> -> vector<16x64xf32>
    %184 = vector.extract_strided_slice %123 {offsets = [0, 320], sizes = [24, 64], strides = [1, 1]} : vector<24x512xf32> to vector<24x64xf32>
    %185 = vector.extract_strided_slice %184 {offsets = [0, 0], sizes = [16, 64], strides = [1, 1]} : vector<24x64xf32> to vector<16x64xf32>
    %186 = vector.extract_strided_slice %184 {offsets = [1, 0], sizes = [16, 64], strides = [1, 1]} : vector<24x64xf32> to vector<16x64xf32>
    %187 = vector.extract_strided_slice %184 {offsets = [2, 0], sizes = [16, 64], strides = [1, 1]} : vector<24x64xf32> to vector<16x64xf32>
    %188 = vector.extract_strided_slice %184 {offsets = [3, 0], sizes = [16, 64], strides = [1, 1]} : vector<24x64xf32> to vector<16x64xf32>
    %189 = vector.extract_strided_slice %184 {offsets = [4, 0], sizes = [16, 64], strides = [1, 1]} : vector<24x64xf32> to vector<16x64xf32>
    %190 = vector.extract_strided_slice %184 {offsets = [5, 0], sizes = [16, 64], strides = [1, 1]} : vector<24x64xf32> to vector<16x64xf32>
    %191 = vector.extract_strided_slice %184 {offsets = [6, 0], sizes = [16, 64], strides = [1, 1]} : vector<24x64xf32> to vector<16x64xf32>
    %192 = vector.extract_strided_slice %184 {offsets = [7, 0], sizes = [16, 64], strides = [1, 1]} : vector<24x64xf32> to vector<16x64xf32>
    %193 = vector.extract_strided_slice %184 {offsets = [8, 0], sizes = [16, 64], strides = [1, 1]} : vector<24x64xf32> to vector<16x64xf32>
    %194 = tpu.concatenate %185, %186, %187, %188, %189, %190, %191, %192, %193 in 1 : vector<16x64xf32>, vector<16x64xf32>, vector<16x64xf32>, vector<16x64xf32>, vector<16x64xf32>, vector<16x64xf32>, vector<16x64xf32>, vector<16x64xf32>, vector<16x64xf32> -> vector<16x576xf32>
    %cst_36 = arith.constant dense<0.000000e+00> : vector<16x64xf32>
    %195 = tpu.matmul %194, %115, %cst_36 {dimension_numbers = #tpu.dot_dimension_numbers<[1], [0], [0], [1], [0, 0, 1, 1], [], []>} : vector<16x576xf32>, vector<576x64xf32>, vector<16x64xf32> -> vector<16x64xf32>
    %196 = vector.extract_strided_slice %123 {offsets = [0, 384], sizes = [24, 64], strides = [1, 1]} : vector<24x512xf32> to vector<24x64xf32>
    %197 = vector.extract_strided_slice %196 {offsets = [0, 0], sizes = [16, 64], strides = [1, 1]} : vector<24x64xf32> to vector<16x64xf32>
    %198 = vector.extract_strided_slice %196 {offsets = [1, 0], sizes = [16, 64], strides = [1, 1]} : vector<24x64xf32> to vector<16x64xf32>
    %199 = vector.extract_strided_slice %196 {offsets = [2, 0], sizes = [16, 64], strides = [1, 1]} : vector<24x64xf32> to vector<16x64xf32>
    %200 = vector.extract_strided_slice %196 {offsets = [3, 0], sizes = [16, 64], strides = [1, 1]} : vector<24x64xf32> to vector<16x64xf32>
    %201 = vector.extract_strided_slice %196 {offsets = [4, 0], sizes = [16, 64], strides = [1, 1]} : vector<24x64xf32> to vector<16x64xf32>
    %202 = vector.extract_strided_slice %196 {offsets = [5, 0], sizes = [16, 64], strides = [1, 1]} : vector<24x64xf32> to vector<16x64xf32>
    %203 = vector.extract_strided_slice %196 {offsets = [6, 0], sizes = [16, 64], strides = [1, 1]} : vector<24x64xf32> to vector<16x64xf32>
    %204 = vector.extract_strided_slice %196 {offsets = [7, 0], sizes = [16, 64], strides = [1, 1]} : vector<24x64xf32> to vector<16x64xf32>
    %205 = vector.extract_strided_slice %196 {offsets = [8, 0], sizes = [16, 64], strides = [1, 1]} : vector<24x64xf32> to vector<16x64xf32>
    %206 = tpu.concatenate %197, %198, %199, %200, %201, %202, %203, %204, %205 in 1 : vector<16x64xf32>, vector<16x64xf32>, vector<16x64xf32>, vector<16x64xf32>, vector<16x64xf32>, vector<16x64xf32>, vector<16x64xf32>, vector<16x64xf32>, vector<16x64xf32> -> vector<16x576xf32>
    %cst_37 = arith.constant dense<0.000000e+00> : vector<16x64xf32>
    %207 = tpu.matmul %206, %115, %cst_37 {dimension_numbers = #tpu.dot_dimension_numbers<[1], [0], [0], [1], [0, 0, 1, 1], [], []>} : vector<16x576xf32>, vector<576x64xf32>, vector<16x64xf32> -> vector<16x64xf32>
    %208 = vector.extract_strided_slice %123 {offsets = [0, 448], sizes = [24, 64], strides = [1, 1]} : vector<24x512xf32> to vector<24x64xf32>
    %209 = vector.extract_strided_slice %208 {offsets = [0, 0], sizes = [16, 64], strides = [1, 1]} : vector<24x64xf32> to vector<16x64xf32>
    %210 = vector.extract_strided_slice %208 {offsets = [1, 0], sizes = [16, 64], strides = [1, 1]} : vector<24x64xf32> to vector<16x64xf32>
    %211 = vector.extract_strided_slice %208 {offsets = [2, 0], sizes = [16, 64], strides = [1, 1]} : vector<24x64xf32> to vector<16x64xf32>
    %212 = vector.extract_strided_slice %208 {offsets = [3, 0], sizes = [16, 64], strides = [1, 1]} : vector<24x64xf32> to vector<16x64xf32>
    %213 = vector.extract_strided_slice %208 {offsets = [4, 0], sizes = [16, 64], strides = [1, 1]} : vector<24x64xf32> to vector<16x64xf32>
    %214 = vector.extract_strided_slice %208 {offsets = [5, 0], sizes = [16, 64], strides = [1, 1]} : vector<24x64xf32> to vector<16x64xf32>
    %215 = vector.extract_strided_slice %208 {offsets = [6, 0], sizes = [16, 64], strides = [1, 1]} : vector<24x64xf32> to vector<16x64xf32>
    %216 = vector.extract_strided_slice %208 {offsets = [7, 0], sizes = [16, 64], strides = [1, 1]} : vector<24x64xf32> to vector<16x64xf32>
    %217 = vector.extract_strided_slice %208 {offsets = [8, 0], sizes = [16, 64], strides = [1, 1]} : vector<24x64xf32> to vector<16x64xf32>
    %218 = tpu.concatenate %209, %210, %211, %212, %213, %214, %215, %216, %217 in 1 : vector<16x64xf32>, vector<16x64xf32>, vector<16x64xf32>, vector<16x64xf32>, vector<16x64xf32>, vector<16x64xf32>, vector<16x64xf32>, vector<16x64xf32>, vector<16x64xf32> -> vector<16x576xf32>
    %cst_38 = arith.constant dense<0.000000e+00> : vector<16x64xf32>
    %219 = tpu.matmul %218, %115, %cst_38 {dimension_numbers = #tpu.dot_dimension_numbers<[1], [0], [0], [1], [0, 0, 1, 1], [], []>} : vector<16x576xf32>, vector<576x64xf32>, vector<16x64xf32> -> vector<16x64xf32>
    %220 = tpu.concatenate %135, %147, %159, %171, %183, %195, %207, %219 in 1 : vector<16x64xf32>, vector<16x64xf32>, vector<16x64xf32>, vector<16x64xf32>, vector<16x64xf32>, vector<16x64xf32>, vector<16x64xf32>, vector<16x64xf32> -> vector<16x512xf32>
    %221 = arith.addf %220, %112 : vector<16x512xf32>
    %222 = vector.broadcast %116 : vector<1x512xf32> to vector<16x512xf32>
    %223 = arith.addf %221, %222 : vector<16x512xf32>
    %cst_39 = arith.constant 0.000000e+00 : f32
    %224 = vector.broadcast %cst_39 : f32 to vector<16x512xf32>
    %225 = arith.maximumf %223, %224 : vector<16x512xf32>
    %c0_40 = arith.constant 0 : index
    %c0_41 = arith.constant 0 : index
    %226 = vector.load %arg10[%c0_40, %c0_41] : memref<512x256xf32, #tpu.memory_space<vmem>>, vector<512x256xf32>
    %c0_42 = arith.constant 0 : index
    %c0_43 = arith.constant 0 : index
    %227 = vector.load %arg11[%c0_42, %c0_43] : memref<1x256xf32, #tpu.memory_space<vmem>>, vector<1x256xf32>
    %c0_44 = arith.constant 0 : index
    %c0_45 = arith.constant 0 : index
    %228 = vector.load %arg12[%c0_44, %c0_45] : memref<288x32xf32, #tpu.memory_space<vmem>>, vector<288x32xf32>
    %c0_46 = arith.constant 0 : index
    %c0_47 = arith.constant 0 : index
    %229 = vector.load %arg13[%c0_46, %c0_47] : memref<1x256xf32, #tpu.memory_space<vmem>>, vector<1x256xf32>
    %c0_48 = arith.constant 0 : index
    %c0_49 = arith.constant 0 : index
    %230 = vector.load %arg14[%c0_48, %c0_49] : memref<512x256xf32, #tpu.memory_space<vmem>>, vector<512x256xf32>
    %cst_50 = arith.constant dense<0.000000e+00> : vector<16x256xf32>
    %231 = tpu.matmul %225, %226, %cst_50 {dimension_numbers = #tpu.dot_dimension_numbers<[1], [0], [0], [1], [0, 0, 1, 1], [], []>} : vector<16x512xf32>, vector<512x256xf32>, vector<16x256xf32> -> vector<16x256xf32>
    %232 = vector.broadcast %227 : vector<1x256xf32> to vector<16x256xf32>
    %233 = arith.addf %231, %232 : vector<16x256xf32>
    %cst_51 = arith.constant 0.000000e+00 : f32
    %234 = vector.broadcast %cst_51 : f32 to vector<16x256xf32>
    %235 = arith.maximumf %233, %234 : vector<16x256xf32>
    %cst_52 = arith.constant 0.000000e+00 : f32
    %236 = vector.broadcast %cst_52 : f32 to vector<4x256xf32>
    %237 = tpu.concatenate %236, %235, %236 in 0 : vector<4x256xf32>, vector<16x256xf32>, vector<4x256xf32> -> vector<24x256xf32>
    %238 = vector.extract_strided_slice %237 {offsets = [0, 0], sizes = [24, 32], strides = [1, 1]} : vector<24x256xf32> to vector<24x32xf32>
    %239 = vector.extract_strided_slice %238 {offsets = [0, 0], sizes = [16, 32], strides = [1, 1]} : vector<24x32xf32> to vector<16x32xf32>
    %240 = vector.extract_strided_slice %238 {offsets = [1, 0], sizes = [16, 32], strides = [1, 1]} : vector<24x32xf32> to vector<16x32xf32>
    %241 = vector.extract_strided_slice %238 {offsets = [2, 0], sizes = [16, 32], strides = [1, 1]} : vector<24x32xf32> to vector<16x32xf32>
    %242 = vector.extract_strided_slice %238 {offsets = [3, 0], sizes = [16, 32], strides = [1, 1]} : vector<24x32xf32> to vector<16x32xf32>
    %243 = vector.extract_strided_slice %238 {offsets = [4, 0], sizes = [16, 32], strides = [1, 1]} : vector<24x32xf32> to vector<16x32xf32>
    %244 = vector.extract_strided_slice %238 {offsets = [5, 0], sizes = [16, 32], strides = [1, 1]} : vector<24x32xf32> to vector<16x32xf32>
    %245 = vector.extract_strided_slice %238 {offsets = [6, 0], sizes = [16, 32], strides = [1, 1]} : vector<24x32xf32> to vector<16x32xf32>
    %246 = vector.extract_strided_slice %238 {offsets = [7, 0], sizes = [16, 32], strides = [1, 1]} : vector<24x32xf32> to vector<16x32xf32>
    %247 = vector.extract_strided_slice %238 {offsets = [8, 0], sizes = [16, 32], strides = [1, 1]} : vector<24x32xf32> to vector<16x32xf32>
    %248 = tpu.concatenate %239, %240, %241, %242, %243, %244, %245, %246, %247 in 1 : vector<16x32xf32>, vector<16x32xf32>, vector<16x32xf32>, vector<16x32xf32>, vector<16x32xf32>, vector<16x32xf32>, vector<16x32xf32>, vector<16x32xf32>, vector<16x32xf32> -> vector<16x288xf32>
    %cst_53 = arith.constant dense<0.000000e+00> : vector<16x32xf32>
    %249 = tpu.matmul %248, %228, %cst_53 {dimension_numbers = #tpu.dot_dimension_numbers<[1], [0], [0], [1], [0, 0, 1, 1], [], []>} : vector<16x288xf32>, vector<288x32xf32>, vector<16x32xf32> -> vector<16x32xf32>
    %250 = vector.extract_strided_slice %237 {offsets = [0, 32], sizes = [24, 32], strides = [1, 1]} : vector<24x256xf32> to vector<24x32xf32>
    %251 = vector.extract_strided_slice %250 {offsets = [0, 0], sizes = [16, 32], strides = [1, 1]} : vector<24x32xf32> to vector<16x32xf32>
    %252 = vector.extract_strided_slice %250 {offsets = [1, 0], sizes = [16, 32], strides = [1, 1]} : vector<24x32xf32> to vector<16x32xf32>
    %253 = vector.extract_strided_slice %250 {offsets = [2, 0], sizes = [16, 32], strides = [1, 1]} : vector<24x32xf32> to vector<16x32xf32>
    %254 = vector.extract_strided_slice %250 {offsets = [3, 0], sizes = [16, 32], strides = [1, 1]} : vector<24x32xf32> to vector<16x32xf32>
    %255 = vector.extract_strided_slice %250 {offsets = [4, 0], sizes = [16, 32], strides = [1, 1]} : vector<24x32xf32> to vector<16x32xf32>
    %256 = vector.extract_strided_slice %250 {offsets = [5, 0], sizes = [16, 32], strides = [1, 1]} : vector<24x32xf32> to vector<16x32xf32>
    %257 = vector.extract_strided_slice %250 {offsets = [6, 0], sizes = [16, 32], strides = [1, 1]} : vector<24x32xf32> to vector<16x32xf32>
    %258 = vector.extract_strided_slice %250 {offsets = [7, 0], sizes = [16, 32], strides = [1, 1]} : vector<24x32xf32> to vector<16x32xf32>
    %259 = vector.extract_strided_slice %250 {offsets = [8, 0], sizes = [16, 32], strides = [1, 1]} : vector<24x32xf32> to vector<16x32xf32>
    %260 = tpu.concatenate %251, %252, %253, %254, %255, %256, %257, %258, %259 in 1 : vector<16x32xf32>, vector<16x32xf32>, vector<16x32xf32>, vector<16x32xf32>, vector<16x32xf32>, vector<16x32xf32>, vector<16x32xf32>, vector<16x32xf32>, vector<16x32xf32> -> vector<16x288xf32>
    %cst_54 = arith.constant dense<0.000000e+00> : vector<16x32xf32>
    %261 = tpu.matmul %260, %228, %cst_54 {dimension_numbers = #tpu.dot_dimension_numbers<[1], [0], [0], [1], [0, 0, 1, 1], [], []>} : vector<16x288xf32>, vector<288x32xf32>, vector<16x32xf32> -> vector<16x32xf32>
    %262 = vector.extract_strided_slice %237 {offsets = [0, 64], sizes = [24, 32], strides = [1, 1]} : vector<24x256xf32> to vector<24x32xf32>
    %263 = vector.extract_strided_slice %262 {offsets = [0, 0], sizes = [16, 32], strides = [1, 1]} : vector<24x32xf32> to vector<16x32xf32>
    %264 = vector.extract_strided_slice %262 {offsets = [1, 0], sizes = [16, 32], strides = [1, 1]} : vector<24x32xf32> to vector<16x32xf32>
    %265 = vector.extract_strided_slice %262 {offsets = [2, 0], sizes = [16, 32], strides = [1, 1]} : vector<24x32xf32> to vector<16x32xf32>
    %266 = vector.extract_strided_slice %262 {offsets = [3, 0], sizes = [16, 32], strides = [1, 1]} : vector<24x32xf32> to vector<16x32xf32>
    %267 = vector.extract_strided_slice %262 {offsets = [4, 0], sizes = [16, 32], strides = [1, 1]} : vector<24x32xf32> to vector<16x32xf32>
    %268 = vector.extract_strided_slice %262 {offsets = [5, 0], sizes = [16, 32], strides = [1, 1]} : vector<24x32xf32> to vector<16x32xf32>
    %269 = vector.extract_strided_slice %262 {offsets = [6, 0], sizes = [16, 32], strides = [1, 1]} : vector<24x32xf32> to vector<16x32xf32>
    %270 = vector.extract_strided_slice %262 {offsets = [7, 0], sizes = [16, 32], strides = [1, 1]} : vector<24x32xf32> to vector<16x32xf32>
    %271 = vector.extract_strided_slice %262 {offsets = [8, 0], sizes = [16, 32], strides = [1, 1]} : vector<24x32xf32> to vector<16x32xf32>
    %272 = tpu.concatenate %263, %264, %265, %266, %267, %268, %269, %270, %271 in 1 : vector<16x32xf32>, vector<16x32xf32>, vector<16x32xf32>, vector<16x32xf32>, vector<16x32xf32>, vector<16x32xf32>, vector<16x32xf32>, vector<16x32xf32>, vector<16x32xf32> -> vector<16x288xf32>
    %cst_55 = arith.constant dense<0.000000e+00> : vector<16x32xf32>
    %273 = tpu.matmul %272, %228, %cst_55 {dimension_numbers = #tpu.dot_dimension_numbers<[1], [0], [0], [1], [0, 0, 1, 1], [], []>} : vector<16x288xf32>, vector<288x32xf32>, vector<16x32xf32> -> vector<16x32xf32>
    %274 = vector.extract_strided_slice %237 {offsets = [0, 96], sizes = [24, 32], strides = [1, 1]} : vector<24x256xf32> to vector<24x32xf32>
    %275 = vector.extract_strided_slice %274 {offsets = [0, 0], sizes = [16, 32], strides = [1, 1]} : vector<24x32xf32> to vector<16x32xf32>
    %276 = vector.extract_strided_slice %274 {offsets = [1, 0], sizes = [16, 32], strides = [1, 1]} : vector<24x32xf32> to vector<16x32xf32>
    %277 = vector.extract_strided_slice %274 {offsets = [2, 0], sizes = [16, 32], strides = [1, 1]} : vector<24x32xf32> to vector<16x32xf32>
    %278 = vector.extract_strided_slice %274 {offsets = [3, 0], sizes = [16, 32], strides = [1, 1]} : vector<24x32xf32> to vector<16x32xf32>
    %279 = vector.extract_strided_slice %274 {offsets = [4, 0], sizes = [16, 32], strides = [1, 1]} : vector<24x32xf32> to vector<16x32xf32>
    %280 = vector.extract_strided_slice %274 {offsets = [5, 0], sizes = [16, 32], strides = [1, 1]} : vector<24x32xf32> to vector<16x32xf32>
    %281 = vector.extract_strided_slice %274 {offsets = [6, 0], sizes = [16, 32], strides = [1, 1]} : vector<24x32xf32> to vector<16x32xf32>
    %282 = vector.extract_strided_slice %274 {offsets = [7, 0], sizes = [16, 32], strides = [1, 1]} : vector<24x32xf32> to vector<16x32xf32>
    %283 = vector.extract_strided_slice %274 {offsets = [8, 0], sizes = [16, 32], strides = [1, 1]} : vector<24x32xf32> to vector<16x32xf32>
    %284 = tpu.concatenate %275, %276, %277, %278, %279, %280, %281, %282, %283 in 1 : vector<16x32xf32>, vector<16x32xf32>, vector<16x32xf32>, vector<16x32xf32>, vector<16x32xf32>, vector<16x32xf32>, vector<16x32xf32>, vector<16x32xf32>, vector<16x32xf32> -> vector<16x288xf32>
    %cst_56 = arith.constant dense<0.000000e+00> : vector<16x32xf32>
    %285 = tpu.matmul %284, %228, %cst_56 {dimension_numbers = #tpu.dot_dimension_numbers<[1], [0], [0], [1], [0, 0, 1, 1], [], []>} : vector<16x288xf32>, vector<288x32xf32>, vector<16x32xf32> -> vector<16x32xf32>
    %286 = vector.extract_strided_slice %237 {offsets = [0, 128], sizes = [24, 32], strides = [1, 1]} : vector<24x256xf32> to vector<24x32xf32>
    %287 = vector.extract_strided_slice %286 {offsets = [0, 0], sizes = [16, 32], strides = [1, 1]} : vector<24x32xf32> to vector<16x32xf32>
    %288 = vector.extract_strided_slice %286 {offsets = [1, 0], sizes = [16, 32], strides = [1, 1]} : vector<24x32xf32> to vector<16x32xf32>
    %289 = vector.extract_strided_slice %286 {offsets = [2, 0], sizes = [16, 32], strides = [1, 1]} : vector<24x32xf32> to vector<16x32xf32>
    %290 = vector.extract_strided_slice %286 {offsets = [3, 0], sizes = [16, 32], strides = [1, 1]} : vector<24x32xf32> to vector<16x32xf32>
    %291 = vector.extract_strided_slice %286 {offsets = [4, 0], sizes = [16, 32], strides = [1, 1]} : vector<24x32xf32> to vector<16x32xf32>
    %292 = vector.extract_strided_slice %286 {offsets = [5, 0], sizes = [16, 32], strides = [1, 1]} : vector<24x32xf32> to vector<16x32xf32>
    %293 = vector.extract_strided_slice %286 {offsets = [6, 0], sizes = [16, 32], strides = [1, 1]} : vector<24x32xf32> to vector<16x32xf32>
    %294 = vector.extract_strided_slice %286 {offsets = [7, 0], sizes = [16, 32], strides = [1, 1]} : vector<24x32xf32> to vector<16x32xf32>
    %295 = vector.extract_strided_slice %286 {offsets = [8, 0], sizes = [16, 32], strides = [1, 1]} : vector<24x32xf32> to vector<16x32xf32>
    %296 = tpu.concatenate %287, %288, %289, %290, %291, %292, %293, %294, %295 in 1 : vector<16x32xf32>, vector<16x32xf32>, vector<16x32xf32>, vector<16x32xf32>, vector<16x32xf32>, vector<16x32xf32>, vector<16x32xf32>, vector<16x32xf32>, vector<16x32xf32> -> vector<16x288xf32>
    %cst_57 = arith.constant dense<0.000000e+00> : vector<16x32xf32>
    %297 = tpu.matmul %296, %228, %cst_57 {dimension_numbers = #tpu.dot_dimension_numbers<[1], [0], [0], [1], [0, 0, 1, 1], [], []>} : vector<16x288xf32>, vector<288x32xf32>, vector<16x32xf32> -> vector<16x32xf32>
    %298 = vector.extract_strided_slice %237 {offsets = [0, 160], sizes = [24, 32], strides = [1, 1]} : vector<24x256xf32> to vector<24x32xf32>
    %299 = vector.extract_strided_slice %298 {offsets = [0, 0], sizes = [16, 32], strides = [1, 1]} : vector<24x32xf32> to vector<16x32xf32>
    %300 = vector.extract_strided_slice %298 {offsets = [1, 0], sizes = [16, 32], strides = [1, 1]} : vector<24x32xf32> to vector<16x32xf32>
    %301 = vector.extract_strided_slice %298 {offsets = [2, 0], sizes = [16, 32], strides = [1, 1]} : vector<24x32xf32> to vector<16x32xf32>
    %302 = vector.extract_strided_slice %298 {offsets = [3, 0], sizes = [16, 32], strides = [1, 1]} : vector<24x32xf32> to vector<16x32xf32>
    %303 = vector.extract_strided_slice %298 {offsets = [4, 0], sizes = [16, 32], strides = [1, 1]} : vector<24x32xf32> to vector<16x32xf32>
    %304 = vector.extract_strided_slice %298 {offsets = [5, 0], sizes = [16, 32], strides = [1, 1]} : vector<24x32xf32> to vector<16x32xf32>
    %305 = vector.extract_strided_slice %298 {offsets = [6, 0], sizes = [16, 32], strides = [1, 1]} : vector<24x32xf32> to vector<16x32xf32>
    %306 = vector.extract_strided_slice %298 {offsets = [7, 0], sizes = [16, 32], strides = [1, 1]} : vector<24x32xf32> to vector<16x32xf32>
    %307 = vector.extract_strided_slice %298 {offsets = [8, 0], sizes = [16, 32], strides = [1, 1]} : vector<24x32xf32> to vector<16x32xf32>
    %308 = tpu.concatenate %299, %300, %301, %302, %303, %304, %305, %306, %307 in 1 : vector<16x32xf32>, vector<16x32xf32>, vector<16x32xf32>, vector<16x32xf32>, vector<16x32xf32>, vector<16x32xf32>, vector<16x32xf32>, vector<16x32xf32>, vector<16x32xf32> -> vector<16x288xf32>
    %cst_58 = arith.constant dense<0.000000e+00> : vector<16x32xf32>
    %309 = tpu.matmul %308, %228, %cst_58 {dimension_numbers = #tpu.dot_dimension_numbers<[1], [0], [0], [1], [0, 0, 1, 1], [], []>} : vector<16x288xf32>, vector<288x32xf32>, vector<16x32xf32> -> vector<16x32xf32>
    %310 = vector.extract_strided_slice %237 {offsets = [0, 192], sizes = [24, 32], strides = [1, 1]} : vector<24x256xf32> to vector<24x32xf32>
    %311 = vector.extract_strided_slice %310 {offsets = [0, 0], sizes = [16, 32], strides = [1, 1]} : vector<24x32xf32> to vector<16x32xf32>
    %312 = vector.extract_strided_slice %310 {offsets = [1, 0], sizes = [16, 32], strides = [1, 1]} : vector<24x32xf32> to vector<16x32xf32>
    %313 = vector.extract_strided_slice %310 {offsets = [2, 0], sizes = [16, 32], strides = [1, 1]} : vector<24x32xf32> to vector<16x32xf32>
    %314 = vector.extract_strided_slice %310 {offsets = [3, 0], sizes = [16, 32], strides = [1, 1]} : vector<24x32xf32> to vector<16x32xf32>
    %315 = vector.extract_strided_slice %310 {offsets = [4, 0], sizes = [16, 32], strides = [1, 1]} : vector<24x32xf32> to vector<16x32xf32>
    %316 = vector.extract_strided_slice %310 {offsets = [5, 0], sizes = [16, 32], strides = [1, 1]} : vector<24x32xf32> to vector<16x32xf32>
    %317 = vector.extract_strided_slice %310 {offsets = [6, 0], sizes = [16, 32], strides = [1, 1]} : vector<24x32xf32> to vector<16x32xf32>
    %318 = vector.extract_strided_slice %310 {offsets = [7, 0], sizes = [16, 32], strides = [1, 1]} : vector<24x32xf32> to vector<16x32xf32>
    %319 = vector.extract_strided_slice %310 {offsets = [8, 0], sizes = [16, 32], strides = [1, 1]} : vector<24x32xf32> to vector<16x32xf32>
    %320 = tpu.concatenate %311, %312, %313, %314, %315, %316, %317, %318, %319 in 1 : vector<16x32xf32>, vector<16x32xf32>, vector<16x32xf32>, vector<16x32xf32>, vector<16x32xf32>, vector<16x32xf32>, vector<16x32xf32>, vector<16x32xf32>, vector<16x32xf32> -> vector<16x288xf32>
    %cst_59 = arith.constant dense<0.000000e+00> : vector<16x32xf32>
    %321 = tpu.matmul %320, %228, %cst_59 {dimension_numbers = #tpu.dot_dimension_numbers<[1], [0], [0], [1], [0, 0, 1, 1], [], []>} : vector<16x288xf32>, vector<288x32xf32>, vector<16x32xf32> -> vector<16x32xf32>
    %322 = vector.extract_strided_slice %237 {offsets = [0, 224], sizes = [24, 32], strides = [1, 1]} : vector<24x256xf32> to vector<24x32xf32>
    %323 = vector.extract_strided_slice %322 {offsets = [0, 0], sizes = [16, 32], strides = [1, 1]} : vector<24x32xf32> to vector<16x32xf32>
    %324 = vector.extract_strided_slice %322 {offsets = [1, 0], sizes = [16, 32], strides = [1, 1]} : vector<24x32xf32> to vector<16x32xf32>
    %325 = vector.extract_strided_slice %322 {offsets = [2, 0], sizes = [16, 32], strides = [1, 1]} : vector<24x32xf32> to vector<16x32xf32>
    %326 = vector.extract_strided_slice %322 {offsets = [3, 0], sizes = [16, 32], strides = [1, 1]} : vector<24x32xf32> to vector<16x32xf32>
    %327 = vector.extract_strided_slice %322 {offsets = [4, 0], sizes = [16, 32], strides = [1, 1]} : vector<24x32xf32> to vector<16x32xf32>
    %328 = vector.extract_strided_slice %322 {offsets = [5, 0], sizes = [16, 32], strides = [1, 1]} : vector<24x32xf32> to vector<16x32xf32>
    %329 = vector.extract_strided_slice %322 {offsets = [6, 0], sizes = [16, 32], strides = [1, 1]} : vector<24x32xf32> to vector<16x32xf32>
    %330 = vector.extract_strided_slice %322 {offsets = [7, 0], sizes = [16, 32], strides = [1, 1]} : vector<24x32xf32> to vector<16x32xf32>
    %331 = vector.extract_strided_slice %322 {offsets = [8, 0], sizes = [16, 32], strides = [1, 1]} : vector<24x32xf32> to vector<16x32xf32>
    %332 = tpu.concatenate %323, %324, %325, %326, %327, %328, %329, %330, %331 in 1 : vector<16x32xf32>, vector<16x32xf32>, vector<16x32xf32>, vector<16x32xf32>, vector<16x32xf32>, vector<16x32xf32>, vector<16x32xf32>, vector<16x32xf32>, vector<16x32xf32> -> vector<16x288xf32>
    %cst_60 = arith.constant dense<0.000000e+00> : vector<16x32xf32>
    %333 = tpu.matmul %332, %228, %cst_60 {dimension_numbers = #tpu.dot_dimension_numbers<[1], [0], [0], [1], [0, 0, 1, 1], [], []>} : vector<16x288xf32>, vector<288x32xf32>, vector<16x32xf32> -> vector<16x32xf32>
    %334 = tpu.concatenate %249, %261, %273, %285, %297, %309, %321, %333 in 1 : vector<16x32xf32>, vector<16x32xf32>, vector<16x32xf32>, vector<16x32xf32>, vector<16x32xf32>, vector<16x32xf32>, vector<16x32xf32>, vector<16x32xf32> -> vector<16x256xf32>
    %cst_61 = arith.constant dense<0.000000e+00> : vector<16x256xf32>
    %335 = tpu.matmul %225, %230, %cst_61 {dimension_numbers = #tpu.dot_dimension_numbers<[1], [0], [0], [1], [0, 0, 1, 1], [], []>} : vector<16x512xf32>, vector<512x256xf32>, vector<16x256xf32> -> vector<16x256xf32>
    %336 = arith.addf %334, %335 : vector<16x256xf32>
    %337 = vector.broadcast %229 : vector<1x256xf32> to vector<16x256xf32>
    %338 = arith.addf %336, %337 : vector<16x256xf32>
    %cst_62 = arith.constant 0.000000e+00 : f32
    %339 = vector.broadcast %cst_62 : f32 to vector<16x256xf32>
    %340 = arith.maximumf %338, %339 : vector<16x256xf32>
    %c0_63 = arith.constant 0 : index
    %c0_64 = arith.constant 0 : index
    %341 = vector.load %arg15[%c0_63, %c0_64] : memref<16x256xf32, #tpu.memory_space<vmem>>, vector<16x256xf32>
    tpu.vector_store %arg15[%c0_63, %c0_64], %340 {strides = array<i32>} : memref<16x256xf32, #tpu.memory_space<vmem>>, vector<16x256xf32>,
    return
  }
  func.func @transform_0(%arg0: i32) -> (i32, i32) {
    %c0_i32 = arith.constant 0 : i32
    %c0_i32_0 = arith.constant 0 : i32
    return %arg0, %c0_i32 : i32, i32
  }
  func.func @transform_1(%arg0: i32) -> (i32, i32) {
    %c0_i32 = arith.constant 0 : i32
    %c0_i32_0 = arith.constant 0 : i32
    %c0_i32_1 = arith.constant 0 : i32
    return %c0_i32, %c0_i32_0 : i32, i32
  }
  func.func @transform_2(%arg0: i32) -> (i32, i32) {
    %c0_i32 = arith.constant 0 : i32
    %c0_i32_0 = arith.constant 0 : i32
    %c0_i32_1 = arith.constant 0 : i32
    return %c0_i32, %c0_i32_0 : i32, i32
  }
  func.func @transform_3(%arg0: i32) -> (i32, i32) {
    %c0_i32 = arith.constant 0 : i32
    %c0_i32_0 = arith.constant 0 : i32
    %c0_i32_1 = arith.constant 0 : i32
    return %c0_i32, %c0_i32_0 : i32, i32
  }
  func.func @transform_4(%arg0: i32) -> (i32, i32) {
    %c0_i32 = arith.constant 0 : i32
    %c0_i32_0 = arith.constant 0 : i32
    %c0_i32_1 = arith.constant 0 : i32
    return %c0_i32, %c0_i32_0 : i32, i32
  }
  func.func @transform_5(%arg0: i32) -> (i32, i32) {
    %c0_i32 = arith.constant 0 : i32
    %c0_i32_0 = arith.constant 0 : i32
    %c0_i32_1 = arith.constant 0 : i32
    return %c0_i32, %c0_i32_0 : i32, i32
  }
  func.func @transform_6(%arg0: i32) -> (i32, i32) {
    %c0_i32 = arith.constant 0 : i32
    %c0_i32_0 = arith.constant 0 : i32
    %c0_i32_1 = arith.constant 0 : i32
    return %c0_i32, %c0_i32_0 : i32, i32
  }
  func.func @transform_7(%arg0: i32) -> (i32, i32) {
    %c0_i32 = arith.constant 0 : i32
    %c0_i32_0 = arith.constant 0 : i32
    %c0_i32_1 = arith.constant 0 : i32
    return %c0_i32, %c0_i32_0 : i32, i32
  }
  func.func @transform_8(%arg0: i32) -> (i32, i32) {
    %c0_i32 = arith.constant 0 : i32
    %c0_i32_0 = arith.constant 0 : i32
    %c0_i32_1 = arith.constant 0 : i32
    return %c0_i32, %c0_i32_0 : i32, i32
  }
  func.func @transform_9(%arg0: i32) -> (i32, i32) {
    %c0_i32 = arith.constant 0 : i32
    %c0_i32_0 = arith.constant 0 : i32
    %c0_i32_1 = arith.constant 0 : i32
    return %c0_i32, %c0_i32_0 : i32, i32
  }
  func.func @transform_10(%arg0: i32) -> (i32, i32) {
    %c0_i32 = arith.constant 0 : i32
    %c0_i32_0 = arith.constant 0 : i32
    %c0_i32_1 = arith.constant 0 : i32
    return %c0_i32, %c0_i32_0 : i32, i32
  }
  func.func @transform_11(%arg0: i32) -> (i32, i32) {
    %c0_i32 = arith.constant 0 : i32
    %c0_i32_0 = arith.constant 0 : i32
    %c0_i32_1 = arith.constant 0 : i32
    return %c0_i32, %c0_i32_0 : i32, i32
  }
  func.func @transform_12(%arg0: i32) -> (i32, i32) {
    %c0_i32 = arith.constant 0 : i32
    %c0_i32_0 = arith.constant 0 : i32
    %c0_i32_1 = arith.constant 0 : i32
    return %c0_i32, %c0_i32_0 : i32, i32
  }
  func.func @transform_13(%arg0: i32) -> (i32, i32) {
    %c0_i32 = arith.constant 0 : i32
    %c0_i32_0 = arith.constant 0 : i32
    %c0_i32_1 = arith.constant 0 : i32
    return %c0_i32, %c0_i32_0 : i32, i32
  }
  func.func @transform_14(%arg0: i32) -> (i32, i32) {
    %c0_i32 = arith.constant 0 : i32
    %c0_i32_0 = arith.constant 0 : i32
    return %arg0, %c0_i32 : i32, i32
  }
}

</mosaic_0001>

<llo_original>
// kernel: _lambda_.1
$region0: #{_lambda_.1}
  #allocation0 [shape = 'u32[]', space=smem, size = 0x4, offset = 0x4, fixed_abs, tag = 'smem constant byte address 0x4 - core index']
  #allocation1 [shape = 'u32[144,128]{1,0:T(1,128)}', space=vmem, size = 0x12000, scoped, tag = 'internal scratch']
  %s0 = inlined_call_operand.vmem [shape: f32[32,32], index: 0, kind: input, shape index: {}]
  %s1 = inlined_call_operand.hbm [shape: f32[32,512], index: 1, kind: input, shape index: {}]
  %s2 = inlined_call_operand.vmem [shape: f32[1,512], index: 2, kind: input, shape index: {}]
  %s3 = inlined_call_operand.hbm [shape: f32[576,64], index: 3, kind: input, shape index: {}]
  %s4 = inlined_call_operand.vmem [shape: f32[1,512], index: 4, kind: input, shape index: {}]
  %s5 = inlined_call_operand.hbm [shape: f32[512,512], index: 5, kind: input, shape index: {}]
  %s6 = inlined_call_operand.vmem [shape: f32[1,512], index: 6, kind: input, shape index: {}]
  %s7 = inlined_call_operand.hbm [shape: f32[576,64], index: 7, kind: input, shape index: {}]
  %s8 = inlined_call_operand.vmem [shape: f32[1,512], index: 8, kind: input, shape index: {}]
  %s9 = inlined_call_operand.hbm [shape: f32[512,256], index: 9, kind: input, shape index: {}]
  %s10 = inlined_call_operand.vmem [shape: f32[1,256], index: 10, kind: input, shape index: {}]
  %s11 = inlined_call_operand.vmem [shape: f32[288,32], index: 11, kind: input, shape index: {}]
  %s12 = inlined_call_operand.vmem [shape: f32[1,256], index: 12, kind: input, shape index: {}]
  %s13 = inlined_call_operand.hbm [shape: f32[512,256], index: 13, kind: input, shape index: {}]
  %s14 = inlined_call_operand.vmem [shape: f32[32,256], index: 14, kind: output, shape index: {}]
  %s15 = sld [smem:[#allocation0]]
  $region113: #{_lambda_.1} parent=0
    _
  %s17 = ssub.s32 1, %s15
  %s18 = scalar_select 0, %s17, %s15
  $region1: #{_lambda_.1} parent=0
    #allocation2 [shape = 'u8[65536]{0}', space=vmem, size = 0x10000, scoped, tag = 'input window, operand 1, single buffered']
    #allocation3 [shape = 's32[2]{0}', space=sflag, size = 0x8, scoped, tag = 'scoped memory for _lambda_.1']
    #allocation4 [shape = 'u8[294912]{0}', space=vmem, size = 0x48000, scoped, tag = 'input window, operand 3, single buffered']
    #allocation5 [shape = 's32[1]{0}', space=sflag, size = 0x4, scoped, tag = 'scoped memory for _lambda_.1']
    #allocation6 [shape = 'u8[1048576]{0}', space=vmem, size = 0x100000, scoped, tag = 'input window, operand 5, single buffered']
    #allocation7 [shape = 'u8[294912]{0}', space=vmem, size = 0x48000, scoped, tag = 'input window, operand 7, single buffered']
    #allocation8 [shape = 's32[1]{0}', space=sflag, size = 0x4, scoped, tag = 'scoped memory for _lambda_.1']
    #allocation9 [shape = 'u8[524288]{0}', space=vmem, size = 0x80000, scoped, tag = 'input window, operand 9, single buffered']
    #allocation10 [shape = 'u8[524288]{0}', space=vmem, size = 0x80000, scoped, tag = 'input window, operand 13, single buffered']
    #allocation11 [shape = 's32[1]{0}', space=sflag, size = 0x4, scoped, tag = 'scoped memory for _lambda_.1']
    %19 = vsyncpa [#allocation3], 0
    %20 = vsyncpa [#allocation5], 0
    %21 = vsyncpa [#allocation8], 0
    %22 = vsyncpa [#allocation11], 0
    loop: start=0, step=1, limit=4
    $region2: #{_lambda_.1} parent=1 // loop_pre_header
      _
    $region3: #{_lambda_.1} parent=1 // loop_header
      %s24 = sphi 0, %s28
      %p25 = scmp.ge.s32.totalorder %s24, 4
      %s34 = sphi 0, %s36
      %s37 = sphi 0, %s34
      %s38 = sphi 0, %s37
      %s54 = sphi 0, %s38
      %s58 = sphi 0, %s58
      %s60 = sphi 0, %s58
      %s61 = sphi 0, %s60
      %s75 = sphi 0, %s61
      %s79 = sphi 0, %s79
      %s81 = sphi 0, %s79
      %s82 = sphi 0, %s81
      %s96 = sphi 0, %s82
      %s100 = sphi 0, %s100
      %s102 = sphi 0, %s100
      %s103 = sphi 0, %s102
      %s117 = sphi 0, %s103
      %s121 = sphi 0, %s121
      %s123 = sphi 0, %s121
      %s124 = sphi 0, %s123
      %s138 = sphi 0, %s124
      %s142 = sphi 0, %s142
      %s144 = sphi 0, %s142
      %s145 = sphi 0, %s144
      %s159 = sphi 0, %s145
      %s163 = sphi 0, %s163
      %s165 = sphi 0, %s163
      %s166 = sphi 0, %s165
      %s180 = sphi 0, %s166
      %s184 = sphi 0, %s184
      %s186 = sphi 0, %s184
      %s187 = sphi 0, %s186
      %s201 = sphi 0, %s187
      %s205 = sphi 0, %s205
      %s207 = sphi 0, %s205
      %s208 = sphi 0, %s207
      %s222 = sphi 0, %s208
      %s226 = sphi 0, %s226
      %s228 = sphi 0, %s226
      %s229 = sphi 0, %s228
      %s243 = sphi 0, %s229
      %s247 = sphi 0, %s247
      %s249 = sphi 0, %s247
      %s250 = sphi 0, %s249
      %s264 = sphi 0, %s250
      %s268 = sphi 0, %s268
      %s270 = sphi 0, %s268
      %s271 = sphi 0, %s270
      %s285 = sphi 0, %s271
      %s289 = sphi 0, %s289
      %s291 = sphi 0, %s289
      %s292 = sphi 0, %s291
      %s306 = sphi 0, %s292
      %s310 = sphi 0, %s310
      %s312 = sphi 0, %s310
      %s313 = sphi 0, %s312
      %s327 = sphi 0, %s313
      %s333 = sphi 0, %s335
      %s336 = sphi 0, %s333
      %s337 = sphi 0, %s336
      %s353 = sphi 0, %s337
    $region4: #{_lambda_.1} parent=1 // loop_header_branch
      %27 = sbr.rel (%p25) target = $region8
    $region5: #{_lambda_.1} parent=1 // loop_body
      %s29 = ssub.s32 %s24, 1
      %s30 = ssub.s32 %s24, 2
      %s31 = sadd.s32 %s24, 1
      %s32 = ssub.s32 %s24, %s31
      %p33 = scmp.eq.s32.totalorder %s32, 0
      %s35 = sadd.s32 %s34, 1
      %s36 = scalar_select %p33, %s34, %s35
      %p39 = pneg %p33
      %p40 = scmp.eq.s32.totalorder %s24, 1
      %p41 = por %p39, %p40
      %p42 = scmp.ne.s32.totalorder %s34, %s37
      %p43 = scmp.eq.s32.totalorder %s24, 0
      %p44 = por %p42, %p43
      %p45 = scmp.ne.s32.totalorder %s34, %s37
      %p46 = scmp.eq.s32.totalorder %s29, 1
      %p47 = por %p45, %p46
      %p48 = scmp.ne.s32.totalorder %s37, %s38
      %p49 = scmp.eq.s32.totalorder %s29, 0
      %p50 = por %p48, %p49
      %p51 = scmp.ne.s32.totalorder %s37, %s38
      %p52 = scmp.eq.s32.totalorder %s30, 1
      %p53 = por %p51, %p52
      %p55 = scmp.ne.s32.totalorder %s38, %s54
      %p56 = scmp.eq.s32.totalorder %s30, 0
      %p57 = por %p55, %p56
      %s59 = sadd.s32 %s58, 1
      %p62 = scmp.eq.s32.totalorder %s24, 1
      %p63 = scmp.ne.s32.totalorder %s58, %s60
      %p64 = scmp.eq.s32.totalorder %s24, 0
      %p65 = por %p63, %p64
      %p66 = scmp.ne.s32.totalorder %s58, %s60
      %p67 = scmp.eq.s32.totalorder %s29, 1
      %p68 = por %p66, %p67
      %p69 = scmp.ne.s32.totalorder %s60, %s61
      %p70 = scmp.eq.s32.totalorder %s29, 0
      %p71 = por %p69, %p70
      %p72 = scmp.ne.s32.totalorder %s60, %s61
      %p73 = scmp.eq.s32.totalorder %s30, 1
      %p74 = por %p72, %p73
      %p76 = scmp.ne.s32.totalorder %s61, %s75
      %p77 = scmp.eq.s32.totalorder %s30, 0
      %p78 = por %p76, %p77
      %s80 = sadd.s32 %s79, 1
      %p83 = scmp.eq.s32.totalorder %s24, 1
      %p84 = scmp.ne.s32.totalorder %s79, %s81
      %p85 = scmp.eq.s32.totalorder %s24, 0
      %p86 = por %p84, %p85
      %p87 = scmp.ne.s32.totalorder %s79, %s81
      %p88 = scmp.eq.s32.totalorder %s29, 1
      %p89 = por %p87, %p88
      %p90 = scmp.ne.s32.totalorder %s81, %s82
      %p91 = scmp.eq.s32.totalorder %s29, 0
      %p92 = por %p90, %p91
      %p93 = scmp.ne.s32.totalorder %s81, %s82
      %p94 = scmp.eq.s32.totalorder %s30, 1
      %p95 = por %p93, %p94
      %p97 = scmp.ne.s32.totalorder %s82, %s96
      %p98 = scmp.eq.s32.totalorder %s30, 0
      %p99 = por %p97, %p98
      %s101 = sadd.s32 %s100, 1
      %p104 = scmp.eq.s32.totalorder %s24, 1
      %p105 = scmp.ne.s32.totalorder %s100, %s102
      %p106 = scmp.eq.s32.totalorder %s24, 0
      %p107 = por %p105, %p106
      %p108 = scmp.ne.s32.totalorder %s100, %s102
      %p109 = scmp.eq.s32.totalorder %s29, 1
      %p110 = por %p108, %p109
      %p111 = scmp.ne.s32.totalorder %s102, %s103
      %p112 = scmp.eq.s32.totalorder %s29, 0
      %p113 = por %p111, %p112
      %p114 = scmp.ne.s32.totalorder %s102, %s103
      %p115 = scmp.eq.s32.totalorder %s30, 1
      %p116 = por %p114, %p115
      %p118 = scmp.ne.s32.totalorder %s103, %s117
      %p119 = scmp.eq.s32.totalorder %s30, 0
      %p120 = por %p118, %p119
      %s122 = sadd.s32 %s121, 1
      %p125 = scmp.eq.s32.totalorder %s24, 1
      %p126 = scmp.ne.s32.totalorder %s121, %s123
      %p127 = scmp.eq.s32.totalorder %s24, 0
      %p128 = por %p126, %p127
      %p129 = scmp.ne.s32.totalorder %s121, %s123
      %p130 = scmp.eq.s32.totalorder %s29, 1
      %p131 = por %p129, %p130
      %p132 = scmp.ne.s32.totalorder %s123, %s124
      %p133 = scmp.eq.s32.totalorder %s29, 0
      %p134 = por %p132, %p133
      %p135 = scmp.ne.s32.totalorder %s123, %s124
      %p136 = scmp.eq.s32.totalorder %s30, 1
      %p137 = por %p135, %p136
      %p139 = scmp.ne.s32.totalorder %s124, %s138
      %p140 = scmp.eq.s32.totalorder %s30, 0
      %p141 = por %p139, %p140
      %s143 = sadd.s32 %s142, 1
      %p146 = scmp.eq.s32.totalorder %s24, 1
      %p147 = scmp.ne.s32.totalorder %s142, %s144
      %p148 = scmp.eq.s32.totalorder %s24, 0
      %p149 = por %p147, %p148
      %p150 = scmp.ne.s32.totalorder %s142, %s144
      %p151 = scmp.eq.s32.totalorder %s29, 1
      %p152 = por %p150, %p151
      %p153 = scmp.ne.s32.totalorder %s144, %s145
      %p154 = scmp.eq.s32.totalorder %s29, 0
      %p155 = por %p153, %p154
      %p156 = scmp.ne.s32.totalorder %s144, %s145
      %p157 = scmp.eq.s32.totalorder %s30, 1
      %p158 = por %p156, %p157
      %p160 = scmp.ne.s32.totalorder %s145, %s159
      %p161 = scmp.eq.s32.totalorder %s30, 0
      %p162 = por %p160, %p161
      %s164 = sadd.s32 %s163, 1
      %p167 = scmp.eq.s32.totalorder %s24, 1
      %p168 = scmp.ne.s32.totalorder %s163, %s165
      %p169 = scmp.eq.s32.totalorder %s24, 0
      %p170 = por %p168, %p169
      %p171 = scmp.ne.s32.totalorder %s163, %s165
      %p172 = scmp.eq.s32.totalorder %s29, 1
      %p173 = por %p171, %p172
      %p174 = scmp.ne.s32.totalorder %s165, %s166
      %p175 = scmp.eq.s32.totalorder %s29, 0
      %p176 = por %p174, %p175
      %p177 = scmp.ne.s32.totalorder %s165, %s166
      %p178 = scmp.eq.s32.totalorder %s30, 1
      %p179 = por %p177, %p178
      %p181 = scmp.ne.s32.totalorder %s166, %s180
      %p182 = scmp.eq.s32.totalorder %s30, 0
      %p183 = por %p181, %p182
      %s185 = sadd.s32 %s184, 1
      %p188 = scmp.eq.s32.totalorder %s24, 1
      %p189 = scmp.ne.s32.totalorder %s184, %s186
      %p190 = scmp.eq.s32.totalorder %s24, 0
      %p191 = por %p189, %p190
      %p192 = scmp.ne.s32.totalorder %s184, %s186
      %p193 = scmp.eq.s32.totalorder %s29, 1
      %p194 = por %p192, %p193
      %p195 = scmp.ne.s32.totalorder %s186, %s187
      %p196 = scmp.eq.s32.totalorder %s29, 0
      %p197 = por %p195, %p196
      %p198 = scmp.ne.s32.totalorder %s186, %s187
      %p199 = scmp.eq.s32.totalorder %s30, 1
      %p200 = por %p198, %p199
      %p202 = scmp.ne.s32.totalorder %s187, %s201
      %p203 = scmp.eq.s32.totalorder %s30, 0
      %p204 = por %p202, %p203
      %s206 = sadd.s32 %s205, 1
      %p209 = scmp.eq.s32.totalorder %s24, 1
      %p210 = scmp.ne.s32.totalorder %s205, %s207
      %p211 = scmp.eq.s32.totalorder %s24, 0
      %p212 = por %p210, %p211
      %p213 = scmp.ne.s32.totalorder %s205, %s207
      %p214 = scmp.eq.s32.totalorder %s29, 1
      %p215 = por %p213, %p214
      %p216 = scmp.ne.s32.totalorder %s207, %s208
      %p217 = scmp.eq.s32.totalorder %s29, 0
      %p218 = por %p216, %p217
      %p219 = scmp.ne.s32.totalorder %s207, %s208
      %p220 = scmp.eq.s32.totalorder %s30, 1
      %p221 = por %p219, %p220
      %p223 = scmp.ne.s32.totalorder %s208, %s222
      %p224 = scmp.eq.s32.totalorder %s30, 0
      %p225 = por %p223, %p224
      %s227 = sadd.s32 %s226, 1
      %p230 = scmp.eq.s32.totalorder %s24, 1
      %p231 = scmp.ne.s32.totalorder %s226, %s228
      %p232 = scmp.eq.s32.totalorder %s24, 0
      %p233 = por %p231, %p232
      %p234 = scmp.ne.s32.totalorder %s226, %s228
      %p235 = scmp.eq.s32.totalorder %s29, 1
      %p236 = por %p234, %p235
      %p237 = scmp.ne.s32.totalorder %s228, %s229
      %p238 = scmp.eq.s32.totalorder %s29, 0
      %p239 = por %p237, %p238
      %p240 = scmp.ne.s32.totalorder %s228, %s229
      %p241 = scmp.eq.s32.totalorder %s30, 1
      %p242 = por %p240, %p241
      %p244 = scmp.ne.s32.totalorder %s229, %s243
      %p245 = scmp.eq.s32.totalorder %s30, 0
      %p246 = por %p244, %p245
      %s248 = sadd.s32 %s247, 1
      %p251 = scmp.eq.s32.totalorder %s24, 1
      %p252 = scmp.ne.s32.totalorder %s247, %s249
      %p253 = scmp.eq.s32.totalorder %s24, 0
      %p254 = por %p252, %p253
      %p255 = scmp.ne.s32.totalorder %s247, %s249
      %p256 = scmp.eq.s32.totalorder %s29, 1
      %p257 = por %p255, %p256
      %p258 = scmp.ne.s32.totalorder %s249, %s250
      %p259 = scmp.eq.s32.totalorder %s29, 0
      %p260 = por %p258, %p259
      %p261 = scmp.ne.s32.totalorder %s249, %s250
      %p262 = scmp.eq.s32.totalorder %s30, 1
      %p263 = por %p261, %p262
      %p265 = scmp.ne.s32.totalorder %s250, %s264
      %p266 = scmp.eq.s32.totalorder %s30, 0
      %p267 = por %p265, %p266
      %s269 = sadd.s32 %s268, 1
      %p272 = scmp.eq.s32.totalorder %s24, 1
      %p273 = scmp.ne.s32.totalorder %s268, %s270
      %p274 = scmp.eq.s32.totalorder %s24, 0
      %p275 = por %p273, %p274
      %p276 = scmp.ne.s32.totalorder %s268, %s270
      %p277 = scmp.eq.s32.totalorder %s29, 1
      %p278 = por %p276, %p277
      %p279 = scmp.ne.s32.totalorder %s270, %s271
      %p280 = scmp.eq.s32.totalorder %s29, 0
      %p281 = por %p279, %p280
      %p282 = scmp.ne.s32.totalorder %s270, %s271
      %p283 = scmp.eq.s32.totalorder %s30, 1
      %p284 = por %p282, %p283
      %p286 = scmp.ne.s32.totalorder %s271, %s285
      %p287 = scmp.eq.s32.totalorder %s30, 0
      %p288 = por %p286, %p287
      %s290 = sadd.s32 %s289, 1
      %p293 = scmp.eq.s32.totalorder %s24, 1
      %p294 = scmp.ne.s32.totalorder %s289, %s291
      %p295 = scmp.eq.s32.totalorder %s24, 0
      %p296 = por %p294, %p295
      %p297 = scmp.ne.s32.totalorder %s289, %s291
      %p298 = scmp.eq.s32.totalorder %s29, 1
      %p299 = por %p297, %p298
      %p300 = scmp.ne.s32.totalorder %s291, %s292
      %p301 = scmp.eq.s32.totalorder %s29, 0
      %p302 = por %p300, %p301
      %p303 = scmp.ne.s32.totalorder %s291, %s292
      %p304 = scmp.eq.s32.totalorder %s30, 1
      %p305 = por %p303, %p304
      %p307 = scmp.ne.s32.totalorder %s292, %s306
      %p308 = scmp.eq.s32.totalorder %s30, 0
      %p309 = por %p307, %p308
      %s311 = sadd.s32 %s310, 1
      %p314 = scmp.eq.s32.totalorder %s24, 1
      %p315 = scmp.ne.s32.totalorder %s310, %s312
      %p316 = scmp.eq.s32.totalorder %s24, 0
      %p317 = por %p315, %p316
      %p318 = scmp.ne.s32.totalorder %s310, %s312
      %p319 = scmp.eq.s32.totalorder %s29, 1
      %p320 = por %p318, %p319
      %p321 = scmp.ne.s32.totalorder %s312, %s313
      %p322 = scmp.eq.s32.totalorder %s29, 0
      %p323 = por %p321, %p322
      %p324 = scmp.ne.s32.totalorder %s312, %s313
      %p325 = scmp.eq.s32.totalorder %s30, 1
      %p326 = por %p324, %p325
      %p328 = scmp.ne.s32.totalorder %s313, %s327
      %p329 = scmp.eq.s32.totalorder %s30, 0
      %p330 = por %p328, %p329
      %s331 = ssub.s32 %s24, %s31
      %p332 = scmp.eq.s32.totalorder %s331, 0
      %s334 = sadd.s32 %s333, 1
      %s335 = scalar_select %p332, %s333, %s334
      %p338 = pneg %p332
      %p339 = scmp.eq.s32.totalorder %s24, 1
      %p340 = por %p338, %p339
      %p341 = scmp.ne.s32.totalorder %s333, %s336
      %p342 = scmp.eq.s32.totalorder %s24, 0
      %p343 = por %p341, %p342
      %p344 = scmp.ne.s32.totalorder %s333, %s336
      %p345 = scmp.eq.s32.totalorder %s29, 1
      %p346 = por %p344, %p345
      %p347 = scmp.ne.s32.totalorder %s336, %s337
      %p348 = scmp.eq.s32.totalorder %s29, 0
      %p349 = por %p347, %p348
      %p350 = scmp.ne.s32.totalorder %s336, %s337
      %p351 = scmp.eq.s32.totalorder %s30, 1
      %p352 = por %p350, %p351
      %p354 = scmp.ne.s32.totalorder %s337, %s353
      %p355 = scmp.eq.s32.totalorder %s30, 0
      %p356 = por %p354, %p355
      %p357 = scmp.le.s32.totalorder 1, %s24
      %p358 = scmp.lt.s32.totalorder %s24, 3
      %p359 = pnand %p357, %p358
      %p360 = pneg %p359
      // Predicated region
      $region9: #{_lambda_.1} parent=5 // pred_check
        _
      $region10: #{_lambda_.1} parent=5 // pred_check_branch
        %362 = sbr.rel (%p359) target = $region12
      $region11: #{_lambda_.1} parent=5 // pred_region
        %s363 = ssub.s32 %s24, 1
        // Predicated region
        $region13: #{_lambda_.1} parent=11 // pred_check
          %p364 = pneg %p71
        $region14: #{_lambda_.1} parent=11 // pred_check_branch
          %366 = sbr.rel (%p364) target = $region16
        $region15: #{_lambda_.1} parent=11 // pred_region
          %s368 = ssub.s32 2048, 2048
          %369 = vsyncadd [#allocation3], %s368
          %s370 = sshll.u32 [#allocation2], 4
          %s371 = int_to_ptr.vmem [resolvable:$true] %s370
          %376 = dma.hbm_to_vmem [thread:$0]  %s1, 2048, %s371, [#allocation3], 512, 512, 32
        $region16: #{_lambda_.1} parent=11 // pred_fallthru
          _
        // Predicated region
        $region17: #{_lambda_.1} parent=11 // pred_check
          %p377 = pneg %p92
        $region18: #{_lambda_.1} parent=11 // pred_check_branch
          %379 = sbr.rel (%p377) target = $region20
        $region19: #{_lambda_.1} parent=11 // pred_region
          _
        $region20: #{_lambda_.1} parent=11 // pred_fallthru
          _
        // Predicated region
        $region21: #{_lambda_.1} parent=11 // pred_check
          %p380 = pneg %p113
        $region22: #{_lambda_.1} parent=11 // pred_check_branch
          %382 = sbr.rel (%p380) target = $region24
        $region23: #{_lambda_.1} parent=11 // pred_region
          %s384 = ssub.s32 9216, 9216
          %385 = vsyncadd [#allocation5], %s384
          %s386 = sshll.u32 [#allocation4], 4
          %s387 = int_to_ptr.vmem [resolvable:$true] %s386
          %392 = dma.hbm_to_vmem [thread:$0]  %s3, 9216, %s387, [#allocation5], 128, 128, 8
        $region24: #{_lambda_.1} parent=11 // pred_fallthru
          _
        // Predicated region
        $region25: #{_lambda_.1} parent=11 // pred_check
          %p393 = pneg %p134
        $region26: #{_lambda_.1} parent=11 // pred_check_branch
          %395 = sbr.rel (%p393) target = $region28
        $region27: #{_lambda_.1} parent=11 // pred_region
          _
        $region28: #{_lambda_.1} parent=11 // pred_fallthru
          _
        // Predicated region
        $region29: #{_lambda_.1} parent=11 // pred_check
          %p396 = pneg %p155
        $region30: #{_lambda_.1} parent=11 // pred_check_branch
          %398 = sbr.rel (%p396) target = $region32
        $region31: #{_lambda_.1} parent=11 // pred_region
          %s400 = ssub.s32 32768, 32768
          %401 = vsyncadd [#allocation5], %s400
          %s402 = sshll.u32 [#allocation6], 4
          %s403 = int_to_ptr.vmem [resolvable:$true] %s402
          %408 = dma.hbm_to_vmem [thread:$0]  %s5, 32768, %s403, [#allocation5], 512, 512, 32
        $region32: #{_lambda_.1} parent=11 // pred_fallthru
          _
        // Predicated region
        $region33: #{_lambda_.1} parent=11 // pred_check
          %p409 = pneg %p176
        $region34: #{_lambda_.1} parent=11 // pred_check_branch
          %411 = sbr.rel (%p409) target = $region36
        $region35: #{_lambda_.1} parent=11 // pred_region
          _
        $region36: #{_lambda_.1} parent=11 // pred_fallthru
          _
        // Predicated region
        $region37: #{_lambda_.1} parent=11 // pred_check
          %p412 = pneg %p197
        $region38: #{_lambda_.1} parent=11 // pred_check_branch
          %414 = sbr.rel (%p412) target = $region40
        $region39: #{_lambda_.1} parent=11 // pred_region
          %s416 = ssub.s32 9216, 9216
          %417 = vsyncadd [#allocation8], %s416
          %s418 = sshll.u32 [#allocation7], 4
          %s419 = int_to_ptr.vmem [resolvable:$true] %s418
          %424 = dma.hbm_to_vmem [thread:$0]  %s7, 9216, %s419, [#allocation8], 128, 128, 8
        $region40: #{_lambda_.1} parent=11 // pred_fallthru
          _
        // Predicated region
        $region41: #{_lambda_.1} parent=11 // pred_check
          %p425 = pneg %p218
        $region42: #{_lambda_.1} parent=11 // pred_check_branch
          %427 = sbr.rel (%p425) target = $region44
        $region43: #{_lambda_.1} parent=11 // pred_region
          _
        $region44: #{_lambda_.1} parent=11 // pred_fallthru
          _
        // Predicated region
        $region45: #{_lambda_.1} parent=11 // pred_check
          %p428 = pneg %p239
        $region46: #{_lambda_.1} parent=11 // pred_check_branch
          %430 = sbr.rel (%p428) target = $region48
        $region47: #{_lambda_.1} parent=11 // pred_region
          %s432 = ssub.s32 16384, 16384
          %433 = vsyncadd [#allocation8], %s432
          %s434 = sshll.u32 [#allocation9], 4
          %s435 = int_to_ptr.vmem [resolvable:$true] %s434
          %440 = dma.hbm_to_vmem [thread:$0]  %s9, 16384, %s435, [#allocation8], 256, 256, 16
        $region48: #{_lambda_.1} parent=11 // pred_fallthru
          _
        // Predicated region
        $region49: #{_lambda_.1} parent=11 // pred_check
          %p441 = pneg %p260
        $region50: #{_lambda_.1} parent=11 // pred_check_branch
          %443 = sbr.rel (%p441) target = $region52
        $region51: #{_lambda_.1} parent=11 // pred_region
          _
        $region52: #{_lambda_.1} parent=11 // pred_fallthru
          _
        // Predicated region
        $region53: #{_lambda_.1} parent=11 // pred_check
          %p444 = pneg %p281
        $region54: #{_lambda_.1} parent=11 // pred_check_branch
          %446 = sbr.rel (%p444) target = $region56
        $region55: #{_lambda_.1} parent=11 // pred_region
          _
        $region56: #{_lambda_.1} parent=11 // pred_fallthru
          _
        // Predicated region
        $region57: #{_lambda_.1} parent=11 // pred_check
          %p447 = pneg %p302
        $region58: #{_lambda_.1} parent=11 // pred_check_branch
          %449 = sbr.rel (%p447) target = $region60
        $region59: #{_lambda_.1} parent=11 // pred_region
          _
        $region60: #{_lambda_.1} parent=11 // pred_fallthru
          _
        // Predicated region
        $region61: #{_lambda_.1} parent=11 // pred_check
          %p450 = pneg %p323
        $region62: #{_lambda_.1} parent=11 // pred_check_branch
          %452 = sbr.rel (%p450) target = $region64
        $region63: #{_lambda_.1} parent=11 // pred_region
          %s454 = ssub.s32 16384, 16384
          %455 = vsyncadd [#allocation11], %s454
          %s456 = sshll.u32 [#allocation10], 4
          %s457 = int_to_ptr.vmem [resolvable:$true] %s456
          %462 = dma.hbm_to_vmem [thread:$0]  %s13, 16384, %s457, [#allocation11], 256, 256, 16
        $region64: #{_lambda_.1} parent=11 // pred_fallthru
          _
      $region12: #{_lambda_.1} parent=5 // pred_fallthru
        _
      %p463 = scmp.lt.s32.totalorder %s24, 2
      // Predicated region
      $region65: #{_lambda_.1} parent=5 // pred_check
        %p464 = pneg %p463
      $region66: #{_lambda_.1} parent=5 // pred_check_branch
        %466 = sbr.rel (%p464) target = $region68
      $region67: #{_lambda_.1} parent=5 // pred_region
        // Predicated region
        $region69: #{_lambda_.1} parent=67 // pred_check
          %p467 = pneg %p44
        $region70: #{_lambda_.1} parent=67 // pred_check_branch
          %469 = sbr.rel (%p467) target = $region72
        $region71: #{_lambda_.1} parent=67 // pred_region
          %s470 = smul.u32 2, %s24
          %p471 = scmp.lt.s32.totalorder %s470, 3
          %s472 = scalar_select %p471, %s470, 3
          %s473 = smul.addr %s472, 8
          %s474 = scalar_lea.vmem %s0, %s473
          %s475 = smul.u32 2, %s24
        $region72: #{_lambda_.1} parent=67 // pred_fallthru
          _
      $region68: #{_lambda_.1} parent=5 // pred_fallthru
        _
      %p476 = scmp.le.s32.totalorder 1, %s24
      %p477 = scmp.lt.s32.totalorder %s24, 3
      %p478 = pnand %p476, %p477
      %p479 = pneg %p478
      // Predicated region
      $region73: #{_lambda_.1} parent=5 // pred_check
        _
      $region74: #{_lambda_.1} parent=5 // pred_check_branch
        %481 = sbr.rel (%p478) target = $region76
      $region75: #{_lambda_.1} parent=5 // pred_region
        %s482 = ssub.s32 %s24, 1
        // Predicated region
        $region77: #{_lambda_.1} parent=75 // pred_check
          %p483 = pneg %p71
        $region78: #{_lambda_.1} parent=75 // pred_check_branch
          %485 = sbr.rel (%p483) target = $region80
        $region79: #{_lambda_.1} parent=75 // pred_region
          %486 = dma.done [#allocation3], 2048
        $region80: #{_lambda_.1} parent=75 // pred_fallthru
          _
        // Predicated region
        $region81: #{_lambda_.1} parent=75 // pred_check
          %p487 = pneg %p113
        $region82: #{_lambda_.1} parent=75 // pred_check_branch
          %489 = sbr.rel (%p487) target = $region84
        $region83: #{_lambda_.1} parent=75 // pred_region
          %490 = dma.done [#allocation5], 9216
        $region84: #{_lambda_.1} parent=75 // pred_fallthru
          _
        // Predicated region
        $region85: #{_lambda_.1} parent=75 // pred_check
          %p491 = pneg %p155
        $region86: #{_lambda_.1} parent=75 // pred_check_branch
          %493 = sbr.rel (%p491) target = $region88
        $region87: #{_lambda_.1} parent=75 // pred_region
          %494 = dma.done [#allocation5], 32768
        $region88: #{_lambda_.1} parent=75 // pred_fallthru
          _
        // Predicated region
        $region89: #{_lambda_.1} parent=75 // pred_check
          %p495 = pneg %p197
        $region90: #{_lambda_.1} parent=75 // pred_check_branch
          %497 = sbr.rel (%p495) target = $region92
        $region91: #{_lambda_.1} parent=75 // pred_region
          %498 = dma.done [#allocation8], 9216
        $region92: #{_lambda_.1} parent=75 // pred_fallthru
          _
        // Predicated region
        $region93: #{_lambda_.1} parent=75 // pred_check
          %p499 = pneg %p239
        $region94: #{_lambda_.1} parent=75 // pred_check_branch
          %501 = sbr.rel (%p499) target = $region96
        $region95: #{_lambda_.1} parent=75 // pred_region
          %502 = dma.done [#allocation8], 16384
        $region96: #{_lambda_.1} parent=75 // pred_fallthru
          _
        // Predicated region
        $region97: #{_lambda_.1} parent=75 // pred_check
          %p503 = pneg %p323
        $region98: #{_lambda_.1} parent=75 // pred_check_branch
          %505 = sbr.rel (%p503) target = $region100
        $region99: #{_lambda_.1} parent=75 // pred_region
          %506 = dma.done [#allocation11], 16384
        $region100: #{_lambda_.1} parent=75 // pred_fallthru
          _
        %s507 = smul.u32 2, %s29
        %p508 = scmp.lt.s32.totalorder %s507, 3
        %s509 = scalar_select %p508, %s507, 3
        %s510 = smul.addr %s509, 8
        %s511 = scalar_lea.vmem %s0, %s510
        %p512 = pneg %p50
        %p513 = pneg %p47
        %p514 = pneg %p71
        %p515 = pneg %p68
        %p516 = pneg %p92
        %p517 = pneg %p89
        %p518 = pneg %p113
        %p519 = pneg %p110
        %p520 = pneg %p134
        %p521 = pneg %p131
        %p522 = pneg %p155
        %p523 = pneg %p152
        %p524 = pneg %p176
        %p525 = pneg %p173
        %p526 = pneg %p197
        %p527 = pneg %p194
        %p528 = pneg %p218
        %p529 = pneg %p215
        %p530 = pneg %p239
        %p531 = pneg %p236
        %p532 = pneg %p260
        %p533 = pneg %p257
        %p534 = pneg %p281
        %p535 = pneg %p278
        %p536 = pneg %p302
        %p537 = pneg %p299
        %p538 = pneg %p323
        %p539 = pneg %p320
        %p540 = pneg %p349
        %p541 = pneg %p346
        %s542 = smul.u32 2, %s29
        %p543 = scmp.lt.s32.totalorder %s542, 3
        %s544 = scalar_select %p543, %s542, 3
        %s545 = smul.addr %s544, 2
        %s546 = smul.addr %s545, 8
        %s547 = scalar_lea.vmem %s14, %s546
        %s548 = smul.u32 2, %s29
        %p549 = scmp.lt.s32.totalorder %s548, 3
        %s550 = scalar_select %p549, %s548, 3
        %s551 = smul.addr %s550, 8
        %s552 = scalar_lea.vmem %s0, %s551
        %s553 = smul.u32 2, %s29
        %s554 = smul.u32 2, %s29
        %p555 = scmp.lt.s32.totalorder %s554, 3
        %s556 = scalar_select %p555, %s554, 3
        %s557 = smul.addr %s556, 2
        %s558 = smul.addr %s557, 8
        %s559 = scalar_lea.vmem %s14, %s558
        %s560 = smul.u32 2, %s29
        %v561 = vld [vmem:[%s552] sm:$0xff]
        %v562 = vld [vmem:[%s552 + $0x8] sm:$0xff]
        %v563 = vld [vmem:[#allocation2] sm:$0xff]
        %v564 = vld [vmem:[#allocation2 + $0x8] sm:$0xff]
        %v565 = vld [vmem:[#allocation2 + $0x10] sm:$0xff]
        %v566 = vld [vmem:[#allocation2 + $0x18] sm:$0xff]
        %v567 = vld [vmem:[#allocation2 + $0x20] sm:$0xff]
        %v568 = vld [vmem:[#allocation2 + $0x28] sm:$0xff]
        %v569 = vld [vmem:[#allocation2 + $0x30] sm:$0xff]
        %v570 = vld [vmem:[#allocation2 + $0x38] sm:$0xff]
        %v571 = vld [vmem:[#allocation2 + $0x40] sm:$0xff]
        %v572 = vld [vmem:[#allocation2 + $0x48] sm:$0xff]
        %v573 = vld [vmem:[#allocation2 + $0x50] sm:$0xff]
        %v574 = vld [vmem:[#allocation2 + $0x58] sm:$0xff]
        %v575 = vld [vmem:[#allocation2 + $0x60] sm:$0xff]
        %v576 = vld [vmem:[#allocation2 + $0x68] sm:$0xff]
        %v577 = vld [vmem:[#allocation2 + $0x70] sm:$0xff]
        %v578 = vld [vmem:[#allocation2 + $0x78] sm:$0xff]
        %v579 = vld [vmem:[%s2] sm:$0xf]
        %v580 = vld [vmem:[#allocation4] sm:$0xff]
        %v581 = vld [vmem:[#allocation4 + $0x8] sm:$0xff]
        %v582 = vld [vmem:[#allocation4 + $0x10] sm:$0xff]
        %v583 = vld [vmem:[#allocation4 + $0x18] sm:$0xff]
        %v584 = vld [vmem:[#allocation4 + $0x20] sm:$0xff]
        %v585 = vld [vmem:[#allocation4 + $0x28] sm:$0xff]
        %v586 = vld [vmem:[#allocation4 + $0x30] sm:$0xff]
        %v587 = vld [vmem:[#allocation4 + $0x38] sm:$0xff]
        %v588 = vld [vmem:[#allocation4 + $0x40] sm:$0xff]
        %v589 = vld [vmem:[#allocation4 + $0x48] sm:$0xff]
        %v590 = vld [vmem:[#allocation4 + $0x50] sm:$0xff]
        %v591 = vld [vmem:[#allocation4 + $0x58] sm:$0xff]
        %v592 = vld [vmem:[#allocation4 + $0x60] sm:$0xff]
        %v593 = vld [vmem:[#allocation4 + $0x68] sm:$0xff]
        %v594 = vld [vmem:[#allocation4 + $0x70] sm:$0xff]
        %v595 = vld [vmem:[#allocation4 + $0x78] sm:$0xff]
        %v596 = vld [vmem:[#allocation4 + $0x80] sm:$0xff]
        %v597 = vld [vmem:[#allocation4 + $0x88] sm:$0xff]
        %v598 = vld [vmem:[#allocation4 + $0x90] sm:$0xff]
        %v599 = vld [vmem:[#allocation4 + $0x98] sm:$0xff]
        %v600 = vld [vmem:[#allocation4 + $0xa0] sm:$0xff]
        %v601 = vld [vmem:[#allocation4 + $0xa8] sm:$0xff]
        %v602 = vld [vmem:[#allocation4 + $0xb0] sm:$0xff]
        %v603 = vld [vmem:[#allocation4 + $0xb8] sm:$0xff]
        %v604 = vld [vmem:[#allocation4 + $0xc0] sm:$0xff]
        %v605 = vld [vmem:[#allocation4 + $0xc8] sm:$0xff]
        %v606 = vld [vmem:[#allocation4 + $0xd0] sm:$0xff]
        %v607 = vld [vmem:[#allocation4 + $0xd8] sm:$0xff]
        %v608 = vld [vmem:[#allocation4 + $0xe0] sm:$0xff]
        %v609 = vld [vmem:[#allocation4 + $0xe8] sm:$0xff]
        %v610 = vld [vmem:[#allocation4 + $0xf0] sm:$0xff]
        %v611 = vld [vmem:[#allocation4 + $0xf8] sm:$0xff]
        %v612 = vld [vmem:[#allocation4 + $0x100] sm:$0xff]
        %v613 = vld [vmem:[#allocation4 + $0x108] sm:$0xff]
        %v614 = vld [vmem:[#allocation4 + $0x110] sm:$0xff]
        %v615 = vld [vmem:[#allocation4 + $0x118] sm:$0xff]
        %v616 = vld [vmem:[#allocation4 + $0x120] sm:$0xff]
        %v617 = vld [vmem:[#allocation4 + $0x128] sm:$0xff]
        %v618 = vld [vmem:[#allocation4 + $0x130] sm:$0xff]
        %v619 = vld [vmem:[#allocation4 + $0x138] sm:$0xff]
        %v620 = vld [vmem:[#allocation4 + $0x140] sm:$0xff]
        %v621 = vld [vmem:[#allocation4 + $0x148] sm:$0xff]
        %v622 = vld [vmem:[#allocation4 + $0x150] sm:$0xff]
        %v623 = vld [vmem:[#allocation4 + $0x158] sm:$0xff]
        %v624 = vld [vmem:[#allocation4 + $0x160] sm:$0xff]
        %v625 = vld [vmem:[#allocation4 + $0x168] sm:$0xff]
        %v626 = vld [vmem:[#allocation4 + $0x170] sm:$0xff]
        %v627 = vld [vmem:[#allocation4 + $0x178] sm:$0xff]
        %v628 = vld [vmem:[#allocation4 + $0x180] sm:$0xff]
        %v629 = vld [vmem:[#allocation4 + $0x188] sm:$0xff]
        %v630 = vld [vmem:[#allocation4 + $0x190] sm:$0xff]
        %v631 = vld [vmem:[#allocation4 + $0x198] sm:$0xff]
        %v632 = vld [vmem:[#allocation4 + $0x1a0] sm:$0xff]
        %v633 = vld [vmem:[#allocation4 + $0x1a8] sm:$0xff]
        %v634 = vld [vmem:[#allocation4 + $0x1b0] sm:$0xff]
        %v635 = vld [vmem:[#allocation4 + $0x1b8] sm:$0xff]
        %v636 = vld [vmem:[#allocation4 + $0x1c0] sm:$0xff]
        %v637 = vld [vmem:[#allocation4 + $0x1c8] sm:$0xff]
        %v638 = vld [vmem:[#allocation4 + $0x1d0] sm:$0xff]
        %v639 = vld [vmem:[#allocation4 + $0x1d8] sm:$0xff]
        %v640 = vld [vmem:[#allocation4 + $0x1e0] sm:$0xff]
        %v641 = vld [vmem:[#allocation4 + $0x1e8] sm:$0xff]
        %v642 = vld [vmem:[#allocation4 + $0x1f0] sm:$0xff]
        %v643 = vld [vmem:[#allocation4 + $0x1f8] sm:$0xff]
        %v644 = vld [vmem:[#allocation4 + $0x200] sm:$0xff]
        %v645 = vld [vmem:[#allocation4 + $0x208] sm:$0xff]
        %v646 = vld [vmem:[#allocation4 + $0x210] sm:$0xff]
        %v647 = vld [vmem:[#allocation4 + $0x218] sm:$0xff]
        %v648 = vld [vmem:[#allocation4 + $0x220] sm:$0xff]
        %v649 = vld [vmem:[#allocation4 + $0x228] sm:$0xff]
        %v650 = vld [vmem:[#allocation4 + $0x230] sm:$0xff]
        %v651 = vld [vmem:[#allocation4 + $0x238] sm:$0xff]
        %v652 = vld [vmem:[%s4] sm:$0xf]
        %v654 = vlaneseq
        %v655 = vshrl.u32 %v654, 7
        %v656 = vsub.s32 0, %v655
        %v657 = vrot.slane %v579, %v656
        %v658 = vlaneseq
        %v659 = vshrl.u32 %v658, 7
        %v660 = vsub.s32 1, %v659
        %v661 = vrot.slane %v579, %v660
        %v662 = vlaneseq
        %v663 = vshrl.u32 %v662, 7
        %v664 = vsub.s32 2, %v663
        %v665 = vrot.slane %v579, %v664
        %v666 = vlaneseq
        %v667 = vshrl.u32 %v666, 7
        %v668 = vsub.s32 3, %v667
        %v669 = vrot.slane %v579, %v668
        %vm674 = vcmask 261120
        %v676 = vsel %vm674, %v561, 0
        %v679 = vsel %vm674, %v562, 0
        %681 = vmatprep.subr.mxu0 %v564
        %682 = vmatpush1.msra.mxu0 %v563
        %683 = vmatprep.subr.mxu0 %v568
        %684 = vmatpush1.msra.mxu0 %v567
        %685 = vmatprep.subr.mxu0 %v572
        %686 = vmatpush1.msra.mxu0 %v571
        %687 = vmatprep.subr.mxu0 %v576
        %688 = vmatpush1.msra.mxu0 %v575
        %689 = vmatprep.subr.mxu0 0.0
        %690 = vmatpush1.msra.mxu0 0.0
        %691 = vmatprep.subr.mxu0 0.0
        %692 = vmatpush1.msra.mxu0 0.0
        %693 = vmatprep.subr.mxu0 0.0
        %694 = vmatpush1.msra.mxu0 0.0
        %695 = vmatprep.subr.mxu0 0.0
        %696 = vmatpush1.msra.mxu0 0.0
        %697 = vmatprep.subr.mxu0 0.0
        %698 = vmatpush1.msra.mxu0 0.0
        %699 = vmatprep.subr.mxu0 0.0
        %700 = vmatpush1.msra.mxu0 0.0
        %701 = vmatprep.subr.mxu0 0.0
        %702 = vmatpush1.msra.mxu0 0.0
        %703 = vmatprep.subr.mxu0 0.0
        %704 = vmatpush1.msra.mxu0 0.0
        %705 = vmatprep.subr.mxu0 0.0
        %706 = vmatpush1.msra.mxu0 0.0
        %707 = vmatprep.subr.mxu0 0.0
        %708 = vmatpush1.msra.mxu0 0.0
        %709 = vmatprep.subr.mxu0 0.0
        %710 = vmatpush1.msra.mxu0 0.0
        %711 = vmatprep.subr.mxu0 0.0
        %712 = vmatpush1.msra.mxu0 0.0
        %713 = vmatprep.subr.mxu0 0.0
        %714 = vmatpush1.msra.mxu0 0.0
        %715 = vmatprep.subr.mxu0 0.0
        %716 = vmatpush1.msra.mxu0 0.0
        %717 = vmatprep.subr.mxu0 0.0
        %718 = vmatpush1.msra.mxu0 0.0
        %719 = vmatprep.subr.mxu0 0.0
        %720 = vmatpush1.msra.mxu0 0.0
        %721 = vmatprep.subr.mxu0 0.0
        %722 = vmatpush1.msra.mxu0 0.0
        %723 = vmatprep.subr.mxu0 0.0
        %724 = vmatpush1.msra.mxu0 0.0
        %725 = vmatprep.subr.mxu0 0.0
        %726 = vmatpush1.msra.mxu0 0.0
        %727 = vmatprep.subr.mxu0 0.0
        %728 = vmatpush1.msra.mxu0 0.0
        %729 = vmatprep.subr.mxu0 0.0
        %730 = vmatpush1.msra.mxu0 0.0
        %731 = vmatprep.subr.mxu0 0.0
        %732 = vmatpush1.msra.mxu0 0.0
        %733 = vmatprep.subr.mxu0 0.0
        %734 = vmatpush1.msra.mxu0 0.0
        %735 = vmatprep.subr.mxu0 0.0
        %736 = vmatpush1.msra.mxu0 0.0
        %737 = vmatprep.subr.mxu0 0.0
        %738 = vmatpush1.msra.mxu0 0.0
        %739 = vmatprep.subr.mxu0 0.0
        %740 = vmatpush1.msra.mxu0 0.0
        %741 = vmatprep.subr.mxu0 0.0
        %742 = vmatpush1.msra.mxu0 0.0
        %743 = vmatprep.subr.mxu0 0.0
        %744 = vmatpush1.msra.mxu0 0.0
        %745 = vmatprep.mubr.f32.mxu0 0.0
        %746 = vmatmul.mubr.f32.gmra.mrb[0].mxu0 %v676
        %v747 = vpop.f32.mrb[0].mxu0
        %v748 = vadd.f32 %v657, %v747
        %v749 = vpop.f32.mrb[0].mxu0
        %v750 = vadd.f32 %v661, %v749
        %751 = vmatprep.mubr.f32.mxu0 0.0
        %752 = vmatmul.mubr.f32.gmra.mrb[0].mxu0 %v679
        %v753 = vpop.f32.mrb[0].mxu0
        %v754 = vadd.f32 %v657, %v753
        %v755 = vpop.f32.mrb[0].mxu0
        %v756 = vadd.f32 %v661, %v755
        %757 = vdwg.mxu0
        %758 = vmatprep.subr.mxu0 %v566
        %759 = vmatpush1.msra.mxu0 %v565
        %760 = vmatprep.subr.mxu0 %v570
        %761 = vmatpush1.msra.mxu0 %v569
        %762 = vmatprep.subr.mxu0 %v574
        %763 = vmatpush1.msra.mxu0 %v573
        %764 = vmatprep.subr.mxu0 %v578
        %765 = vmatpush1.msra.mxu0 %v577
        %766 = vmatprep.subr.mxu0 0.0
        %767 = vmatpush1.msra.mxu0 0.0
        %768 = vmatprep.subr.mxu0 0.0
        %769 = vmatpush1.msra.mxu0 0.0
        %770 = vmatprep.subr.mxu0 0.0
        %771 = vmatpush1.msra.mxu0 0.0
        %772 = vmatprep.subr.mxu0 0.0
        %773 = vmatpush1.msra.mxu0 0.0
        %774 = vmatprep.subr.mxu0 0.0
        %775 = vmatpush1.msra.mxu0 0.0
        %776 = vmatprep.subr.mxu0 0.0
        %777 = vmatpush1.msra.mxu0 0.0
        %778 = vmatprep.subr.mxu0 0.0
        %779 = vmatpush1.msra.mxu0 0.0
        %780 = vmatprep.subr.mxu0 0.0
        %781 = vmatpush1.msra.mxu0 0.0
        %782 = vmatprep.subr.mxu0 0.0
        %783 = vmatpush1.msra.mxu0 0.0
        %784 = vmatprep.subr.mxu0 0.0
        %785 = vmatpush1.msra.mxu0 0.0
        %786 = vmatprep.subr.mxu0 0.0
        %787 = vmatpush1.msra.mxu0 0.0
        %788 = vmatprep.subr.mxu0 0.0
        %789 = vmatpush1.msra.mxu0 0.0
        %790 = vmatprep.subr.mxu0 0.0
        %791 = vmatpush1.msra.mxu0 0.0
        %792 = vmatprep.subr.mxu0 0.0
        %793 = vmatpush1.msra.mxu0 0.0
        %794 = vmatprep.subr.mxu0 0.0
        %795 = vmatpush1.msra.mxu0 0.0
        %796 = vmatprep.subr.mxu0 0.0
        %797 = vmatpush1.msra.mxu0 0.0
        %798 = vmatprep.subr.mxu0 0.0
        %799 = vmatpush1.msra.mxu0 0.0
        %800 = vmatprep.subr.mxu0 0.0
        %801 = vmatpush1.msra.mxu0 0.0
        %802 = vmatprep.subr.mxu0 0.0
        %803 = vmatpush1.msra.mxu0 0.0
        %804 = vmatprep.subr.mxu0 0.0
        %805 = vmatpush1.msra.mxu0 0.0
        %806 = vmatprep.subr.mxu0 0.0
        %807 = vmatpush1.msra.mxu0 0.0
        %808 = vmatprep.subr.mxu0 0.0
        %809 = vmatpush1.msra.mxu0 0.0
        %810 = vmatprep.subr.mxu0 0.0
        %811 = vmatpush1.msra.mxu0 0.0
        %812 = vmatprep.subr.mxu0 0.0
        %813 = vmatpush1.msra.mxu0 0.0
        %814 = vmatprep.subr.mxu0 0.0
        %815 = vmatpush1.msra.mxu0 0.0
        %816 = vmatprep.subr.mxu0 0.0
        %817 = vmatpush1.msra.mxu0 0.0
        %818 = vmatprep.subr.mxu0 0.0
        %819 = vmatpush1.msra.mxu0 0.0
        %820 = vmatprep.subr.mxu0 0.0
        %821 = vmatpush1.msra.mxu0 0.0
        %822 = vmatprep.mubr.f32.mxu0 0.0
        %823 = vmatmul.mubr.f32.gmra.mrb[0].mxu0 %v676
        %v824 = vpop.f32.mrb[0].mxu0
        %v825 = vadd.f32 %v665, %v824
        %v826 = vpop.f32.mrb[0].mxu0
        %v827 = vadd.f32 %v669, %v826
        %828 = vmatprep.mubr.f32.mxu0 0.0
        %829 = vmatmul.mubr.f32.gmra.mrb[0].mxu0 %v679
        %v830 = vpop.f32.mrb[0].mxu0
        %v831 = vadd.f32 %v665, %v830
        %v832 = vpop.f32.mrb[0].mxu0
        %v833 = vadd.f32 %v669, %v832
        %834 = vdwg.mxu0
        %v835 = vmax.f32 %v748, 0.0
        %v836 = vmax.f32 %v750, 0.0
        %v837 = vmax.f32 %v825, 0.0
        %v838 = vmax.f32 %v827, 0.0
        %v839 = vmax.f32 %v754, 0.0
        %v840 = vmax.f32 %v756, 0.0
        %v841 = vmax.f32 %v831, 0.0
        %v842 = vmax.f32 %v833, 0.0
        %vm851 = vcmask 1043456
        %v852 = vrot.slane %v835, 4
        %v853 = vrot.slane %v836, 4
        %v854 = vrot.slane %v837, 4
        %v855 = vrot.slane %v838, 4
        %v856 = vrot.slane %v839, 4
        %v857 = vsel %vm851, %v852, %v856
        %v858 = vrot.slane %v840, 4
        %v859 = vsel %vm851, %v853, %v858
        %v860 = vrot.slane %v841, 4
        %v861 = vsel %vm851, %v854, %v860
        %v862 = vrot.slane %v842, 4
        %v863 = vsel %vm851, %v855, %v862
        %v876 = vsel %vm851, 0.0, %v852
        %v877 = vsel %vm851, 0.0, %v853
        %v878 = vsel %vm851, 0.0, %v854
        %v879 = vsel %vm851, 0.0, %v855
        %v880 = vsel %vm851, %v856, 0.0
        %v881 = vsel %vm851, %v858, 0.0
        %v882 = vsel %vm851, %v860, 0.0
        %v883 = vsel %vm851, %v862, 0.0
        %vm886 = vcmask 1046528
        %v887 = vrot.slane %v876, 1
        %v888 = vrot.slane %v857, 1
        %v889 = vsel %vm886, %v887, %v888
        %v890 = vrot.slane %v880, 1
        %v891 = vsel %vm886, %v888, %v890
        %892 = vrot.lane.b32.xlu0 %v889, 64
        %v893 = vpop.permute.xlu0 %892
        %894 = vrot.lane.b32.xlu0 %v891, 64
        %v895 = vpop.permute.xlu0 %894
        %vm898 = vcmask 1045504
        %v899 = vrot.slane %v876, 2
        %v900 = vrot.slane %v857, 2
        %v901 = vsel %vm898, %v899, %v900
        %v902 = vrot.slane %v880, 2
        %v903 = vsel %vm898, %v900, %v902
        %vm906 = vcmask 1044480
        %v907 = vrot.slane %v876, 3
        %v908 = vrot.slane %v857, 3
        %v909 = vsel %vm906, %v907, %v908
        %v910 = vrot.slane %v880, 3
        %v911 = vsel %vm906, %v908, %v910
        %912 = vrot.lane.b32.xlu0 %v909, 64
        %v913 = vpop.permute.xlu0 %912
        %914 = vrot.lane.b32.xlu0 %v911, 64
        %v915 = vpop.permute.xlu0 %914
        %v918 = vrot.slane %v876, 4
        %v919 = vrot.slane %v857, 4
        %v920 = vsel %vm851, %v918, %v919
        %v921 = vrot.slane %v880, 4
        %v922 = vsel %vm851, %v919, %v921
        %vm925 = vcmask 1042432
        %v926 = vrot.slane %v876, 5
        %v927 = vrot.slane %v857, 5
        %v928 = vsel %vm925, %v926, %v927
        %v929 = vrot.slane %v880, 5
        %v930 = vsel %vm925, %v927, %v929
        %931 = vrot.lane.b32.xlu0 %v928, 64
        %v932 = vpop.permute.xlu0 %931
        %933 = vrot.lane.b32.xlu0 %v930, 64
        %v934 = vpop.permute.xlu0 %933
        %vm937 = vcmask 1041408
        %v938 = vrot.slane %v876, 6
        %v939 = vrot.slane %v857, 6
        %v940 = vsel %vm937, %v938, %v939
        %v941 = vrot.slane %v880, 6
        %v942 = vsel %vm937, %v939, %v941
        %vm945 = vcmask 1040384
        %v946 = vrot.slane %v876, 7
        %v947 = vrot.slane %v857, 7
        %v948 = vsel %vm945, %v946, %v947
        %v949 = vrot.slane %v880, 7
        %v950 = vsel %vm945, %v947, %v949
        %951 = vrot.lane.b32.xlu0 %v948, 64
        %v952 = vpop.permute.xlu0 %951
        %953 = vrot.lane.b32.xlu0 %v950, 64
        %v954 = vpop.permute.xlu0 %953
        %vm957 = vcmask 523264
        %v958 = vsel %vm957, %v876, %v893
        %v959 = vsel %vm957, %v857, %v895
        %v960 = vsel %vm957, %v901, %v913
        %v961 = vsel %vm957, %v903, %v915
        %v962 = vsel %vm957, %v920, %v932
        %v963 = vsel %vm957, %v922, %v934
        %v964 = vsel %vm957, %v940, %v952
        %v965 = vsel %vm957, %v942, %v954
        %v966 = vsel %vm957, %v857, 0
        %v968 = vsel %vm957, %v880, 0
        %970 = vmatprep.subr.mxu0 0.0
        %971 = vmatpush1.msra.mxu0 %v580
        %972 = vmatprep.subr.mxu0 0.0
        %973 = vmatpush1.msra.mxu0 %v581
        %974 = vmatprep.subr.mxu0 0.0
        %975 = vmatpush1.msra.mxu0 %v582
        %976 = vmatprep.subr.mxu0 0.0
        %977 = vmatpush1.msra.mxu0 %v583
        %978 = vmatprep.subr.mxu0 0.0
        %979 = vmatpush1.msra.mxu0 %v584
        %980 = vmatprep.subr.mxu0 0.0
        %981 = vmatpush1.msra.mxu0 %v585
        %982 = vmatprep.subr.mxu0 0.0
        %983 = vmatpush1.msra.mxu0 %v586
        %984 = vmatprep.subr.mxu0 0.0
        %985 = vmatpush1.msra.mxu0 %v587
        %986 = vmatprep.subr.mxu0 0.0
        %987 = vmatpush1.msra.mxu0 %v588
        %988 = vmatprep.subr.mxu0 0.0
        %989 = vmatpush1.msra.mxu0 %v589
        %990 = vmatprep.subr.mxu0 0.0
        %991 = vmatpush1.msra.mxu0 %v590
        %992 = vmatprep.subr.mxu0 0.0
        %993 = vmatpush1.msra.mxu0 %v591
        %994 = vmatprep.subr.mxu0 0.0
        %995 = vmatpush1.msra.mxu0 %v592
        %996 = vmatprep.subr.mxu0 0.0
        %997 = vmatpush1.msra.mxu0 %v593
        %998 = vmatprep.subr.mxu0 0.0
        %999 = vmatpush1.msra.mxu0 %v594
        %1000 = vmatprep.subr.mxu0 0.0
        %1001 = vmatpush1.msra.mxu0 %v595
        %1002 = vmatprep.subr.mxu0 0.0
        %1003 = vmatpush1.msra.mxu0 %v596
        %1004 = vmatprep.subr.mxu0 0.0
        %1005 = vmatpush1.msra.mxu0 %v597
        %1006 = vmatprep.subr.mxu0 0.0
        %1007 = vmatpush1.msra.mxu0 %v598
        %1008 = vmatprep.subr.mxu0 0.0
        %1009 = vmatpush1.msra.mxu0 %v599
        %1010 = vmatprep.subr.mxu0 0.0
        %1011 = vmatpush1.msra.mxu0 %v600
        %1012 = vmatprep.subr.mxu0 0.0
        %1013 = vmatpush1.msra.mxu0 %v601
        %1014 = vmatprep.subr.mxu0 0.0
        %1015 = vmatpush1.msra.mxu0 %v602
        %1016 = vmatprep.subr.mxu0 0.0
        %1017 = vmatpush1.msra.mxu0 %v603
        %1018 = vmatprep.subr.mxu0 0.0
        %1019 = vmatpush1.msra.mxu0 %v604
        %1020 = vmatprep.subr.mxu0 0.0
        %1021 = vmatpush1.msra.mxu0 %v605
        %1022 = vmatprep.subr.mxu0 0.0
        %1023 = vmatpush1.msra.mxu0 %v606
        %1024 = vmatprep.subr.mxu0 0.0
        %1025 = vmatpush1.msra.mxu0 %v607
        %1026 = vmatprep.subr.mxu0 0.0
        %1027 = vmatpush1.msra.mxu0 %v608
        %1028 = vmatprep.subr.mxu0 0.0
        %1029 = vmatpush1.msra.mxu0 %v609
        %1030 = vmatprep.subr.mxu0 0.0
        %1031 = vmatpush1.msra.mxu0 %v610
        %1032 = vmatprep.subr.mxu0 0.0
        %1033 = vmatpush1.msra.mxu0 %v611
        %1034 = vmatprep.mubr.f32.mxu0 %v960
        %1035 = vmatmul.mubr.f32.gmra.mrb[0].mxu0 %v958
        %v1036 = vpop.f32.mrb[0].mxu0
        %v1037 = vadd.f32 0.0, %v1036
        %v1038 = vpop.f32.mrb[0].mxu0
        %1039 = vmatprep.mubr.f32.mxu0 %v961
        %1040 = vmatmul.mubr.f32.gmra.mrb[0].mxu0 %v959
        %v1041 = vpop.f32.mrb[0].mxu0
        %v1042 = vadd.f32 0.0, %v1041
        %v1043 = vpop.f32.mrb[0].mxu0
        %1044 = vdwg.mxu0
        %1045 = vmatprep.subr.mxu0 0.0
        %1046 = vmatpush1.msra.mxu0 %v612
        %1047 = vmatprep.subr.mxu0 0.0
        %1048 = vmatpush1.msra.mxu0 %v613
        %1049 = vmatprep.subr.mxu0 0.0
        %1050 = vmatpush1.msra.mxu0 %v614
        %1051 = vmatprep.subr.mxu0 0.0
        %1052 = vmatpush1.msra.mxu0 %v615
        %1053 = vmatprep.subr.mxu0 0.0
        %1054 = vmatpush1.msra.mxu0 %v616
        %1055 = vmatprep.subr.mxu0 0.0
        %1056 = vmatpush1.msra.mxu0 %v617
        %1057 = vmatprep.subr.mxu0 0.0
        %1058 = vmatpush1.msra.mxu0 %v618
        %1059 = vmatprep.subr.mxu0 0.0
        %1060 = vmatpush1.msra.mxu0 %v619
        %1061 = vmatprep.subr.mxu0 0.0
        %1062 = vmatpush1.msra.mxu0 %v620
        %1063 = vmatprep.subr.mxu0 0.0
        %1064 = vmatpush1.msra.mxu0 %v621
        %1065 = vmatprep.subr.mxu0 0.0
        %1066 = vmatpush1.msra.mxu0 %v622
        %1067 = vmatprep.subr.mxu0 0.0
        %1068 = vmatpush1.msra.mxu0 %v623
        %1069 = vmatprep.subr.mxu0 0.0
        %1070 = vmatpush1.msra.mxu0 %v624
        %1071 = vmatprep.subr.mxu0 0.0
        %1072 = vmatpush1.msra.mxu0 %v625
        %1073 = vmatprep.subr.mxu0 0.0
        %1074 = vmatpush1.msra.mxu0 %v626
        %1075 = vmatprep.subr.mxu0 0.0
        %1076 = vmatpush1.msra.mxu0 %v627
        %1077 = vmatprep.subr.mxu0 0.0
        %1078 = vmatpush1.msra.mxu0 %v628
        %1079 = vmatprep.subr.mxu0 0.0
        %1080 = vmatpush1.msra.mxu0 %v629
        %1081 = vmatprep.subr.mxu0 0.0
        %1082 = vmatpush1.msra.mxu0 %v630
        %1083 = vmatprep.subr.mxu0 0.0
        %1084 = vmatpush1.msra.mxu0 %v631
        %1085 = vmatprep.subr.mxu0 0.0
        %1086 = vmatpush1.msra.mxu0 %v632
        %1087 = vmatprep.subr.mxu0 0.0
        %1088 = vmatpush1.msra.mxu0 %v633
        %1089 = vmatprep.subr.mxu0 0.0
        %1090 = vmatpush1.msra.mxu0 %v634
        %1091 = vmatprep.subr.mxu0 0.0
        %1092 = vmatpush1.msra.mxu0 %v635
        %1093 = vmatprep.subr.mxu0 0.0
        %1094 = vmatpush1.msra.mxu0 %v636
        %1095 = vmatprep.subr.mxu0 0.0
        %1096 = vmatpush1.msra.mxu0 %v637
        %1097 = vmatprep.subr.mxu0 0.0
        %1098 = vmatpush1.msra.mxu0 %v638
        %1099 = vmatprep.subr.mxu0 0.0
        %1100 = vmatpush1.msra.mxu0 %v639
        %1101 = vmatprep.subr.mxu0 0.0
        %1102 = vmatpush1.msra.mxu0 %v640
        %1103 = vmatprep.subr.mxu0 0.0
        %1104 = vmatpush1.msra.mxu0 %v641
        %1105 = vmatprep.subr.mxu0 0.0
        %1106 = vmatpush1.msra.mxu0 %v642
        %1107 = vmatprep.subr.mxu0 0.0
        %1108 = vmatpush1.msra.mxu0 %v643
        %1109 = vmatprep.mubr.f32.mxu0 %v964
        %1110 = vmatmul.mubr.f32.gmra.mrb[0].mxu0 %v962
        %v1111 = vpop.f32.mrb[0].mxu0
        %v1112 = vadd.f32 %v1037, %v1111
        %v1113 = vpop.f32.mrb[0].mxu0
        %1114 = vmatprep.mubr.f32.mxu0 %v965
        %1115 = vmatmul.mubr.f32.gmra.mrb[0].mxu0 %v963
        %v1116 = vpop.f32.mrb[0].mxu0
        %v1117 = vadd.f32 %v1042, %v1116
        %v1118 = vpop.f32.mrb[0].mxu0
        %1119 = vdwg.mxu0
        %1120 = vmatprep.subr.mxu0 0.0
        %1121 = vmatpush1.msra.mxu0 %v644
        %1122 = vmatprep.subr.mxu0 0.0
        %1123 = vmatpush1.msra.mxu0 %v645
        %1124 = vmatprep.subr.mxu0 0.0
        %1125 = vmatpush1.msra.mxu0 %v646
        %1126 = vmatprep.subr.mxu0 0.0
        %1127 = vmatpush1.msra.mxu0 %v647
        %1128 = vmatprep.subr.mxu0 0.0
        %1129 = vmatpush1.msra.mxu0 %v648
        %1130 = vmatprep.subr.mxu0 0.0
        %1131 = vmatpush1.msra.mxu0 %v649
        %1132 = vmatprep.subr.mxu0 0.0
        %1133 = vmatpush1.msra.mxu0 %v650
        %1134 = vmatprep.subr.mxu0 0.0
        %1135 = vmatpush1.msra.mxu0 %v651
        %1136 = vmatprep.subr.mxu0 0.0
        %1137 = vmatpush1.msra.mxu0 0.0
        %1138 = vmatprep.subr.mxu0 0.0
        %1139 = vmatpush1.msra.mxu0 0.0
        %1140 = vmatprep.subr.mxu0 0.0
        %1141 = vmatpush1.msra.mxu0 0.0
        %1142 = vmatprep.subr.mxu0 0.0
        %1143 = vmatpush1.msra.mxu0 0.0
        %1144 = vmatprep.subr.mxu0 0.0
        %1145 = vmatpush1.msra.mxu0 0.0
        %1146 = vmatprep.subr.mxu0 0.0
        %1147 = vmatpush1.msra.mxu0 0.0
        %1148 = vmatprep.subr.mxu0 0.0
        %1149 = vmatpush1.msra.mxu0 0.0
        %1150 = vmatprep.subr.mxu0 0.0
        %1151 = vmatpush1.msra.mxu0 0.0
        %1152 = vmatprep.subr.mxu0 0.0
        %1153 = vmatpush1.msra.mxu0 0.0
        %1154 = vmatprep.subr.mxu0 0.0
        %1155 = vmatpush1.msra.mxu0 0.0
        %1156 = vmatprep.subr.mxu0 0.0
        %1157 = vmatpush1.msra.mxu0 0.0
        %1158 = vmatprep.subr.mxu0 0.0
        %1159 = vmatpush1.msra.mxu0 0.0
        %1160 = vmatprep.subr.mxu0 0.0
        %1161 = vmatpush1.msra.mxu0 0.0
        %1162 = vmatprep.subr.mxu0 0.0
        %1163 = vmatpush1.msra.mxu0 0.0
        %1164 = vmatprep.subr.mxu0 0.0
        %1165 = vmatpush1.msra.mxu0 0.0
        %1166 = vmatprep.subr.mxu0 0.0
        %1167 = vmatpush1.msra.mxu0 0.0
        %1168 = vmatprep.subr.mxu0 0.0
        %1169 = vmatpush1.msra.mxu0 0.0
        %1170 = vmatprep.subr.mxu0 0.0
        %1171 = vmatpush1.msra.mxu0 0.0
        %1172 = vmatprep.subr.mxu0 0.0
        %1173 = vmatpush1.msra.mxu0 0.0
        %1174 = vmatprep.subr.mxu0 0.0
        %1175 = vmatpush1.msra.mxu0 0.0
        %1176 = vmatprep.subr.mxu0 0.0
        %1177 = vmatpush1.msra.mxu0 0.0
        %1178 = vmatprep.subr.mxu0 0.0
        %1179 = vmatpush1.msra.mxu0 0.0
        %1180 = vmatprep.subr.mxu0 0.0
        %1181 = vmatpush1.msra.mxu0 0.0
        %1182 = vmatprep.subr.mxu0 0.0
        %1183 = vmatpush1.msra.mxu0 0.0
        %1184 = vmatprep.mubr.f32.mxu0 0.0
        %1185 = vmatmul.mubr.f32.gmra.mrb[0].mxu0 %v966
        %v1186 = vpop.f32.mrb[0].mxu0
        %v1187 = vadd.f32 %v1112, %v1186
        %v1188 = vpop.f32.mrb[0].mxu0
        %1189 = vmatprep.mubr.f32.mxu0 0.0
        %1190 = vmatmul.mubr.f32.gmra.mrb[0].mxu0 %v968
        %v1191 = vpop.f32.mrb[0].mxu0
        %v1192 = vadd.f32 %v1117, %v1191
        %v1193 = vpop.f32.mrb[0].mxu0
        %1194 = vdwg.mxu0
        %1195 = vrot.lane.b32.xlu0 %v876, 64
        %v1196 = vpop.permute.xlu0 %1195
        %1197 = vrot.lane.b32.xlu0 %v857, 64
        %v1198 = vpop.permute.xlu0 %1197
        %1203 = vrot.lane.b32.xlu0 %v901, 64
        %v1204 = vpop.permute.xlu0 %1203
        %1205 = vrot.lane.b32.xlu0 %v903, 64
        %v1206 = vpop.permute.xlu0 %1205
        %1211 = vrot.lane.b32.xlu0 %v920, 64
        %v1212 = vpop.permute.xlu0 %1211
        %1213 = vrot.lane.b32.xlu0 %v922, 64
        %v1214 = vpop.permute.xlu0 %1213
        %1219 = vrot.lane.b32.xlu0 %v940, 64
        %v1220 = vpop.permute.xlu0 %1219
        %1221 = vrot.lane.b32.xlu0 %v942, 64
        %v1222 = vpop.permute.xlu0 %1221
        %1227 = vrot.lane.b32.xlu0 %v880, 64
        %v1228 = vpop.permute.xlu0 %1227
        %v1229 = vsel %vm957, %v1196, %v889
        %v1230 = vsel %vm957, %v1198, %v891
        %v1231 = vsel %vm957, %v1204, %v909
        %v1232 = vsel %vm957, %v1206, %v911
        %v1233 = vsel %vm957, %v1212, %v928
        %v1234 = vsel %vm957, %v1214, %v930
        %v1235 = vsel %vm957, %v1220, %v948
        %v1236 = vsel %vm957, %v1222, %v950
        %v1237 = vsel %vm957, %v1198, 0
        %v1239 = vsel %vm957, %v1228, 0
        %1241 = vmatprep.subr.mxu0 0.0
        %1242 = vmatpush1.msra.mxu0 %v580
        %1243 = vmatprep.subr.mxu0 0.0
        %1244 = vmatpush1.msra.mxu0 %v581
        %1245 = vmatprep.subr.mxu0 0.0
        %1246 = vmatpush1.msra.mxu0 %v582
        %1247 = vmatprep.subr.mxu0 0.0
        %1248 = vmatpush1.msra.mxu0 %v583
        %1249 = vmatprep.subr.mxu0 0.0
        %1250 = vmatpush1.msra.mxu0 %v584
        %1251 = vmatprep.subr.mxu0 0.0
        %1252 = vmatpush1.msra.mxu0 %v585
        %1253 = vmatprep.subr.mxu0 0.0
        %1254 = vmatpush1.msra.mxu0 %v586
        %1255 = vmatprep.subr.mxu0 0.0
        %1256 = vmatpush1.msra.mxu0 %v587
        %1257 = vmatprep.subr.mxu0 0.0
        %1258 = vmatpush1.msra.mxu0 %v588
        %1259 = vmatprep.subr.mxu0 0.0
        %1260 = vmatpush1.msra.mxu0 %v589
        %1261 = vmatprep.subr.mxu0 0.0
        %1262 = vmatpush1.msra.mxu0 %v590
        %1263 = vmatprep.subr.mxu0 0.0
        %1264 = vmatpush1.msra.mxu0 %v591
        %1265 = vmatprep.subr.mxu0 0.0
        %1266 = vmatpush1.msra.mxu0 %v592
        %1267 = vmatprep.subr.mxu0 0.0
        %1268 = vmatpush1.msra.mxu0 %v593
        %1269 = vmatprep.subr.mxu0 0.0
        %1270 = vmatpush1.msra.mxu0 %v594
        %1271 = vmatprep.subr.mxu0 0.0
        %1272 = vmatpush1.msra.mxu0 %v595
        %1273 = vmatprep.subr.mxu0 0.0
        %1274 = vmatpush1.msra.mxu0 %v596
        %1275 = vmatprep.subr.mxu0 0.0
        %1276 = vmatpush1.msra.mxu0 %v597
        %1277 = vmatprep.subr.mxu0 0.0
        %1278 = vmatpush1.msra.mxu0 %v598
        %1279 = vmatprep.subr.mxu0 0.0
        %1280 = vmatpush1.msra.mxu0 %v599
        %1281 = vmatprep.subr.mxu0 0.0
        %1282 = vmatpush1.msra.mxu0 %v600
        %1283 = vmatprep.subr.mxu0 0.0
        %1284 = vmatpush1.msra.mxu0 %v601
        %1285 = vmatprep.subr.mxu0 0.0
        %1286 = vmatpush1.msra.mxu0 %v602
        %1287 = vmatprep.subr.mxu0 0.0
        %1288 = vmatpush1.msra.mxu0 %v603
        %1289 = vmatprep.subr.mxu0 0.0
        %1290 = vmatpush1.msra.mxu0 %v604
        %1291 = vmatprep.subr.mxu0 0.0
        %1292 = vmatpush1.msra.mxu0 %v605
        %1293 = vmatprep.subr.mxu0 0.0
        %1294 = vmatpush1.msra.mxu0 %v606
        %1295 = vmatprep.subr.mxu0 0.0
        %1296 = vmatpush1.msra.mxu0 %v607
        %1297 = vmatprep.subr.mxu0 0.0
        %1298 = vmatpush1.msra.mxu0 %v608
        %1299 = vmatprep.subr.mxu0 0.0
        %1300 = vmatpush1.msra.mxu0 %v609
        %1301 = vmatprep.subr.mxu0 0.0
        %1302 = vmatpush1.msra.mxu0 %v610
        %1303 = vmatprep.subr.mxu0 0.0
        %1304 = vmatpush1.msra.mxu0 %v611
        %1305 = vmatprep.mubr.f32.mxu0 %v1231
        %1306 = vmatmul.mubr.f32.gmra.mrb[0].mxu0 %v1229
        %v1307 = vpop.f32.mrb[0].mxu0
        %v1308 = vadd.f32 0.0, %v1307
        %v1309 = vpop.f32.mrb[0].mxu0
        %1310 = vmatprep.mubr.f32.mxu0 %v1232
        %1311 = vmatmul.mubr.f32.gmra.mrb[0].mxu0 %v1230
        %v1312 = vpop.f32.mrb[0].mxu0
        %v1313 = vadd.f32 0.0, %v1312
        %v1314 = vpop.f32.mrb[0].mxu0
        %1315 = vdwg.mxu0
        %1316 = vmatprep.subr.mxu0 0.0
        %1317 = vmatpush1.msra.mxu0 %v612
        %1318 = vmatprep.subr.mxu0 0.0
        %1319 = vmatpush1.msra.mxu0 %v613
        %1320 = vmatprep.subr.mxu0 0.0
        %1321 = vmatpush1.msra.mxu0 %v614
        %1322 = vmatprep.subr.mxu0 0.0
        %1323 = vmatpush1.msra.mxu0 %v615
        %1324 = vmatprep.subr.mxu0 0.0
        %1325 = vmatpush1.msra.mxu0 %v616
        %1326 = vmatprep.subr.mxu0 0.0
        %1327 = vmatpush1.msra.mxu0 %v617
        %1328 = vmatprep.subr.mxu0 0.0
        %1329 = vmatpush1.msra.mxu0 %v618
        %1330 = vmatprep.subr.mxu0 0.0
        %1331 = vmatpush1.msra.mxu0 %v619
        %1332 = vmatprep.subr.mxu0 0.0
        %1333 = vmatpush1.msra.mxu0 %v620
        %1334 = vmatprep.subr.mxu0 0.0
        %1335 = vmatpush1.msra.mxu0 %v621
        %1336 = vmatprep.subr.mxu0 0.0
        %1337 = vmatpush1.msra.mxu0 %v622
        %1338 = vmatprep.subr.mxu0 0.0
        %1339 = vmatpush1.msra.mxu0 %v623
        %1340 = vmatprep.subr.mxu0 0.0
        %1341 = vmatpush1.msra.mxu0 %v624
        %1342 = vmatprep.subr.mxu0 0.0
        %1343 = vmatpush1.msra.mxu0 %v625
        %1344 = vmatprep.subr.mxu0 0.0
        %1345 = vmatpush1.msra.mxu0 %v626
        %1346 = vmatprep.subr.mxu0 0.0
        %1347 = vmatpush1.msra.mxu0 %v627
        %1348 = vmatprep.subr.mxu0 0.0
        %1349 = vmatpush1.msra.mxu0 %v628
        %1350 = vmatprep.subr.mxu0 0.0
        %1351 = vmatpush1.msra.mxu0 %v629
        %1352 = vmatprep.subr.mxu0 0.0
        %1353 = vmatpush1.msra.mxu0 %v630
        %1354 = vmatprep.subr.mxu0 0.0
        %1355 = vmatpush1.msra.mxu0 %v631
        %1356 = vmatprep.subr.mxu0 0.0
        %1357 = vmatpush1.msra.mxu0 %v632
        %1358 = vmatprep.subr.mxu0 0.0
        %1359 = vmatpush1.msra.mxu0 %v633
        %1360 = vmatprep.subr.mxu0 0.0
        %1361 = vmatpush1.msra.mxu0 %v634
        %1362 = vmatprep.subr.mxu0 0.0
        %1363 = vmatpush1.msra.mxu0 %v635
        %1364 = vmatprep.subr.mxu0 0.0
        %1365 = vmatpush1.msra.mxu0 %v636
        %1366 = vmatprep.subr.mxu0 0.0
        %1367 = vmatpush1.msra.mxu0 %v637
        %1368 = vmatprep.subr.mxu0 0.0
        %1369 = vmatpush1.msra.mxu0 %v638
        %1370 = vmatprep.subr.mxu0 0.0
        %1371 = vmatpush1.msra.mxu0 %v639
        %1372 = vmatprep.subr.mxu0 0.0
        %1373 = vmatpush1.msra.mxu0 %v640
        %1374 = vmatprep.subr.mxu0 0.0
        %1375 = vmatpush1.msra.mxu0 %v641
        %1376 = vmatprep.subr.mxu0 0.0
        %1377 = vmatpush1.msra.mxu0 %v642
        %1378 = vmatprep.subr.mxu0 0.0
        %1379 = vmatpush1.msra.mxu0 %v643
        %1380 = vmatprep.mubr.f32.mxu0 %v1235
        %1381 = vmatmul.mubr.f32.gmra.mrb[0].mxu0 %v1233
        %v1382 = vpop.f32.mrb[0].mxu0
        %v1383 = vadd.f32 %v1308, %v1382
        %v1384 = vpop.f32.mrb[0].mxu0
        %1385 = vmatprep.mubr.f32.mxu0 %v1236
        %1386 = vmatmul.mubr.f32.gmra.mrb[0].mxu0 %v1234
        %v1387 = vpop.f32.mrb[0].mxu0
        %v1388 = vadd.f32 %v1313, %v1387
        %v1389 = vpop.f32.mrb[0].mxu0
        %1390 = vdwg.mxu0
        %1391 = vmatprep.subr.mxu0 0.0
        %1392 = vmatpush1.msra.mxu0 %v644
        %1393 = vmatprep.subr.mxu0 0.0
        %1394 = vmatpush1.msra.mxu0 %v645
        %1395 = vmatprep.subr.mxu0 0.0
        %1396 = vmatpush1.msra.mxu0 %v646
        %1397 = vmatprep.subr.mxu0 0.0
        %1398 = vmatpush1.msra.mxu0 %v647
        %1399 = vmatprep.subr.mxu0 0.0
        %1400 = vmatpush1.msra.mxu0 %v648
        %1401 = vmatprep.subr.mxu0 0.0
        %1402 = vmatpush1.msra.mxu0 %v649
        %1403 = vmatprep.subr.mxu0 0.0
        %1404 = vmatpush1.msra.mxu0 %v650
        %1405 = vmatprep.subr.mxu0 0.0
        %1406 = vmatpush1.msra.mxu0 %v651
        %1407 = vmatprep.subr.mxu0 0.0
        %1408 = vmatpush1.msra.mxu0 0.0
        %1409 = vmatprep.subr.mxu0 0.0
        %1410 = vmatpush1.msra.mxu0 0.0
        %1411 = vmatprep.subr.mxu0 0.0
        %1412 = vmatpush1.msra.mxu0 0.0
        %1413 = vmatprep.subr.mxu0 0.0
        %1414 = vmatpush1.msra.mxu0 0.0
        %1415 = vmatprep.subr.mxu0 0.0
        %1416 = vmatpush1.msra.mxu0 0.0
        %1417 = vmatprep.subr.mxu0 0.0
        %1418 = vmatpush1.msra.mxu0 0.0
        %1419 = vmatprep.subr.mxu0 0.0
        %1420 = vmatpush1.msra.mxu0 0.0
        %1421 = vmatprep.subr.mxu0 0.0
        %1422 = vmatpush1.msra.mxu0 0.0
        %1423 = vmatprep.subr.mxu0 0.0
        %1424 = vmatpush1.msra.mxu0 0.0
        %1425 = vmatprep.subr.mxu0 0.0
        %1426 = vmatpush1.msra.mxu0 0.0
        %1427 = vmatprep.subr.mxu0 0.0
        %1428 = vmatpush1.msra.mxu0 0.0
        %1429 = vmatprep.subr.mxu0 0.0
        %1430 = vmatpush1.msra.mxu0 0.0
        %1431 = vmatprep.subr.mxu0 0.0
        %1432 = vmatpush1.msra.mxu0 0.0
        %1433 = vmatprep.subr.mxu0 0.0
        %1434 = vmatpush1.msra.mxu0 0.0
        %1435 = vmatprep.subr.mxu0 0.0
        %1436 = vmatpush1.msra.mxu0 0.0
        %1437 = vmatprep.subr.mxu0 0.0
        %1438 = vmatpush1.msra.mxu0 0.0
        %1439 = vmatprep.subr.mxu0 0.0
        %1440 = vmatpush1.msra.mxu0 0.0
        %1441 = vmatprep.subr.mxu0 0.0
        %1442 = vmatpush1.msra.mxu0 0.0
        %1443 = vmatprep.subr.mxu0 0.0
        %1444 = vmatpush1.msra.mxu0 0.0
        %1445 = vmatprep.subr.mxu0 0.0
        %1446 = vmatpush1.msra.mxu0 0.0
        %1447 = vmatprep.subr.mxu0 0.0
        %1448 = vmatpush1.msra.mxu0 0.0
        %1449 = vmatprep.subr.mxu0 0.0
        %1450 = vmatpush1.msra.mxu0 0.0
        %1451 = vmatprep.subr.mxu0 0.0
        %1452 = vmatpush1.msra.mxu0 0.0
        %1453 = vmatprep.subr.mxu0 0.0
        %1454 = vmatpush1.msra.mxu0 0.0
        %1455 = vmatprep.mubr.f32.mxu0 0.0
        %1456 = vmatmul.mubr.f32.gmra.mrb[0].mxu0 %v1237
        %v1457 = vpop.f32.mrb[0].mxu0
        %v1458 = vadd.f32 %v1383, %v1457
        %v1459 = vpop.f32.mrb[0].mxu0
        %1460 = vmatprep.mubr.f32.mxu0 0.0
        %1461 = vmatmul.mubr.f32.gmra.mrb[0].mxu0 %v1239
        %v1462 = vpop.f32.mrb[0].mxu0
        %v1463 = vadd.f32 %v1388, %v1462
        %v1464 = vpop.f32.mrb[0].mxu0
        %1465 = vdwg.mxu0
        %v1468 = vrot.slane %v877, 1
        %v1469 = vrot.slane %v859, 1
        %v1470 = vsel %vm886, %v1468, %v1469
        %v1471 = vrot.slane %v881, 1
        %v1472 = vsel %vm886, %v1469, %v1471
        %1473 = vrot.lane.b32.xlu0 %v1470, 64
        %v1474 = vpop.permute.xlu0 %1473
        %1475 = vrot.lane.b32.xlu0 %v1472, 64
        %v1476 = vpop.permute.xlu0 %1475
        %v1479 = vrot.slane %v877, 2
        %v1480 = vrot.slane %v859, 2
        %v1481 = vsel %vm898, %v1479, %v1480
        %v1482 = vrot.slane %v881, 2
        %v1483 = vsel %vm898, %v1480, %v1482
        %v1486 = vrot.slane %v877, 3
        %v1487 = vrot.slane %v859, 3
        %v1488 = vsel %vm906, %v1486, %v1487
        %v1489 = vrot.slane %v881, 3
        %v1490 = vsel %vm906, %v1487, %v1489
        %1491 = vrot.lane.b32.xlu0 %v1488, 64
        %v1492 = vpop.permute.xlu0 %1491
        %1493 = vrot.lane.b32.xlu0 %v1490, 64
        %v1494 = vpop.permute.xlu0 %1493
        %v1497 = vrot.slane %v877, 4
        %v1498 = vrot.slane %v859, 4
        %v1499 = vsel %vm851, %v1497, %v1498
        %v1500 = vrot.slane %v881, 4
        %v1501 = vsel %vm851, %v1498, %v1500
        %v1504 = vrot.slane %v877, 5
        %v1505 = vrot.slane %v859, 5
        %v1506 = vsel %vm925, %v1504, %v1505
        %v1507 = vrot.slane %v881, 5
        %v1508 = vsel %vm925, %v1505, %v1507
        %1509 = vrot.lane.b32.xlu0 %v1506, 64
        %v1510 = vpop.permute.xlu0 %1509
        %1511 = vrot.lane.b32.xlu0 %v1508, 64
        %v1512 = vpop.permute.xlu0 %1511
        %v1515 = vrot.slane %v877, 6
        %v1516 = vrot.slane %v859, 6
        %v1517 = vsel %vm937, %v1515, %v1516
        %v1518 = vrot.slane %v881, 6
        %v1519 = vsel %vm937, %v1516, %v1518
        %v1522 = vrot.slane %v877, 7
        %v1523 = vrot.slane %v859, 7
        %v1524 = vsel %vm945, %v1522, %v1523
        %v1525 = vrot.slane %v881, 7
        %v1526 = vsel %vm945, %v1523, %v1525
        %1527 = vrot.lane.b32.xlu0 %v1524, 64
        %v1528 = vpop.permute.xlu0 %1527
        %1529 = vrot.lane.b32.xlu0 %v1526, 64
        %v1530 = vpop.permute.xlu0 %1529
        %v1533 = vsel %vm957, %v877, %v1474
        %v1534 = vsel %vm957, %v859, %v1476
        %v1535 = vsel %vm957, %v1481, %v1492
        %v1536 = vsel %vm957, %v1483, %v1494
        %v1537 = vsel %vm957, %v1499, %v1510
        %v1538 = vsel %vm957, %v1501, %v1512
        %v1539 = vsel %vm957, %v1517, %v1528
        %v1540 = vsel %vm957, %v1519, %v1530
        %v1541 = vsel %vm957, %v859, 0
        %v1543 = vsel %vm957, %v881, 0
        %1545 = vmatprep.subr.mxu0 0.0
        %1546 = vmatpush1.msra.mxu0 %v580
        %1547 = vmatprep.subr.mxu0 0.0
        %1548 = vmatpush1.msra.mxu0 %v581
        %1549 = vmatprep.subr.mxu0 0.0
        %1550 = vmatpush1.msra.mxu0 %v582
        %1551 = vmatprep.subr.mxu0 0.0
        %1552 = vmatpush1.msra.mxu0 %v583
        %1553 = vmatprep.subr.mxu0 0.0
        %1554 = vmatpush1.msra.mxu0 %v584
        %1555 = vmatprep.subr.mxu0 0.0
        %1556 = vmatpush1.msra.mxu0 %v585
        %1557 = vmatprep.subr.mxu0 0.0
        %1558 = vmatpush1.msra.mxu0 %v586
        %1559 = vmatprep.subr.mxu0 0.0
        %1560 = vmatpush1.msra.mxu0 %v587
        %1561 = vmatprep.subr.mxu0 0.0
        %1562 = vmatpush1.msra.mxu0 %v588
        %1563 = vmatprep.subr.mxu0 0.0
        %1564 = vmatpush1.msra.mxu0 %v589
        %1565 = vmatprep.subr.mxu0 0.0
        %1566 = vmatpush1.msra.mxu0 %v590
        %1567 = vmatprep.subr.mxu0 0.0
        %1568 = vmatpush1.msra.mxu0 %v591
        %1569 = vmatprep.subr.mxu0 0.0
        %1570 = vmatpush1.msra.mxu0 %v592
        %1571 = vmatprep.subr.mxu0 0.0
        %1572 = vmatpush1.msra.mxu0 %v593
        %1573 = vmatprep.subr.mxu0 0.0
        %1574 = vmatpush1.msra.mxu0 %v594
        %1575 = vmatprep.subr.mxu0 0.0
        %1576 = vmatpush1.msra.mxu0 %v595
        %1577 = vmatprep.subr.mxu0 0.0
        %1578 = vmatpush1.msra.mxu0 %v596
        %1579 = vmatprep.subr.mxu0 0.0
        %1580 = vmatpush1.msra.mxu0 %v597
        %1581 = vmatprep.subr.mxu0 0.0
        %1582 = vmatpush1.msra.mxu0 %v598
        %1583 = vmatprep.subr.mxu0 0.0
        %1584 = vmatpush1.msra.mxu0 %v599
        %1585 = vmatprep.subr.mxu0 0.0
        %1586 = vmatpush1.msra.mxu0 %v600
        %1587 = vmatprep.subr.mxu0 0.0
        %1588 = vmatpush1.msra.mxu0 %v601
        %1589 = vmatprep.subr.mxu0 0.0
        %1590 = vmatpush1.msra.mxu0 %v602
        %1591 = vmatprep.subr.mxu0 0.0
        %1592 = vmatpush1.msra.mxu0 %v603
        %1593 = vmatprep.subr.mxu0 0.0
        %1594 = vmatpush1.msra.mxu0 %v604
        %1595 = vmatprep.subr.mxu0 0.0
        %1596 = vmatpush1.msra.mxu0 %v605
        %1597 = vmatprep.subr.mxu0 0.0
        %1598 = vmatpush1.msra.mxu0 %v606
        %1599 = vmatprep.subr.mxu0 0.0
        %1600 = vmatpush1.msra.mxu0 %v607
        %1601 = vmatprep.subr.mxu0 0.0
        %1602 = vmatpush1.msra.mxu0 %v608
        %1603 = vmatprep.subr.mxu0 0.0
        %1604 = vmatpush1.msra.mxu0 %v609
        %1605 = vmatprep.subr.mxu0 0.0
        %1606 = vmatpush1.msra.mxu0 %v610
        %1607 = vmatprep.subr.mxu0 0.0
        %1608 = vmatpush1.msra.mxu0 %v611
        %1609 = vmatprep.mubr.f32.mxu0 %v1535
        %1610 = vmatmul.mubr.f32.gmra.mrb[0].mxu0 %v1533
        %v1611 = vpop.f32.mrb[0].mxu0
        %v1612 = vadd.f32 0.0, %v1611
        %v1613 = vpop.f32.mrb[0].mxu0
        %1614 = vmatprep.mubr.f32.mxu0 %v1536
        %1615 = vmatmul.mubr.f32.gmra.mrb[0].mxu0 %v1534
        %v1616 = vpop.f32.mrb[0].mxu0
        %v1617 = vadd.f32 0.0, %v1616
        %v1618 = vpop.f32.mrb[0].mxu0
        %1619 = vdwg.mxu0
        %1620 = vmatprep.subr.mxu0 0.0
        %1621 = vmatpush1.msra.mxu0 %v612
        %1622 = vmatprep.subr.mxu0 0.0
        %1623 = vmatpush1.msra.mxu0 %v613
        %1624 = vmatprep.subr.mxu0 0.0
        %1625 = vmatpush1.msra.mxu0 %v614
        %1626 = vmatprep.subr.mxu0 0.0
        %1627 = vmatpush1.msra.mxu0 %v615
        %1628 = vmatprep.subr.mxu0 0.0
        %1629 = vmatpush1.msra.mxu0 %v616
        %1630 = vmatprep.subr.mxu0 0.0
        %1631 = vmatpush1.msra.mxu0 %v617
        %1632 = vmatprep.subr.mxu0 0.0
        %1633 = vmatpush1.msra.mxu0 %v618
        %1634 = vmatprep.subr.mxu0 0.0
        %1635 = vmatpush1.msra.mxu0 %v619
        %1636 = vmatprep.subr.mxu0 0.0
        %1637 = vmatpush1.msra.mxu0 %v620
        %1638 = vmatprep.subr.mxu0 0.0
        %1639 = vmatpush1.msra.mxu0 %v621
        %1640 = vmatprep.subr.mxu0 0.0
        %1641 = vmatpush1.msra.mxu0 %v622
        %1642 = vmatprep.subr.mxu0 0.0
        %1643 = vmatpush1.msra.mxu0 %v623
        %1644 = vmatprep.subr.mxu0 0.0
        %1645 = vmatpush1.msra.mxu0 %v624
        %1646 = vmatprep.subr.mxu0 0.0
        %1647 = vmatpush1.msra.mxu0 %v625
        %1648 = vmatprep.subr.mxu0 0.0
        %1649 = vmatpush1.msra.mxu0 %v626
        %1650 = vmatprep.subr.mxu0 0.0
        %1651 = vmatpush1.msra.mxu0 %v627
        %1652 = vmatprep.subr.mxu0 0.0
        %1653 = vmatpush1.msra.mxu0 %v628
        %1654 = vmatprep.subr.mxu0 0.0
        %1655 = vmatpush1.msra.mxu0 %v629
        %1656 = vmatprep.subr.mxu0 0.0
        %1657 = vmatpush1.msra.mxu0 %v630
        %1658 = vmatprep.subr.mxu0 0.0
        %1659 = vmatpush1.msra.mxu0 %v631
        %1660 = vmatprep.subr.mxu0 0.0
        %1661 = vmatpush1.msra.mxu0 %v632
        %1662 = vmatprep.subr.mxu0 0.0
        %1663 = vmatpush1.msra.mxu0 %v633
        %1664 = vmatprep.subr.mxu0 0.0
        %1665 = vmatpush1.msra.mxu0 %v634
        %1666 = vmatprep.subr.mxu0 0.0
        %1667 = vmatpush1.msra.mxu0 %v635
        %1668 = vmatprep.subr.mxu0 0.0
        %1669 = vmatpush1.msra.mxu0 %v636
        %1670 = vmatprep.subr.mxu0 0.0
        %1671 = vmatpush1.msra.mxu0 %v637
        %1672 = vmatprep.subr.mxu0 0.0
        %1673 = vmatpush1.msra.mxu0 %v638
        %1674 = vmatprep.subr.mxu0 0.0
        %1675 = vmatpush1.msra.mxu0 %v639
        %1676 = vmatprep.subr.mxu0 0.0
        %1677 = vmatpush1.msra.mxu0 %v640
        %1678 = vmatprep.subr.mxu0 0.0
        %1679 = vmatpush1.msra.mxu0 %v641
        %1680 = vmatprep.subr.mxu0 0.0
        %1681 = vmatpush1.msra.mxu0 %v642
        %1682 = vmatprep.subr.mxu0 0.0
        %1683 = vmatpush1.msra.mxu0 %v643
        %1684 = vmatprep.mubr.f32.mxu0 %v1539
        %1685 = vmatmul.mubr.f32.gmra.mrb[0].mxu0 %v1537
        %v1686 = vpop.f32.mrb[0].mxu0
        %v1687 = vadd.f32 %v1612, %v1686
        %v1688 = vpop.f32.mrb[0].mxu0
        %1689 = vmatprep.mubr.f32.mxu0 %v1540
        %1690 = vmatmul.mubr.f32.gmra.mrb[0].mxu0 %v1538
        %v1691 = vpop.f32.mrb[0].mxu0
        %v1692 = vadd.f32 %v1617, %v1691
        %v1693 = vpop.f32.mrb[0].mxu0
        %1694 = vdwg.mxu0
        %1695 = vmatprep.subr.mxu0 0.0
        %1696 = vmatpush1.msra.mxu0 %v644
        %1697 = vmatprep.subr.mxu0 0.0
        %1698 = vmatpush1.msra.mxu0 %v645
        %1699 = vmatprep.subr.mxu0 0.0
        %1700 = vmatpush1.msra.mxu0 %v646
        %1701 = vmatprep.subr.mxu0 0.0
        %1702 = vmatpush1.msra.mxu0 %v647
        %1703 = vmatprep.subr.mxu0 0.0
        %1704 = vmatpush1.msra.mxu0 %v648
        %1705 = vmatprep.subr.mxu0 0.0
        %1706 = vmatpush1.msra.mxu0 %v649
        %1707 = vmatprep.subr.mxu0 0.0
        %1708 = vmatpush1.msra.mxu0 %v650
        %1709 = vmatprep.subr.mxu0 0.0
        %1710 = vmatpush1.msra.mxu0 %v651
        %1711 = vmatprep.subr.mxu0 0.0
        %1712 = vmatpush1.msra.mxu0 0.0
        %1713 = vmatprep.subr.mxu0 0.0
        %1714 = vmatpush1.msra.mxu0 0.0
        %1715 = vmatprep.subr.mxu0 0.0
        %1716 = vmatpush1.msra.mxu0 0.0
        %1717 = vmatprep.subr.mxu0 0.0
        %1718 = vmatpush1.msra.mxu0 0.0
        %1719 = vmatprep.subr.mxu0 0.0
        %1720 = vmatpush1.msra.mxu0 0.0
        %1721 = vmatprep.subr.mxu0 0.0
        %1722 = vmatpush1.msra.mxu0 0.0
        %1723 = vmatprep.subr.mxu0 0.0
        %1724 = vmatpush1.msra.mxu0 0.0
        %1725 = vmatprep.subr.mxu0 0.0
        %1726 = vmatpush1.msra.mxu0 0.0
        %1727 = vmatprep.subr.mxu0 0.0
        %1728 = vmatpush1.msra.mxu0 0.0
        %1729 = vmatprep.subr.mxu0 0.0
        %1730 = vmatpush1.msra.mxu0 0.0
        %1731 = vmatprep.subr.mxu0 0.0
        %1732 = vmatpush1.msra.mxu0 0.0
        %1733 = vmatprep.subr.mxu0 0.0
        %1734 = vmatpush1.msra.mxu0 0.0
        %1735 = vmatprep.subr.mxu0 0.0
        %1736 = vmatpush1.msra.mxu0 0.0
        %1737 = vmatprep.subr.mxu0 0.0
        %1738 = vmatpush1.msra.mxu0 0.0
        %1739 = vmatprep.subr.mxu0 0.0
        %1740 = vmatpush1.msra.mxu0 0.0
        %1741 = vmatprep.subr.mxu0 0.0
        %1742 = vmatpush1.msra.mxu0 0.0
        %1743 = vmatprep.subr.mxu0 0.0
        %1744 = vmatpush1.msra.mxu0 0.0
        %1745 = vmatprep.subr.mxu0 0.0
        %1746 = vmatpush1.msra.mxu0 0.0
        %1747 = vmatprep.subr.mxu0 0.0
        %1748 = vmatpush1.msra.mxu0 0.0
        %1749 = vmatprep.subr.mxu0 0.0
        %1750 = vmatpush1.msra.mxu0 0.0
        %1751 = vmatprep.subr.mxu0 0.0
        %1752 = vmatpush1.msra.mxu0 0.0
        %1753 = vmatprep.subr.mxu0 0.0
        %1754 = vmatpush1.msra.mxu0 0.0
        %1755 = vmatprep.subr.mxu0 0.0
        %1756 = vmatpush1.msra.mxu0 0.0
        %1757 = vmatprep.subr.mxu0 0.0
        %1758 = vmatpush1.msra.mxu0 0.0
        %1759 = vmatprep.mubr.f32.mxu0 0.0
        %1760 = vmatmul.mubr.f32.gmra.mrb[0].mxu0 %v1541
        %v1761 = vpop.f32.mrb[0].mxu0
        %v1762 = vadd.f32 %v1687, %v1761
        %v1763 = vpop.f32.mrb[0].mxu0
        %1764 = vmatprep.mubr.f32.mxu0 0.0
        %1765 = vmatmul.mubr.f32.gmra.mrb[0].mxu0 %v1543
        %v1766 = vpop.f32.mrb[0].mxu0
        %v1767 = vadd.f32 %v1692, %v1766
        %v1768 = vpop.f32.mrb[0].mxu0
        %1769 = vdwg.mxu0
        %1770 = vrot.lane.b32.xlu0 %v877, 64
        %v1771 = vpop.permute.xlu0 %1770
        %1772 = vrot.lane.b32.xlu0 %v859, 64
        %v1773 = vpop.permute.xlu0 %1772
        %1778 = vrot.lane.b32.xlu0 %v1481, 64
        %v1779 = vpop.permute.xlu0 %1778
        %1780 = vrot.lane.b32.xlu0 %v1483, 64
        %v1781 = vpop.permute.xlu0 %1780
        %1786 = vrot.lane.b32.xlu0 %v1499, 64
        %v1787 = vpop.permute.xlu0 %1786
        %1788 = vrot.lane.b32.xlu0 %v1501, 64
        %v1789 = vpop.permute.xlu0 %1788
        %1794 = vrot.lane.b32.xlu0 %v1517, 64
        %v1795 = vpop.permute.xlu0 %1794
        %1796 = vrot.lane.b32.xlu0 %v1519, 64
        %v1797 = vpop.permute.xlu0 %1796
        %1802 = vrot.lane.b32.xlu0 %v881, 64
        %v1803 = vpop.permute.xlu0 %1802
        %v1804 = vsel %vm957, %v1771, %v1470
        %v1805 = vsel %vm957, %v1773, %v1472
        %v1806 = vsel %vm957, %v1779, %v1488
        %v1807 = vsel %vm957, %v1781, %v1490
        %v1808 = vsel %vm957, %v1787, %v1506
        %v1809 = vsel %vm957, %v1789, %v1508
        %v1810 = vsel %vm957, %v1795, %v1524
        %v1811 = vsel %vm957, %v1797, %v1526
        %v1812 = vsel %vm957, %v1773, 0
        %v1814 = vsel %vm957, %v1803, 0
        %1816 = vmatprep.subr.mxu0 0.0
        %1817 = vmatpush1.msra.mxu0 %v580
        %1818 = vmatprep.subr.mxu0 0.0
        %1819 = vmatpush1.msra.mxu0 %v581
        %1820 = vmatprep.subr.mxu0 0.0
        %1821 = vmatpush1.msra.mxu0 %v582
        %1822 = vmatprep.subr.mxu0 0.0
        %1823 = vmatpush1.msra.mxu0 %v583
        %1824 = vmatprep.subr.mxu0 0.0
        %1825 = vmatpush1.msra.mxu0 %v584
        %1826 = vmatprep.subr.mxu0 0.0
        %1827 = vmatpush1.msra.mxu0 %v585
        %1828 = vmatprep.subr.mxu0 0.0
        %1829 = vmatpush1.msra.mxu0 %v586
        %1830 = vmatprep.subr.mxu0 0.0
        %1831 = vmatpush1.msra.mxu0 %v587
        %1832 = vmatprep.subr.mxu0 0.0
        %1833 = vmatpush1.msra.mxu0 %v588
        %1834 = vmatprep.subr.mxu0 0.0
        %1835 = vmatpush1.msra.mxu0 %v589
        %1836 = vmatprep.subr.mxu0 0.0
        %1837 = vmatpush1.msra.mxu0 %v590
        %1838 = vmatprep.subr.mxu0 0.0
        %1839 = vmatpush1.msra.mxu0 %v591
        %1840 = vmatprep.subr.mxu0 0.0
        %1841 = vmatpush1.msra.mxu0 %v592
        %1842 = vmatprep.subr.mxu0 0.0
        %1843 = vmatpush1.msra.mxu0 %v593
        %1844 = vmatprep.subr.mxu0 0.0
        %1845 = vmatpush1.msra.mxu0 %v594
        %1846 = vmatprep.subr.mxu0 0.0
        %1847 = vmatpush1.msra.mxu0 %v595
        %1848 = vmatprep.subr.mxu0 0.0
        %1849 = vmatpush1.msra.mxu0 %v596
        %1850 = vmatprep.subr.mxu0 0.0
        %1851 = vmatpush1.msra.mxu0 %v597
        %1852 = vmatprep.subr.mxu0 0.0
        %1853 = vmatpush1.msra.mxu0 %v598
        %1854 = vmatprep.subr.mxu0 0.0
        %1855 = vmatpush1.msra.mxu0 %v599
        %1856 = vmatprep.subr.mxu0 0.0
        %1857 = vmatpush1.msra.mxu0 %v600
        %1858 = vmatprep.subr.mxu0 0.0
        %1859 = vmatpush1.msra.mxu0 %v601
        %1860 = vmatprep.subr.mxu0 0.0
        %1861 = vmatpush1.msra.mxu0 %v602
        %1862 = vmatprep.subr.mxu0 0.0
        %1863 = vmatpush1.msra.mxu0 %v603
        %1864 = vmatprep.subr.mxu0 0.0
        %1865 = vmatpush1.msra.mxu0 %v604
        %1866 = vmatprep.subr.mxu0 0.0
        %1867 = vmatpush1.msra.mxu0 %v605
        %1868 = vmatprep.subr.mxu0 0.0
        %1869 = vmatpush1.msra.mxu0 %v606
        %1870 = vmatprep.subr.mxu0 0.0
        %1871 = vmatpush1.msra.mxu0 %v607
        %1872 = vmatprep.subr.mxu0 0.0
        %1873 = vmatpush1.msra.mxu0 %v608
        %1874 = vmatprep.subr.mxu0 0.0
        %1875 = vmatpush1.msra.mxu0 %v609
        %1876 = vmatprep.subr.mxu0 0.0
        %1877 = vmatpush1.msra.mxu0 %v610
        %1878 = vmatprep.subr.mxu0 0.0
        %1879 = vmatpush1.msra.mxu0 %v611
        %1880 = vmatprep.mubr.f32.mxu0 %v1806
        %1881 = vmatmul.mubr.f32.gmra.mrb[0].mxu0 %v1804
        %v1882 = vpop.f32.mrb[0].mxu0
        %v1883 = vadd.f32 0.0, %v1882
        %v1884 = vpop.f32.mrb[0].mxu0
        %1885 = vmatprep.mubr.f32.mxu0 %v1807
        %1886 = vmatmul.mubr.f32.gmra.mrb[0].mxu0 %v1805
        %v1887 = vpop.f32.mrb[0].mxu0
        %v1888 = vadd.f32 0.0, %v1887
        %v1889 = vpop.f32.mrb[0].mxu0
        %1890 = vdwg.mxu0
        %1891 = vmatprep.subr.mxu0 0.0
        %1892 = vmatpush1.msra.mxu0 %v612
        %1893 = vmatprep.subr.mxu0 0.0
        %1894 = vmatpush1.msra.mxu0 %v613
        %1895 = vmatprep.subr.mxu0 0.0
        %1896 = vmatpush1.msra.mxu0 %v614
        %1897 = vmatprep.subr.mxu0 0.0
        %1898 = vmatpush1.msra.mxu0 %v615
        %1899 = vmatprep.subr.mxu0 0.0
        %1900 = vmatpush1.msra.mxu0 %v616
        %1901 = vmatprep.subr.mxu0 0.0
        %1902 = vmatpush1.msra.mxu0 %v617
        %1903 = vmatprep.subr.mxu0 0.0
        %1904 = vmatpush1.msra.mxu0 %v618
        %1905 = vmatprep.subr.mxu0 0.0
        %1906 = vmatpush1.msra.mxu0 %v619
        %1907 = vmatprep.subr.mxu0 0.0
        %1908 = vmatpush1.msra.mxu0 %v620
        %1909 = vmatprep.subr.mxu0 0.0
        %1910 = vmatpush1.msra.mxu0 %v621
        %1911 = vmatprep.subr.mxu0 0.0
        %1912 = vmatpush1.msra.mxu0 %v622
        %1913 = vmatprep.subr.mxu0 0.0
        %1914 = vmatpush1.msra.mxu0 %v623
        %1915 = vmatprep.subr.mxu0 0.0
        %1916 = vmatpush1.msra.mxu0 %v624
        %1917 = vmatprep.subr.mxu0 0.0
        %1918 = vmatpush1.msra.mxu0 %v625
        %1919 = vmatprep.subr.mxu0 0.0
        %1920 = vmatpush1.msra.mxu0 %v626
        %1921 = vmatprep.subr.mxu0 0.0
        %1922 = vmatpush1.msra.mxu0 %v627
        %1923 = vmatprep.subr.mxu0 0.0
        %1924 = vmatpush1.msra.mxu0 %v628
        %1925 = vmatprep.subr.mxu0 0.0
        %1926 = vmatpush1.msra.mxu0 %v629
        %1927 = vmatprep.subr.mxu0 0.0
        %1928 = vmatpush1.msra.mxu0 %v630
        %1929 = vmatprep.subr.mxu0 0.0
        %1930 = vmatpush1.msra.mxu0 %v631
        %1931 = vmatprep.subr.mxu0 0.0
        %1932 = vmatpush1.msra.mxu0 %v632
        %1933 = vmatprep.subr.mxu0 0.0
        %1934 = vmatpush1.msra.mxu0 %v633
        %1935 = vmatprep.subr.mxu0 0.0
        %1936 = vmatpush1.msra.mxu0 %v634
        %1937 = vmatprep.subr.mxu0 0.0
        %1938 = vmatpush1.msra.mxu0 %v635
        %1939 = vmatprep.subr.mxu0 0.0
        %1940 = vmatpush1.msra.mxu0 %v636
        %1941 = vmatprep.subr.mxu0 0.0
        %1942 = vmatpush1.msra.mxu0 %v637
        %1943 = vmatprep.subr.mxu0 0.0
        %1944 = vmatpush1.msra.mxu0 %v638
        %1945 = vmatprep.subr.mxu0 0.0
        %1946 = vmatpush1.msra.mxu0 %v639
        %1947 = vmatprep.subr.mxu0 0.0
        %1948 = vmatpush1.msra.mxu0 %v640
        %1949 = vmatprep.subr.mxu0 0.0
        %1950 = vmatpush1.msra.mxu0 %v641
        %1951 = vmatprep.subr.mxu0 0.0
        %1952 = vmatpush1.msra.mxu0 %v642
        %1953 = vmatprep.subr.mxu0 0.0
        %1954 = vmatpush1.msra.mxu0 %v643
        %1955 = vmatprep.mubr.f32.mxu0 %v1810
        %1956 = vmatmul.mubr.f32.gmra.mrb[0].mxu0 %v1808
        %v1957 = vpop.f32.mrb[0].mxu0
        %v1958 = vadd.f32 %v1883, %v1957
        %v1959 = vpop.f32.mrb[0].mxu0
        %1960 = vmatprep.mubr.f32.mxu0 %v1811
        %1961 = vmatmul.mubr.f32.gmra.mrb[0].mxu0 %v1809
        %v1962 = vpop.f32.mrb[0].mxu0
        %v1963 = vadd.f32 %v1888, %v1962
        %v1964 = vpop.f32.mrb[0].mxu0
        %1965 = vdwg.mxu0
        %1966 = vmatprep.subr.mxu0 0.0
        %1967 = vmatpush1.msra.mxu0 %v644
        %1968 = vmatprep.subr.mxu0 0.0
        %1969 = vmatpush1.msra.mxu0 %v645
        %1970 = vmatprep.subr.mxu0 0.0
        %1971 = vmatpush1.msra.mxu0 %v646
        %1972 = vmatprep.subr.mxu0 0.0
        %1973 = vmatpush1.msra.mxu0 %v647
        %1974 = vmatprep.subr.mxu0 0.0
        %1975 = vmatpush1.msra.mxu0 %v648
        %1976 = vmatprep.subr.mxu0 0.0
        %1977 = vmatpush1.msra.mxu0 %v649
        %1978 = vmatprep.subr.mxu0 0.0
        %1979 = vmatpush1.msra.mxu0 %v650
        %1980 = vmatprep.subr.mxu0 0.0
        %1981 = vmatpush1.msra.mxu0 %v651
        %1982 = vmatprep.subr.mxu0 0.0
        %1983 = vmatpush1.msra.mxu0 0.0
        %1984 = vmatprep.subr.mxu0 0.0
        %1985 = vmatpush1.msra.mxu0 0.0
        %1986 = vmatprep.subr.mxu0 0.0
        %1987 = vmatpush1.msra.mxu0 0.0
        %1988 = vmatprep.subr.mxu0 0.0
        %1989 = vmatpush1.msra.mxu0 0.0
        %1990 = vmatprep.subr.mxu0 0.0
        %1991 = vmatpush1.msra.mxu0 0.0
        %1992 = vmatprep.subr.mxu0 0.0
        %1993 = vmatpush1.msra.mxu0 0.0
        %1994 = vmatprep.subr.mxu0 0.0
        %1995 = vmatpush1.msra.mxu0 0.0
        %1996 = vmatprep.subr.mxu0 0.0
        %1997 = vmatpush1.msra.mxu0 0.0
        %1998 = vmatprep.subr.mxu0 0.0
        %1999 = vmatpush1.msra.mxu0 0.0
        %2000 = vmatprep.subr.mxu0 0.0
        %2001 = vmatpush1.msra.mxu0 0.0
        %2002 = vmatprep.subr.mxu0 0.0
        %2003 = vmatpush1.msra.mxu0 0.0
        %2004 = vmatprep.subr.mxu0 0.0
        %2005 = vmatpush1.msra.mxu0 0.0
        %2006 = vmatprep.subr.mxu0 0.0
        %2007 = vmatpush1.msra.mxu0 0.0
        %2008 = vmatprep.subr.mxu0 0.0
        %2009 = vmatpush1.msra.mxu0 0.0
        %2010 = vmatprep.subr.mxu0 0.0
        %2011 = vmatpush1.msra.mxu0 0.0
        %2012 = vmatprep.subr.mxu0 0.0
        %2013 = vmatpush1.msra.mxu0 0.0
        %2014 = vmatprep.subr.mxu0 0.0
        %2015 = vmatpush1.msra.mxu0 0.0
        %2016 = vmatprep.subr.mxu0 0.0
        %2017 = vmatpush1.msra.mxu0 0.0
        %2018 = vmatprep.subr.mxu0 0.0
        %2019 = vmatpush1.msra.mxu0 0.0
        %2020 = vmatprep.subr.mxu0 0.0
        %2021 = vmatpush1.msra.mxu0 0.0
        %2022 = vmatprep.subr.mxu0 0.0
        %2023 = vmatpush1.msra.mxu0 0.0
        %2024 = vmatprep.subr.mxu0 0.0
        %2025 = vmatpush1.msra.mxu0 0.0
        %2026 = vmatprep.subr.mxu0 0.0
        %2027 = vmatpush1.msra.mxu0 0.0
        %2028 = vmatprep.subr.mxu0 0.0
        %2029 = vmatpush1.msra.mxu0 0.0
        %2030 = vmatprep.mubr.f32.mxu0 0.0
        %2031 = vmatmul.mubr.f32.gmra.mrb[0].mxu0 %v1812
        %v2032 = vpop.f32.mrb[0].mxu0
        %v2033 = vadd.f32 %v1958, %v2032
        %v2034 = vpop.f32.mrb[0].mxu0
        %2035 = vmatprep.mubr.f32.mxu0 0.0
        %2036 = vmatmul.mubr.f32.gmra.mrb[0].mxu0 %v1814
        %v2037 = vpop.f32.mrb[0].mxu0
        %v2038 = vadd.f32 %v1963, %v2037
        %v2039 = vpop.f32.mrb[0].mxu0
        %2040 = vdwg.mxu0
        %v2043 = vrot.slane %v878, 1
        %v2044 = vrot.slane %v861, 1
        %v2045 = vsel %vm886, %v2043, %v2044
        %v2046 = vrot.slane %v882, 1
        %v2047 = vsel %vm886, %v2044, %v2046
        %2048 = vrot.lane.b32.xlu0 %v2045, 64
        %v2049 = vpop.permute.xlu0 %2048
        %2050 = vrot.lane.b32.xlu0 %v2047, 64
        %v2051 = vpop.permute.xlu0 %2050
        %v2054 = vrot.slane %v878, 2
        %v2055 = vrot.slane %v861, 2
        %v2056 = vsel %vm898, %v2054, %v2055
        %v2057 = vrot.slane %v882, 2
        %v2058 = vsel %vm898, %v2055, %v2057
        %v2061 = vrot.slane %v878, 3
        %v2062 = vrot.slane %v861, 3
        %v2063 = vsel %vm906, %v2061, %v2062
        %v2064 = vrot.slane %v882, 3
        %v2065 = vsel %vm906, %v2062, %v2064
        %2066 = vrot.lane.b32.xlu0 %v2063, 64
        %v2067 = vpop.permute.xlu0 %2066
        %2068 = vrot.lane.b32.xlu0 %v2065, 64
        %v2069 = vpop.permute.xlu0 %2068
        %v2072 = vrot.slane %v878, 4
        %v2073 = vrot.slane %v861, 4
        %v2074 = vsel %vm851, %v2072, %v2073
        %v2075 = vrot.slane %v882, 4
        %v2076 = vsel %vm851, %v2073, %v2075
        %v2079 = vrot.slane %v878, 5
        %v2080 = vrot.slane %v861, 5
        %v2081 = vsel %vm925, %v2079, %v2080
        %v2082 = vrot.slane %v882, 5
        %v2083 = vsel %vm925, %v2080, %v2082
        %2084 = vrot.lane.b32.xlu0 %v2081, 64
        %v2085 = vpop.permute.xlu0 %2084
        %2086 = vrot.lane.b32.xlu0 %v2083, 64
        %v2087 = vpop.permute.xlu0 %2086
        %v2090 = vrot.slane %v878, 6
        %v2091 = vrot.slane %v861, 6
        %v2092 = vsel %vm937, %v2090, %v2091
        %v2093 = vrot.slane %v882, 6
        %v2094 = vsel %vm937, %v2091, %v2093
        %v2097 = vrot.slane %v878, 7
        %v2098 = vrot.slane %v861, 7
        %v2099 = vsel %vm945, %v2097, %v2098
        %v2100 = vrot.slane %v882, 7
        %v2101 = vsel %vm945, %v2098, %v2100
        %2102 = vrot.lane.b32.xlu0 %v2099, 64
        %v2103 = vpop.permute.xlu0 %2102
        %2104 = vrot.lane.b32.xlu0 %v2101, 64
        %v2105 = vpop.permute.xlu0 %2104
        %v2108 = vsel %vm957, %v878, %v2049
        %v2109 = vsel %vm957, %v861, %v2051
        %v2110 = vsel %vm957, %v2056, %v2067
        %v2111 = vsel %vm957, %v2058, %v2069
        %v2112 = vsel %vm957, %v2074, %v2085
        %v2113 = vsel %vm957, %v2076, %v2087
        %v2114 = vsel %vm957, %v2092, %v2103
        %v2115 = vsel %vm957, %v2094, %v2105
        %v2116 = vsel %vm957, %v861, 0
        %v2118 = vsel %vm957, %v882, 0
        %2120 = vmatprep.subr.mxu0 0.0
        %2121 = vmatpush1.msra.mxu0 %v580
        %2122 = vmatprep.subr.mxu0 0.0
        %2123 = vmatpush1.msra.mxu0 %v581
        %2124 = vmatprep.subr.mxu0 0.0
        %2125 = vmatpush1.msra.mxu0 %v582
        %2126 = vmatprep.subr.mxu0 0.0
        %2127 = vmatpush1.msra.mxu0 %v583
        %2128 = vmatprep.subr.mxu0 0.0
        %2129 = vmatpush1.msra.mxu0 %v584
        %2130 = vmatprep.subr.mxu0 0.0
        %2131 = vmatpush1.msra.mxu0 %v585
        %2132 = vmatprep.subr.mxu0 0.0
        %2133 = vmatpush1.msra.mxu0 %v586
        %2134 = vmatprep.subr.mxu0 0.0
        %2135 = vmatpush1.msra.mxu0 %v587
        %2136 = vmatprep.subr.mxu0 0.0
        %2137 = vmatpush1.msra.mxu0 %v588
        %2138 = vmatprep.subr.mxu0 0.0
        %2139 = vmatpush1.msra.mxu0 %v589
        %2140 = vmatprep.subr.mxu0 0.0
        %2141 = vmatpush1.msra.mxu0 %v590
        %2142 = vmatprep.subr.mxu0 0.0
        %2143 = vmatpush1.msra.mxu0 %v591
        %2144 = vmatprep.subr.mxu0 0.0
        %2145 = vmatpush1.msra.mxu0 %v592
        %2146 = vmatprep.subr.mxu0 0.0
        %2147 = vmatpush1.msra.mxu0 %v593
        %2148 = vmatprep.subr.mxu0 0.0
        %2149 = vmatpush1.msra.mxu0 %v594
        %2150 = vmatprep.subr.mxu0 0.0
        %2151 = vmatpush1.msra.mxu0 %v595
        %2152 = vmatprep.subr.mxu0 0.0
        %2153 = vmatpush1.msra.mxu0 %v596
        %2154 = vmatprep.subr.mxu0 0.0
        %2155 = vmatpush1.msra.mxu0 %v597
        %2156 = vmatprep.subr.mxu0 0.0
        %2157 = vmatpush1.msra.mxu0 %v598
        %2158 = vmatprep.subr.mxu0 0.0
        %2159 = vmatpush1.msra.mxu0 %v599
        %2160 = vmatprep.subr.mxu0 0.0
        %2161 = vmatpush1.msra.mxu0 %v600
        %2162 = vmatprep.subr.mxu0 0.0
        %2163 = vmatpush1.msra.mxu0 %v601
        %2164 = vmatprep.subr.mxu0 0.0
        %2165 = vmatpush1.msra.mxu0 %v602
        %2166 = vmatprep.subr.mxu0 0.0
        %2167 = vmatpush1.msra.mxu0 %v603
        %2168 = vmatprep.subr.mxu0 0.0
        %2169 = vmatpush1.msra.mxu0 %v604
        %2170 = vmatprep.subr.mxu0 0.0
        %2171 = vmatpush1.msra.mxu0 %v605
        %2172 = vmatprep.subr.mxu0 0.0
        %2173 = vmatpush1.msra.mxu0 %v606
        %2174 = vmatprep.subr.mxu0 0.0
        %2175 = vmatpush1.msra.mxu0 %v607
        %2176 = vmatprep.subr.mxu0 0.0
        %2177 = vmatpush1.msra.mxu0 %v608
        %2178 = vmatprep.subr.mxu0 0.0
        %2179 = vmatpush1.msra.mxu0 %v609
        %2180 = vmatprep.subr.mxu0 0.0
        %2181 = vmatpush1.msra.mxu0 %v610
        %2182 = vmatprep.subr.mxu0 0.0
        %2183 = vmatpush1.msra.mxu0 %v611
        %2184 = vmatprep.mubr.f32.mxu0 %v2110
        %2185 = vmatmul.mubr.f32.gmra.mrb[0].mxu0 %v2108
        %v2186 = vpop.f32.mrb[0].mxu0
        %v2187 = vadd.f32 0.0, %v2186
        %v2188 = vpop.f32.mrb[0].mxu0
        %2189 = vmatprep.mubr.f32.mxu0 %v2111
        %2190 = vmatmul.mubr.f32.gmra.mrb[0].mxu0 %v2109
        %v2191 = vpop.f32.mrb[0].mxu0
        %v2192 = vadd.f32 0.0, %v2191
        %v2193 = vpop.f32.mrb[0].mxu0
        %2194 = vdwg.mxu0
        %2195 = vmatprep.subr.mxu0 0.0
        %2196 = vmatpush1.msra.mxu0 %v612
        %2197 = vmatprep.subr.mxu0 0.0
        %2198 = vmatpush1.msra.mxu0 %v613
        %2199 = vmatprep.subr.mxu0 0.0
        %2200 = vmatpush1.msra.mxu0 %v614
        %2201 = vmatprep.subr.mxu0 0.0
        %2202 = vmatpush1.msra.mxu0 %v615
        %2203 = vmatprep.subr.mxu0 0.0
        %2204 = vmatpush1.msra.mxu0 %v616
        %2205 = vmatprep.subr.mxu0 0.0
        %2206 = vmatpush1.msra.mxu0 %v617
        %2207 = vmatprep.subr.mxu0 0.0
        %2208 = vmatpush1.msra.mxu0 %v618
        %2209 = vmatprep.subr.mxu0 0.0
        %2210 = vmatpush1.msra.mxu0 %v619
        %2211 = vmatprep.subr.mxu0 0.0
        %2212 = vmatpush1.msra.mxu0 %v620
        %2213 = vmatprep.subr.mxu0 0.0
        %2214 = vmatpush1.msra.mxu0 %v621
        %2215 = vmatprep.subr.mxu0 0.0
        %2216 = vmatpush1.msra.mxu0 %v622
        %2217 = vmatprep.subr.mxu0 0.0
        %2218 = vmatpush1.msra.mxu0 %v623
        %2219 = vmatprep.subr.mxu0 0.0
        %2220 = vmatpush1.msra.mxu0 %v624
        %2221 = vmatprep.subr.mxu0 0.0
        %2222 = vmatpush1.msra.mxu0 %v625
        %2223 = vmatprep.subr.mxu0 0.0
        %2224 = vmatpush1.msra.mxu0 %v626
        %2225 = vmatprep.subr.mxu0 0.0
        %2226 = vmatpush1.msra.mxu0 %v627
        %2227 = vmatprep.subr.mxu0 0.0
        %2228 = vmatpush1.msra.mxu0 %v628
        %2229 = vmatprep.subr.mxu0 0.0
        %2230 = vmatpush1.msra.mxu0 %v629
        %2231 = vmatprep.subr.mxu0 0.0
        %2232 = vmatpush1.msra.mxu0 %v630
        %2233 = vmatprep.subr.mxu0 0.0
        %2234 = vmatpush1.msra.mxu0 %v631
        %2235 = vmatprep.subr.mxu0 0.0
        %2236 = vmatpush1.msra.mxu0 %v632
        %2237 = vmatprep.subr.mxu0 0.0
        %2238 = vmatpush1.msra.mxu0 %v633
        %2239 = vmatprep.subr.mxu0 0.0
        %2240 = vmatpush1.msra.mxu0 %v634
        %2241 = vmatprep.subr.mxu0 0.0
        %2242 = vmatpush1.msra.mxu0 %v635
        %2243 = vmatprep.subr.mxu0 0.0
        %2244 = vmatpush1.msra.mxu0 %v636
        %2245 = vmatprep.subr.mxu0 0.0
        %2246 = vmatpush1.msra.mxu0 %v637
        %2247 = vmatprep.subr.mxu0 0.0
        %2248 = vmatpush1.msra.mxu0 %v638
        %2249 = vmatprep.subr.mxu0 0.0
        %2250 = vmatpush1.msra.mxu0 %v639
        %2251 = vmatprep.subr.mxu0 0.0
        %2252 = vmatpush1.msra.mxu0 %v640
        %2253 = vmatprep.subr.mxu0 0.0
        %2254 = vmatpush1.msra.mxu0 %v641
        %2255 = vmatprep.subr.mxu0 0.0
        %2256 = vmatpush1.msra.mxu0 %v642
        %2257 = vmatprep.subr.mxu0 0.0
        %2258 = vmatpush1.msra.mxu0 %v643
        %2259 = vmatprep.mubr.f32.mxu0 %v2114
        %2260 = vmatmul.mubr.f32.gmra.mrb[0].mxu0 %v2112
        %v2261 = vpop.f32.mrb[0].mxu0
        %v2262 = vadd.f32 %v2187, %v2261
        %v2263 = vpop.f32.mrb[0].mxu0
        %2264 = vmatprep.mubr.f32.mxu0 %v2115
        %2265 = vmatmul.mubr.f32.gmra.mrb[0].mxu0 %v2113
        %v2266 = vpop.f32.mrb[0].mxu0
        %v2267 = vadd.f32 %v2192, %v2266
        %v2268 = vpop.f32.mrb[0].mxu0
        %2269 = vdwg.mxu0
        %2270 = vmatprep.subr.mxu0 0.0
        %2271 = vmatpush1.msra.mxu0 %v644
        %2272 = vmatprep.subr.mxu0 0.0
        %2273 = vmatpush1.msra.mxu0 %v645
        %2274 = vmatprep.subr.mxu0 0.0
        %2275 = vmatpush1.msra.mxu0 %v646
        %2276 = vmatprep.subr.mxu0 0.0
        %2277 = vmatpush1.msra.mxu0 %v647
        %2278 = vmatprep.subr.mxu0 0.0
        %2279 = vmatpush1.msra.mxu0 %v648
        %2280 = vmatprep.subr.mxu0 0.0
        %2281 = vmatpush1.msra.mxu0 %v649
        %2282 = vmatprep.subr.mxu0 0.0
        %2283 = vmatpush1.msra.mxu0 %v650
        %2284 = vmatprep.subr.mxu0 0.0
        %2285 = vmatpush1.msra.mxu0 %v651
        %2286 = vmatprep.subr.mxu0 0.0
        %2287 = vmatpush1.msra.mxu0 0.0
        %2288 = vmatprep.subr.mxu0 0.0
        %2289 = vmatpush1.msra.mxu0 0.0
        %2290 = vmatprep.subr.mxu0 0.0
        %2291 = vmatpush1.msra.mxu0 0.0
        %2292 = vmatprep.subr.mxu0 0.0
        %2293 = vmatpush1.msra.mxu0 0.0
        %2294 = vmatprep.subr.mxu0 0.0
        %2295 = vmatpush1.msra.mxu0 0.0
        %2296 = vmatprep.subr.mxu0 0.0
        %2297 = vmatpush1.msra.mxu0 0.0
        %2298 = vmatprep.subr.mxu0 0.0
        %2299 = vmatpush1.msra.mxu0 0.0
        %2300 = vmatprep.subr.mxu0 0.0
        %2301 = vmatpush1.msra.mxu0 0.0
        %2302 = vmatprep.subr.mxu0 0.0
        %2303 = vmatpush1.msra.mxu0 0.0
        %2304 = vmatprep.subr.mxu0 0.0
        %2305 = vmatpush1.msra.mxu0 0.0
        %2306 = vmatprep.subr.mxu0 0.0
        %2307 = vmatpush1.msra.mxu0 0.0
        %2308 = vmatprep.subr.mxu0 0.0
        %2309 = vmatpush1.msra.mxu0 0.0
        %2310 = vmatprep.subr.mxu0 0.0
        %2311 = vmatpush1.msra.mxu0 0.0
        %2312 = vmatprep.subr.mxu0 0.0
        %2313 = vmatpush1.msra.mxu0 0.0
        %2314 = vmatprep.subr.mxu0 0.0
        %2315 = vmatpush1.msra.mxu0 0.0
        %2316 = vmatprep.subr.mxu0 0.0
        %2317 = vmatpush1.msra.mxu0 0.0
        %2318 = vmatprep.subr.mxu0 0.0
        %2319 = vmatpush1.msra.mxu0 0.0
        %2320 = vmatprep.subr.mxu0 0.0
        %2321 = vmatpush1.msra.mxu0 0.0
        %2322 = vmatprep.subr.mxu0 0.0
        %2323 = vmatpush1.msra.mxu0 0.0
        %2324 = vmatprep.subr.mxu0 0.0
        %2325 = vmatpush1.msra.mxu0 0.0
        %2326 = vmatprep.subr.mxu0 0.0
        %2327 = vmatpush1.msra.mxu0 0.0
        %2328 = vmatprep.subr.mxu0 0.0
        %2329 = vmatpush1.msra.mxu0 0.0
        %2330 = vmatprep.subr.mxu0 0.0
        %2331 = vmatpush1.msra.mxu0 0.0
        %2332 = vmatprep.subr.mxu0 0.0
        %2333 = vmatpush1.msra.mxu0 0.0
        %2334 = vmatprep.mubr.f32.mxu0 0.0
        %2335 = vmatmul.mubr.f32.gmra.mrb[0].mxu0 %v2116
        %v2336 = vpop.f32.mrb[0].mxu0
        %v2337 = vadd.f32 %v2262, %v2336
        %v2338 = vpop.f32.mrb[0].mxu0
        %2339 = vmatprep.mubr.f32.mxu0 0.0
        %2340 = vmatmul.mubr.f32.gmra.mrb[0].mxu0 %v2118
        %v2341 = vpop.f32.mrb[0].mxu0
        %v2342 = vadd.f32 %v2267, %v2341
        %v2343 = vpop.f32.mrb[0].mxu0
        %2344 = vdwg.mxu0
        %2345 = vrot.lane.b32.xlu0 %v878, 64
        %v2346 = vpop.permute.xlu0 %2345
        %2347 = vrot.lane.b32.xlu0 %v861, 64
        %v2348 = vpop.permute.xlu0 %2347
        %2353 = vrot.lane.b32.xlu0 %v2056, 64
        %v2354 = vpop.permute.xlu0 %2353
        %2355 = vrot.lane.b32.xlu0 %v2058, 64
        %v2356 = vpop.permute.xlu0 %2355
        %2361 = vrot.lane.b32.xlu0 %v2074, 64
        %v2362 = vpop.permute.xlu0 %2361
        %2363 = vrot.lane.b32.xlu0 %v2076, 64
        %v2364 = vpop.permute.xlu0 %2363
        %2369 = vrot.lane.b32.xlu0 %v2092, 64
        %v2370 = vpop.permute.xlu0 %2369
        %2371 = vrot.lane.b32.xlu0 %v2094, 64
        %v2372 = vpop.permute.xlu0 %2371
        %2377 = vrot.lane.b32.xlu0 %v882, 64
        %v2378 = vpop.permute.xlu0 %2377
        %v2379 = vsel %vm957, %v2346, %v2045
        %v2380 = vsel %vm957, %v2348, %v2047
        %v2381 = vsel %vm957, %v2354, %v2063
        %v2382 = vsel %vm957, %v2356, %v2065
        %v2383 = vsel %vm957, %v2362, %v2081
        %v2384 = vsel %vm957, %v2364, %v2083
        %v2385 = vsel %vm957, %v2370, %v2099
        %v2386 = vsel %vm957, %v2372, %v2101
        %v2387 = vsel %vm957, %v2348, 0
        %v2389 = vsel %vm957, %v2378, 0
        %2391 = vmatprep.subr.mxu0 0.0
        %2392 = vmatpush1.msra.mxu0 %v580
        %2393 = vmatprep.subr.mxu0 0.0
        %2394 = vmatpush1.msra.mxu0 %v581
        %2395 = vmatprep.subr.mxu0 0.0
        %2396 = vmatpush1.msra.mxu0 %v582
        %2397 = vmatprep.subr.mxu0 0.0
        %2398 = vmatpush1.msra.mxu0 %v583
        %2399 = vmatprep.subr.mxu0 0.0
        %2400 = vmatpush1.msra.mxu0 %v584
        %2401 = vmatprep.subr.mxu0 0.0
        %2402 = vmatpush1.msra.mxu0 %v585
        %2403 = vmatprep.subr.mxu0 0.0
        %2404 = vmatpush1.msra.mxu0 %v586
        %2405 = vmatprep.subr.mxu0 0.0
        %2406 = vmatpush1.msra.mxu0 %v587
        %2407 = vmatprep.subr.mxu0 0.0
        %2408 = vmatpush1.msra.mxu0 %v588
        %2409 = vmatprep.subr.mxu0 0.0
        %2410 = vmatpush1.msra.mxu0 %v589
        %2411 = vmatprep.subr.mxu0 0.0
        %2412 = vmatpush1.msra.mxu0 %v590
        %2413 = vmatprep.subr.mxu0 0.0
        %2414 = vmatpush1.msra.mxu0 %v591
        %2415 = vmatprep.subr.mxu0 0.0
        %2416 = vmatpush1.msra.mxu0 %v592
        %2417 = vmatprep.subr.mxu0 0.0
        %2418 = vmatpush1.msra.mxu0 %v593
        %2419 = vmatprep.subr.mxu0 0.0
        %2420 = vmatpush1.msra.mxu0 %v594
        %2421 = vmatprep.subr.mxu0 0.0
        %2422 = vmatpush1.msra.mxu0 %v595
        %2423 = vmatprep.subr.mxu0 0.0
        %2424 = vmatpush1.msra.mxu0 %v596
        %2425 = vmatprep.subr.mxu0 0.0
        %2426 = vmatpush1.msra.mxu0 %v597
        %2427 = vmatprep.subr.mxu0 0.0
        %2428 = vmatpush1.msra.mxu0 %v598
        %2429 = vmatprep.subr.mxu0 0.0
        %2430 = vmatpush1.msra.mxu0 %v599
        %2431 = vmatprep.subr.mxu0 0.0
        %2432 = vmatpush1.msra.mxu0 %v600
        %2433 = vmatprep.subr.mxu0 0.0
        %2434 = vmatpush1.msra.mxu0 %v601
        %2435 = vmatprep.subr.mxu0 0.0
        %2436 = vmatpush1.msra.mxu0 %v602
        %2437 = vmatprep.subr.mxu0 0.0
        %2438 = vmatpush1.msra.mxu0 %v603
        %2439 = vmatprep.subr.mxu0 0.0
        %2440 = vmatpush1.msra.mxu0 %v604
        %2441 = vmatprep.subr.mxu0 0.0
        %2442 = vmatpush1.msra.mxu0 %v605
        %2443 = vmatprep.subr.mxu0 0.0
        %2444 = vmatpush1.msra.mxu0 %v606
        %2445 = vmatprep.subr.mxu0 0.0
        %2446 = vmatpush1.msra.mxu0 %v607
        %2447 = vmatprep.subr.mxu0 0.0
        %2448 = vmatpush1.msra.mxu0 %v608
        %2449 = vmatprep.subr.mxu0 0.0
        %2450 = vmatpush1.msra.mxu0 %v609
        %2451 = vmatprep.subr.mxu0 0.0
        %2452 = vmatpush1.msra.mxu0 %v610
        %2453 = vmatprep.subr.mxu0 0.0
        %2454 = vmatpush1.msra.mxu0 %v611
        %2455 = vmatprep.mubr.f32.mxu0 %v2381
        %2456 = vmatmul.mubr.f32.gmra.mrb[0].mxu0 %v2379
        %v2457 = vpop.f32.mrb[0].mxu0
        %v2458 = vadd.f32 0.0, %v2457
        %v2459 = vpop.f32.mrb[0].mxu0
        %2460 = vmatprep.mubr.f32.mxu0 %v2382
        %2461 = vmatmul.mubr.f32.gmra.mrb[0].mxu0 %v2380
        %v2462 = vpop.f32.mrb[0].mxu0
        %v2463 = vadd.f32 0.0, %v2462
        %v2464 = vpop.f32.mrb[0].mxu0
        %2465 = vdwg.mxu0
        %2466 = vmatprep.subr.mxu0 0.0
        %2467 = vmatpush1.msra.mxu0 %v612
        %2468 = vmatprep.subr.mxu0 0.0
        %2469 = vmatpush1.msra.mxu0 %v613
        %2470 = vmatprep.subr.mxu0 0.0
        %2471 = vmatpush1.msra.mxu0 %v614
        %2472 = vmatprep.subr.mxu0 0.0
        %2473 = vmatpush1.msra.mxu0 %v615
        %2474 = vmatprep.subr.mxu0 0.0
        %2475 = vmatpush1.msra.mxu0 %v616
        %2476 = vmatprep.subr.mxu0 0.0
        %2477 = vmatpush1.msra.mxu0 %v617
        %2478 = vmatprep.subr.mxu0 0.0
        %2479 = vmatpush1.msra.mxu0 %v618
        %2480 = vmatprep.subr.mxu0 0.0
        %2481 = vmatpush1.msra.mxu0 %v619
        %2482 = vmatprep.subr.mxu0 0.0
        %2483 = vmatpush1.msra.mxu0 %v620
        %2484 = vmatprep.subr.mxu0 0.0
        %2485 = vmatpush1.msra.mxu0 %v621
        %2486 = vmatprep.subr.mxu0 0.0
        %2487 = vmatpush1.msra.mxu0 %v622
        %2488 = vmatprep.subr.mxu0 0.0
        %2489 = vmatpush1.msra.mxu0 %v623
        %2490 = vmatprep.subr.mxu0 0.0
        %2491 = vmatpush1.msra.mxu0 %v624
        %2492 = vmatprep.subr.mxu0 0.0
        %2493 = vmatpush1.msra.mxu0 %v625
        %2494 = vmatprep.subr.mxu0 0.0
        %2495 = vmatpush1.msra.mxu0 %v626
        %2496 = vmatprep.subr.mxu0 0.0
        %2497 = vmatpush1.msra.mxu0 %v627
        %2498 = vmatprep.subr.mxu0 0.0
        %2499 = vmatpush1.msra.mxu0 %v628
        %2500 = vmatprep.subr.mxu0 0.0
        %2501 = vmatpush1.msra.mxu0 %v629
        %2502 = vmatprep.subr.mxu0 0.0
        %2503 = vmatpush1.msra.mxu0 %v630
        %2504 = vmatprep.subr.mxu0 0.0
        %2505 = vmatpush1.msra.mxu0 %v631
        %2506 = vmatprep.subr.mxu0 0.0
        %2507 = vmatpush1.msra.mxu0 %v632
        %2508 = vmatprep.subr.mxu0 0.0
        %2509 = vmatpush1.msra.mxu0 %v633
        %2510 = vmatprep.subr.mxu0 0.0
        %2511 = vmatpush1.msra.mxu0 %v634
        %2512 = vmatprep.subr.mxu0 0.0
        %2513 = vmatpush1.msra.mxu0 %v635
        %2514 = vmatprep.subr.mxu0 0.0
        %2515 = vmatpush1.msra.mxu0 %v636
        %2516 = vmatprep.subr.mxu0 0.0
        %2517 = vmatpush1.msra.mxu0 %v637
        %2518 = vmatprep.subr.mxu0 0.0
        %2519 = vmatpush1.msra.mxu0 %v638
        %2520 = vmatprep.subr.mxu0 0.0
        %2521 = vmatpush1.msra.mxu0 %v639
        %2522 = vmatprep.subr.mxu0 0.0
        %2523 = vmatpush1.msra.mxu0 %v640
        %2524 = vmatprep.subr.mxu0 0.0
        %2525 = vmatpush1.msra.mxu0 %v641
        %2526 = vmatprep.subr.mxu0 0.0
        %2527 = vmatpush1.msra.mxu0 %v642
        %2528 = vmatprep.subr.mxu0 0.0
        %2529 = vmatpush1.msra.mxu0 %v643
        %2530 = vmatprep.mubr.f32.mxu0 %v2385
        %2531 = vmatmul.mubr.f32.gmra.mrb[0].mxu0 %v2383
        %v2532 = vpop.f32.mrb[0].mxu0
        %v2533 = vadd.f32 %v2458, %v2532
        %v2534 = vpop.f32.mrb[0].mxu0
        %2535 = vmatprep.mubr.f32.mxu0 %v2386
        %2536 = vmatmul.mubr.f32.gmra.mrb[0].mxu0 %v2384
        %v2537 = vpop.f32.mrb[0].mxu0
        %v2538 = vadd.f32 %v2463, %v2537
        %v2539 = vpop.f32.mrb[0].mxu0
        %2540 = vdwg.mxu0
        %2541 = vmatprep.subr.mxu0 0.0
        %2542 = vmatpush1.msra.mxu0 %v644
        %2543 = vmatprep.subr.mxu0 0.0
        %2544 = vmatpush1.msra.mxu0 %v645
        %2545 = vmatprep.subr.mxu0 0.0
        %2546 = vmatpush1.msra.mxu0 %v646
        %2547 = vmatprep.subr.mxu0 0.0
        %2548 = vmatpush1.msra.mxu0 %v647
        %2549 = vmatprep.subr.mxu0 0.0
        %2550 = vmatpush1.msra.mxu0 %v648
        %2551 = vmatprep.subr.mxu0 0.0
        %2552 = vmatpush1.msra.mxu0 %v649
        %2553 = vmatprep.subr.mxu0 0.0
        %2554 = vmatpush1.msra.mxu0 %v650
        %2555 = vmatprep.subr.mxu0 0.0
        %2556 = vmatpush1.msra.mxu0 %v651
        %2557 = vmatprep.subr.mxu0 0.0
        %2558 = vmatpush1.msra.mxu0 0.0
        %2559 = vmatprep.subr.mxu0 0.0
        %2560 = vmatpush1.msra.mxu0 0.0
        %2561 = vmatprep.subr.mxu0 0.0
        %2562 = vmatpush1.msra.mxu0 0.0
        %2563 = vmatprep.subr.mxu0 0.0
        %2564 = vmatpush1.msra.mxu0 0.0
        %2565 = vmatprep.subr.mxu0 0.0
        %2566 = vmatpush1.msra.mxu0 0.0
        %2567 = vmatprep.subr.mxu0 0.0
        %2568 = vmatpush1.msra.mxu0 0.0
        %2569 = vmatprep.subr.mxu0 0.0
        %2570 = vmatpush1.msra.mxu0 0.0
        %2571 = vmatprep.subr.mxu0 0.0
        %2572 = vmatpush1.msra.mxu0 0.0
        %2573 = vmatprep.subr.mxu0 0.0
        %2574 = vmatpush1.msra.mxu0 0.0
        %2575 = vmatprep.subr.mxu0 0.0
        %2576 = vmatpush1.msra.mxu0 0.0
        %2577 = vmatprep.subr.mxu0 0.0
        %2578 = vmatpush1.msra.mxu0 0.0
        %2579 = vmatprep.subr.mxu0 0.0
        %2580 = vmatpush1.msra.mxu0 0.0
        %2581 = vmatprep.subr.mxu0 0.0
        %2582 = vmatpush1.msra.mxu0 0.0
        %2583 = vmatprep.subr.mxu0 0.0
        %2584 = vmatpush1.msra.mxu0 0.0
        %2585 = vmatprep.subr.mxu0 0.0
        %2586 = vmatpush1.msra.mxu0 0.0
        %2587 = vmatprep.subr.mxu0 0.0
        %2588 = vmatpush1.msra.mxu0 0.0
        %2589 = vmatprep.subr.mxu0 0.0
        %2590 = vmatpush1.msra.mxu0 0.0
        %2591 = vmatprep.subr.mxu0 0.0
        %2592 = vmatpush1.msra.mxu0 0.0
        %2593 = vmatprep.subr.mxu0 0.0
        %2594 = vmatpush1.msra.mxu0 0.0
        %2595 = vmatprep.subr.mxu0 0.0
        %2596 = vmatpush1.msra.mxu0 0.0
        %2597 = vmatprep.subr.mxu0 0.0
        %2598 = vmatpush1.msra.mxu0 0.0
        %2599 = vmatprep.subr.mxu0 0.0
        %2600 = vmatpush1.msra.mxu0 0.0
        %2601 = vmatprep.subr.mxu0 0.0
        %2602 = vmatpush1.msra.mxu0 0.0
        %2603 = vmatprep.subr.mxu0 0.0
        %2604 = vmatpush1.msra.mxu0 0.0
        %2605 = vmatprep.mubr.f32.mxu0 0.0
        %2606 = vmatmul.mubr.f32.gmra.mrb[0].mxu0 %v2387
        %v2607 = vpop.f32.mrb[0].mxu0
        %v2608 = vadd.f32 %v2533, %v2607
        %v2609 = vpop.f32.mrb[0].mxu0
        %2610 = vmatprep.mubr.f32.mxu0 0.0
        %2611 = vmatmul.mubr.f32.gmra.mrb[0].mxu0 %v2389
        %v2612 = vpop.f32.mrb[0].mxu0
        %v2613 = vadd.f32 %v2538, %v2612
        %v2614 = vpop.f32.mrb[0].mxu0
        %2615 = vdwg.mxu0
        %v2618 = vrot.slane %v879, 1
        %v2619 = vrot.slane %v863, 1
        %v2620 = vsel %vm886, %v2618, %v2619
        %v2621 = vrot.slane %v883, 1
        %v2622 = vsel %vm886, %v2619, %v2621
        %2623 = vrot.lane.b32.xlu0 %v2620, 64
        %v2624 = vpop.permute.xlu0 %2623
        %2625 = vrot.lane.b32.xlu0 %v2622, 64
        %v2626 = vpop.permute.xlu0 %2625
        %v2629 = vrot.slane %v879, 2
        %v2630 = vrot.slane %v863, 2
        %v2631 = vsel %vm898, %v2629, %v2630
        %v2632 = vrot.slane %v883, 2
        %v2633 = vsel %vm898, %v2630, %v2632
        %v2636 = vrot.slane %v879, 3
        %v2637 = vrot.slane %v863, 3
        %v2638 = vsel %vm906, %v2636, %v2637
        %v2639 = vrot.slane %v883, 3
        %v2640 = vsel %vm906, %v2637, %v2639
        %2641 = vrot.lane.b32.xlu0 %v2638, 64
        %v2642 = vpop.permute.xlu0 %2641
        %2643 = vrot.lane.b32.xlu0 %v2640, 64
        %v2644 = vpop.permute.xlu0 %2643
        %v2647 = vrot.slane %v879, 4
        %v2648 = vrot.slane %v863, 4
        %v2649 = vsel %vm851, %v2647, %v2648
        %v2650 = vrot.slane %v883, 4
        %v2651 = vsel %vm851, %v2648, %v2650
        %v2654 = vrot.slane %v879, 5
        %v2655 = vrot.slane %v863, 5
        %v2656 = vsel %vm925, %v2654, %v2655
        %v2657 = vrot.slane %v883, 5
        %v2658 = vsel %vm925, %v2655, %v2657
        %2659 = vrot.lane.b32.xlu0 %v2656, 64
        %v2660 = vpop.permute.xlu0 %2659
        %2661 = vrot.lane.b32.xlu0 %v2658, 64
        %v2662 = vpop.permute.xlu0 %2661
        %v2665 = vrot.slane %v879, 6
        %v2666 = vrot.slane %v863, 6
        %v2667 = vsel %vm937, %v2665, %v2666
        %v2668 = vrot.slane %v883, 6
        %v2669 = vsel %vm937, %v2666, %v2668
        %v2672 = vrot.slane %v879, 7
        %v2673 = vrot.slane %v863, 7
        %v2674 = vsel %vm945, %v2672, %v2673
        %v2675 = vrot.slane %v883, 7
        %v2676 = vsel %vm945, %v2673, %v2675
        %2677 = vrot.lane.b32.xlu0 %v2674, 64
        %v2678 = vpop.permute.xlu0 %2677
        %2679 = vrot.lane.b32.xlu0 %v2676, 64
        %v2680 = vpop.permute.xlu0 %2679
        %v2683 = vsel %vm957, %v879, %v2624
        %v2684 = vsel %vm957, %v863, %v2626
        %v2685 = vsel %vm957, %v2631, %v2642
        %v2686 = vsel %vm957, %v2633, %v2644
        %v2687 = vsel %vm957, %v2649, %v2660
        %v2688 = vsel %vm957, %v2651, %v2662
        %v2689 = vsel %vm957, %v2667, %v2678
        %v2690 = vsel %vm957, %v2669, %v2680
        %v2691 = vsel %vm957, %v863, 0
        %v2693 = vsel %vm957, %v883, 0
        %2695 = vmatprep.subr.mxu0 0.0
        %2696 = vmatpush1.msra.mxu0 %v580
        %2697 = vmatprep.subr.mxu0 0.0
        %2698 = vmatpush1.msra.mxu0 %v581
        %2699 = vmatprep.subr.mxu0 0.0
        %2700 = vmatpush1.msra.mxu0 %v582
        %2701 = vmatprep.subr.mxu0 0.0
        %2702 = vmatpush1.msra.mxu0 %v583
        %2703 = vmatprep.subr.mxu0 0.0
        %2704 = vmatpush1.msra.mxu0 %v584
        %2705 = vmatprep.subr.mxu0 0.0
        %2706 = vmatpush1.msra.mxu0 %v585
        %2707 = vmatprep.subr.mxu0 0.0
        %2708 = vmatpush1.msra.mxu0 %v586
        %2709 = vmatprep.subr.mxu0 0.0
        %2710 = vmatpush1.msra.mxu0 %v587
        %2711 = vmatprep.subr.mxu0 0.0
        %2712 = vmatpush1.msra.mxu0 %v588
        %2713 = vmatprep.subr.mxu0 0.0
        %2714 = vmatpush1.msra.mxu0 %v589
        %2715 = vmatprep.subr.mxu0 0.0
        %2716 = vmatpush1.msra.mxu0 %v590
        %2717 = vmatprep.subr.mxu0 0.0
        %2718 = vmatpush1.msra.mxu0 %v591
        %2719 = vmatprep.subr.mxu0 0.0
        %2720 = vmatpush1.msra.mxu0 %v592
        %2721 = vmatprep.subr.mxu0 0.0
        %2722 = vmatpush1.msra.mxu0 %v593
        %2723 = vmatprep.subr.mxu0 0.0
        %2724 = vmatpush1.msra.mxu0 %v594
        %2725 = vmatprep.subr.mxu0 0.0
        %2726 = vmatpush1.msra.mxu0 %v595
        %2727 = vmatprep.subr.mxu0 0.0
        %2728 = vmatpush1.msra.mxu0 %v596
        %2729 = vmatprep.subr.mxu0 0.0
        %2730 = vmatpush1.msra.mxu0 %v597
        %2731 = vmatprep.subr.mxu0 0.0
        %2732 = vmatpush1.msra.mxu0 %v598
        %2733 = vmatprep.subr.mxu0 0.0
        %2734 = vmatpush1.msra.mxu0 %v599
        %2735 = vmatprep.subr.mxu0 0.0
        %2736 = vmatpush1.msra.mxu0 %v600
        %2737 = vmatprep.subr.mxu0 0.0
        %2738 = vmatpush1.msra.mxu0 %v601
        %2739 = vmatprep.subr.mxu0 0.0
        %2740 = vmatpush1.msra.mxu0 %v602
        %2741 = vmatprep.subr.mxu0 0.0
        %2742 = vmatpush1.msra.mxu0 %v603
        %2743 = vmatprep.subr.mxu0 0.0
        %2744 = vmatpush1.msra.mxu0 %v604
        %2745 = vmatprep.subr.mxu0 0.0
        %2746 = vmatpush1.msra.mxu0 %v605
        %2747 = vmatprep.subr.mxu0 0.0
        %2748 = vmatpush1.msra.mxu0 %v606
        %2749 = vmatprep.subr.mxu0 0.0
        %2750 = vmatpush1.msra.mxu0 %v607
        %2751 = vmatprep.subr.mxu0 0.0
        %2752 = vmatpush1.msra.mxu0 %v608
        %2753 = vmatprep.subr.mxu0 0.0
        %2754 = vmatpush1.msra.mxu0 %v609
        %2755 = vmatprep.subr.mxu0 0.0
        %2756 = vmatpush1.msra.mxu0 %v610
        %2757 = vmatprep.subr.mxu0 0.0
        %2758 = vmatpush1.msra.mxu0 %v611
        %2759 = vmatprep.mubr.f32.mxu0 %v2685
        %2760 = vmatmul.mubr.f32.gmra.mrb[0].mxu0 %v2683
        %v2761 = vpop.f32.mrb[0].mxu0
        %v2762 = vadd.f32 0.0, %v2761
        %v2763 = vpop.f32.mrb[0].mxu0
        %2764 = vmatprep.mubr.f32.mxu0 %v2686
        %2765 = vmatmul.mubr.f32.gmra.mrb[0].mxu0 %v2684
        %v2766 = vpop.f32.mrb[0].mxu0
        %v2767 = vadd.f32 0.0, %v2766
        %v2768 = vpop.f32.mrb[0].mxu0
        %2769 = vdwg.mxu0
        %2770 = vmatprep.subr.mxu0 0.0
        %2771 = vmatpush1.msra.mxu0 %v612
        %2772 = vmatprep.subr.mxu0 0.0
        %2773 = vmatpush1.msra.mxu0 %v613
        %2774 = vmatprep.subr.mxu0 0.0
        %2775 = vmatpush1.msra.mxu0 %v614
        %2776 = vmatprep.subr.mxu0 0.0
        %2777 = vmatpush1.msra.mxu0 %v615
        %2778 = vmatprep.subr.mxu0 0.0
        %2779 = vmatpush1.msra.mxu0 %v616
        %2780 = vmatprep.subr.mxu0 0.0
        %2781 = vmatpush1.msra.mxu0 %v617
        %2782 = vmatprep.subr.mxu0 0.0
        %2783 = vmatpush1.msra.mxu0 %v618
        %2784 = vmatprep.subr.mxu0 0.0
        %2785 = vmatpush1.msra.mxu0 %v619
        %2786 = vmatprep.subr.mxu0 0.0
        %2787 = vmatpush1.msra.mxu0 %v620
        %2788 = vmatprep.subr.mxu0 0.0
        %2789 = vmatpush1.msra.mxu0 %v621
        %2790 = vmatprep.subr.mxu0 0.0
        %2791 = vmatpush1.msra.mxu0 %v622
        %2792 = vmatprep.subr.mxu0 0.0
        %2793 = vmatpush1.msra.mxu0 %v623
        %2794 = vmatprep.subr.mxu0 0.0
        %2795 = vmatpush1.msra.mxu0 %v624
        %2796 = vmatprep.subr.mxu0 0.0
        %2797 = vmatpush1.msra.mxu0 %v625
        %2798 = vmatprep.subr.mxu0 0.0
        %2799 = vmatpush1.msra.mxu0 %v626
        %2800 = vmatprep.subr.mxu0 0.0
        %2801 = vmatpush1.msra.mxu0 %v627
        %2802 = vmatprep.subr.mxu0 0.0
        %2803 = vmatpush1.msra.mxu0 %v628
        %2804 = vmatprep.subr.mxu0 0.0
        %2805 = vmatpush1.msra.mxu0 %v629
        %2806 = vmatprep.subr.mxu0 0.0
        %2807 = vmatpush1.msra.mxu0 %v630
        %2808 = vmatprep.subr.mxu0 0.0
        %2809 = vmatpush1.msra.mxu0 %v631
        %2810 = vmatprep.subr.mxu0 0.0
        %2811 = vmatpush1.msra.mxu0 %v632
        %2812 = vmatprep.subr.mxu0 0.0
        %2813 = vmatpush1.msra.mxu0 %v633
        %2814 = vmatprep.subr.mxu0 0.0
        %2815 = vmatpush1.msra.mxu0 %v634
        %2816 = vmatprep.subr.mxu0 0.0
        %2817 = vmatpush1.msra.mxu0 %v635
        %2818 = vmatprep.subr.mxu0 0.0
        %2819 = vmatpush1.msra.mxu0 %v636
        %2820 = vmatprep.subr.mxu0 0.0
        %2821 = vmatpush1.msra.mxu0 %v637
        %2822 = vmatprep.subr.mxu0 0.0
        %2823 = vmatpush1.msra.mxu0 %v638
        %2824 = vmatprep.subr.mxu0 0.0
        %2825 = vmatpush1.msra.mxu0 %v639
        %2826 = vmatprep.subr.mxu0 0.0
        %2827 = vmatpush1.msra.mxu0 %v640
        %2828 = vmatprep.subr.mxu0 0.0
        %2829 = vmatpush1.msra.mxu0 %v641
        %2830 = vmatprep.subr.mxu0 0.0
        %2831 = vmatpush1.msra.mxu0 %v642
        %2832 = vmatprep.subr.mxu0 0.0
        %2833 = vmatpush1.msra.mxu0 %v643
        %2834 = vmatprep.mubr.f32.mxu0 %v2689
        %2835 = vmatmul.mubr.f32.gmra.mrb[0].mxu0 %v2687
        %v2836 = vpop.f32.mrb[0].mxu0
        %v2837 = vadd.f32 %v2762, %v2836
        %v2838 = vpop.f32.mrb[0].mxu0
        %2839 = vmatprep.mubr.f32.mxu0 %v2690
        %2840 = vmatmul.mubr.f32.gmra.mrb[0].mxu0 %v2688
        %v2841 = vpop.f32.mrb[0].mxu0
        %v2842 = vadd.f32 %v2767, %v2841
        %v2843 = vpop.f32.mrb[0].mxu0
        %2844 = vdwg.mxu0
        %2845 = vmatprep.subr.mxu0 0.0
        %2846 = vmatpush1.msra.mxu0 %v644
        %2847 = vmatprep.subr.mxu0 0.0
        %2848 = vmatpush1.msra.mxu0 %v645
        %2849 = vmatprep.subr.mxu0 0.0
        %2850 = vmatpush1.msra.mxu0 %v646
        %2851 = vmatprep.subr.mxu0 0.0
        %2852 = vmatpush1.msra.mxu0 %v647
        %2853 = vmatprep.subr.mxu0 0.0
        %2854 = vmatpush1.msra.mxu0 %v648
        %2855 = vmatprep.subr.mxu0 0.0
        %2856 = vmatpush1.msra.mxu0 %v649
        %2857 = vmatprep.subr.mxu0 0.0
        %2858 = vmatpush1.msra.mxu0 %v650
        %2859 = vmatprep.subr.mxu0 0.0
        %2860 = vmatpush1.msra.mxu0 %v651
        %2861 = vmatprep.subr.mxu0 0.0
        %2862 = vmatpush1.msra.mxu0 0.0
        %2863 = vmatprep.subr.mxu0 0.0
        %2864 = vmatpush1.msra.mxu0 0.0
        %2865 = vmatprep.subr.mxu0 0.0
        %2866 = vmatpush1.msra.mxu0 0.0
        %2867 = vmatprep.subr.mxu0 0.0
        %2868 = vmatpush1.msra.mxu0 0.0
        %2869 = vmatprep.subr.mxu0 0.0
        %2870 = vmatpush1.msra.mxu0 0.0
        %2871 = vmatprep.subr.mxu0 0.0
        %2872 = vmatpush1.msra.mxu0 0.0
        %2873 = vmatprep.subr.mxu0 0.0
        %2874 = vmatpush1.msra.mxu0 0.0
        %2875 = vmatprep.subr.mxu0 0.0
        %2876 = vmatpush1.msra.mxu0 0.0
        %2877 = vmatprep.subr.mxu0 0.0
        %2878 = vmatpush1.msra.mxu0 0.0
        %2879 = vmatprep.subr.mxu0 0.0
        %2880 = vmatpush1.msra.mxu0 0.0
        %2881 = vmatprep.subr.mxu0 0.0
        %2882 = vmatpush1.msra.mxu0 0.0
        %2883 = vmatprep.subr.mxu0 0.0
        %2884 = vmatpush1.msra.mxu0 0.0
        %2885 = vmatprep.subr.mxu0 0.0
        %2886 = vmatpush1.msra.mxu0 0.0
        %2887 = vmatprep.subr.mxu0 0.0
        %2888 = vmatpush1.msra.mxu0 0.0
        %2889 = vmatprep.subr.mxu0 0.0
        %2890 = vmatpush1.msra.mxu0 0.0
        %2891 = vmatprep.subr.mxu0 0.0
        %2892 = vmatpush1.msra.mxu0 0.0
        %2893 = vmatprep.subr.mxu0 0.0
        %2894 = vmatpush1.msra.mxu0 0.0
        %2895 = vmatprep.subr.mxu0 0.0
        %2896 = vmatpush1.msra.mxu0 0.0
        %2897 = vmatprep.subr.mxu0 0.0
        %2898 = vmatpush1.msra.mxu0 0.0
        %2899 = vmatprep.subr.mxu0 0.0
        %2900 = vmatpush1.msra.mxu0 0.0
        %2901 = vmatprep.subr.mxu0 0.0
        %2902 = vmatpush1.msra.mxu0 0.0
        %2903 = vmatprep.subr.mxu0 0.0
        %2904 = vmatpush1.msra.mxu0 0.0
        %2905 = vmatprep.subr.mxu0 0.0
        %2906 = vmatpush1.msra.mxu0 0.0
        %2907 = vmatprep.subr.mxu0 0.0
        %2908 = vmatpush1.msra.mxu0 0.0
        %2909 = vmatprep.mubr.f32.mxu0 0.0
        %2910 = vmatmul.mubr.f32.gmra.mrb[0].mxu0 %v2691
        %v2911 = vpop.f32.mrb[0].mxu0
        %v2912 = vadd.f32 %v2837, %v2911
        %v2913 = vpop.f32.mrb[0].mxu0
        %2914 = vmatprep.mubr.f32.mxu0 0.0
        %2915 = vmatmul.mubr.f32.gmra.mrb[0].mxu0 %v2693
        %v2916 = vpop.f32.mrb[0].mxu0
        %v2917 = vadd.f32 %v2842, %v2916
        %v2918 = vpop.f32.mrb[0].mxu0
        %2919 = vdwg.mxu0
        %2920 = vrot.lane.b32.xlu0 %v879, 64
        %v2921 = vpop.permute.xlu0 %2920
        %2922 = vrot.lane.b32.xlu0 %v863, 64
        %v2923 = vpop.permute.xlu0 %2922
        %2928 = vrot.lane.b32.xlu0 %v2631, 64
        %v2929 = vpop.permute.xlu0 %2928
        %2930 = vrot.lane.b32.xlu0 %v2633, 64
        %v2931 = vpop.permute.xlu0 %2930
        %2936 = vrot.lane.b32.xlu0 %v2649, 64
        %v2937 = vpop.permute.xlu0 %2936
        %2938 = vrot.lane.b32.xlu0 %v2651, 64
        %v2939 = vpop.permute.xlu0 %2938
        %2944 = vrot.lane.b32.xlu0 %v2667, 64
        %v2945 = vpop.permute.xlu0 %2944
        %2946 = vrot.lane.b32.xlu0 %v2669, 64
        %v2947 = vpop.permute.xlu0 %2946
        %2952 = vrot.lane.b32.xlu0 %v883, 64
        %v2953 = vpop.permute.xlu0 %2952
        %v2954 = vsel %vm957, %v2921, %v2620
        %v2955 = vsel %vm957, %v2923, %v2622
        %v2956 = vsel %vm957, %v2929, %v2638
        %v2957 = vsel %vm957, %v2931, %v2640
        %v2958 = vsel %vm957, %v2937, %v2656
        %v2959 = vsel %vm957, %v2939, %v2658
        %v2960 = vsel %vm957, %v2945, %v2674
        %v2961 = vsel %vm957, %v2947, %v2676
        %v2962 = vsel %vm957, %v2923, 0
        %v2964 = vsel %vm957, %v2953, 0
        %2966 = vmatprep.subr.mxu0 0.0
        %2967 = vmatpush1.msra.mxu0 %v580
        %2968 = vmatprep.subr.mxu0 0.0
        %2969 = vmatpush1.msra.mxu0 %v581
        %2970 = vmatprep.subr.mxu0 0.0
        %2971 = vmatpush1.msra.mxu0 %v582
        %2972 = vmatprep.subr.mxu0 0.0
        %2973 = vmatpush1.msra.mxu0 %v583
        %2974 = vmatprep.subr.mxu0 0.0
        %2975 = vmatpush1.msra.mxu0 %v584
        %2976 = vmatprep.subr.mxu0 0.0
        %2977 = vmatpush1.msra.mxu0 %v585
        %2978 = vmatprep.subr.mxu0 0.0
        %2979 = vmatpush1.msra.mxu0 %v586
        %2980 = vmatprep.subr.mxu0 0.0
        %2981 = vmatpush1.msra.mxu0 %v587
        %2982 = vmatprep.subr.mxu0 0.0
        %2983 = vmatpush1.msra.mxu0 %v588
        %2984 = vmatprep.subr.mxu0 0.0
        %2985 = vmatpush1.msra.mxu0 %v589
        %2986 = vmatprep.subr.mxu0 0.0
        %2987 = vmatpush1.msra.mxu0 %v590
        %2988 = vmatprep.subr.mxu0 0.0
        %2989 = vmatpush1.msra.mxu0 %v591
        %2990 = vmatprep.subr.mxu0 0.0
        %2991 = vmatpush1.msra.mxu0 %v592
        %2992 = vmatprep.subr.mxu0 0.0
        %2993 = vmatpush1.msra.mxu0 %v593
        %2994 = vmatprep.subr.mxu0 0.0
        %2995 = vmatpush1.msra.mxu0 %v594
        %2996 = vmatprep.subr.mxu0 0.0
        %2997 = vmatpush1.msra.mxu0 %v595
        %2998 = vmatprep.subr.mxu0 0.0
        %2999 = vmatpush1.msra.mxu0 %v596
        %3000 = vmatprep.subr.mxu0 0.0
        %3001 = vmatpush1.msra.mxu0 %v597
        %3002 = vmatprep.subr.mxu0 0.0
        %3003 = vmatpush1.msra.mxu0 %v598
        %3004 = vmatprep.subr.mxu0 0.0
        %3005 = vmatpush1.msra.mxu0 %v599
        %3006 = vmatprep.subr.mxu0 0.0
        %3007 = vmatpush1.msra.mxu0 %v600
        %3008 = vmatprep.subr.mxu0 0.0
        %3009 = vmatpush1.msra.mxu0 %v601
        %3010 = vmatprep.subr.mxu0 0.0
        %3011 = vmatpush1.msra.mxu0 %v602
        %3012 = vmatprep.subr.mxu0 0.0
        %3013 = vmatpush1.msra.mxu0 %v603
        %3014 = vmatprep.subr.mxu0 0.0
        %3015 = vmatpush1.msra.mxu0 %v604
        %3016 = vmatprep.subr.mxu0 0.0
        %3017 = vmatpush1.msra.mxu0 %v605
        %3018 = vmatprep.subr.mxu0 0.0
        %3019 = vmatpush1.msra.mxu0 %v606
        %3020 = vmatprep.subr.mxu0 0.0
        %3021 = vmatpush1.msra.mxu0 %v607
        %3022 = vmatprep.subr.mxu0 0.0
        %3023 = vmatpush1.msra.mxu0 %v608
        %3024 = vmatprep.subr.mxu0 0.0
        %3025 = vmatpush1.msra.mxu0 %v609
        %3026 = vmatprep.subr.mxu0 0.0
        %3027 = vmatpush1.msra.mxu0 %v610
        %3028 = vmatprep.subr.mxu0 0.0
        %3029 = vmatpush1.msra.mxu0 %v611
        %3030 = vmatprep.mubr.f32.mxu0 %v2956
        %3031 = vmatmul.mubr.f32.gmra.mrb[0].mxu0 %v2954
        %v3032 = vpop.f32.mrb[0].mxu0
        %v3033 = vadd.f32 0.0, %v3032
        %v3034 = vpop.f32.mrb[0].mxu0
        %3035 = vmatprep.mubr.f32.mxu0 %v2957
        %3036 = vmatmul.mubr.f32.gmra.mrb[0].mxu0 %v2955
        %v3037 = vpop.f32.mrb[0].mxu0
        %v3038 = vadd.f32 0.0, %v3037
        %v3039 = vpop.f32.mrb[0].mxu0
        %3040 = vdwg.mxu0
        %3041 = vmatprep.subr.mxu0 0.0
        %3042 = vmatpush1.msra.mxu0 %v612
        %3043 = vmatprep.subr.mxu0 0.0
        %3044 = vmatpush1.msra.mxu0 %v613
        %3045 = vmatprep.subr.mxu0 0.0
        %3046 = vmatpush1.msra.mxu0 %v614
        %3047 = vmatprep.subr.mxu0 0.0
        %3048 = vmatpush1.msra.mxu0 %v615
        %3049 = vmatprep.subr.mxu0 0.0
        %3050 = vmatpush1.msra.mxu0 %v616
        %3051 = vmatprep.subr.mxu0 0.0
        %3052 = vmatpush1.msra.mxu0 %v617
        %3053 = vmatprep.subr.mxu0 0.0
        %3054 = vmatpush1.msra.mxu0 %v618
        %3055 = vmatprep.subr.mxu0 0.0
        %3056 = vmatpush1.msra.mxu0 %v619
        %3057 = vmatprep.subr.mxu0 0.0
        %3058 = vmatpush1.msra.mxu0 %v620
        %3059 = vmatprep.subr.mxu0 0.0
        %3060 = vmatpush1.msra.mxu0 %v621
        %3061 = vmatprep.subr.mxu0 0.0
        %3062 = vmatpush1.msra.mxu0 %v622
        %3063 = vmatprep.subr.mxu0 0.0
        %3064 = vmatpush1.msra.mxu0 %v623
        %3065 = vmatprep.subr.mxu0 0.0
        %3066 = vmatpush1.msra.mxu0 %v624
        %3067 = vmatprep.subr.mxu0 0.0
        %3068 = vmatpush1.msra.mxu0 %v625
        %3069 = vmatprep.subr.mxu0 0.0
        %3070 = vmatpush1.msra.mxu0 %v626
        %3071 = vmatprep.subr.mxu0 0.0
        %3072 = vmatpush1.msra.mxu0 %v627
        %3073 = vmatprep.subr.mxu0 0.0
        %3074 = vmatpush1.msra.mxu0 %v628
        %3075 = vmatprep.subr.mxu0 0.0
        %3076 = vmatpush1.msra.mxu0 %v629
        %3077 = vmatprep.subr.mxu0 0.0
        %3078 = vmatpush1.msra.mxu0 %v630
        %3079 = vmatprep.subr.mxu0 0.0
        %3080 = vmatpush1.msra.mxu0 %v631
        %3081 = vmatprep.subr.mxu0 0.0
        %3082 = vmatpush1.msra.mxu0 %v632
        %3083 = vmatprep.subr.mxu0 0.0
        %3084 = vmatpush1.msra.mxu0 %v633
        %3085 = vmatprep.subr.mxu0 0.0
        %3086 = vmatpush1.msra.mxu0 %v634
        %3087 = vmatprep.subr.mxu0 0.0
        %3088 = vmatpush1.msra.mxu0 %v635
        %3089 = vmatprep.subr.mxu0 0.0
        %3090 = vmatpush1.msra.mxu0 %v636
        %3091 = vmatprep.subr.mxu0 0.0
        %3092 = vmatpush1.msra.mxu0 %v637
        %3093 = vmatprep.subr.mxu0 0.0
        %3094 = vmatpush1.msra.mxu0 %v638
        %3095 = vmatprep.subr.mxu0 0.0
        %3096 = vmatpush1.msra.mxu0 %v639
        %3097 = vmatprep.subr.mxu0 0.0
        %3098 = vmatpush1.msra.mxu0 %v640
        %3099 = vmatprep.subr.mxu0 0.0
        %3100 = vmatpush1.msra.mxu0 %v641
        %3101 = vmatprep.subr.mxu0 0.0
        %3102 = vmatpush1.msra.mxu0 %v642
        %3103 = vmatprep.subr.mxu0 0.0
        %3104 = vmatpush1.msra.mxu0 %v643
        %3105 = vmatprep.mubr.f32.mxu0 %v2960
        %3106 = vmatmul.mubr.f32.gmra.mrb[0].mxu0 %v2958
        %v3107 = vpop.f32.mrb[0].mxu0
        %v3108 = vadd.f32 %v3033, %v3107
        %v3109 = vpop.f32.mrb[0].mxu0
        %3110 = vmatprep.mubr.f32.mxu0 %v2961
        %3111 = vmatmul.mubr.f32.gmra.mrb[0].mxu0 %v2959
        %v3112 = vpop.f32.mrb[0].mxu0
        %v3113 = vadd.f32 %v3038, %v3112
        %v3114 = vpop.f32.mrb[0].mxu0
        %3115 = vdwg.mxu0
        %3116 = vmatprep.subr.mxu0 0.0
        %3117 = vmatpush1.msra.mxu0 %v644
        %3118 = vmatprep.subr.mxu0 0.0
        %3119 = vmatpush1.msra.mxu0 %v645
        %3120 = vmatprep.subr.mxu0 0.0
        %3121 = vmatpush1.msra.mxu0 %v646
        %3122 = vmatprep.subr.mxu0 0.0
        %3123 = vmatpush1.msra.mxu0 %v647
        %3124 = vmatprep.subr.mxu0 0.0
        %3125 = vmatpush1.msra.mxu0 %v648
        %3126 = vmatprep.subr.mxu0 0.0
        %3127 = vmatpush1.msra.mxu0 %v649
        %3128 = vmatprep.subr.mxu0 0.0
        %3129 = vmatpush1.msra.mxu0 %v650
        %3130 = vmatprep.subr.mxu0 0.0
        %3131 = vmatpush1.msra.mxu0 %v651
        %3132 = vmatprep.subr.mxu0 0.0
        %3133 = vmatpush1.msra.mxu0 0.0
        %3134 = vmatprep.subr.mxu0 0.0
        %3135 = vmatpush1.msra.mxu0 0.0
        %3136 = vmatprep.subr.mxu0 0.0
        %3137 = vmatpush1.msra.mxu0 0.0
        %3138 = vmatprep.subr.mxu0 0.0
        %3139 = vmatpush1.msra.mxu0 0.0
        %3140 = vmatprep.subr.mxu0 0.0
        %3141 = vmatpush1.msra.mxu0 0.0
        %3142 = vmatprep.subr.mxu0 0.0
        %3143 = vmatpush1.msra.mxu0 0.0
        %3144 = vmatprep.subr.mxu0 0.0
        %3145 = vmatpush1.msra.mxu0 0.0
        %3146 = vmatprep.subr.mxu0 0.0
        %3147 = vmatpush1.msra.mxu0 0.0
        %3148 = vmatprep.subr.mxu0 0.0
        %3149 = vmatpush1.msra.mxu0 0.0
        %3150 = vmatprep.subr.mxu0 0.0
        %3151 = vmatpush1.msra.mxu0 0.0
        %3152 = vmatprep.subr.mxu0 0.0
        %3153 = vmatpush1.msra.mxu0 0.0
        %3154 = vmatprep.subr.mxu0 0.0
        %3155 = vmatpush1.msra.mxu0 0.0
        %3156 = vmatprep.subr.mxu0 0.0
        %3157 = vmatpush1.msra.mxu0 0.0
        %3158 = vmatprep.subr.mxu0 0.0
        %3159 = vmatpush1.msra.mxu0 0.0
        %3160 = vmatprep.subr.mxu0 0.0
        %3161 = vmatpush1.msra.mxu0 0.0
        %3162 = vmatprep.subr.mxu0 0.0
        %3163 = vmatpush1.msra.mxu0 0.0
        %3164 = vmatprep.subr.mxu0 0.0
        %3165 = vmatpush1.msra.mxu0 0.0
        %3166 = vmatprep.subr.mxu0 0.0
        %3167 = vmatpush1.msra.mxu0 0.0
        %3168 = vmatprep.subr.mxu0 0.0
        %3169 = vmatpush1.msra.mxu0 0.0
        %3170 = vmatprep.subr.mxu0 0.0
        %3171 = vmatpush1.msra.mxu0 0.0
        %3172 = vmatprep.subr.mxu0 0.0
        %3173 = vmatpush1.msra.mxu0 0.0
        %3174 = vmatprep.subr.mxu0 0.0
        %3175 = vmatpush1.msra.mxu0 0.0
        %3176 = vmatprep.subr.mxu0 0.0
        %3177 = vmatpush1.msra.mxu0 0.0
        %3178 = vmatprep.subr.mxu0 0.0
        %3179 = vmatpush1.msra.mxu0 0.0
        %3180 = vmatprep.mubr.f32.mxu0 0.0
        %3181 = vmatmul.mubr.f32.gmra.mrb[0].mxu0 %v2962
        %v3182 = vpop.f32.mrb[0].mxu0
        %v3183 = vadd.f32 %v3108, %v3182
        %v3184 = vpop.f32.mrb[0].mxu0
        %3185 = vmatprep.mubr.f32.mxu0 0.0
        %3186 = vmatmul.mubr.f32.gmra.mrb[0].mxu0 %v2964
        %v3187 = vpop.f32.mrb[0].mxu0
        %v3188 = vadd.f32 %v3113, %v3187
        %v3189 = vpop.f32.mrb[0].mxu0
        %3190 = vdwg.mxu0
        %3193 = vrot.lane.b32.xlu0 %v1458, 64
        %v3194 = vpop.permute.xlu0 %3193
        %3195 = vrot.lane.b32.xlu0 %v1463, 64
        %v3196 = vpop.permute.xlu0 %3195
        %3201 = vrot.lane.b32.xlu0 %v2033, 64
        %v3202 = vpop.permute.xlu0 %3201
        %3203 = vrot.lane.b32.xlu0 %v2038, 64
        %v3204 = vpop.permute.xlu0 %3203
        %3209 = vrot.lane.b32.xlu0 %v2608, 64
        %v3210 = vpop.permute.xlu0 %3209
        %3211 = vrot.lane.b32.xlu0 %v2613, 64
        %v3212 = vpop.permute.xlu0 %3211
        %3217 = vrot.lane.b32.xlu0 %v3183, 64
        %v3218 = vpop.permute.xlu0 %3217
        %3219 = vrot.lane.b32.xlu0 %v3188, 64
        %v3220 = vpop.permute.xlu0 %3219
        %v3223 = vsel %vm957, %v1187, %v3194
        %v3224 = vsel %vm957, %v1192, %v3196
        %v3225 = vsel %vm957, %v1762, %v3202
        %v3226 = vsel %vm957, %v1767, %v3204
        %v3227 = vsel %vm957, %v2337, %v3210
        %v3228 = vsel %vm957, %v2342, %v3212
        %v3229 = vsel %vm957, %v2912, %v3218
        %v3230 = vsel %vm957, %v2917, %v3220
        %v3232 = vlaneseq
        %v3233 = vshrl.u32 %v3232, 7
        %v3234 = vsub.s32 0, %v3233
        %v3235 = vrot.slane %v652, %v3234
        %v3236 = vlaneseq
        %v3237 = vshrl.u32 %v3236, 7
        %v3238 = vsub.s32 1, %v3237
        %v3239 = vrot.slane %v652, %v3238
        %v3240 = vlaneseq
        %v3241 = vshrl.u32 %v3240, 7
        %v3242 = vsub.s32 2, %v3241
        %v3243 = vrot.slane %v652, %v3242
        %v3244 = vlaneseq
        %v3245 = vshrl.u32 %v3244, 7
        %v3246 = vsub.s32 3, %v3245
        %v3247 = vrot.slane %v652, %v3246
        %v3252 = vadd.f32 %v3223, %v3235
        %v3253 = vadd.f32 %v3225, %v3239
        %v3254 = vadd.f32 %v3227, %v3243
        %v3255 = vadd.f32 %v3229, %v3247
        %v3256 = vadd.f32 %v3224, %v3235
        %v3257 = vadd.f32 %v3226, %v3239
        %v3258 = vadd.f32 %v3228, %v3243
        %v3259 = vadd.f32 %v3230, %v3247
        %v3260 = vmax.f32 %v3252, 0.0
        %v3261 = vmax.f32 %v3253, 0.0
        %v3262 = vmax.f32 %v3254, 0.0
        %v3263 = vmax.f32 %v3255, 0.0
        %v3264 = vmax.f32 %v3256, 0.0
        %v3265 = vmax.f32 %v3257, 0.0
        %v3266 = vmax.f32 %v3258, 0.0
        %v3267 = vmax.f32 %v3259, 0.0
        %v3268 = vld [vmem:[#allocation6] sm:$0xff]
        %v3269 = vld [vmem:[#allocation6 + $0x8] sm:$0xff]
        %v3270 = vld [vmem:[#allocation6 + $0x10] sm:$0xff]
        %v3271 = vld [vmem:[#allocation6 + $0x18] sm:$0xff]
        %v3272 = vld [vmem:[#allocation6 + $0x20] sm:$0xff]
        %v3273 = vld [vmem:[#allocation6 + $0x28] sm:$0xff]
        %v3274 = vld [vmem:[#allocation6 + $0x30] sm:$0xff]
        %v3275 = vld [vmem:[#allocation6 + $0x38] sm:$0xff]
        %v3276 = vld [vmem:[#allocation6 + $0x40] sm:$0xff]
        %v3277 = vld [vmem:[#allocation6 + $0x48] sm:$0xff]
        %v3278 = vld [vmem:[#allocation6 + $0x50] sm:$0xff]
        %v3279 = vld [vmem:[#allocation6 + $0x58] sm:$0xff]
        %v3280 = vld [vmem:[#allocation6 + $0x60] sm:$0xff]
        %v3281 = vld [vmem:[#allocation6 + $0x68] sm:$0xff]
        %v3282 = vld [vmem:[#allocation6 + $0x70] sm:$0xff]
        %v3283 = vld [vmem:[#allocation6 + $0x78] sm:$0xff]
        %v3284 = vld [vmem:[#allocation6 + $0x80] sm:$0xff]
        %v3285 = vld [vmem:[#allocation6 + $0x88] sm:$0xff]
        %v3286 = vld [vmem:[#allocation6 + $0x90] sm:$0xff]
        %v3287 = vld [vmem:[#allocation6 + $0x98] sm:$0xff]
        %v3288 = vld [vmem:[#allocation6 + $0xa0] sm:$0xff]
        %v3289 = vld [vmem:[#allocation6 + $0xa8] sm:$0xff]
        %v3290 = vld [vmem:[#allocation6 + $0xb0] sm:$0xff]
        %v3291 = vld [vmem:[#allocation6 + $0xb8] sm:$0xff]
        %v3292 = vld [vmem:[#allocation6 + $0xc0] sm:$0xff]
        %v3293 = vld [vmem:[#allocation6 + $0xc8] sm:$0xff]
        %v3294 = vld [vmem:[#allocation6 + $0xd0] sm:$0xff]
        %v3295 = vld [vmem:[#allocation6 + $0xd8] sm:$0xff]
        %v3296 = vld [vmem:[#allocation6 + $0xe0] sm:$0xff]
        %v3297 = vld [vmem:[#allocation6 + $0xe8] sm:$0xff]
        %v3298 = vld [vmem:[#allocation6 + $0xf0] sm:$0xff]
        %v3299 = vld [vmem:[#allocation6 + $0xf8] sm:$0xff]
        %v3300 = vld [vmem:[#allocation6 + $0x100] sm:$0xff]
        %v3301 = vld [vmem:[#allocation6 + $0x108] sm:$0xff]
        %v3302 = vld [vmem:[#allocation6 + $0x110] sm:$0xff]
        %v3303 = vld [vmem:[#allocation6 + $0x118] sm:$0xff]
        %v3304 = vld [vmem:[#allocation6 + $0x120] sm:$0xff]
        %v3305 = vld [vmem:[#allocation6 + $0x128] sm:$0xff]
        %v3306 = vld [vmem:[#allocation6 + $0x130] sm:$0xff]
        %v3307 = vld [vmem:[#allocation6 + $0x138] sm:$0xff]
        %v3308 = vld [vmem:[#allocation6 + $0x140] sm:$0xff]
        %v3309 = vld [vmem:[#allocation6 + $0x148] sm:$0xff]
        %v3310 = vld [vmem:[#allocation6 + $0x150] sm:$0xff]
        %v3311 = vld [vmem:[#allocation6 + $0x158] sm:$0xff]
        %v3312 = vld [vmem:[#allocation6 + $0x160] sm:$0xff]
        %v3313 = vld [vmem:[#allocation6 + $0x168] sm:$0xff]
        %v3314 = vld [vmem:[#allocation6 + $0x170] sm:$0xff]
        %v3315 = vld [vmem:[#allocation6 + $0x178] sm:$0xff]
        %v3316 = vld [vmem:[#allocation6 + $0x180] sm:$0xff]
        %v3317 = vld [vmem:[#allocation6 + $0x188] sm:$0xff]
        %v3318 = vld [vmem:[#allocation6 + $0x190] sm:$0xff]
        %v3319 = vld [vmem:[#allocation6 + $0x198] sm:$0xff]
        %v3320 = vld [vmem:[#allocation6 + $0x1a0] sm:$0xff]
        %v3321 = vld [vmem:[#allocation6 + $0x1a8] sm:$0xff]
        %v3322 = vld [vmem:[#allocation6 + $0x1b0] sm:$0xff]
        %v3323 = vld [vmem:[#allocation6 + $0x1b8] sm:$0xff]
        %v3324 = vld [vmem:[#allocation6 + $0x1c0] sm:$0xff]
        %v3325 = vld [vmem:[#allocation6 + $0x1c8] sm:$0xff]
        %v3326 = vld [vmem:[#allocation6 + $0x1d0] sm:$0xff]
        %v3327 = vld [vmem:[#allocation6 + $0x1d8] sm:$0xff]
        %v3328 = vld [vmem:[#allocation6 + $0x1e0] sm:$0xff]
        %v3329 = vld [vmem:[#allocation6 + $0x1e8] sm:$0xff]
        %v3330 = vld [vmem:[#allocation6 + $0x1f0] sm:$0xff]
        %v3331 = vld [vmem:[#allocation6 + $0x1f8] sm:$0xff]
        %v3332 = vld [vmem:[#allocation6 + $0x200] sm:$0xff]
        %v3333 = vld [vmem:[#allocation6 + $0x208] sm:$0xff]
        %v3334 = vld [vmem:[#allocation6 + $0x210] sm:$0xff]
        %v3335 = vld [vmem:[#allocation6 + $0x218] sm:$0xff]
        %v3336 = vld [vmem:[#allocation6 + $0x220] sm:$0xff]
        %v3337 = vld [vmem:[#allocation6 + $0x228] sm:$0xff]
        %v3338 = vld [vmem:[#allocation6 + $0x230] sm:$0xff]
        %v3339 = vld [vmem:[#allocation6 + $0x238] sm:$0xff]
        %v3340 = vld [vmem:[#allocation6 + $0x240] sm:$0xff]
        %v3341 = vld [vmem:[#allocation6 + $0x248] sm:$0xff]
        %v3342 = vld [vmem:[#allocation6 + $0x250] sm:$0xff]
        %v3343 = vld [vmem:[#allocation6 + $0x258] sm:$0xff]
        %v3344 = vld [vmem:[#allocation6 + $0x260] sm:$0xff]
        %v3345 = vld [vmem:[#allocation6 + $0x268] sm:$0xff]
        %v3346 = vld [vmem:[#allocation6 + $0x270] sm:$0xff]
        %v3347 = vld [vmem:[#allocation6 + $0x278] sm:$0xff]
        %v3348 = vld [vmem:[#allocation6 + $0x280] sm:$0xff]
        %v3349 = vld [vmem:[#allocation6 + $0x288] sm:$0xff]
        %v3350 = vld [vmem:[#allocation6 + $0x290] sm:$0xff]
        %v3351 = vld [vmem:[#allocation6 + $0x298] sm:$0xff]
        %v3352 = vld [vmem:[#allocation6 + $0x2a0] sm:$0xff]
        %v3353 = vld [vmem:[#allocation6 + $0x2a8] sm:$0xff]
        %v3354 = vld [vmem:[#allocation6 + $0x2b0] sm:$0xff]
        %v3355 = vld [vmem:[#allocation6 + $0x2b8] sm:$0xff]
        %v3356 = vld [vmem:[#allocation6 + $0x2c0] sm:$0xff]
        %v3357 = vld [vmem:[#allocation6 + $0x2c8] sm:$0xff]
        %v3358 = vld [vmem:[#allocation6 + $0x2d0] sm:$0xff]
        %v3359 = vld [vmem:[#allocation6 + $0x2d8] sm:$0xff]
        %v3360 = vld [vmem:[#allocation6 + $0x2e0] sm:$0xff]
        %v3361 = vld [vmem:[#allocation6 + $0x2e8] sm:$0xff]
        %v3362 = vld [vmem:[#allocation6 + $0x2f0] sm:$0xff]
        %v3363 = vld [vmem:[#allocation6 + $0x2f8] sm:$0xff]
        %v3364 = vld [vmem:[#allocation6 + $0x300] sm:$0xff]
        %v3365 = vld [vmem:[#allocation6 + $0x308] sm:$0xff]
        %v3366 = vld [vmem:[#allocation6 + $0x310] sm:$0xff]
        %v3367 = vld [vmem:[#allocation6 + $0x318] sm:$0xff]
        %v3368 = vld [vmem:[#allocation6 + $0x320] sm:$0xff]
        %v3369 = vld [vmem:[#allocation6 + $0x328] sm:$0xff]
        %v3370 = vld [vmem:[#allocation6 + $0x330] sm:$0xff]
        %v3371 = vld [vmem:[#allocation6 + $0x338] sm:$0xff]
        %v3372 = vld [vmem:[#allocation6 + $0x340] sm:$0xff]
        %v3373 = vld [vmem:[#allocation6 + $0x348] sm:$0xff]
        %v3374 = vld [vmem:[#allocation6 + $0x350] sm:$0xff]
        %v3375 = vld [vmem:[#allocation6 + $0x358] sm:$0xff]
        %v3376 = vld [vmem:[#allocation6 + $0x360] sm:$0xff]
        %v3377 = vld [vmem:[#allocation6 + $0x368] sm:$0xff]
        %v3378 = vld [vmem:[#allocation6 + $0x370] sm:$0xff]
        %v3379 = vld [vmem:[#allocation6 + $0x378] sm:$0xff]
        %v3380 = vld [vmem:[#allocation6 + $0x380] sm:$0xff]
        %v3381 = vld [vmem:[#allocation6 + $0x388] sm:$0xff]
        %v3382 = vld [vmem:[#allocation6 + $0x390] sm:$0xff]
        %v3383 = vld [vmem:[#allocation6 + $0x398] sm:$0xff]
        %v3384 = vld [vmem:[#allocation6 + $0x3a0] sm:$0xff]
        %v3385 = vld [vmem:[#allocation6 + $0x3a8] sm:$0xff]
        %v3386 = vld [vmem:[#allocation6 + $0x3b0] sm:$0xff]
        %v3387 = vld [vmem:[#allocation6 + $0x3b8] sm:$0xff]
        %v3388 = vld [vmem:[#allocation6 + $0x3c0] sm:$0xff]
        %v3389 = vld [vmem:[#allocation6 + $0x3c8] sm:$0xff]
        %v3390 = vld [vmem:[#allocation6 + $0x3d0] sm:$0xff]
        %v3391 = vld [vmem:[#allocation6 + $0x3d8] sm:$0xff]
        %v3392 = vld [vmem:[#allocation6 + $0x3e0] sm:$0xff]
        %v3393 = vld [vmem:[#allocation6 + $0x3e8] sm:$0xff]
        %v3394 = vld [vmem:[#allocation6 + $0x3f0] sm:$0xff]
        %v3395 = vld [vmem:[#allocation6 + $0x3f8] sm:$0xff]
        %v3396 = vld [vmem:[#allocation6 + $0x400] sm:$0xff]
        %v3397 = vld [vmem:[#allocation6 + $0x408] sm:$0xff]
        %v3398 = vld [vmem:[#allocation6 + $0x410] sm:$0xff]
        %v3399 = vld [vmem:[#allocation6 + $0x418] sm:$0xff]
        %v3400 = vld [vmem:[#allocation6 + $0x420] sm:$0xff]
        %v3401 = vld [vmem:[#allocation6 + $0x428] sm:$0xff]
        %v3402 = vld [vmem:[#allocation6 + $0x430] sm:$0xff]
        %v3403 = vld [vmem:[#allocation6 + $0x438] sm:$0xff]
        %v3404 = vld [vmem:[#allocation6 + $0x440] sm:$0xff]
        %v3405 = vld [vmem:[#allocation6 + $0x448] sm:$0xff]
        %v3406 = vld [vmem:[#allocation6 + $0x450] sm:$0xff]
        %v3407 = vld [vmem:[#allocation6 + $0x458] sm:$0xff]
        %v3408 = vld [vmem:[#allocation6 + $0x460] sm:$0xff]
        %v3409 = vld [vmem:[#allocation6 + $0x468] sm:$0xff]
        %v3410 = vld [vmem:[#allocation6 + $0x470] sm:$0xff]
        %v3411 = vld [vmem:[#allocation6 + $0x478] sm:$0xff]
        %v3412 = vld [vmem:[#allocation6 + $0x480] sm:$0xff]
        %v3413 = vld [vmem:[#allocation6 + $0x488] sm:$0xff]
        %v3414 = vld [vmem:[#allocation6 + $0x490] sm:$0xff]
        %v3415 = vld [vmem:[#allocation6 + $0x498] sm:$0xff]
        %v3416 = vld [vmem:[#allocation6 + $0x4a0] sm:$0xff]
        %v3417 = vld [vmem:[#allocation6 + $0x4a8] sm:$0xff]
        %v3418 = vld [vmem:[#allocation6 + $0x4b0] sm:$0xff]
        %v3419 = vld [vmem:[#allocation6 + $0x4b8] sm:$0xff]
        %v3420 = vld [vmem:[#allocation6 + $0x4c0] sm:$0xff]
        %v3421 = vld [vmem:[#allocation6 + $0x4c8] sm:$0xff]
        %v3422 = vld [vmem:[#allocation6 + $0x4d0] sm:$0xff]
        %v3423 = vld [vmem:[#allocation6 + $0x4d8] sm:$0xff]
        %v3424 = vld [vmem:[#allocation6 + $0x4e0] sm:$0xff]
        %v3425 = vld [vmem:[#allocation6 + $0x4e8] sm:$0xff]
        %v3426 = vld [vmem:[#allocation6 + $0x4f0] sm:$0xff]
        %v3427 = vld [vmem:[#allocation6 + $0x4f8] sm:$0xff]
        %v3428 = vld [vmem:[#allocation6 + $0x500] sm:$0xff]
        %v3429 = vld [vmem:[#allocation6 + $0x508] sm:$0xff]
        %v3430 = vld [vmem:[#allocation6 + $0x510] sm:$0xff]
        %v3431 = vld [vmem:[#allocation6 + $0x518] sm:$0xff]
        %v3432 = vld [vmem:[#allocation6 + $0x520] sm:$0xff]
        %v3433 = vld [vmem:[#allocation6 + $0x528] sm:$0xff]
        %v3434 = vld [vmem:[#allocation6 + $0x530] sm:$0xff]
        %v3435 = vld [vmem:[#allocation6 + $0x538] sm:$0xff]
        %v3436 = vld [vmem:[#allocation6 + $0x540] sm:$0xff]
        %v3437 = vld [vmem:[#allocation6 + $0x548] sm:$0xff]
        %v3438 = vld [vmem:[#allocation6 + $0x550] sm:$0xff]
        %v3439 = vld [vmem:[#allocation6 + $0x558] sm:$0xff]
        %v3440 = vld [vmem:[#allocation6 + $0x560] sm:$0xff]
        %v3441 = vld [vmem:[#allocation6 + $0x568] sm:$0xff]
        %v3442 = vld [vmem:[#allocation6 + $0x570] sm:$0xff]
        %v3443 = vld [vmem:[#allocation6 + $0x578] sm:$0xff]
        %v3444 = vld [vmem:[#allocation6 + $0x580] sm:$0xff]
        %v3445 = vld [vmem:[#allocation6 + $0x588] sm:$0xff]
        %v3446 = vld [vmem:[#allocation6 + $0x590] sm:$0xff]
        %v3447 = vld [vmem:[#allocation6 + $0x598] sm:$0xff]
        %v3448 = vld [vmem:[#allocation6 + $0x5a0] sm:$0xff]
        %v3449 = vld [vmem:[#allocation6 + $0x5a8] sm:$0xff]
        %v3450 = vld [vmem:[#allocation6 + $0x5b0] sm:$0xff]
        %v3451 = vld [vmem:[#allocation6 + $0x5b8] sm:$0xff]
        %v3452 = vld [vmem:[#allocation6 + $0x5c0] sm:$0xff]
        %v3453 = vld [vmem:[#allocation6 + $0x5c8] sm:$0xff]
        %v3454 = vld [vmem:[#allocation6 + $0x5d0] sm:$0xff]
        %v3455 = vld [vmem:[#allocation6 + $0x5d8] sm:$0xff]
        %v3456 = vld [vmem:[#allocation6 + $0x5e0] sm:$0xff]
        %v3457 = vld [vmem:[#allocation6 + $0x5e8] sm:$0xff]
        %v3458 = vld [vmem:[#allocation6 + $0x5f0] sm:$0xff]
        %v3459 = vld [vmem:[#allocation6 + $0x5f8] sm:$0xff]
        %v3460 = vld [vmem:[#allocation6 + $0x600] sm:$0xff]
        %v3461 = vld [vmem:[#allocation6 + $0x608] sm:$0xff]
        %v3462 = vld [vmem:[#allocation6 + $0x610] sm:$0xff]
        %v3463 = vld [vmem:[#allocation6 + $0x618] sm:$0xff]
        %v3464 = vld [vmem:[#allocation6 + $0x620] sm:$0xff]
        %v3465 = vld [vmem:[#allocation6 + $0x628] sm:$0xff]
        %v3466 = vld [vmem:[#allocation6 + $0x630] sm:$0xff]
        %v3467 = vld [vmem:[#allocation6 + $0x638] sm:$0xff]
        %v3468 = vld [vmem:[#allocation6 + $0x640] sm:$0xff]
        %v3469 = vld [vmem:[#allocation6 + $0x648] sm:$0xff]
        %v3470 = vld [vmem:[#allocation6 + $0x650] sm:$0xff]
        %v3471 = vld [vmem:[#allocation6 + $0x658] sm:$0xff]
        %v3472 = vld [vmem:[#allocation6 + $0x660] sm:$0xff]
        %v3473 = vld [vmem:[#allocation6 + $0x668] sm:$0xff]
        %v3474 = vld [vmem:[#allocation6 + $0x670] sm:$0xff]
        %v3475 = vld [vmem:[#allocation6 + $0x678] sm:$0xff]
        %v3476 = vld [vmem:[#allocation6 + $0x680] sm:$0xff]
        %v3477 = vld [vmem:[#allocation6 + $0x688] sm:$0xff]
        %v3478 = vld [vmem:[#allocation6 + $0x690] sm:$0xff]
        %v3479 = vld [vmem:[#allocation6 + $0x698] sm:$0xff]
        %v3480 = vld [vmem:[#allocation6 + $0x6a0] sm:$0xff]
        %v3481 = vld [vmem:[#allocation6 + $0x6a8] sm:$0xff]
        %v3482 = vld [vmem:[#allocation6 + $0x6b0] sm:$0xff]
        %v3483 = vld [vmem:[#allocation6 + $0x6b8] sm:$0xff]
        %v3484 = vld [vmem:[#allocation6 + $0x6c0] sm:$0xff]
        %v3485 = vld [vmem:[#allocation6 + $0x6c8] sm:$0xff]
        %v3486 = vld [vmem:[#allocation6 + $0x6d0] sm:$0xff]
        %v3487 = vld [vmem:[#allocation6 + $0x6d8] sm:$0xff]
        %v3488 = vld [vmem:[#allocation6 + $0x6e0] sm:$0xff]
        %v3489 = vld [vmem:[#allocation6 + $0x6e8] sm:$0xff]
        %v3490 = vld [vmem:[#allocation6 + $0x6f0] sm:$0xff]
        %v3491 = vld [vmem:[#allocation6 + $0x6f8] sm:$0xff]
        %v3492 = vld [vmem:[#allocation6 + $0x700] sm:$0xff]
        %v3493 = vld [vmem:[#allocation6 + $0x708] sm:$0xff]
        %v3494 = vld [vmem:[#allocation6 + $0x710] sm:$0xff]
        %v3495 = vld [vmem:[#allocation6 + $0x718] sm:$0xff]
        %v3496 = vld [vmem:[#allocation6 + $0x720] sm:$0xff]
        %v3497 = vld [vmem:[#allocation6 + $0x728] sm:$0xff]
        %v3498 = vld [vmem:[#allocation6 + $0x730] sm:$0xff]
        %v3499 = vld [vmem:[#allocation6 + $0x738] sm:$0xff]
        %v3500 = vld [vmem:[#allocation6 + $0x740] sm:$0xff]
        %v3501 = vld [vmem:[#allocation6 + $0x748] sm:$0xff]
        %v3502 = vld [vmem:[#allocation6 + $0x750] sm:$0xff]
        %v3503 = vld [vmem:[#allocation6 + $0x758] sm:$0xff]
        %v3504 = vld [vmem:[#allocation6 + $0x760] sm:$0xff]
        %v3505 = vld [vmem:[#allocation6 + $0x768] sm:$0xff]
        %v3506 = vld [vmem:[#allocation6 + $0x770] sm:$0xff]
        %v3507 = vld [vmem:[#allocation6 + $0x778] sm:$0xff]
        %v3508 = vld [vmem:[#allocation6 + $0x780] sm:$0xff]
        %v3509 = vld [vmem:[#allocation6 + $0x788] sm:$0xff]
        %v3510 = vld [vmem:[#allocation6 + $0x790] sm:$0xff]
        %v3511 = vld [vmem:[#allocation6 + $0x798] sm:$0xff]
        %v3512 = vld [vmem:[#allocation6 + $0x7a0] sm:$0xff]
        %v3513 = vld [vmem:[#allocation6 + $0x7a8] sm:$0xff]
        %v3514 = vld [vmem:[#allocation6 + $0x7b0] sm:$0xff]
        %v3515 = vld [vmem:[#allocation6 + $0x7b8] sm:$0xff]
        %v3516 = vld [vmem:[#allocation6 + $0x7c0] sm:$0xff]
        %v3517 = vld [vmem:[#allocation6 + $0x7c8] sm:$0xff]
        %v3518 = vld [vmem:[#allocation6 + $0x7d0] sm:$0xff]
        %v3519 = vld [vmem:[#allocation6 + $0x7d8] sm:$0xff]
        %v3520 = vld [vmem:[#allocation6 + $0x7e0] sm:$0xff]
        %v3521 = vld [vmem:[#allocation6 + $0x7e8] sm:$0xff]
        %v3522 = vld [vmem:[#allocation6 + $0x7f0] sm:$0xff]
        %v3523 = vld [vmem:[#allocation6 + $0x7f8] sm:$0xff]
        %v3524 = vld [vmem:[%s6] sm:$0xf]
        %v3525 = vld [vmem:[#allocation7] sm:$0xff]
        %v3526 = vld [vmem:[#allocation7 + $0x8] sm:$0xff]
        %v3527 = vld [vmem:[#allocation7 + $0x10] sm:$0xff]
        %v3528 = vld [vmem:[#allocation7 + $0x18] sm:$0xff]
        %v3529 = vld [vmem:[#allocation7 + $0x20] sm:$0xff]
        %v3530 = vld [vmem:[#allocation7 + $0x28] sm:$0xff]
        %v3531 = vld [vmem:[#allocation7 + $0x30] sm:$0xff]
        %v3532 = vld [vmem:[#allocation7 + $0x38] sm:$0xff]
        %v3533 = vld [vmem:[#allocation7 + $0x40] sm:$0xff]
        %v3534 = vld [vmem:[#allocation7 + $0x48] sm:$0xff]
        %v3535 = vld [vmem:[#allocation7 + $0x50] sm:$0xff]
        %v3536 = vld [vmem:[#allocation7 + $0x58] sm:$0xff]
        %v3537 = vld [vmem:[#allocation7 + $0x60] sm:$0xff]
        %v3538 = vld [vmem:[#allocation7 + $0x68] sm:$0xff]
        %v3539 = vld [vmem:[#allocation7 + $0x70] sm:$0xff]
        %v3540 = vld [vmem:[#allocation7 + $0x78] sm:$0xff]
        %v3541 = vld [vmem:[#allocation7 + $0x80] sm:$0xff]
        %v3542 = vld [vmem:[#allocation7 + $0x88] sm:$0xff]
        %v3543 = vld [vmem:[#allocation7 + $0x90] sm:$0xff]
        %v3544 = vld [vmem:[#allocation7 + $0x98] sm:$0xff]
        %v3545 = vld [vmem:[#allocation7 + $0xa0] sm:$0xff]
        %v3546 = vld [vmem:[#allocation7 + $0xa8] sm:$0xff]
        %v3547 = vld [vmem:[#allocation7 + $0xb0] sm:$0xff]
        %v3548 = vld [vmem:[#allocation7 + $0xb8] sm:$0xff]
        %v3549 = vld [vmem:[#allocation7 + $0xc0] sm:$0xff]
        %v3550 = vld [vmem:[#allocation7 + $0xc8] sm:$0xff]
        %v3551 = vld [vmem:[#allocation7 + $0xd0] sm:$0xff]
        %v3552 = vld [vmem:[#allocation7 + $0xd8] sm:$0xff]
        %v3553 = vld [vmem:[#allocation7 + $0xe0] sm:$0xff]
        %v3554 = vld [vmem:[#allocation7 + $0xe8] sm:$0xff]
        %v3555 = vld [vmem:[#allocation7 + $0xf0] sm:$0xff]
        %v3556 = vld [vmem:[#allocation7 + $0xf8] sm:$0xff]
        %v3557 = vld [vmem:[#allocation7 + $0x100] sm:$0xff]
        %v3558 = vld [vmem:[#allocation7 + $0x108] sm:$0xff]
        %v3559 = vld [vmem:[#allocation7 + $0x110] sm:$0xff]
        %v3560 = vld [vmem:[#allocation7 + $0x118] sm:$0xff]
        %v3561 = vld [vmem:[#allocation7 + $0x120] sm:$0xff]
        %v3562 = vld [vmem:[#allocation7 + $0x128] sm:$0xff]
        %v3563 = vld [vmem:[#allocation7 + $0x130] sm:$0xff]
        %v3564 = vld [vmem:[#allocation7 + $0x138] sm:$0xff]
        %v3565 = vld [vmem:[#allocation7 + $0x140] sm:$0xff]
        %v3566 = vld [vmem:[#allocation7 + $0x148] sm:$0xff]
        %v3567 = vld [vmem:[#allocation7 + $0x150] sm:$0xff]
        %v3568 = vld [vmem:[#allocation7 + $0x158] sm:$0xff]
        %v3569 = vld [vmem:[#allocation7 + $0x160] sm:$0xff]
        %v3570 = vld [vmem:[#allocation7 + $0x168] sm:$0xff]
        %v3571 = vld [vmem:[#allocation7 + $0x170] sm:$0xff]
        %v3572 = vld [vmem:[#allocation7 + $0x178] sm:$0xff]
        %v3573 = vld [vmem:[#allocation7 + $0x180] sm:$0xff]
        %v3574 = vld [vmem:[#allocation7 + $0x188] sm:$0xff]
        %v3575 = vld [vmem:[#allocation7 + $0x190] sm:$0xff]
        %v3576 = vld [vmem:[#allocation7 + $0x198] sm:$0xff]
        %v3577 = vld [vmem:[#allocation7 + $0x1a0] sm:$0xff]
        %v3578 = vld [vmem:[#allocation7 + $0x1a8] sm:$0xff]
        %v3579 = vld [vmem:[#allocation7 + $0x1b0] sm:$0xff]
        %v3580 = vld [vmem:[#allocation7 + $0x1b8] sm:$0xff]
        %v3581 = vld [vmem:[#allocation7 + $0x1c0] sm:$0xff]
        %v3582 = vld [vmem:[#allocation7 + $0x1c8] sm:$0xff]
        %v3583 = vld [vmem:[#allocation7 + $0x1d0] sm:$0xff]
        %v3584 = vld [vmem:[#allocation7 + $0x1d8] sm:$0xff]
        %v3585 = vld [vmem:[#allocation7 + $0x1e0] sm:$0xff]
        %v3586 = vld [vmem:[#allocation7 + $0x1e8] sm:$0xff]
        %v3587 = vld [vmem:[#allocation7 + $0x1f0] sm:$0xff]
        %v3588 = vld [vmem:[#allocation7 + $0x1f8] sm:$0xff]
        %v3589 = vld [vmem:[#allocation7 + $0x200] sm:$0xff]
        %v3590 = vld [vmem:[#allocation7 + $0x208] sm:$0xff]
        %v3591 = vld [vmem:[#allocation7 + $0x210] sm:$0xff]
        %v3592 = vld [vmem:[#allocation7 + $0x218] sm:$0xff]
        %v3593 = vld [vmem:[#allocation7 + $0x220] sm:$0xff]
        %v3594 = vld [vmem:[#allocation7 + $0x228] sm:$0xff]
        %v3595 = vld [vmem:[#allocation7 + $0x230] sm:$0xff]
        %v3596 = vld [vmem:[#allocation7 + $0x238] sm:$0xff]
        %v3597 = vld [vmem:[%s8] sm:$0xf]
        %v3599 = vlaneseq
        %v3600 = vshrl.u32 %v3599, 7
        %v3601 = vsub.s32 0, %v3600
        %v3602 = vrot.slane %v3524, %v3601
        %v3603 = vlaneseq
        %v3604 = vshrl.u32 %v3603, 7
        %v3605 = vsub.s32 1, %v3604
        %v3606 = vrot.slane %v3524, %v3605
        %v3607 = vlaneseq
        %v3608 = vshrl.u32 %v3607, 7
        %v3609 = vsub.s32 2, %v3608
        %v3610 = vrot.slane %v3524, %v3609
        %v3611 = vlaneseq
        %v3612 = vshrl.u32 %v3611, 7
        %v3613 = vsub.s32 3, %v3612
        %v3614 = vrot.slane %v3524, %v3613
        %3619 = vmatprep.subr.mxu0 %v3269
        %3620 = vmatpush1.msra.mxu0 %v3268
        %3621 = vmatprep.subr.mxu0 %v3273
        %3622 = vmatpush1.msra.mxu0 %v3272
        %3623 = vmatprep.subr.mxu0 %v3277
        %3624 = vmatpush1.msra.mxu0 %v3276
        %3625 = vmatprep.subr.mxu0 %v3281
        %3626 = vmatpush1.msra.mxu0 %v3280
        %3627 = vmatprep.subr.mxu0 %v3285
        %3628 = vmatpush1.msra.mxu0 %v3284
        %3629 = vmatprep.subr.mxu0 %v3289
        %3630 = vmatpush1.msra.mxu0 %v3288
        %3631 = vmatprep.subr.mxu0 %v3293
        %3632 = vmatpush1.msra.mxu0 %v3292
        %3633 = vmatprep.subr.mxu0 %v3297
        %3634 = vmatpush1.msra.mxu0 %v3296
        %3635 = vmatprep.subr.mxu0 %v3301
        %3636 = vmatpush1.msra.mxu0 %v3300
        %3637 = vmatprep.subr.mxu0 %v3305
        %3638 = vmatpush1.msra.mxu0 %v3304
        %3639 = vmatprep.subr.mxu0 %v3309
        %3640 = vmatpush1.msra.mxu0 %v3308
        %3641 = vmatprep.subr.mxu0 %v3313
        %3642 = vmatpush1.msra.mxu0 %v3312
        %3643 = vmatprep.subr.mxu0 %v3317
        %3644 = vmatpush1.msra.mxu0 %v3316
        %3645 = vmatprep.subr.mxu0 %v3321
        %3646 = vmatpush1.msra.mxu0 %v3320
        %3647 = vmatprep.subr.mxu0 %v3325
        %3648 = vmatpush1.msra.mxu0 %v3324
        %3649 = vmatprep.subr.mxu0 %v3329
        %3650 = vmatpush1.msra.mxu0 %v3328
        %3651 = vmatprep.subr.mxu0 %v3333
        %3652 = vmatpush1.msra.mxu0 %v3332
        %3653 = vmatprep.subr.mxu0 %v3337
        %3654 = vmatpush1.msra.mxu0 %v3336
        %3655 = vmatprep.subr.mxu0 %v3341
        %3656 = vmatpush1.msra.mxu0 %v3340
        %3657 = vmatprep.subr.mxu0 %v3345
        %3658 = vmatpush1.msra.mxu0 %v3344
        %3659 = vmatprep.subr.mxu0 %v3349
        %3660 = vmatpush1.msra.mxu0 %v3348
        %3661 = vmatprep.subr.mxu0 %v3353
        %3662 = vmatpush1.msra.mxu0 %v3352
        %3663 = vmatprep.subr.mxu0 %v3357
        %3664 = vmatpush1.msra.mxu0 %v3356
        %3665 = vmatprep.subr.mxu0 %v3361
        %3666 = vmatpush1.msra.mxu0 %v3360
        %3667 = vmatprep.subr.mxu0 %v3365
        %3668 = vmatpush1.msra.mxu0 %v3364
        %3669 = vmatprep.subr.mxu0 %v3369
        %3670 = vmatpush1.msra.mxu0 %v3368
        %3671 = vmatprep.subr.mxu0 %v3373
        %3672 = vmatpush1.msra.mxu0 %v3372
        %3673 = vmatprep.subr.mxu0 %v3377
        %3674 = vmatpush1.msra.mxu0 %v3376
        %3675 = vmatprep.subr.mxu0 %v3381
        %3676 = vmatpush1.msra.mxu0 %v3380
        %3677 = vmatprep.subr.mxu0 %v3385
        %3678 = vmatpush1.msra.mxu0 %v3384
        %3679 = vmatprep.subr.mxu0 %v3389
        %3680 = vmatpush1.msra.mxu0 %v3388
        %3681 = vmatprep.subr.mxu0 %v3393
        %3682 = vmatpush1.msra.mxu0 %v3392
        %3683 = vmatprep.mubr.f32.mxu0 %v3261
        %3684 = vmatmul.mubr.f32.gmra.mrb[0].mxu0 %v3260
        %v3685 = vpop.f32.mrb[0].mxu0
        %v3686 = vadd.f32 %v3602, %v3685
        %v3687 = vpop.f32.mrb[0].mxu0
        %v3688 = vadd.f32 %v3606, %v3687
        %3689 = vmatprep.mubr.f32.mxu0 %v3265
        %3690 = vmatmul.mubr.f32.gmra.mrb[0].mxu0 %v3264
        %v3691 = vpop.f32.mrb[0].mxu0
        %v3692 = vadd.f32 %v3602, %v3691
        %v3693 = vpop.f32.mrb[0].mxu0
        %v3694 = vadd.f32 %v3606, %v3693
        %3695 = vdwg.mxu0
        %3696 = vmatprep.subr.mxu0 %v3397
        %3697 = vmatpush1.msra.mxu0 %v3396
        %3698 = vmatprep.subr.mxu0 %v3401
        %3699 = vmatpush1.msra.mxu0 %v3400
        %3700 = vmatprep.subr.mxu0 %v3405
        %3701 = vmatpush1.msra.mxu0 %v3404
        %3702 = vmatprep.subr.mxu0 %v3409
        %3703 = vmatpush1.msra.mxu0 %v3408
        %3704 = vmatprep.subr.mxu0 %v3413
        %3705 = vmatpush1.msra.mxu0 %v3412
        %3706 = vmatprep.subr.mxu0 %v3417
        %3707 = vmatpush1.msra.mxu0 %v3416
        %3708 = vmatprep.subr.mxu0 %v3421
        %3709 = vmatpush1.msra.mxu0 %v3420
        %3710 = vmatprep.subr.mxu0 %v3425
        %3711 = vmatpush1.msra.mxu0 %v3424
        %3712 = vmatprep.subr.mxu0 %v3429
        %3713 = vmatpush1.msra.mxu0 %v3428
        %3714 = vmatprep.subr.mxu0 %v3433
        %3715 = vmatpush1.msra.mxu0 %v3432
        %3716 = vmatprep.subr.mxu0 %v3437
        %3717 = vmatpush1.msra.mxu0 %v3436
        %3718 = vmatprep.subr.mxu0 %v3441
        %3719 = vmatpush1.msra.mxu0 %v3440
        %3720 = vmatprep.subr.mxu0 %v3445
        %3721 = vmatpush1.msra.mxu0 %v3444
        %3722 = vmatprep.subr.mxu0 %v3449
        %3723 = vmatpush1.msra.mxu0 %v3448
        %3724 = vmatprep.subr.mxu0 %v3453
        %3725 = vmatpush1.msra.mxu0 %v3452
        %3726 = vmatprep.subr.mxu0 %v3457
        %3727 = vmatpush1.msra.mxu0 %v3456
        %3728 = vmatprep.subr.mxu0 %v3461
        %3729 = vmatpush1.msra.mxu0 %v3460
        %3730 = vmatprep.subr.mxu0 %v3465
        %3731 = vmatpush1.msra.mxu0 %v3464
        %3732 = vmatprep.subr.mxu0 %v3469
        %3733 = vmatpush1.msra.mxu0 %v3468
        %3734 = vmatprep.subr.mxu0 %v3473
        %3735 = vmatpush1.msra.mxu0 %v3472
        %3736 = vmatprep.subr.mxu0 %v3477
        %3737 = vmatpush1.msra.mxu0 %v3476
        %3738 = vmatprep.subr.mxu0 %v3481
        %3739 = vmatpush1.msra.mxu0 %v3480
        %3740 = vmatprep.subr.mxu0 %v3485
        %3741 = vmatpush1.msra.mxu0 %v3484
        %3742 = vmatprep.subr.mxu0 %v3489
        %3743 = vmatpush1.msra.mxu0 %v3488
        %3744 = vmatprep.subr.mxu0 %v3493
        %3745 = vmatpush1.msra.mxu0 %v3492
        %3746 = vmatprep.subr.mxu0 %v3497
        %3747 = vmatpush1.msra.mxu0 %v3496
        %3748 = vmatprep.subr.mxu0 %v3501
        %3749 = vmatpush1.msra.mxu0 %v3500
        %3750 = vmatprep.subr.mxu0 %v3505
        %3751 = vmatpush1.msra.mxu0 %v3504
        %3752 = vmatprep.subr.mxu0 %v3509
        %3753 = vmatpush1.msra.mxu0 %v3508
        %3754 = vmatprep.subr.mxu0 %v3513
        %3755 = vmatpush1.msra.mxu0 %v3512
        %3756 = vmatprep.subr.mxu0 %v3517
        %3757 = vmatpush1.msra.mxu0 %v3516
        %3758 = vmatprep.subr.mxu0 %v3521
        %3759 = vmatpush1.msra.mxu0 %v3520
        %3760 = vmatprep.mubr.f32.mxu0 %v3263
        %3761 = vmatmul.mubr.f32.gmra.mrb[0].mxu0 %v3262
        %v3762 = vpop.f32.mrb[0].mxu0
        %v3763 = vadd.f32 %v3686, %v3762
        %v3764 = vpop.f32.mrb[0].mxu0
        %v3765 = vadd.f32 %v3688, %v3764
        %3766 = vmatprep.mubr.f32.mxu0 %v3267
        %3767 = vmatmul.mubr.f32.gmra.mrb[0].mxu0 %v3266
        %v3768 = vpop.f32.mrb[0].mxu0
        %v3769 = vadd.f32 %v3692, %v3768
        %v3770 = vpop.f32.mrb[0].mxu0
        %v3771 = vadd.f32 %v3694, %v3770
        %3772 = vdwg.mxu0
        %3773 = vmatprep.subr.mxu0 %v3271
        %3774 = vmatpush1.msra.mxu0 %v3270
        %3775 = vmatprep.subr.mxu0 %v3275
        %3776 = vmatpush1.msra.mxu0 %v3274
        %3777 = vmatprep.subr.mxu0 %v3279
        %3778 = vmatpush1.msra.mxu0 %v3278
        %3779 = vmatprep.subr.mxu0 %v3283
        %3780 = vmatpush1.msra.mxu0 %v3282
        %3781 = vmatprep.subr.mxu0 %v3287
        %3782 = vmatpush1.msra.mxu0 %v3286
        %3783 = vmatprep.subr.mxu0 %v3291
        %3784 = vmatpush1.msra.mxu0 %v3290
        %3785 = vmatprep.subr.mxu0 %v3295
        %3786 = vmatpush1.msra.mxu0 %v3294
        %3787 = vmatprep.subr.mxu0 %v3299
        %3788 = vmatpush1.msra.mxu0 %v3298
        %3789 = vmatprep.subr.mxu0 %v3303
        %3790 = vmatpush1.msra.mxu0 %v3302
        %3791 = vmatprep.subr.mxu0 %v3307
        %3792 = vmatpush1.msra.mxu0 %v3306
        %3793 = vmatprep.subr.mxu0 %v3311
        %3794 = vmatpush1.msra.mxu0 %v3310
        %3795 = vmatprep.subr.mxu0 %v3315
        %3796 = vmatpush1.msra.mxu0 %v3314
        %3797 = vmatprep.subr.mxu0 %v3319
        %3798 = vmatpush1.msra.mxu0 %v3318
        %3799 = vmatprep.subr.mxu0 %v3323
        %3800 = vmatpush1.msra.mxu0 %v3322
        %3801 = vmatprep.subr.mxu0 %v3327
        %3802 = vmatpush1.msra.mxu0 %v3326
        %3803 = vmatprep.subr.mxu0 %v3331
        %3804 = vmatpush1.msra.mxu0 %v3330
        %3805 = vmatprep.subr.mxu0 %v3335
        %3806 = vmatpush1.msra.mxu0 %v3334
        %3807 = vmatprep.subr.mxu0 %v3339
        %3808 = vmatpush1.msra.mxu0 %v3338
        %3809 = vmatprep.subr.mxu0 %v3343
        %3810 = vmatpush1.msra.mxu0 %v3342
        %3811 = vmatprep.subr.mxu0 %v3347
        %3812 = vmatpush1.msra.mxu0 %v3346
        %3813 = vmatprep.subr.mxu0 %v3351
        %3814 = vmatpush1.msra.mxu0 %v3350
        %3815 = vmatprep.subr.mxu0 %v3355
        %3816 = vmatpush1.msra.mxu0 %v3354
        %3817 = vmatprep.subr.mxu0 %v3359
        %3818 = vmatpush1.msra.mxu0 %v3358
        %3819 = vmatprep.subr.mxu0 %v3363
        %3820 = vmatpush1.msra.mxu0 %v3362
        %3821 = vmatprep.subr.mxu0 %v3367
        %3822 = vmatpush1.msra.mxu0 %v3366
        %3823 = vmatprep.subr.mxu0 %v3371
        %3824 = vmatpush1.msra.mxu0 %v3370
        %3825 = vmatprep.subr.mxu0 %v3375
        %3826 = vmatpush1.msra.mxu0 %v3374
        %3827 = vmatprep.subr.mxu0 %v3379
        %3828 = vmatpush1.msra.mxu0 %v3378
        %3829 = vmatprep.subr.mxu0 %v3383
        %3830 = vmatpush1.msra.mxu0 %v3382
        %3831 = vmatprep.subr.mxu0 %v3387
        %3832 = vmatpush1.msra.mxu0 %v3386
        %3833 = vmatprep.subr.mxu0 %v3391
        %3834 = vmatpush1.msra.mxu0 %v3390
        %3835 = vmatprep.subr.mxu0 %v3395
        %3836 = vmatpush1.msra.mxu0 %v3394
        %3837 = vmatprep.mubr.f32.mxu0 %v3261
        %3838 = vmatmul.mubr.f32.gmra.mrb[0].mxu0 %v3260
        %v3839 = vpop.f32.mrb[0].mxu0
        %v3840 = vadd.f32 %v3610, %v3839
        %v3841 = vpop.f32.mrb[0].mxu0
        %v3842 = vadd.f32 %v3614, %v3841
        %3843 = vmatprep.mubr.f32.mxu0 %v3265
        %3844 = vmatmul.mubr.f32.gmra.mrb[0].mxu0 %v3264
        %v3845 = vpop.f32.mrb[0].mxu0
        %v3846 = vadd.f32 %v3610, %v3845
        %v3847 = vpop.f32.mrb[0].mxu0
        %v3848 = vadd.f32 %v3614, %v3847
        %3849 = vdwg.mxu0
        %3850 = vmatprep.subr.mxu0 %v3399
        %3851 = vmatpush1.msra.mxu0 %v3398
        %3852 = vmatprep.subr.mxu0 %v3403
        %3853 = vmatpush1.msra.mxu0 %v3402
        %3854 = vmatprep.subr.mxu0 %v3407
        %3855 = vmatpush1.msra.mxu0 %v3406
        %3856 = vmatprep.subr.mxu0 %v3411
        %3857 = vmatpush1.msra.mxu0 %v3410
        %3858 = vmatprep.subr.mxu0 %v3415
        %3859 = vmatpush1.msra.mxu0 %v3414
        %3860 = vmatprep.subr.mxu0 %v3419
        %3861 = vmatpush1.msra.mxu0 %v3418
        %3862 = vmatprep.subr.mxu0 %v3423
        %3863 = vmatpush1.msra.mxu0 %v3422
        %3864 = vmatprep.subr.mxu0 %v3427
        %3865 = vmatpush1.msra.mxu0 %v3426
        %3866 = vmatprep.subr.mxu0 %v3431
        %3867 = vmatpush1.msra.mxu0 %v3430
        %3868 = vmatprep.subr.mxu0 %v3435
        %3869 = vmatpush1.msra.mxu0 %v3434
        %3870 = vmatprep.subr.mxu0 %v3439
        %3871 = vmatpush1.msra.mxu0 %v3438
        %3872 = vmatprep.subr.mxu0 %v3443
        %3873 = vmatpush1.msra.mxu0 %v3442
        %3874 = vmatprep.subr.mxu0 %v3447
        %3875 = vmatpush1.msra.mxu0 %v3446
        %3876 = vmatprep.subr.mxu0 %v3451
        %3877 = vmatpush1.msra.mxu0 %v3450
        %3878 = vmatprep.subr.mxu0 %v3455
        %3879 = vmatpush1.msra.mxu0 %v3454
        %3880 = vmatprep.subr.mxu0 %v3459
        %3881 = vmatpush1.msra.mxu0 %v3458
        %3882 = vmatprep.subr.mxu0 %v3463
        %3883 = vmatpush1.msra.mxu0 %v3462
        %3884 = vmatprep.subr.mxu0 %v3467
        %3885 = vmatpush1.msra.mxu0 %v3466
        %3886 = vmatprep.subr.mxu0 %v3471
        %3887 = vmatpush1.msra.mxu0 %v3470
        %3888 = vmatprep.subr.mxu0 %v3475
        %3889 = vmatpush1.msra.mxu0 %v3474
        %3890 = vmatprep.subr.mxu0 %v3479
        %3891 = vmatpush1.msra.mxu0 %v3478
        %3892 = vmatprep.subr.mxu0 %v3483
        %3893 = vmatpush1.msra.mxu0 %v3482
        %3894 = vmatprep.subr.mxu0 %v3487
        %3895 = vmatpush1.msra.mxu0 %v3486
        %3896 = vmatprep.subr.mxu0 %v3491
        %3897 = vmatpush1.msra.mxu0 %v3490
        %3898 = vmatprep.subr.mxu0 %v3495
        %3899 = vmatpush1.msra.mxu0 %v3494
        %3900 = vmatprep.subr.mxu0 %v3499
        %3901 = vmatpush1.msra.mxu0 %v3498
        %3902 = vmatprep.subr.mxu0 %v3503
        %3903 = vmatpush1.msra.mxu0 %v3502
        %3904 = vmatprep.subr.mxu0 %v3507
        %3905 = vmatpush1.msra.mxu0 %v3506
        %3906 = vmatprep.subr.mxu0 %v3511
        %3907 = vmatpush1.msra.mxu0 %v3510
        %3908 = vmatprep.subr.mxu0 %v3515
        %3909 = vmatpush1.msra.mxu0 %v3514
        %3910 = vmatprep.subr.mxu0 %v3519
        %3911 = vmatpush1.msra.mxu0 %v3518
        %3912 = vmatprep.subr.mxu0 %v3523
        %3913 = vmatpush1.msra.mxu0 %v3522
        %3914 = vmatprep.mubr.f32.mxu0 %v3263
        %3915 = vmatmul.mubr.f32.gmra.mrb[0].mxu0 %v3262
        %v3916 = vpop.f32.mrb[0].mxu0
        %v3917 = vadd.f32 %v3840, %v3916
        %v3918 = vpop.f32.mrb[0].mxu0
        %v3919 = vadd.f32 %v3842, %v3918
        %3920 = vmatprep.mubr.f32.mxu0 %v3267
        %3921 = vmatmul.mubr.f32.gmra.mrb[0].mxu0 %v3266
        %v3922 = vpop.f32.mrb[0].mxu0
        %v3923 = vadd.f32 %v3846, %v3922
        %v3924 = vpop.f32.mrb[0].mxu0
        %v3925 = vadd.f32 %v3848, %v3924
        %3926 = vdwg.mxu0
        %v3927 = vmax.f32 %v3763, 0.0
        %v3928 = vmax.f32 %v3765, 0.0
        %v3929 = vmax.f32 %v3917, 0.0
        %v3930 = vmax.f32 %v3919, 0.0
        %v3931 = vmax.f32 %v3769, 0.0
        %v3932 = vmax.f32 %v3771, 0.0
        %v3933 = vmax.f32 %v3923, 0.0
        %v3934 = vmax.f32 %v3925, 0.0
        %v3943 = vrot.slane %v3927, 4
        %v3944 = vrot.slane %v3928, 4
        %v3945 = vrot.slane %v3929, 4
        %v3946 = vrot.slane %v3930, 4
        %v3947 = vrot.slane %v3931, 4
        %v3948 = vsel %vm851, %v3943, %v3947
        %v3949 = vrot.slane %v3932, 4
        %v3950 = vsel %vm851, %v3944, %v3949
        %v3951 = vrot.slane %v3933, 4
        %v3952 = vsel %vm851, %v3945, %v3951
        %v3953 = vrot.slane %v3934, 4
        %v3954 = vsel %vm851, %v3946, %v3953
        %v3967 = vsel %vm851, 0.0, %v3943
        %v3968 = vsel %vm851, 0.0, %v3944
        %v3969 = vsel %vm851, 0.0, %v3945
        %v3970 = vsel %vm851, 0.0, %v3946
        %v3971 = vsel %vm851, %v3947, 0.0
        %v3972 = vsel %vm851, %v3949, 0.0
        %v3973 = vsel %vm851, %v3951, 0.0
        %v3974 = vsel %vm851, %v3953, 0.0
        %v3977 = vrot.slane %v3967, 1
        %v3978 = vrot.slane %v3948, 1
        %v3979 = vsel %vm886, %v3977, %v3978
        %v3980 = vrot.slane %v3971, 1
        %v3981 = vsel %vm886, %v3978, %v3980
        %3982 = vrot.lane.b32.xlu0 %v3979, 64
        %v3983 = vpop.permute.xlu0 %3982
        %3984 = vrot.lane.b32.xlu0 %v3981, 64
        %v3985 = vpop.permute.xlu0 %3984
        %v3988 = vrot.slane %v3967, 2
        %v3989 = vrot.slane %v3948, 2
        %v3990 = vsel %vm898, %v3988, %v3989
        %v3991 = vrot.slane %v3971, 2
        %v3992 = vsel %vm898, %v3989, %v3991
        %v3995 = vrot.slane %v3967, 3
        %v3996 = vrot.slane %v3948, 3
        %v3997 = vsel %vm906, %v3995, %v3996
        %v3998 = vrot.slane %v3971, 3
        %v3999 = vsel %vm906, %v3996, %v3998
        %4000 = vrot.lane.b32.xlu0 %v3997, 64
        %v4001 = vpop.permute.xlu0 %4000
        %4002 = vrot.lane.b32.xlu0 %v3999, 64
        %v4003 = vpop.permute.xlu0 %4002
        %v4006 = vrot.slane %v3967, 4
        %v4007 = vrot.slane %v3948, 4
        %v4008 = vsel %vm851, %v4006, %v4007
        %v4009 = vrot.slane %v3971, 4
        %v4010 = vsel %vm851, %v4007, %v4009
        %v4013 = vrot.slane %v3967, 5
        %v4014 = vrot.slane %v3948, 5
        %v4015 = vsel %vm925, %v4013, %v4014
        %v4016 = vrot.slane %v3971, 5
        %v4017 = vsel %vm925, %v4014, %v4016
        %4018 = vrot.lane.b32.xlu0 %v4015, 64
        %v4019 = vpop.permute.xlu0 %4018
        %4020 = vrot.lane.b32.xlu0 %v4017, 64
        %v4021 = vpop.permute.xlu0 %4020
        %v4024 = vrot.slane %v3967, 6
        %v4025 = vrot.slane %v3948, 6
        %v4026 = vsel %vm937, %v4024, %v4025
        %v4027 = vrot.slane %v3971, 6
        %v4028 = vsel %vm937, %v4025, %v4027
        %v4031 = vrot.slane %v3967, 7
        %v4032 = vrot.slane %v3948, 7
        %v4033 = vsel %vm945, %v4031, %v4032
        %v4034 = vrot.slane %v3971, 7
        %v4035 = vsel %vm945, %v4032, %v4034
        %4036 = vrot.lane.b32.xlu0 %v4033, 64
        %v4037 = vpop.permute.xlu0 %4036
        %4038 = vrot.lane.b32.xlu0 %v4035, 64
        %v4039 = vpop.permute.xlu0 %4038
        %v4042 = vsel %vm957, %v3967, %v3983
        %v4043 = vsel %vm957, %v3948, %v3985
        %v4044 = vsel %vm957, %v3990, %v4001
        %v4045 = vsel %vm957, %v3992, %v4003
        %v4046 = vsel %vm957, %v4008, %v4019
        %v4047 = vsel %vm957, %v4010, %v4021
        %v4048 = vsel %vm957, %v4026, %v4037
        %v4049 = vsel %vm957, %v4028, %v4039
        %v4050 = vsel %vm957, %v3948, 0
        %v4052 = vsel %vm957, %v3971, 0
        %4054 = vmatprep.subr.mxu0 0.0
        %4055 = vmatpush1.msra.mxu0 %v3525
        %4056 = vmatprep.subr.mxu0 0.0
        %4057 = vmatpush1.msra.mxu0 %v3526
        %4058 = vmatprep.subr.mxu0 0.0
        %4059 = vmatpush1.msra.mxu0 %v3527
        %4060 = vmatprep.subr.mxu0 0.0
        %4061 = vmatpush1.msra.mxu0 %v3528
        %4062 = vmatprep.subr.mxu0 0.0
        %4063 = vmatpush1.msra.mxu0 %v3529
        %4064 = vmatprep.subr.mxu0 0.0
        %4065 = vmatpush1.msra.mxu0 %v3530
        %4066 = vmatprep.subr.mxu0 0.0
        %4067 = vmatpush1.msra.mxu0 %v3531
        %4068 = vmatprep.subr.mxu0 0.0
        %4069 = vmatpush1.msra.mxu0 %v3532
        %4070 = vmatprep.subr.mxu0 0.0
        %4071 = vmatpush1.msra.mxu0 %v3533
        %4072 = vmatprep.subr.mxu0 0.0
        %4073 = vmatpush1.msra.mxu0 %v3534
        %4074 = vmatprep.subr.mxu0 0.0
        %4075 = vmatpush1.msra.mxu0 %v3535
        %4076 = vmatprep.subr.mxu0 0.0
        %4077 = vmatpush1.msra.mxu0 %v3536
        %4078 = vmatprep.subr.mxu0 0.0
        %4079 = vmatpush1.msra.mxu0 %v3537
        %4080 = vmatprep.subr.mxu0 0.0
        %4081 = vmatpush1.msra.mxu0 %v3538
        %4082 = vmatprep.subr.mxu0 0.0
        %4083 = vmatpush1.msra.mxu0 %v3539
        %4084 = vmatprep.subr.mxu0 0.0
        %4085 = vmatpush1.msra.mxu0 %v3540
        %4086 = vmatprep.subr.mxu0 0.0
        %4087 = vmatpush1.msra.mxu0 %v3541
        %4088 = vmatprep.subr.mxu0 0.0
        %4089 = vmatpush1.msra.mxu0 %v3542
        %4090 = vmatprep.subr.mxu0 0.0
        %4091 = vmatpush1.msra.mxu0 %v3543
        %4092 = vmatprep.subr.mxu0 0.0
        %4093 = vmatpush1.msra.mxu0 %v3544
        %4094 = vmatprep.subr.mxu0 0.0
        %4095 = vmatpush1.msra.mxu0 %v3545
        %4096 = vmatprep.subr.mxu0 0.0
        %4097 = vmatpush1.msra.mxu0 %v3546
        %4098 = vmatprep.subr.mxu0 0.0
        %4099 = vmatpush1.msra.mxu0 %v3547
        %4100 = vmatprep.subr.mxu0 0.0
        %4101 = vmatpush1.msra.mxu0 %v3548
        %4102 = vmatprep.subr.mxu0 0.0
        %4103 = vmatpush1.msra.mxu0 %v3549
        %4104 = vmatprep.subr.mxu0 0.0
        %4105 = vmatpush1.msra.mxu0 %v3550
        %4106 = vmatprep.subr.mxu0 0.0
        %4107 = vmatpush1.msra.mxu0 %v3551
        %4108 = vmatprep.subr.mxu0 0.0
        %4109 = vmatpush1.msra.mxu0 %v3552
        %4110 = vmatprep.subr.mxu0 0.0
        %4111 = vmatpush1.msra.mxu0 %v3553
        %4112 = vmatprep.subr.mxu0 0.0
        %4113 = vmatpush1.msra.mxu0 %v3554
        %4114 = vmatprep.subr.mxu0 0.0
        %4115 = vmatpush1.msra.mxu0 %v3555
        %4116 = vmatprep.subr.mxu0 0.0
        %4117 = vmatpush1.msra.mxu0 %v3556
        %4118 = vmatprep.mubr.f32.mxu0 %v4044
        %4119 = vmatmul.mubr.f32.gmra.mrb[0].mxu0 %v4042
        %v4120 = vpop.f32.mrb[0].mxu0
        %v4121 = vadd.f32 0.0, %v4120
        %v4122 = vpop.f32.mrb[0].mxu0
        %4123 = vmatprep.mubr.f32.mxu0 %v4045
        %4124 = vmatmul.mubr.f32.gmra.mrb[0].mxu0 %v4043
        %v4125 = vpop.f32.mrb[0].mxu0
        %v4126 = vadd.f32 0.0, %v4125
        %v4127 = vpop.f32.mrb[0].mxu0
        %4128 = vdwg.mxu0
        %4129 = vmatprep.subr.mxu0 0.0
        %4130 = vmatpush1.msra.mxu0 %v3557
        %4131 = vmatprep.subr.mxu0 0.0
        %4132 = vmatpush1.msra.mxu0 %v3558
        %4133 = vmatprep.subr.mxu0 0.0
        %4134 = vmatpush1.msra.mxu0 %v3559
        %4135 = vmatprep.subr.mxu0 0.0
        %4136 = vmatpush1.msra.mxu0 %v3560
        %4137 = vmatprep.subr.mxu0 0.0
        %4138 = vmatpush1.msra.mxu0 %v3561
        %4139 = vmatprep.subr.mxu0 0.0
        %4140 = vmatpush1.msra.mxu0 %v3562
        %4141 = vmatprep.subr.mxu0 0.0
        %4142 = vmatpush1.msra.mxu0 %v3563
        %4143 = vmatprep.subr.mxu0 0.0
        %4144 = vmatpush1.msra.mxu0 %v3564
        %4145 = vmatprep.subr.mxu0 0.0
        %4146 = vmatpush1.msra.mxu0 %v3565
        %4147 = vmatprep.subr.mxu0 0.0
        %4148 = vmatpush1.msra.mxu0 %v3566
        %4149 = vmatprep.subr.mxu0 0.0
        %4150 = vmatpush1.msra.mxu0 %v3567
        %4151 = vmatprep.subr.mxu0 0.0
        %4152 = vmatpush1.msra.mxu0 %v3568
        %4153 = vmatprep.subr.mxu0 0.0
        %4154 = vmatpush1.msra.mxu0 %v3569
        %4155 = vmatprep.subr.mxu0 0.0
        %4156 = vmatpush1.msra.mxu0 %v3570
        %4157 = vmatprep.subr.mxu0 0.0
        %4158 = vmatpush1.msra.mxu0 %v3571
        %4159 = vmatprep.subr.mxu0 0.0
        %4160 = vmatpush1.msra.mxu0 %v3572
        %4161 = vmatprep.subr.mxu0 0.0
        %4162 = vmatpush1.msra.mxu0 %v3573
        %4163 = vmatprep.subr.mxu0 0.0
        %4164 = vmatpush1.msra.mxu0 %v3574
        %4165 = vmatprep.subr.mxu0 0.0
        %4166 = vmatpush1.msra.mxu0 %v3575
        %4167 = vmatprep.subr.mxu0 0.0
        %4168 = vmatpush1.msra.mxu0 %v3576
        %4169 = vmatprep.subr.mxu0 0.0
        %4170 = vmatpush1.msra.mxu0 %v3577
        %4171 = vmatprep.subr.mxu0 0.0
        %4172 = vmatpush1.msra.mxu0 %v3578
        %4173 = vmatprep.subr.mxu0 0.0
        %4174 = vmatpush1.msra.mxu0 %v3579
        %4175 = vmatprep.subr.mxu0 0.0
        %4176 = vmatpush1.msra.mxu0 %v3580
        %4177 = vmatprep.subr.mxu0 0.0
        %4178 = vmatpush1.msra.mxu0 %v3581
        %4179 = vmatprep.subr.mxu0 0.0
        %4180 = vmatpush1.msra.mxu0 %v3582
        %4181 = vmatprep.subr.mxu0 0.0
        %4182 = vmatpush1.msra.mxu0 %v3583
        %4183 = vmatprep.subr.mxu0 0.0
        %4184 = vmatpush1.msra.mxu0 %v3584
        %4185 = vmatprep.subr.mxu0 0.0
        %4186 = vmatpush1.msra.mxu0 %v3585
        %4187 = vmatprep.subr.mxu0 0.0
        %4188 = vmatpush1.msra.mxu0 %v3586
        %4189 = vmatprep.subr.mxu0 0.0
        %4190 = vmatpush1.msra.mxu0 %v3587
        %4191 = vmatprep.subr.mxu0 0.0
        %4192 = vmatpush1.msra.mxu0 %v3588
        %4193 = vmatprep.mubr.f32.mxu0 %v4048
        %4194 = vmatmul.mubr.f32.gmra.mrb[0].mxu0 %v4046
        %v4195 = vpop.f32.mrb[0].mxu0
        %v4196 = vadd.f32 %v4121, %v4195
        %v4197 = vpop.f32.mrb[0].mxu0
        %4198 = vmatprep.mubr.f32.mxu0 %v4049
        %4199 = vmatmul.mubr.f32.gmra.mrb[0].mxu0 %v4047
        %v4200 = vpop.f32.mrb[0].mxu0
        %v4201 = vadd.f32 %v4126, %v4200
        %v4202 = vpop.f32.mrb[0].mxu0
        %4203 = vdwg.mxu0
        %4204 = vmatprep.subr.mxu0 0.0
        %4205 = vmatpush1.msra.mxu0 %v3589
        %4206 = vmatprep.subr.mxu0 0.0
        %4207 = vmatpush1.msra.mxu0 %v3590
        %4208 = vmatprep.subr.mxu0 0.0
        %4209 = vmatpush1.msra.mxu0 %v3591
        %4210 = vmatprep.subr.mxu0 0.0
        %4211 = vmatpush1.msra.mxu0 %v3592
        %4212 = vmatprep.subr.mxu0 0.0
        %4213 = vmatpush1.msra.mxu0 %v3593
        %4214 = vmatprep.subr.mxu0 0.0
        %4215 = vmatpush1.msra.mxu0 %v3594
        %4216 = vmatprep.subr.mxu0 0.0
        %4217 = vmatpush1.msra.mxu0 %v3595
        %4218 = vmatprep.subr.mxu0 0.0
        %4219 = vmatpush1.msra.mxu0 %v3596
        %4220 = vmatprep.subr.mxu0 0.0
        %4221 = vmatpush1.msra.mxu0 0.0
        %4222 = vmatprep.subr.mxu0 0.0
        %4223 = vmatpush1.msra.mxu0 0.0
        %4224 = vmatprep.subr.mxu0 0.0
        %4225 = vmatpush1.msra.mxu0 0.0
        %4226 = vmatprep.subr.mxu0 0.0
        %4227 = vmatpush1.msra.mxu0 0.0
        %4228 = vmatprep.subr.mxu0 0.0
        %4229 = vmatpush1.msra.mxu0 0.0
        %4230 = vmatprep.subr.mxu0 0.0
        %4231 = vmatpush1.msra.mxu0 0.0
        %4232 = vmatprep.subr.mxu0 0.0
        %4233 = vmatpush1.msra.mxu0 0.0
        %4234 = vmatprep.subr.mxu0 0.0
        %4235 = vmatpush1.msra.mxu0 0.0
        %4236 = vmatprep.subr.mxu0 0.0
        %4237 = vmatpush1.msra.mxu0 0.0
        %4238 = vmatprep.subr.mxu0 0.0
        %4239 = vmatpush1.msra.mxu0 0.0
        %4240 = vmatprep.subr.mxu0 0.0
        %4241 = vmatpush1.msra.mxu0 0.0
        %4242 = vmatprep.subr.mxu0 0.0
        %4243 = vmatpush1.msra.mxu0 0.0
        %4244 = vmatprep.subr.mxu0 0.0
        %4245 = vmatpush1.msra.mxu0 0.0
        %4246 = vmatprep.subr.mxu0 0.0
        %4247 = vmatpush1.msra.mxu0 0.0
        %4248 = vmatprep.subr.mxu0 0.0
        %4249 = vmatpush1.msra.mxu0 0.0
        %4250 = vmatprep.subr.mxu0 0.0
        %4251 = vmatpush1.msra.mxu0 0.0
        %4252 = vmatprep.subr.mxu0 0.0
        %4253 = vmatpush1.msra.mxu0 0.0
        %4254 = vmatprep.subr.mxu0 0.0
        %4255 = vmatpush1.msra.mxu0 0.0
        %4256 = vmatprep.subr.mxu0 0.0
        %4257 = vmatpush1.msra.mxu0 0.0
        %4258 = vmatprep.subr.mxu0 0.0
        %4259 = vmatpush1.msra.mxu0 0.0
        %4260 = vmatprep.subr.mxu0 0.0
        %4261 = vmatpush1.msra.mxu0 0.0
        %4262 = vmatprep.subr.mxu0 0.0
        %4263 = vmatpush1.msra.mxu0 0.0
        %4264 = vmatprep.subr.mxu0 0.0
        %4265 = vmatpush1.msra.mxu0 0.0
        %4266 = vmatprep.subr.mxu0 0.0
        %4267 = vmatpush1.msra.mxu0 0.0
        %4268 = vmatprep.mubr.f32.mxu0 0.0
        %4269 = vmatmul.mubr.f32.gmra.mrb[0].mxu0 %v4050
        %v4270 = vpop.f32.mrb[0].mxu0
        %v4271 = vadd.f32 %v4196, %v4270
        %v4272 = vpop.f32.mrb[0].mxu0
        %4273 = vmatprep.mubr.f32.mxu0 0.0
        %4274 = vmatmul.mubr.f32.gmra.mrb[0].mxu0 %v4052
        %v4275 = vpop.f32.mrb[0].mxu0
        %v4276 = vadd.f32 %v4201, %v4275
        %v4277 = vpop.f32.mrb[0].mxu0
        %4278 = vdwg.mxu0
        %4279 = vrot.lane.b32.xlu0 %v3967, 64
        %v4280 = vpop.permute.xlu0 %4279
        %4281 = vrot.lane.b32.xlu0 %v3948, 64
        %v4282 = vpop.permute.xlu0 %4281
        %4287 = vrot.lane.b32.xlu0 %v3990, 64
        %v4288 = vpop.permute.xlu0 %4287
        %4289 = vrot.lane.b32.xlu0 %v3992, 64
        %v4290 = vpop.permute.xlu0 %4289
        %4295 = vrot.lane.b32.xlu0 %v4008, 64
        %v4296 = vpop.permute.xlu0 %4295
        %4297 = vrot.lane.b32.xlu0 %v4010, 64
        %v4298 = vpop.permute.xlu0 %4297
        %4303 = vrot.lane.b32.xlu0 %v4026, 64
        %v4304 = vpop.permute.xlu0 %4303
        %4305 = vrot.lane.b32.xlu0 %v4028, 64
        %v4306 = vpop.permute.xlu0 %4305
        %4311 = vrot.lane.b32.xlu0 %v3971, 64
        %v4312 = vpop.permute.xlu0 %4311
        %v4313 = vsel %vm957, %v4280, %v3979
        %v4314 = vsel %vm957, %v4282, %v3981
        %v4315 = vsel %vm957, %v4288, %v3997
        %v4316 = vsel %vm957, %v4290, %v3999
        %v4317 = vsel %vm957, %v4296, %v4015
        %v4318 = vsel %vm957, %v4298, %v4017
        %v4319 = vsel %vm957, %v4304, %v4033
        %v4320 = vsel %vm957, %v4306, %v4035
        %v4321 = vsel %vm957, %v4282, 0
        %v4323 = vsel %vm957, %v4312, 0
        %4325 = vmatprep.subr.mxu0 0.0
        %4326 = vmatpush1.msra.mxu0 %v3525
        %4327 = vmatprep.subr.mxu0 0.0
        %4328 = vmatpush1.msra.mxu0 %v3526
        %4329 = vmatprep.subr.mxu0 0.0
        %4330 = vmatpush1.msra.mxu0 %v3527
        %4331 = vmatprep.subr.mxu0 0.0
        %4332 = vmatpush1.msra.mxu0 %v3528
        %4333 = vmatprep.subr.mxu0 0.0
        %4334 = vmatpush1.msra.mxu0 %v3529
        %4335 = vmatprep.subr.mxu0 0.0
        %4336 = vmatpush1.msra.mxu0 %v3530
        %4337 = vmatprep.subr.mxu0 0.0
        %4338 = vmatpush1.msra.mxu0 %v3531
        %4339 = vmatprep.subr.mxu0 0.0
        %4340 = vmatpush1.msra.mxu0 %v3532
        %4341 = vmatprep.subr.mxu0 0.0
        %4342 = vmatpush1.msra.mxu0 %v3533
        %4343 = vmatprep.subr.mxu0 0.0
        %4344 = vmatpush1.msra.mxu0 %v3534
        %4345 = vmatprep.subr.mxu0 0.0
        %4346 = vmatpush1.msra.mxu0 %v3535
        %4347 = vmatprep.subr.mxu0 0.0
        %4348 = vmatpush1.msra.mxu0 %v3536
        %4349 = vmatprep.subr.mxu0 0.0
        %4350 = vmatpush1.msra.mxu0 %v3537
        %4351 = vmatprep.subr.mxu0 0.0
        %4352 = vmatpush1.msra.mxu0 %v3538
        %4353 = vmatprep.subr.mxu0 0.0
        %4354 = vmatpush1.msra.mxu0 %v3539
        %4355 = vmatprep.subr.mxu0 0.0
        %4356 = vmatpush1.msra.mxu0 %v3540
        %4357 = vmatprep.subr.mxu0 0.0
        %4358 = vmatpush1.msra.mxu0 %v3541
        %4359 = vmatprep.subr.mxu0 0.0
        %4360 = vmatpush1.msra.mxu0 %v3542
        %4361 = vmatprep.subr.mxu0 0.0
        %4362 = vmatpush1.msra.mxu0 %v3543
        %4363 = vmatprep.subr.mxu0 0.0
        %4364 = vmatpush1.msra.mxu0 %v3544
        %4365 = vmatprep.subr.mxu0 0.0
        %4366 = vmatpush1.msra.mxu0 %v3545
        %4367 = vmatprep.subr.mxu0 0.0
        %4368 = vmatpush1.msra.mxu0 %v3546
        %4369 = vmatprep.subr.mxu0 0.0
        %4370 = vmatpush1.msra.mxu0 %v3547
        %4371 = vmatprep.subr.mxu0 0.0
        %4372 = vmatpush1.msra.mxu0 %v3548
        %4373 = vmatprep.subr.mxu0 0.0
        %4374 = vmatpush1.msra.mxu0 %v3549
        %4375 = vmatprep.subr.mxu0 0.0
        %4376 = vmatpush1.msra.mxu0 %v3550
        %4377 = vmatprep.subr.mxu0 0.0
        %4378 = vmatpush1.msra.mxu0 %v3551
        %4379 = vmatprep.subr.mxu0 0.0
        %4380 = vmatpush1.msra.mxu0 %v3552
        %4381 = vmatprep.subr.mxu0 0.0
        %4382 = vmatpush1.msra.mxu0 %v3553
        %4383 = vmatprep.subr.mxu0 0.0
        %4384 = vmatpush1.msra.mxu0 %v3554
        %4385 = vmatprep.subr.mxu0 0.0
        %4386 = vmatpush1.msra.mxu0 %v3555
        %4387 = vmatprep.subr.mxu0 0.0
        %4388 = vmatpush1.msra.mxu0 %v3556
        %4389 = vmatprep.mubr.f32.mxu0 %v4315
        %4390 = vmatmul.mubr.f32.gmra.mrb[0].mxu0 %v4313
        %v4391 = vpop.f32.mrb[0].mxu0
        %v4392 = vadd.f32 0.0, %v4391
        %v4393 = vpop.f32.mrb[0].mxu0
        %4394 = vmatprep.mubr.f32.mxu0 %v4316
        %4395 = vmatmul.mubr.f32.gmra.mrb[0].mxu0 %v4314
        %v4396 = vpop.f32.mrb[0].mxu0
        %v4397 = vadd.f32 0.0, %v4396
        %v4398 = vpop.f32.mrb[0].mxu0
        %4399 = vdwg.mxu0
        %4400 = vmatprep.subr.mxu0 0.0
        %4401 = vmatpush1.msra.mxu0 %v3557
        %4402 = vmatprep.subr.mxu0 0.0
        %4403 = vmatpush1.msra.mxu0 %v3558
        %4404 = vmatprep.subr.mxu0 0.0
        %4405 = vmatpush1.msra.mxu0 %v3559
        %4406 = vmatprep.subr.mxu0 0.0
        %4407 = vmatpush1.msra.mxu0 %v3560
        %4408 = vmatprep.subr.mxu0 0.0
        %4409 = vmatpush1.msra.mxu0 %v3561
        %4410 = vmatprep.subr.mxu0 0.0
        %4411 = vmatpush1.msra.mxu0 %v3562
        %4412 = vmatprep.subr.mxu0 0.0
        %4413 = vmatpush1.msra.mxu0 %v3563
        %4414 = vmatprep.subr.mxu0 0.0
        %4415 = vmatpush1.msra.mxu0 %v3564
        %4416 = vmatprep.subr.mxu0 0.0
        %4417 = vmatpush1.msra.mxu0 %v3565
        %4418 = vmatprep.subr.mxu0 0.0
        %4419 = vmatpush1.msra.mxu0 %v3566
        %4420 = vmatprep.subr.mxu0 0.0
        %4421 = vmatpush1.msra.mxu0 %v3567
        %4422 = vmatprep.subr.mxu0 0.0
        %4423 = vmatpush1.msra.mxu0 %v3568
        %4424 = vmatprep.subr.mxu0 0.0
        %4425 = vmatpush1.msra.mxu0 %v3569
        %4426 = vmatprep.subr.mxu0 0.0
        %4427 = vmatpush1.msra.mxu0 %v3570
        %4428 = vmatprep.subr.mxu0 0.0
        %4429 = vmatpush1.msra.mxu0 %v3571
        %4430 = vmatprep.subr.mxu0 0.0
        %4431 = vmatpush1.msra.mxu0 %v3572
        %4432 = vmatprep.subr.mxu0 0.0
        %4433 = vmatpush1.msra.mxu0 %v3573
        %4434 = vmatprep.subr.mxu0 0.0
        %4435 = vmatpush1.msra.mxu0 %v3574
        %4436 = vmatprep.subr.mxu0 0.0
        %4437 = vmatpush1.msra.mxu0 %v3575
        %4438 = vmatprep.subr.mxu0 0.0
        %4439 = vmatpush1.msra.mxu0 %v3576
        %4440 = vmatprep.subr.mxu0 0.0
        %4441 = vmatpush1.msra.mxu0 %v3577
        %4442 = vmatprep.subr.mxu0 0.0
        %4443 = vmatpush1.msra.mxu0 %v3578
        %4444 = vmatprep.subr.mxu0 0.0
        %4445 = vmatpush1.msra.mxu0 %v3579
        %4446 = vmatprep.subr.mxu0 0.0
        %4447 = vmatpush1.msra.mxu0 %v3580
        %4448 = vmatprep.subr.mxu0 0.0
        %4449 = vmatpush1.msra.mxu0 %v3581
        %4450 = vmatprep.subr.mxu0 0.0
        %4451 = vmatpush1.msra.mxu0 %v3582
        %4452 = vmatprep.subr.mxu0 0.0
        %4453 = vmatpush1.msra.mxu0 %v3583
        %4454 = vmatprep.subr.mxu0 0.0
        %4455 = vmatpush1.msra.mxu0 %v3584
        %4456 = vmatprep.subr.mxu0 0.0
        %4457 = vmatpush1.msra.mxu0 %v3585
        %4458 = vmatprep.subr.mxu0 0.0
        %4459 = vmatpush1.msra.mxu0 %v3586
        %4460 = vmatprep.subr.mxu0 0.0
        %4461 = vmatpush1.msra.mxu0 %v3587
        %4462 = vmatprep.subr.mxu0 0.0
        %4463 = vmatpush1.msra.mxu0 %v3588
        %4464 = vmatprep.mubr.f32.mxu0 %v4319
        %4465 = vmatmul.mubr.f32.gmra.mrb[0].mxu0 %v4317
        %v4466 = vpop.f32.mrb[0].mxu0
        %v4467 = vadd.f32 %v4392, %v4466
        %v4468 = vpop.f32.mrb[0].mxu0
        %4469 = vmatprep.mubr.f32.mxu0 %v4320
        %4470 = vmatmul.mubr.f32.gmra.mrb[0].mxu0 %v4318
        %v4471 = vpop.f32.mrb[0].mxu0
        %v4472 = vadd.f32 %v4397, %v4471
        %v4473 = vpop.f32.mrb[0].mxu0
        %4474 = vdwg.mxu0
        %4475 = vmatprep.subr.mxu0 0.0
        %4476 = vmatpush1.msra.mxu0 %v3589
        %4477 = vmatprep.subr.mxu0 0.0
        %4478 = vmatpush1.msra.mxu0 %v3590
        %4479 = vmatprep.subr.mxu0 0.0
        %4480 = vmatpush1.msra.mxu0 %v3591
        %4481 = vmatprep.subr.mxu0 0.0
        %4482 = vmatpush1.msra.mxu0 %v3592
        %4483 = vmatprep.subr.mxu0 0.0
        %4484 = vmatpush1.msra.mxu0 %v3593
        %4485 = vmatprep.subr.mxu0 0.0
        %4486 = vmatpush1.msra.mxu0 %v3594
        %4487 = vmatprep.subr.mxu0 0.0
        %4488 = vmatpush1.msra.mxu0 %v3595
        %4489 = vmatprep.subr.mxu0 0.0
        %4490 = vmatpush1.msra.mxu0 %v3596
        %4491 = vmatprep.subr.mxu0 0.0
        %4492 = vmatpush1.msra.mxu0 0.0
        %4493 = vmatprep.subr.mxu0 0.0
        %4494 = vmatpush1.msra.mxu0 0.0
        %4495 = vmatprep.subr.mxu0 0.0
        %4496 = vmatpush1.msra.mxu0 0.0
        %4497 = vmatprep.subr.mxu0 0.0
        %4498 = vmatpush1.msra.mxu0 0.0
        %4499 = vmatprep.subr.mxu0 0.0
        %4500 = vmatpush1.msra.mxu0 0.0
        %4501 = vmatprep.subr.mxu0 0.0
        %4502 = vmatpush1.msra.mxu0 0.0
        %4503 = vmatprep.subr.mxu0 0.0
        %4504 = vmatpush1.msra.mxu0 0.0
        %4505 = vmatprep.subr.mxu0 0.0
        %4506 = vmatpush1.msra.mxu0 0.0
        %4507 = vmatprep.subr.mxu0 0.0
        %4508 = vmatpush1.msra.mxu0 0.0
        %4509 = vmatprep.subr.mxu0 0.0
        %4510 = vmatpush1.msra.mxu0 0.0
        %4511 = vmatprep.subr.mxu0 0.0
        %4512 = vmatpush1.msra.mxu0 0.0
        %4513 = vmatprep.subr.mxu0 0.0
        %4514 = vmatpush1.msra.mxu0 0.0
        %4515 = vmatprep.subr.mxu0 0.0
        %4516 = vmatpush1.msra.mxu0 0.0
        %4517 = vmatprep.subr.mxu0 0.0
        %4518 = vmatpush1.msra.mxu0 0.0
        %4519 = vmatprep.subr.mxu0 0.0
        %4520 = vmatpush1.msra.mxu0 0.0
        %4521 = vmatprep.subr.mxu0 0.0
        %4522 = vmatpush1.msra.mxu0 0.0
        %4523 = vmatprep.subr.mxu0 0.0
        %4524 = vmatpush1.msra.mxu0 0.0
        %4525 = vmatprep.subr.mxu0 0.0
        %4526 = vmatpush1.msra.mxu0 0.0
        %4527 = vmatprep.subr.mxu0 0.0
        %4528 = vmatpush1.msra.mxu0 0.0
        %4529 = vmatprep.subr.mxu0 0.0
        %4530 = vmatpush1.msra.mxu0 0.0
        %4531 = vmatprep.subr.mxu0 0.0
        %4532 = vmatpush1.msra.mxu0 0.0
        %4533 = vmatprep.subr.mxu0 0.0
        %4534 = vmatpush1.msra.mxu0 0.0
        %4535 = vmatprep.subr.mxu0 0.0
        %4536 = vmatpush1.msra.mxu0 0.0
        %4537 = vmatprep.subr.mxu0 0.0
        %4538 = vmatpush1.msra.mxu0 0.0
        %4539 = vmatprep.mubr.f32.mxu0 0.0
        %4540 = vmatmul.mubr.f32.gmra.mrb[0].mxu0 %v4321
        %v4541 = vpop.f32.mrb[0].mxu0
        %v4542 = vadd.f32 %v4467, %v4541
        %v4543 = vpop.f32.mrb[0].mxu0
        %4544 = vmatprep.mubr.f32.mxu0 0.0
        %4545 = vmatmul.mubr.f32.gmra.mrb[0].mxu0 %v4323
        %v4546 = vpop.f32.mrb[0].mxu0
        %v4547 = vadd.f32 %v4472, %v4546
        %v4548 = vpop.f32.mrb[0].mxu0
        %4549 = vdwg.mxu0
        %v4552 = vrot.slane %v3968, 1
        %v4553 = vrot.slane %v3950, 1
        %v4554 = vsel %vm886, %v4552, %v4553
        %v4555 = vrot.slane %v3972, 1
        %v4556 = vsel %vm886, %v4553, %v4555
        %4557 = vrot.lane.b32.xlu0 %v4554, 64
        %v4558 = vpop.permute.xlu0 %4557
        %4559 = vrot.lane.b32.xlu0 %v4556, 64
        %v4560 = vpop.permute.xlu0 %4559
        %v4563 = vrot.slane %v3968, 2
        %v4564 = vrot.slane %v3950, 2
        %v4565 = vsel %vm898, %v4563, %v4564
        %v4566 = vrot.slane %v3972, 2
        %v4567 = vsel %vm898, %v4564, %v4566
        %v4570 = vrot.slane %v3968, 3
        %v4571 = vrot.slane %v3950, 3
        %v4572 = vsel %vm906, %v4570, %v4571
        %v4573 = vrot.slane %v3972, 3
        %v4574 = vsel %vm906, %v4571, %v4573
        %4575 = vrot.lane.b32.xlu0 %v4572, 64
        %v4576 = vpop.permute.xlu0 %4575
        %4577 = vrot.lane.b32.xlu0 %v4574, 64
        %v4578 = vpop.permute.xlu0 %4577
        %v4581 = vrot.slane %v3968, 4
        %v4582 = vrot.slane %v3950, 4
        %v4583 = vsel %vm851, %v4581, %v4582
        %v4584 = vrot.slane %v3972, 4
        %v4585 = vsel %vm851, %v4582, %v4584
        %v4588 = vrot.slane %v3968, 5
        %v4589 = vrot.slane %v3950, 5
        %v4590 = vsel %vm925, %v4588, %v4589
        %v4591 = vrot.slane %v3972, 5
        %v4592 = vsel %vm925, %v4589, %v4591
        %4593 = vrot.lane.b32.xlu0 %v4590, 64
        %v4594 = vpop.permute.xlu0 %4593
        %4595 = vrot.lane.b32.xlu0 %v4592, 64
        %v4596 = vpop.permute.xlu0 %4595
        %v4599 = vrot.slane %v3968, 6
        %v4600 = vrot.slane %v3950, 6
        %v4601 = vsel %vm937, %v4599, %v4600
        %v4602 = vrot.slane %v3972, 6
        %v4603 = vsel %vm937, %v4600, %v4602
        %v4606 = vrot.slane %v3968, 7
        %v4607 = vrot.slane %v3950, 7
        %v4608 = vsel %vm945, %v4606, %v4607
        %v4609 = vrot.slane %v3972, 7
        %v4610 = vsel %vm945, %v4607, %v4609
        %4611 = vrot.lane.b32.xlu0 %v4608, 64
        %v4612 = vpop.permute.xlu0 %4611
        %4613 = vrot.lane.b32.xlu0 %v4610, 64
        %v4614 = vpop.permute.xlu0 %4613
        %v4617 = vsel %vm957, %v3968, %v4558
        %v4618 = vsel %vm957, %v3950, %v4560
        %v4619 = vsel %vm957, %v4565, %v4576
        %v4620 = vsel %vm957, %v4567, %v4578
        %v4621 = vsel %vm957, %v4583, %v4594
        %v4622 = vsel %vm957, %v4585, %v4596
        %v4623 = vsel %vm957, %v4601, %v4612
        %v4624 = vsel %vm957, %v4603, %v4614
        %v4625 = vsel %vm957, %v3950, 0
        %v4627 = vsel %vm957, %v3972, 0
        %4629 = vmatprep.subr.mxu0 0.0
        %4630 = vmatpush1.msra.mxu0 %v3525
        %4631 = vmatprep.subr.mxu0 0.0
        %4632 = vmatpush1.msra.mxu0 %v3526
        %4633 = vmatprep.subr.mxu0 0.0
        %4634 = vmatpush1.msra.mxu0 %v3527
        %4635 = vmatprep.subr.mxu0 0.0
        %4636 = vmatpush1.msra.mxu0 %v3528
        %4637 = vmatprep.subr.mxu0 0.0
        %4638 = vmatpush1.msra.mxu0 %v3529
        %4639 = vmatprep.subr.mxu0 0.0
        %4640 = vmatpush1.msra.mxu0 %v3530
        %4641 = vmatprep.subr.mxu0 0.0
        %4642 = vmatpush1.msra.mxu0 %v3531
        %4643 = vmatprep.subr.mxu0 0.0
        %4644 = vmatpush1.msra.mxu0 %v3532
        %4645 = vmatprep.subr.mxu0 0.0
        %4646 = vmatpush1.msra.mxu0 %v3533
        %4647 = vmatprep.subr.mxu0 0.0
        %4648 = vmatpush1.msra.mxu0 %v3534
        %4649 = vmatprep.subr.mxu0 0.0
        %4650 = vmatpush1.msra.mxu0 %v3535
        %4651 = vmatprep.subr.mxu0 0.0
        %4652 = vmatpush1.msra.mxu0 %v3536
        %4653 = vmatprep.subr.mxu0 0.0
        %4654 = vmatpush1.msra.mxu0 %v3537
        %4655 = vmatprep.subr.mxu0 0.0
        %4656 = vmatpush1.msra.mxu0 %v3538
        %4657 = vmatprep.subr.mxu0 0.0
        %4658 = vmatpush1.msra.mxu0 %v3539
        %4659 = vmatprep.subr.mxu0 0.0
        %4660 = vmatpush1.msra.mxu0 %v3540
        %4661 = vmatprep.subr.mxu0 0.0
        %4662 = vmatpush1.msra.mxu0 %v3541
        %4663 = vmatprep.subr.mxu0 0.0
        %4664 = vmatpush1.msra.mxu0 %v3542
        %4665 = vmatprep.subr.mxu0 0.0
        %4666 = vmatpush1.msra.mxu0 %v3543
        %4667 = vmatprep.subr.mxu0 0.0
        %4668 = vmatpush1.msra.mxu0 %v3544
        %4669 = vmatprep.subr.mxu0 0.0
        %4670 = vmatpush1.msra.mxu0 %v3545
        %4671 = vmatprep.subr.mxu0 0.0
        %4672 = vmatpush1.msra.mxu0 %v3546
        %4673 = vmatprep.subr.mxu0 0.0
        %4674 = vmatpush1.msra.mxu0 %v3547
        %4675 = vmatprep.subr.mxu0 0.0
        %4676 = vmatpush1.msra.mxu0 %v3548
        %4677 = vmatprep.subr.mxu0 0.0
        %4678 = vmatpush1.msra.mxu0 %v3549
        %4679 = vmatprep.subr.mxu0 0.0
        %4680 = vmatpush1.msra.mxu0 %v3550
        %4681 = vmatprep.subr.mxu0 0.0
        %4682 = vmatpush1.msra.mxu0 %v3551
        %4683 = vmatprep.subr.mxu0 0.0
        %4684 = vmatpush1.msra.mxu0 %v3552
        %4685 = vmatprep.subr.mxu0 0.0
        %4686 = vmatpush1.msra.mxu0 %v3553
        %4687 = vmatprep.subr.mxu0 0.0
        %4688 = vmatpush1.msra.mxu0 %v3554
        %4689 = vmatprep.subr.mxu0 0.0
        %4690 = vmatpush1.msra.mxu0 %v3555
        %4691 = vmatprep.subr.mxu0 0.0
        %4692 = vmatpush1.msra.mxu0 %v3556
        %4693 = vmatprep.mubr.f32.mxu0 %v4619
        %4694 = vmatmul.mubr.f32.gmra.mrb[0].mxu0 %v4617
        %v4695 = vpop.f32.mrb[0].mxu0
        %v4696 = vadd.f32 0.0, %v4695
        %v4697 = vpop.f32.mrb[0].mxu0
        %4698 = vmatprep.mubr.f32.mxu0 %v4620
        %4699 = vmatmul.mubr.f32.gmra.mrb[0].mxu0 %v4618
        %v4700 = vpop.f32.mrb[0].mxu0
        %v4701 = vadd.f32 0.0, %v4700
        %v4702 = vpop.f32.mrb[0].mxu0
        %4703 = vdwg.mxu0
        %4704 = vmatprep.subr.mxu0 0.0
        %4705 = vmatpush1.msra.mxu0 %v3557
        %4706 = vmatprep.subr.mxu0 0.0
        %4707 = vmatpush1.msra.mxu0 %v3558
        %4708 = vmatprep.subr.mxu0 0.0
        %4709 = vmatpush1.msra.mxu0 %v3559
        %4710 = vmatprep.subr.mxu0 0.0
        %4711 = vmatpush1.msra.mxu0 %v3560
        %4712 = vmatprep.subr.mxu0 0.0
        %4713 = vmatpush1.msra.mxu0 %v3561
        %4714 = vmatprep.subr.mxu0 0.0
        %4715 = vmatpush1.msra.mxu0 %v3562
        %4716 = vmatprep.subr.mxu0 0.0
        %4717 = vmatpush1.msra.mxu0 %v3563
        %4718 = vmatprep.subr.mxu0 0.0
        %4719 = vmatpush1.msra.mxu0 %v3564
        %4720 = vmatprep.subr.mxu0 0.0
        %4721 = vmatpush1.msra.mxu0 %v3565
        %4722 = vmatprep.subr.mxu0 0.0
        %4723 = vmatpush1.msra.mxu0 %v3566
        %4724 = vmatprep.subr.mxu0 0.0
        %4725 = vmatpush1.msra.mxu0 %v3567
        %4726 = vmatprep.subr.mxu0 0.0
        %4727 = vmatpush1.msra.mxu0 %v3568
        %4728 = vmatprep.subr.mxu0 0.0
        %4729 = vmatpush1.msra.mxu0 %v3569
        %4730 = vmatprep.subr.mxu0 0.0
        %4731 = vmatpush1.msra.mxu0 %v3570
        %4732 = vmatprep.subr.mxu0 0.0
        %4733 = vmatpush1.msra.mxu0 %v3571
        %4734 = vmatprep.subr.mxu0 0.0
        %4735 = vmatpush1.msra.mxu0 %v3572
        %4736 = vmatprep.subr.mxu0 0.0
        %4737 = vmatpush1.msra.mxu0 %v3573
        %4738 = vmatprep.subr.mxu0 0.0
        %4739 = vmatpush1.msra.mxu0 %v3574
        %4740 = vmatprep.subr.mxu0 0.0
        %4741 = vmatpush1.msra.mxu0 %v3575
        %4742 = vmatprep.subr.mxu0 0.0
        %4743 = vmatpush1.msra.mxu0 %v3576
        %4744 = vmatprep.subr.mxu0 0.0
        %4745 = vmatpush1.msra.mxu0 %v3577
        %4746 = vmatprep.subr.mxu0 0.0
        %4747 = vmatpush1.msra.mxu0 %v3578
        %4748 = vmatprep.subr.mxu0 0.0
        %4749 = vmatpush1.msra.mxu0 %v3579
        %4750 = vmatprep.subr.mxu0 0.0
        %4751 = vmatpush1.msra.mxu0 %v3580
        %4752 = vmatprep.subr.mxu0 0.0
        %4753 = vmatpush1.msra.mxu0 %v3581
        %4754 = vmatprep.subr.mxu0 0.0
        %4755 = vmatpush1.msra.mxu0 %v3582
        %4756 = vmatprep.subr.mxu0 0.0
        %4757 = vmatpush1.msra.mxu0 %v3583
        %4758 = vmatprep.subr.mxu0 0.0
        %4759 = vmatpush1.msra.mxu0 %v3584
        %4760 = vmatprep.subr.mxu0 0.0
        %4761 = vmatpush1.msra.mxu0 %v3585
        %4762 = vmatprep.subr.mxu0 0.0
        %4763 = vmatpush1.msra.mxu0 %v3586
        %4764 = vmatprep.subr.mxu0 0.0
        %4765 = vmatpush1.msra.mxu0 %v3587
        %4766 = vmatprep.subr.mxu0 0.0
        %4767 = vmatpush1.msra.mxu0 %v3588
        %4768 = vmatprep.mubr.f32.mxu0 %v4623
        %4769 = vmatmul.mubr.f32.gmra.mrb[0].mxu0 %v4621
        %v4770 = vpop.f32.mrb[0].mxu0
        %v4771 = vadd.f32 %v4696, %v4770
        %v4772 = vpop.f32.mrb[0].mxu0
        %4773 = vmatprep.mubr.f32.mxu0 %v4624
        %4774 = vmatmul.mubr.f32.gmra.mrb[0].mxu0 %v4622
        %v4775 = vpop.f32.mrb[0].mxu0
        %v4776 = vadd.f32 %v4701, %v4775
        %v4777 = vpop.f32.mrb[0].mxu0
        %4778 = vdwg.mxu0
        %4779 = vmatprep.subr.mxu0 0.0
        %4780 = vmatpush1.msra.mxu0 %v3589
        %4781 = vmatprep.subr.mxu0 0.0
        %4782 = vmatpush1.msra.mxu0 %v3590
        %4783 = vmatprep.subr.mxu0 0.0
        %4784 = vmatpush1.msra.mxu0 %v3591
        %4785 = vmatprep.subr.mxu0 0.0
        %4786 = vmatpush1.msra.mxu0 %v3592
        %4787 = vmatprep.subr.mxu0 0.0
        %4788 = vmatpush1.msra.mxu0 %v3593
        %4789 = vmatprep.subr.mxu0 0.0
        %4790 = vmatpush1.msra.mxu0 %v3594
        %4791 = vmatprep.subr.mxu0 0.0
        %4792 = vmatpush1.msra.mxu0 %v3595
        %4793 = vmatprep.subr.mxu0 0.0
        %4794 = vmatpush1.msra.mxu0 %v3596
        %4795 = vmatprep.subr.mxu0 0.0
        %4796 = vmatpush1.msra.mxu0 0.0
        %4797 = vmatprep.subr.mxu0 0.0
        %4798 = vmatpush1.msra.mxu0 0.0
        %4799 = vmatprep.subr.mxu0 0.0
        %4800 = vmatpush1.msra.mxu0 0.0
        %4801 = vmatprep.subr.mxu0 0.0
        %4802 = vmatpush1.msra.mxu0 0.0
        %4803 = vmatprep.subr.mxu0 0.0
        %4804 = vmatpush1.msra.mxu0 0.0
        %4805 = vmatprep.subr.mxu0 0.0
        %4806 = vmatpush1.msra.mxu0 0.0
        %4807 = vmatprep.subr.mxu0 0.0
        %4808 = vmatpush1.msra.mxu0 0.0
        %4809 = vmatprep.subr.mxu0 0.0
        %4810 = vmatpush1.msra.mxu0 0.0
        %4811 = vmatprep.subr.mxu0 0.0
        %4812 = vmatpush1.msra.mxu0 0.0
        %4813 = vmatprep.subr.mxu0 0.0
        %4814 = vmatpush1.msra.mxu0 0.0
        %4815 = vmatprep.subr.mxu0 0.0
        %4816 = vmatpush1.msra.mxu0 0.0
        %4817 = vmatprep.subr.mxu0 0.0
        %4818 = vmatpush1.msra.mxu0 0.0
        %4819 = vmatprep.subr.mxu0 0.0
        %4820 = vmatpush1.msra.mxu0 0.0
        %4821 = vmatprep.subr.mxu0 0.0
        %4822 = vmatpush1.msra.mxu0 0.0
        %4823 = vmatprep.subr.mxu0 0.0
        %4824 = vmatpush1.msra.mxu0 0.0
        %4825 = vmatprep.subr.mxu0 0.0
        %4826 = vmatpush1.msra.mxu0 0.0
        %4827 = vmatprep.subr.mxu0 0.0
        %4828 = vmatpush1.msra.mxu0 0.0
        %4829 = vmatprep.subr.mxu0 0.0
        %4830 = vmatpush1.msra.mxu0 0.0
        %4831 = vmatprep.subr.mxu0 0.0
        %4832 = vmatpush1.msra.mxu0 0.0
        %4833 = vmatprep.subr.mxu0 0.0
        %4834 = vmatpush1.msra.mxu0 0.0
        %4835 = vmatprep.subr.mxu0 0.0
        %4836 = vmatpush1.msra.mxu0 0.0
        %4837 = vmatprep.subr.mxu0 0.0
        %4838 = vmatpush1.msra.mxu0 0.0
        %4839 = vmatprep.subr.mxu0 0.0
        %4840 = vmatpush1.msra.mxu0 0.0
        %4841 = vmatprep.subr.mxu0 0.0
        %4842 = vmatpush1.msra.mxu0 0.0
        %4843 = vmatprep.mubr.f32.mxu0 0.0
        %4844 = vmatmul.mubr.f32.gmra.mrb[0].mxu0 %v4625
        %v4845 = vpop.f32.mrb[0].mxu0
        %v4846 = vadd.f32 %v4771, %v4845
        %v4847 = vpop.f32.mrb[0].mxu0
        %4848 = vmatprep.mubr.f32.mxu0 0.0
        %4849 = vmatmul.mubr.f32.gmra.mrb[0].mxu0 %v4627
        %v4850 = vpop.f32.mrb[0].mxu0
        %v4851 = vadd.f32 %v4776, %v4850
        %v4852 = vpop.f32.mrb[0].mxu0
        %4853 = vdwg.mxu0
        %4854 = vrot.lane.b32.xlu0 %v3968, 64
        %v4855 = vpop.permute.xlu0 %4854
        %4856 = vrot.lane.b32.xlu0 %v3950, 64
        %v4857 = vpop.permute.xlu0 %4856
        %4862 = vrot.lane.b32.xlu0 %v4565, 64
        %v4863 = vpop.permute.xlu0 %4862
        %4864 = vrot.lane.b32.xlu0 %v4567, 64
        %v4865 = vpop.permute.xlu0 %4864
        %4870 = vrot.lane.b32.xlu0 %v4583, 64
        %v4871 = vpop.permute.xlu0 %4870
        %4872 = vrot.lane.b32.xlu0 %v4585, 64
        %v4873 = vpop.permute.xlu0 %4872
        %4878 = vrot.lane.b32.xlu0 %v4601, 64
        %v4879 = vpop.permute.xlu0 %4878
        %4880 = vrot.lane.b32.xlu0 %v4603, 64
        %v4881 = vpop.permute.xlu0 %4880
        %4886 = vrot.lane.b32.xlu0 %v3972, 64
        %v4887 = vpop.permute.xlu0 %4886
        %v4888 = vsel %vm957, %v4855, %v4554
        %v4889 = vsel %vm957, %v4857, %v4556
        %v4890 = vsel %vm957, %v4863, %v4572
        %v4891 = vsel %vm957, %v4865, %v4574
        %v4892 = vsel %vm957, %v4871, %v4590
        %v4893 = vsel %vm957, %v4873, %v4592
        %v4894 = vsel %vm957, %v4879, %v4608
        %v4895 = vsel %vm957, %v4881, %v4610
        %v4896 = vsel %vm957, %v4857, 0
        %v4898 = vsel %vm957, %v4887, 0
        %4900 = vmatprep.subr.mxu0 0.0
        %4901 = vmatpush1.msra.mxu0 %v3525
        %4902 = vmatprep.subr.mxu0 0.0
        %4903 = vmatpush1.msra.mxu0 %v3526
        %4904 = vmatprep.subr.mxu0 0.0
        %4905 = vmatpush1.msra.mxu0 %v3527
        %4906 = vmatprep.subr.mxu0 0.0
        %4907 = vmatpush1.msra.mxu0 %v3528
        %4908 = vmatprep.subr.mxu0 0.0
        %4909 = vmatpush1.msra.mxu0 %v3529
        %4910 = vmatprep.subr.mxu0 0.0
        %4911 = vmatpush1.msra.mxu0 %v3530
        %4912 = vmatprep.subr.mxu0 0.0
        %4913 = vmatpush1.msra.mxu0 %v3531
        %4914 = vmatprep.subr.mxu0 0.0
        %4915 = vmatpush1.msra.mxu0 %v3532
        %4916 = vmatprep.subr.mxu0 0.0
        %4917 = vmatpush1.msra.mxu0 %v3533
        %4918 = vmatprep.subr.mxu0 0.0
        %4919 = vmatpush1.msra.mxu0 %v3534
        %4920 = vmatprep.subr.mxu0 0.0
        %4921 = vmatpush1.msra.mxu0 %v3535
        %4922 = vmatprep.subr.mxu0 0.0
        %4923 = vmatpush1.msra.mxu0 %v3536
        %4924 = vmatprep.subr.mxu0 0.0
        %4925 = vmatpush1.msra.mxu0 %v3537
        %4926 = vmatprep.subr.mxu0 0.0
        %4927 = vmatpush1.msra.mxu0 %v3538
        %4928 = vmatprep.subr.mxu0 0.0
        %4929 = vmatpush1.msra.mxu0 %v3539
        %4930 = vmatprep.subr.mxu0 0.0
        %4931 = vmatpush1.msra.mxu0 %v3540
        %4932 = vmatprep.subr.mxu0 0.0
        %4933 = vmatpush1.msra.mxu0 %v3541
        %4934 = vmatprep.subr.mxu0 0.0
        %4935 = vmatpush1.msra.mxu0 %v3542
        %4936 = vmatprep.subr.mxu0 0.0
        %4937 = vmatpush1.msra.mxu0 %v3543
        %4938 = vmatprep.subr.mxu0 0.0
        %4939 = vmatpush1.msra.mxu0 %v3544
        %4940 = vmatprep.subr.mxu0 0.0
        %4941 = vmatpush1.msra.mxu0 %v3545
        %4942 = vmatprep.subr.mxu0 0.0
        %4943 = vmatpush1.msra.mxu0 %v3546
        %4944 = vmatprep.subr.mxu0 0.0
        %4945 = vmatpush1.msra.mxu0 %v3547
        %4946 = vmatprep.subr.mxu0 0.0
        %4947 = vmatpush1.msra.mxu0 %v3548
        %4948 = vmatprep.subr.mxu0 0.0
        %4949 = vmatpush1.msra.mxu0 %v3549
        %4950 = vmatprep.subr.mxu0 0.0
        %4951 = vmatpush1.msra.mxu0 %v3550
        %4952 = vmatprep.subr.mxu0 0.0
        %4953 = vmatpush1.msra.mxu0 %v3551
        %4954 = vmatprep.subr.mxu0 0.0
        %4955 = vmatpush1.msra.mxu0 %v3552
        %4956 = vmatprep.subr.mxu0 0.0
        %4957 = vmatpush1.msra.mxu0 %v3553
        %4958 = vmatprep.subr.mxu0 0.0
        %4959 = vmatpush1.msra.mxu0 %v3554
        %4960 = vmatprep.subr.mxu0 0.0
        %4961 = vmatpush1.msra.mxu0 %v3555
        %4962 = vmatprep.subr.mxu0 0.0
        %4963 = vmatpush1.msra.mxu0 %v3556
        %4964 = vmatprep.mubr.f32.mxu0 %v4890
        %4965 = vmatmul.mubr.f32.gmra.mrb[0].mxu0 %v4888
        %v4966 = vpop.f32.mrb[0].mxu0
        %v4967 = vadd.f32 0.0, %v4966
        %v4968 = vpop.f32.mrb[0].mxu0
        %4969 = vmatprep.mubr.f32.mxu0 %v4891
        %4970 = vmatmul.mubr.f32.gmra.mrb[0].mxu0 %v4889
        %v4971 = vpop.f32.mrb[0].mxu0
        %v4972 = vadd.f32 0.0, %v4971
        %v4973 = vpop.f32.mrb[0].mxu0
        %4974 = vdwg.mxu0
        %4975 = vmatprep.subr.mxu0 0.0
        %4976 = vmatpush1.msra.mxu0 %v3557
        %4977 = vmatprep.subr.mxu0 0.0
        %4978 = vmatpush1.msra.mxu0 %v3558
        %4979 = vmatprep.subr.mxu0 0.0
        %4980 = vmatpush1.msra.mxu0 %v3559
        %4981 = vmatprep.subr.mxu0 0.0
        %4982 = vmatpush1.msra.mxu0 %v3560
        %4983 = vmatprep.subr.mxu0 0.0
        %4984 = vmatpush1.msra.mxu0 %v3561
        %4985 = vmatprep.subr.mxu0 0.0
        %4986 = vmatpush1.msra.mxu0 %v3562
        %4987 = vmatprep.subr.mxu0 0.0
        %4988 = vmatpush1.msra.mxu0 %v3563
        %4989 = vmatprep.subr.mxu0 0.0
        %4990 = vmatpush1.msra.mxu0 %v3564
        %4991 = vmatprep.subr.mxu0 0.0
        %4992 = vmatpush1.msra.mxu0 %v3565
        %4993 = vmatprep.subr.mxu0 0.0
        %4994 = vmatpush1.msra.mxu0 %v3566
        %4995 = vmatprep.subr.mxu0 0.0
        %4996 = vmatpush1.msra.mxu0 %v3567
        %4997 = vmatprep.subr.mxu0 0.0
        %4998 = vmatpush1.msra.mxu0 %v3568
        %4999 = vmatprep.subr.mxu0 0.0
        %5000 = vmatpush1.msra.mxu0 %v3569
        %5001 = vmatprep.subr.mxu0 0.0
        %5002 = vmatpush1.msra.mxu0 %v3570
        %5003 = vmatprep.subr.mxu0 0.0
        %5004 = vmatpush1.msra.mxu0 %v3571
        %5005 = vmatprep.subr.mxu0 0.0
        %5006 = vmatpush1.msra.mxu0 %v3572
        %5007 = vmatprep.subr.mxu0 0.0
        %5008 = vmatpush1.msra.mxu0 %v3573
        %5009 = vmatprep.subr.mxu0 0.0
        %5010 = vmatpush1.msra.mxu0 %v3574
        %5011 = vmatprep.subr.mxu0 0.0
        %5012 = vmatpush1.msra.mxu0 %v3575
        %5013 = vmatprep.subr.mxu0 0.0
        %5014 = vmatpush1.msra.mxu0 %v3576
        %5015 = vmatprep.subr.mxu0 0.0
        %5016 = vmatpush1.msra.mxu0 %v3577
        %5017 = vmatprep.subr.mxu0 0.0
        %5018 = vmatpush1.msra.mxu0 %v3578
        %5019 = vmatprep.subr.mxu0 0.0
        %5020 = vmatpush1.msra.mxu0 %v3579
        %5021 = vmatprep.subr.mxu0 0.0
        %5022 = vmatpush1.msra.mxu0 %v3580
        %5023 = vmatprep.subr.mxu0 0.0
        %5024 = vmatpush1.msra.mxu0 %v3581
        %5025 = vmatprep.subr.mxu0 0.0
        %5026 = vmatpush1.msra.mxu0 %v3582
        %5027 = vmatprep.subr.mxu0 0.0
        %5028 = vmatpush1.msra.mxu0 %v3583
        %5029 = vmatprep.subr.mxu0 0.0
        %5030 = vmatpush1.msra.mxu0 %v3584
        %5031 = vmatprep.subr.mxu0 0.0
        %5032 = vmatpush1.msra.mxu0 %v3585
        %5033 = vmatprep.subr.mxu0 0.0
        %5034 = vmatpush1.msra.mxu0 %v3586
        %5035 = vmatprep.subr.mxu0 0.0
        %5036 = vmatpush1.msra.mxu0 %v3587
        %5037 = vmatprep.subr.mxu0 0.0
        %5038 = vmatpush1.msra.mxu0 %v3588
        %5039 = vmatprep.mubr.f32.mxu0 %v4894
        %5040 = vmatmul.mubr.f32.gmra.mrb[0].mxu0 %v4892
        %v5041 = vpop.f32.mrb[0].mxu0
        %v5042 = vadd.f32 %v4967, %v5041
        %v5043 = vpop.f32.mrb[0].mxu0
        %5044 = vmatprep.mubr.f32.mxu0 %v4895
        %5045 = vmatmul.mubr.f32.gmra.mrb[0].mxu0 %v4893
        %v5046 = vpop.f32.mrb[0].mxu0
        %v5047 = vadd.f32 %v4972, %v5046
        %v5048 = vpop.f32.mrb[0].mxu0
        %5049 = vdwg.mxu0
        %5050 = vmatprep.subr.mxu0 0.0
        %5051 = vmatpush1.msra.mxu0 %v3589
        %5052 = vmatprep.subr.mxu0 0.0
        %5053 = vmatpush1.msra.mxu0 %v3590
        %5054 = vmatprep.subr.mxu0 0.0
        %5055 = vmatpush1.msra.mxu0 %v3591
        %5056 = vmatprep.subr.mxu0 0.0
        %5057 = vmatpush1.msra.mxu0 %v3592
        %5058 = vmatprep.subr.mxu0 0.0
        %5059 = vmatpush1.msra.mxu0 %v3593
        %5060 = vmatprep.subr.mxu0 0.0
        %5061 = vmatpush1.msra.mxu0 %v3594
        %5062 = vmatprep.subr.mxu0 0.0
        %5063 = vmatpush1.msra.mxu0 %v3595
        %5064 = vmatprep.subr.mxu0 0.0
        %5065 = vmatpush1.msra.mxu0 %v3596
        %5066 = vmatprep.subr.mxu0 0.0
        %5067 = vmatpush1.msra.mxu0 0.0
        %5068 = vmatprep.subr.mxu0 0.0
        %5069 = vmatpush1.msra.mxu0 0.0
        %5070 = vmatprep.subr.mxu0 0.0
        %5071 = vmatpush1.msra.mxu0 0.0
        %5072 = vmatprep.subr.mxu0 0.0
        %5073 = vmatpush1.msra.mxu0 0.0
        %5074 = vmatprep.subr.mxu0 0.0
        %5075 = vmatpush1.msra.mxu0 0.0
        %5076 = vmatprep.subr.mxu0 0.0
        %5077 = vmatpush1.msra.mxu0 0.0
        %5078 = vmatprep.subr.mxu0 0.0
        %5079 = vmatpush1.msra.mxu0 0.0
        %5080 = vmatprep.subr.mxu0 0.0
        %5081 = vmatpush1.msra.mxu0 0.0
        %5082 = vmatprep.subr.mxu0 0.0
        %5083 = vmatpush1.msra.mxu0 0.0
        %5084 = vmatprep.subr.mxu0 0.0
        %5085 = vmatpush1.msra.mxu0 0.0
        %5086 = vmatprep.subr.mxu0 0.0
        %5087 = vmatpush1.msra.mxu0 0.0
        %5088 = vmatprep.subr.mxu0 0.0
        %5089 = vmatpush1.msra.mxu0 0.0
        %5090 = vmatprep.subr.mxu0 0.0
        %5091 = vmatpush1.msra.mxu0 0.0
        %5092 = vmatprep.subr.mxu0 0.0
        %5093 = vmatpush1.msra.mxu0 0.0
        %5094 = vmatprep.subr.mxu0 0.0
        %5095 = vmatpush1.msra.mxu0 0.0
        %5096 = vmatprep.subr.mxu0 0.0
        %5097 = vmatpush1.msra.mxu0 0.0
        %5098 = vmatprep.subr.mxu0 0.0
        %5099 = vmatpush1.msra.mxu0 0.0
        %5100 = vmatprep.subr.mxu0 0.0
        %5101 = vmatpush1.msra.mxu0 0.0
        %5102 = vmatprep.subr.mxu0 0.0
        %5103 = vmatpush1.msra.mxu0 0.0
        %5104 = vmatprep.subr.mxu0 0.0
        %5105 = vmatpush1.msra.mxu0 0.0
        %5106 = vmatprep.subr.mxu0 0.0
        %5107 = vmatpush1.msra.mxu0 0.0
        %5108 = vmatprep.subr.mxu0 0.0
        %5109 = vmatpush1.msra.mxu0 0.0
        %5110 = vmatprep.subr.mxu0 0.0
        %5111 = vmatpush1.msra.mxu0 0.0
        %5112 = vmatprep.subr.mxu0 0.0
        %5113 = vmatpush1.msra.mxu0 0.0
        %5114 = vmatprep.mubr.f32.mxu0 0.0
        %5115 = vmatmul.mubr.f32.gmra.mrb[0].mxu0 %v4896
        %v5116 = vpop.f32.mrb[0].mxu0
        %v5117 = vadd.f32 %v5042, %v5116
        %v5118 = vpop.f32.mrb[0].mxu0
        %5119 = vmatprep.mubr.f32.mxu0 0.0
        %5120 = vmatmul.mubr.f32.gmra.mrb[0].mxu0 %v4898
        %v5121 = vpop.f32.mrb[0].mxu0
        %v5122 = vadd.f32 %v5047, %v5121
        %v5123 = vpop.f32.mrb[0].mxu0
        %5124 = vdwg.mxu0
        %v5127 = vrot.slane %v3969, 1
        %v5128 = vrot.slane %v3952, 1
        %v5129 = vsel %vm886, %v5127, %v5128
        %v5130 = vrot.slane %v3973, 1
        %v5131 = vsel %vm886, %v5128, %v5130
        %5132 = vrot.lane.b32.xlu0 %v5129, 64
        %v5133 = vpop.permute.xlu0 %5132
        %5134 = vrot.lane.b32.xlu0 %v5131, 64
        %v5135 = vpop.permute.xlu0 %5134
        %v5138 = vrot.slane %v3969, 2
        %v5139 = vrot.slane %v3952, 2
        %v5140 = vsel %vm898, %v5138, %v5139
        %v5141 = vrot.slane %v3973, 2
        %v5142 = vsel %vm898, %v5139, %v5141
        %v5145 = vrot.slane %v3969, 3
        %v5146 = vrot.slane %v3952, 3
        %v5147 = vsel %vm906, %v5145, %v5146
        %v5148 = vrot.slane %v3973, 3
        %v5149 = vsel %vm906, %v5146, %v5148
        %5150 = vrot.lane.b32.xlu0 %v5147, 64
        %v5151 = vpop.permute.xlu0 %5150
        %5152 = vrot.lane.b32.xlu0 %v5149, 64
        %v5153 = vpop.permute.xlu0 %5152
        %v5156 = vrot.slane %v3969, 4
        %v5157 = vrot.slane %v3952, 4
        %v5158 = vsel %vm851, %v5156, %v5157
        %v5159 = vrot.slane %v3973, 4
        %v5160 = vsel %vm851, %v5157, %v5159
        %v5163 = vrot.slane %v3969, 5
        %v5164 = vrot.slane %v3952, 5
        %v5165 = vsel %vm925, %v5163, %v5164
        %v5166 = vrot.slane %v3973, 5
        %v5167 = vsel %vm925, %v5164, %v5166
        %5168 = vrot.lane.b32.xlu0 %v5165, 64
        %v5169 = vpop.permute.xlu0 %5168
        %5170 = vrot.lane.b32.xlu0 %v5167, 64
        %v5171 = vpop.permute.xlu0 %5170
        %v5174 = vrot.slane %v3969, 6
        %v5175 = vrot.slane %v3952, 6
        %v5176 = vsel %vm937, %v5174, %v5175
        %v5177 = vrot.slane %v3973, 6
        %v5178 = vsel %vm937, %v5175, %v5177
        %v5181 = vrot.slane %v3969, 7
        %v5182 = vrot.slane %v3952, 7
        %v5183 = vsel %vm945, %v5181, %v5182
        %v5184 = vrot.slane %v3973, 7
        %v5185 = vsel %vm945, %v5182, %v5184
        %5186 = vrot.lane.b32.xlu0 %v5183, 64
        %v5187 = vpop.permute.xlu0 %5186
        %5188 = vrot.lane.b32.xlu0 %v5185, 64
        %v5189 = vpop.permute.xlu0 %5188
        %v5192 = vsel %vm957, %v3969, %v5133
        %v5193 = vsel %vm957, %v3952, %v5135
        %v5194 = vsel %vm957, %v5140, %v5151
        %v5195 = vsel %vm957, %v5142, %v5153
        %v5196 = vsel %vm957, %v5158, %v5169
        %v5197 = vsel %vm957, %v5160, %v5171
        %v5198 = vsel %vm957, %v5176, %v5187
        %v5199 = vsel %vm957, %v5178, %v5189
        %v5200 = vsel %vm957, %v3952, 0
        %v5202 = vsel %vm957, %v3973, 0
        %5204 = vmatprep.subr.mxu0 0.0
        %5205 = vmatpush1.msra.mxu0 %v3525
        %5206 = vmatprep.subr.mxu0 0.0
        %5207 = vmatpush1.msra.mxu0 %v3526
        %5208 = vmatprep.subr.mxu0 0.0
        %5209 = vmatpush1.msra.mxu0 %v3527
        %5210 = vmatprep.subr.mxu0 0.0
        %5211 = vmatpush1.msra.mxu0 %v3528
        %5212 = vmatprep.subr.mxu0 0.0
        %5213 = vmatpush1.msra.mxu0 %v3529
        %5214 = vmatprep.subr.mxu0 0.0
        %5215 = vmatpush1.msra.mxu0 %v3530
        %5216 = vmatprep.subr.mxu0 0.0
        %5217 = vmatpush1.msra.mxu0 %v3531
        %5218 = vmatprep.subr.mxu0 0.0
        %5219 = vmatpush1.msra.mxu0 %v3532
        %5220 = vmatprep.subr.mxu0 0.0
        %5221 = vmatpush1.msra.mxu0 %v3533
        %5222 = vmatprep.subr.mxu0 0.0
        %5223 = vmatpush1.msra.mxu0 %v3534
        %5224 = vmatprep.subr.mxu0 0.0
        %5225 = vmatpush1.msra.mxu0 %v3535
        %5226 = vmatprep.subr.mxu0 0.0
        %5227 = vmatpush1.msra.mxu0 %v3536
        %5228 = vmatprep.subr.mxu0 0.0
        %5229 = vmatpush1.msra.mxu0 %v3537
        %5230 = vmatprep.subr.mxu0 0.0
        %5231 = vmatpush1.msra.mxu0 %v3538
        %5232 = vmatprep.subr.mxu0 0.0
        %5233 = vmatpush1.msra.mxu0 %v3539
        %5234 = vmatprep.subr.mxu0 0.0
        %5235 = vmatpush1.msra.mxu0 %v3540
        %5236 = vmatprep.subr.mxu0 0.0
        %5237 = vmatpush1.msra.mxu0 %v3541
        %5238 = vmatprep.subr.mxu0 0.0
        %5239 = vmatpush1.msra.mxu0 %v3542
        %5240 = vmatprep.subr.mxu0 0.0
        %5241 = vmatpush1.msra.mxu0 %v3543
        %5242 = vmatprep.subr.mxu0 0.0
        %5243 = vmatpush1.msra.mxu0 %v3544
        %5244 = vmatprep.subr.mxu0 0.0
        %5245 = vmatpush1.msra.mxu0 %v3545
        %5246 = vmatprep.subr.mxu0 0.0
        %5247 = vmatpush1.msra.mxu0 %v3546
        %5248 = vmatprep.subr.mxu0 0.0
        %5249 = vmatpush1.msra.mxu0 %v3547
        %5250 = vmatprep.subr.mxu0 0.0
        %5251 = vmatpush1.msra.mxu0 %v3548
        %5252 = vmatprep.subr.mxu0 0.0
        %5253 = vmatpush1.msra.mxu0 %v3549
        %5254 = vmatprep.subr.mxu0 0.0
        %5255 = vmatpush1.msra.mxu0 %v3550
        %5256 = vmatprep.subr.mxu0 0.0
        %5257 = vmatpush1.msra.mxu0 %v3551
        %5258 = vmatprep.subr.mxu0 0.0
        %5259 = vmatpush1.msra.mxu0 %v3552
        %5260 = vmatprep.subr.mxu0 0.0
        %5261 = vmatpush1.msra.mxu0 %v3553
        %5262 = vmatprep.subr.mxu0 0.0
        %5263 = vmatpush1.msra.mxu0 %v3554
        %5264 = vmatprep.subr.mxu0 0.0
        %5265 = vmatpush1.msra.mxu0 %v3555
        %5266 = vmatprep.subr.mxu0 0.0
        %5267 = vmatpush1.msra.mxu0 %v3556
        %5268 = vmatprep.mubr.f32.mxu0 %v5194
        %5269 = vmatmul.mubr.f32.gmra.mrb[0].mxu0 %v5192
        %v5270 = vpop.f32.mrb[0].mxu0
        %v5271 = vadd.f32 0.0, %v5270
        %v5272 = vpop.f32.mrb[0].mxu0
        %5273 = vmatprep.mubr.f32.mxu0 %v5195
        %5274 = vmatmul.mubr.f32.gmra.mrb[0].mxu0 %v5193
        %v5275 = vpop.f32.mrb[0].mxu0
        %v5276 = vadd.f32 0.0, %v5275
        %v5277 = vpop.f32.mrb[0].mxu0
        %5278 = vdwg.mxu0
        %5279 = vmatprep.subr.mxu0 0.0
        %5280 = vmatpush1.msra.mxu0 %v3557
        %5281 = vmatprep.subr.mxu0 0.0
        %5282 = vmatpush1.msra.mxu0 %v3558
        %5283 = vmatprep.subr.mxu0 0.0
        %5284 = vmatpush1.msra.mxu0 %v3559
        %5285 = vmatprep.subr.mxu0 0.0
        %5286 = vmatpush1.msra.mxu0 %v3560
        %5287 = vmatprep.subr.mxu0 0.0
        %5288 = vmatpush1.msra.mxu0 %v3561
        %5289 = vmatprep.subr.mxu0 0.0
        %5290 = vmatpush1.msra.mxu0 %v3562
        %5291 = vmatprep.subr.mxu0 0.0
        %5292 = vmatpush1.msra.mxu0 %v3563
        %5293 = vmatprep.subr.mxu0 0.0
        %5294 = vmatpush1.msra.mxu0 %v3564
        %5295 = vmatprep.subr.mxu0 0.0
        %5296 = vmatpush1.msra.mxu0 %v3565
        %5297 = vmatprep.subr.mxu0 0.0
        %5298 = vmatpush1.msra.mxu0 %v3566
        %5299 = vmatprep.subr.mxu0 0.0
        %5300 = vmatpush1.msra.mxu0 %v3567
        %5301 = vmatprep.subr.mxu0 0.0
        %5302 = vmatpush1.msra.mxu0 %v3568
        %5303 = vmatprep.subr.mxu0 0.0
        %5304 = vmatpush1.msra.mxu0 %v3569
        %5305 = vmatprep.subr.mxu0 0.0
        %5306 = vmatpush1.msra.mxu0 %v3570
        %5307 = vmatprep.subr.mxu0 0.0
        %5308 = vmatpush1.msra.mxu0 %v3571
        %5309 = vmatprep.subr.mxu0 0.0
        %5310 = vmatpush1.msra.mxu0 %v3572
        %5311 = vmatprep.subr.mxu0 0.0
        %5312 = vmatpush1.msra.mxu0 %v3573
        %5313 = vmatprep.subr.mxu0 0.0
        %5314 = vmatpush1.msra.mxu0 %v3574
        %5315 = vmatprep.subr.mxu0 0.0
        %5316 = vmatpush1.msra.mxu0 %v3575
        %5317 = vmatprep.subr.mxu0 0.0
        %5318 = vmatpush1.msra.mxu0 %v3576
        %5319 = vmatprep.subr.mxu0 0.0
        %5320 = vmatpush1.msra.mxu0 %v3577
        %5321 = vmatprep.subr.mxu0 0.0
        %5322 = vmatpush1.msra.mxu0 %v3578
        %5323 = vmatprep.subr.mxu0 0.0
        %5324 = vmatpush1.msra.mxu0 %v3579
        %5325 = vmatprep.subr.mxu0 0.0
        %5326 = vmatpush1.msra.mxu0 %v3580
        %5327 = vmatprep.subr.mxu0 0.0
        %5328 = vmatpush1.msra.mxu0 %v3581
        %5329 = vmatprep.subr.mxu0 0.0
        %5330 = vmatpush1.msra.mxu0 %v3582
        %5331 = vmatprep.subr.mxu0 0.0
        %5332 = vmatpush1.msra.mxu0 %v3583
        %5333 = vmatprep.subr.mxu0 0.0
        %5334 = vmatpush1.msra.mxu0 %v3584
        %5335 = vmatprep.subr.mxu0 0.0
        %5336 = vmatpush1.msra.mxu0 %v3585
        %5337 = vmatprep.subr.mxu0 0.0
        %5338 = vmatpush1.msra.mxu0 %v3586
        %5339 = vmatprep.subr.mxu0 0.0
        %5340 = vmatpush1.msra.mxu0 %v3587
        %5341 = vmatprep.subr.mxu0 0.0
        %5342 = vmatpush1.msra.mxu0 %v3588
        %5343 = vmatprep.mubr.f32.mxu0 %v5198
        %5344 = vmatmul.mubr.f32.gmra.mrb[0].mxu0 %v5196
        %v5345 = vpop.f32.mrb[0].mxu0
        %v5346 = vadd.f32 %v5271, %v5345
        %v5347 = vpop.f32.mrb[0].mxu0
        %5348 = vmatprep.mubr.f32.mxu0 %v5199
        %5349 = vmatmul.mubr.f32.gmra.mrb[0].mxu0 %v5197
        %v5350 = vpop.f32.mrb[0].mxu0
        %v5351 = vadd.f32 %v5276, %v5350
        %v5352 = vpop.f32.mrb[0].mxu0
        %5353 = vdwg.mxu0
        %5354 = vmatprep.subr.mxu0 0.0
        %5355 = vmatpush1.msra.mxu0 %v3589
        %5356 = vmatprep.subr.mxu0 0.0
        %5357 = vmatpush1.msra.mxu0 %v3590
        %5358 = vmatprep.subr.mxu0 0.0
        %5359 = vmatpush1.msra.mxu0 %v3591
        %5360 = vmatprep.subr.mxu0 0.0
        %5361 = vmatpush1.msra.mxu0 %v3592
        %5362 = vmatprep.subr.mxu0 0.0
        %5363 = vmatpush1.msra.mxu0 %v3593
        %5364 = vmatprep.subr.mxu0 0.0
        %5365 = vmatpush1.msra.mxu0 %v3594
        %5366 = vmatprep.subr.mxu0 0.0
        %5367 = vmatpush1.msra.mxu0 %v3595
        %5368 = vmatprep.subr.mxu0 0.0
        %5369 = vmatpush1.msra.mxu0 %v3596
        %5370 = vmatprep.subr.mxu0 0.0
        %5371 = vmatpush1.msra.mxu0 0.0
        %5372 = vmatprep.subr.mxu0 0.0
        %5373 = vmatpush1.msra.mxu0 0.0
        %5374 = vmatprep.subr.mxu0 0.0
        %5375 = vmatpush1.msra.mxu0 0.0
        %5376 = vmatprep.subr.mxu0 0.0
        %5377 = vmatpush1.msra.mxu0 0.0
        %5378 = vmatprep.subr.mxu0 0.0
        %5379 = vmatpush1.msra.mxu0 0.0
        %5380 = vmatprep.subr.mxu0 0.0
        %5381 = vmatpush1.msra.mxu0 0.0
        %5382 = vmatprep.subr.mxu0 0.0
        %5383 = vmatpush1.msra.mxu0 0.0
        %5384 = vmatprep.subr.mxu0 0.0
        %5385 = vmatpush1.msra.mxu0 0.0
        %5386 = vmatprep.subr.mxu0 0.0
        %5387 = vmatpush1.msra.mxu0 0.0
        %5388 = vmatprep.subr.mxu0 0.0
        %5389 = vmatpush1.msra.mxu0 0.0
        %5390 = vmatprep.subr.mxu0 0.0
        %5391 = vmatpush1.msra.mxu0 0.0
        %5392 = vmatprep.subr.mxu0 0.0
        %5393 = vmatpush1.msra.mxu0 0.0
        %5394 = vmatprep.subr.mxu0 0.0
        %5395 = vmatpush1.msra.mxu0 0.0
        %5396 = vmatprep.subr.mxu0 0.0
        %5397 = vmatpush1.msra.mxu0 0.0
        %5398 = vmatprep.subr.mxu0 0.0
        %5399 = vmatpush1.msra.mxu0 0.0
        %5400 = vmatprep.subr.mxu0 0.0
        %5401 = vmatpush1.msra.mxu0 0.0
        %5402 = vmatprep.subr.mxu0 0.0
        %5403 = vmatpush1.msra.mxu0 0.0
        %5404 = vmatprep.subr.mxu0 0.0
        %5405 = vmatpush1.msra.mxu0 0.0
        %5406 = vmatprep.subr.mxu0 0.0
        %5407 = vmatpush1.msra.mxu0 0.0
        %5408 = vmatprep.subr.mxu0 0.0
        %5409 = vmatpush1.msra.mxu0 0.0
        %5410 = vmatprep.subr.mxu0 0.0
        %5411 = vmatpush1.msra.mxu0 0.0
        %5412 = vmatprep.subr.mxu0 0.0
        %5413 = vmatpush1.msra.mxu0 0.0
        %5414 = vmatprep.subr.mxu0 0.0
        %5415 = vmatpush1.msra.mxu0 0.0
        %5416 = vmatprep.subr.mxu0 0.0
        %5417 = vmatpush1.msra.mxu0 0.0
        %5418 = vmatprep.mubr.f32.mxu0 0.0
        %5419 = vmatmul.mubr.f32.gmra.mrb[0].mxu0 %v5200
        %v5420 = vpop.f32.mrb[0].mxu0
        %v5421 = vadd.f32 %v5346, %v5420
        %v5422 = vpop.f32.mrb[0].mxu0
        %5423 = vmatprep.mubr.f32.mxu0 0.0
        %5424 = vmatmul.mubr.f32.gmra.mrb[0].mxu0 %v5202
        %v5425 = vpop.f32.mrb[0].mxu0
        %v5426 = vadd.f32 %v5351, %v5425
        %v5427 = vpop.f32.mrb[0].mxu0
        %5428 = vdwg.mxu0
        %5429 = vrot.lane.b32.xlu0 %v3969, 64
        %v5430 = vpop.permute.xlu0 %5429
        %5431 = vrot.lane.b32.xlu0 %v3952, 64
        %v5432 = vpop.permute.xlu0 %5431
        %5437 = vrot.lane.b32.xlu0 %v5140, 64
        %v5438 = vpop.permute.xlu0 %5437
        %5439 = vrot.lane.b32.xlu0 %v5142, 64
        %v5440 = vpop.permute.xlu0 %5439
        %5445 = vrot.lane.b32.xlu0 %v5158, 64
        %v5446 = vpop.permute.xlu0 %5445
        %5447 = vrot.lane.b32.xlu0 %v5160, 64
        %v5448 = vpop.permute.xlu0 %5447
        %5453 = vrot.lane.b32.xlu0 %v5176, 64
        %v5454 = vpop.permute.xlu0 %5453
        %5455 = vrot.lane.b32.xlu0 %v5178, 64
        %v5456 = vpop.permute.xlu0 %5455
        %5461 = vrot.lane.b32.xlu0 %v3973, 64
        %v5462 = vpop.permute.xlu0 %5461
        %v5463 = vsel %vm957, %v5430, %v5129
        %v5464 = vsel %vm957, %v5432, %v5131
        %v5465 = vsel %vm957, %v5438, %v5147
        %v5466 = vsel %vm957, %v5440, %v5149
        %v5467 = vsel %vm957, %v5446, %v5165
        %v5468 = vsel %vm957, %v5448, %v5167
        %v5469 = vsel %vm957, %v5454, %v5183
        %v5470 = vsel %vm957, %v5456, %v5185
        %v5471 = vsel %vm957, %v5432, 0
        %v5473 = vsel %vm957, %v5462, 0
        %5475 = vmatprep.subr.mxu0 0.0
        %5476 = vmatpush1.msra.mxu0 %v3525
        %5477 = vmatprep.subr.mxu0 0.0
        %5478 = vmatpush1.msra.mxu0 %v3526
        %5479 = vmatprep.subr.mxu0 0.0
        %5480 = vmatpush1.msra.mxu0 %v3527
        %5481 = vmatprep.subr.mxu0 0.0
        %5482 = vmatpush1.msra.mxu0 %v3528
        %5483 = vmatprep.subr.mxu0 0.0
        %5484 = vmatpush1.msra.mxu0 %v3529
        %5485 = vmatprep.subr.mxu0 0.0
        %5486 = vmatpush1.msra.mxu0 %v3530
        %5487 = vmatprep.subr.mxu0 0.0
        %5488 = vmatpush1.msra.mxu0 %v3531
        %5489 = vmatprep.subr.mxu0 0.0
        %5490 = vmatpush1.msra.mxu0 %v3532
        %5491 = vmatprep.subr.mxu0 0.0
        %5492 = vmatpush1.msra.mxu0 %v3533
        %5493 = vmatprep.subr.mxu0 0.0
        %5494 = vmatpush1.msra.mxu0 %v3534
        %5495 = vmatprep.subr.mxu0 0.0
        %5496 = vmatpush1.msra.mxu0 %v3535
        %5497 = vmatprep.subr.mxu0 0.0
        %5498 = vmatpush1.msra.mxu0 %v3536
        %5499 = vmatprep.subr.mxu0 0.0
        %5500 = vmatpush1.msra.mxu0 %v3537
        %5501 = vmatprep.subr.mxu0 0.0
        %5502 = vmatpush1.msra.mxu0 %v3538
        %5503 = vmatprep.subr.mxu0 0.0
        %5504 = vmatpush1.msra.mxu0 %v3539
        %5505 = vmatprep.subr.mxu0 0.0
        %5506 = vmatpush1.msra.mxu0 %v3540
        %5507 = vmatprep.subr.mxu0 0.0
        %5508 = vmatpush1.msra.mxu0 %v3541
        %5509 = vmatprep.subr.mxu0 0.0
        %5510 = vmatpush1.msra.mxu0 %v3542
        %5511 = vmatprep.subr.mxu0 0.0
        %5512 = vmatpush1.msra.mxu0 %v3543
        %5513 = vmatprep.subr.mxu0 0.0
        %5514 = vmatpush1.msra.mxu0 %v3544
        %5515 = vmatprep.subr.mxu0 0.0
        %5516 = vmatpush1.msra.mxu0 %v3545
        %5517 = vmatprep.subr.mxu0 0.0
        %5518 = vmatpush1.msra.mxu0 %v3546
        %5519 = vmatprep.subr.mxu0 0.0
        %5520 = vmatpush1.msra.mxu0 %v3547
        %5521 = vmatprep.subr.mxu0 0.0
        %5522 = vmatpush1.msra.mxu0 %v3548
        %5523 = vmatprep.subr.mxu0 0.0
        %5524 = vmatpush1.msra.mxu0 %v3549
        %5525 = vmatprep.subr.mxu0 0.0
        %5526 = vmatpush1.msra.mxu0 %v3550
        %5527 = vmatprep.subr.mxu0 0.0
        %5528 = vmatpush1.msra.mxu0 %v3551
        %5529 = vmatprep.subr.mxu0 0.0
        %5530 = vmatpush1.msra.mxu0 %v3552
        %5531 = vmatprep.subr.mxu0 0.0
        %5532 = vmatpush1.msra.mxu0 %v3553
        %5533 = vmatprep.subr.mxu0 0.0
        %5534 = vmatpush1.msra.mxu0 %v3554
        %5535 = vmatprep.subr.mxu0 0.0
        %5536 = vmatpush1.msra.mxu0 %v3555
        %5537 = vmatprep.subr.mxu0 0.0
        %5538 = vmatpush1.msra.mxu0 %v3556
        %5539 = vmatprep.mubr.f32.mxu0 %v5465
        %5540 = vmatmul.mubr.f32.gmra.mrb[0].mxu0 %v5463
        %v5541 = vpop.f32.mrb[0].mxu0
        %v5542 = vadd.f32 0.0, %v5541
        %v5543 = vpop.f32.mrb[0].mxu0
        %5544 = vmatprep.mubr.f32.mxu0 %v5466
        %5545 = vmatmul.mubr.f32.gmra.mrb[0].mxu0 %v5464
        %v5546 = vpop.f32.mrb[0].mxu0
        %v5547 = vadd.f32 0.0, %v5546
        %v5548 = vpop.f32.mrb[0].mxu0
        %5549 = vdwg.mxu0
        %5550 = vmatprep.subr.mxu0 0.0
        %5551 = vmatpush1.msra.mxu0 %v3557
        %5552 = vmatprep.subr.mxu0 0.0
        %5553 = vmatpush1.msra.mxu0 %v3558
        %5554 = vmatprep.subr.mxu0 0.0
        %5555 = vmatpush1.msra.mxu0 %v3559
        %5556 = vmatprep.subr.mxu0 0.0
        %5557 = vmatpush1.msra.mxu0 %v3560
        %5558 = vmatprep.subr.mxu0 0.0
        %5559 = vmatpush1.msra.mxu0 %v3561
        %5560 = vmatprep.subr.mxu0 0.0
        %5561 = vmatpush1.msra.mxu0 %v3562
        %5562 = vmatprep.subr.mxu0 0.0
        %5563 = vmatpush1.msra.mxu0 %v3563
        %5564 = vmatprep.subr.mxu0 0.0
        %5565 = vmatpush1.msra.mxu0 %v3564
        %5566 = vmatprep.subr.mxu0 0.0
        %5567 = vmatpush1.msra.mxu0 %v3565
        %5568 = vmatprep.subr.mxu0 0.0
        %5569 = vmatpush1.msra.mxu0 %v3566
        %5570 = vmatprep.subr.mxu0 0.0
        %5571 = vmatpush1.msra.mxu0 %v3567
        %5572 = vmatprep.subr.mxu0 0.0
        %5573 = vmatpush1.msra.mxu0 %v3568
        %5574 = vmatprep.subr.mxu0 0.0
        %5575 = vmatpush1.msra.mxu0 %v3569
        %5576 = vmatprep.subr.mxu0 0.0
        %5577 = vmatpush1.msra.mxu0 %v3570
        %5578 = vmatprep.subr.mxu0 0.0
        %5579 = vmatpush1.msra.mxu0 %v3571
        %5580 = vmatprep.subr.mxu0 0.0
        %5581 = vmatpush1.msra.mxu0 %v3572
        %5582 = vmatprep.subr.mxu0 0.0
        %5583 = vmatpush1.msra.mxu0 %v3573
        %5584 = vmatprep.subr.mxu0 0.0
        %5585 = vmatpush1.msra.mxu0 %v3574
        %5586 = vmatprep.subr.mxu0 0.0
        %5587 = vmatpush1.msra.mxu0 %v3575
        %5588 = vmatprep.subr.mxu0 0.0
        %5589 = vmatpush1.msra.mxu0 %v3576
        %5590 = vmatprep.subr.mxu0 0.0
        %5591 = vmatpush1.msra.mxu0 %v3577
        %5592 = vmatprep.subr.mxu0 0.0
        %5593 = vmatpush1.msra.mxu0 %v3578
        %5594 = vmatprep.subr.mxu0 0.0
        %5595 = vmatpush1.msra.mxu0 %v3579
        %5596 = vmatprep.subr.mxu0 0.0
        %5597 = vmatpush1.msra.mxu0 %v3580
        %5598 = vmatprep.subr.mxu0 0.0
        %5599 = vmatpush1.msra.mxu0 %v3581
        %5600 = vmatprep.subr.mxu0 0.0
        %5601 = vmatpush1.msra.mxu0 %v3582
        %5602 = vmatprep.subr.mxu0 0.0
        %5603 = vmatpush1.msra.mxu0 %v3583
        %5604 = vmatprep.subr.mxu0 0.0
        %5605 = vmatpush1.msra.mxu0 %v3584
        %5606 = vmatprep.subr.mxu0 0.0
        %5607 = vmatpush1.msra.mxu0 %v3585
        %5608 = vmatprep.subr.mxu0 0.0
        %5609 = vmatpush1.msra.mxu0 %v3586
        %5610 = vmatprep.subr.mxu0 0.0
        %5611 = vmatpush1.msra.mxu0 %v3587
        %5612 = vmatprep.subr.mxu0 0.0
        %5613 = vmatpush1.msra.mxu0 %v3588
        %5614 = vmatprep.mubr.f32.mxu0 %v5469
        %5615 = vmatmul.mubr.f32.gmra.mrb[0].mxu0 %v5467
        %v5616 = vpop.f32.mrb[0].mxu0
        %v5617 = vadd.f32 %v5542, %v5616
        %v5618 = vpop.f32.mrb[0].mxu0
        %5619 = vmatprep.mubr.f32.mxu0 %v5470
        %5620 = vmatmul.mubr.f32.gmra.mrb[0].mxu0 %v5468
        %v5621 = vpop.f32.mrb[0].mxu0
        %v5622 = vadd.f32 %v5547, %v5621
        %v5623 = vpop.f32.mrb[0].mxu0
        %5624 = vdwg.mxu0
        %5625 = vmatprep.subr.mxu0 0.0
        %5626 = vmatpush1.msra.mxu0 %v3589
        %5627 = vmatprep.subr.mxu0 0.0
        %5628 = vmatpush1.msra.mxu0 %v3590
        %5629 = vmatprep.subr.mxu0 0.0
        %5630 = vmatpush1.msra.mxu0 %v3591
        %5631 = vmatprep.subr.mxu0 0.0
        %5632 = vmatpush1.msra.mxu0 %v3592
        %5633 = vmatprep.subr.mxu0 0.0
        %5634 = vmatpush1.msra.mxu0 %v3593
        %5635 = vmatprep.subr.mxu0 0.0
        %5636 = vmatpush1.msra.mxu0 %v3594
        %5637 = vmatprep.subr.mxu0 0.0
        %5638 = vmatpush1.msra.mxu0 %v3595
        %5639 = vmatprep.subr.mxu0 0.0
        %5640 = vmatpush1.msra.mxu0 %v3596
        %5641 = vmatprep.subr.mxu0 0.0
        %5642 = vmatpush1.msra.mxu0 0.0
        %5643 = vmatprep.subr.mxu0 0.0
        %5644 = vmatpush1.msra.mxu0 0.0
        %5645 = vmatprep.subr.mxu0 0.0
        %5646 = vmatpush1.msra.mxu0 0.0
        %5647 = vmatprep.subr.mxu0 0.0
        %5648 = vmatpush1.msra.mxu0 0.0
        %5649 = vmatprep.subr.mxu0 0.0
        %5650 = vmatpush1.msra.mxu0 0.0
        %5651 = vmatprep.subr.mxu0 0.0
        %5652 = vmatpush1.msra.mxu0 0.0
        %5653 = vmatprep.subr.mxu0 0.0
        %5654 = vmatpush1.msra.mxu0 0.0
        %5655 = vmatprep.subr.mxu0 0.0
        %5656 = vmatpush1.msra.mxu0 0.0
        %5657 = vmatprep.subr.mxu0 0.0
        %5658 = vmatpush1.msra.mxu0 0.0
        %5659 = vmatprep.subr.mxu0 0.0
        %5660 = vmatpush1.msra.mxu0 0.0
        %5661 = vmatprep.subr.mxu0 0.0
        %5662 = vmatpush1.msra.mxu0 0.0
        %5663 = vmatprep.subr.mxu0 0.0
        %5664 = vmatpush1.msra.mxu0 0.0
        %5665 = vmatprep.subr.mxu0 0.0
        %5666 = vmatpush1.msra.mxu0 0.0
        %5667 = vmatprep.subr.mxu0 0.0
        %5668 = vmatpush1.msra.mxu0 0.0
        %5669 = vmatprep.subr.mxu0 0.0
        %5670 = vmatpush1.msra.mxu0 0.0
        %5671 = vmatprep.subr.mxu0 0.0
        %5672 = vmatpush1.msra.mxu0 0.0
        %5673 = vmatprep.subr.mxu0 0.0
        %5674 = vmatpush1.msra.mxu0 0.0
        %5675 = vmatprep.subr.mxu0 0.0
        %5676 = vmatpush1.msra.mxu0 0.0
        %5677 = vmatprep.subr.mxu0 0.0
        %5678 = vmatpush1.msra.mxu0 0.0
        %5679 = vmatprep.subr.mxu0 0.0
        %5680 = vmatpush1.msra.mxu0 0.0
        %5681 = vmatprep.subr.mxu0 0.0
        %5682 = vmatpush1.msra.mxu0 0.0
        %5683 = vmatprep.subr.mxu0 0.0
        %5684 = vmatpush1.msra.mxu0 0.0
        %5685 = vmatprep.subr.mxu0 0.0
        %5686 = vmatpush1.msra.mxu0 0.0
        %5687 = vmatprep.subr.mxu0 0.0
        %5688 = vmatpush1.msra.mxu0 0.0
        %5689 = vmatprep.mubr.f32.mxu0 0.0
        %5690 = vmatmul.mubr.f32.gmra.mrb[0].mxu0 %v5471
        %v5691 = vpop.f32.mrb[0].mxu0
        %v5692 = vadd.f32 %v5617, %v5691
        %v5693 = vpop.f32.mrb[0].mxu0
        %5694 = vmatprep.mubr.f32.mxu0 0.0
        %5695 = vmatmul.mubr.f32.gmra.mrb[0].mxu0 %v5473
        %v5696 = vpop.f32.mrb[0].mxu0
        %v5697 = vadd.f32 %v5622, %v5696
        %v5698 = vpop.f32.mrb[0].mxu0
        %5699 = vdwg.mxu0
        %v5702 = vrot.slane %v3970, 1
        %v5703 = vrot.slane %v3954, 1
        %v5704 = vsel %vm886, %v5702, %v5703
        %v5705 = vrot.slane %v3974, 1
        %v5706 = vsel %vm886, %v5703, %v5705
        %5707 = vrot.lane.b32.xlu0 %v5704, 64
        %v5708 = vpop.permute.xlu0 %5707
        %5709 = vrot.lane.b32.xlu0 %v5706, 64
        %v5710 = vpop.permute.xlu0 %5709
        %v5713 = vrot.slane %v3970, 2
        %v5714 = vrot.slane %v3954, 2
        %v5715 = vsel %vm898, %v5713, %v5714
        %v5716 = vrot.slane %v3974, 2
        %v5717 = vsel %vm898, %v5714, %v5716
        %v5720 = vrot.slane %v3970, 3
        %v5721 = vrot.slane %v3954, 3
        %v5722 = vsel %vm906, %v5720, %v5721
        %v5723 = vrot.slane %v3974, 3
        %v5724 = vsel %vm906, %v5721, %v5723
        %5725 = vrot.lane.b32.xlu0 %v5722, 64
        %v5726 = vpop.permute.xlu0 %5725
        %5727 = vrot.lane.b32.xlu0 %v5724, 64
        %v5728 = vpop.permute.xlu0 %5727
        %v5731 = vrot.slane %v3970, 4
        %v5732 = vrot.slane %v3954, 4
        %v5733 = vsel %vm851, %v5731, %v5732
        %v5734 = vrot.slane %v3974, 4
        %v5735 = vsel %vm851, %v5732, %v5734
        %v5738 = vrot.slane %v3970, 5
        %v5739 = vrot.slane %v3954, 5
        %v5740 = vsel %vm925, %v5738, %v5739
        %v5741 = vrot.slane %v3974, 5
        %v5742 = vsel %vm925, %v5739, %v5741
        %5743 = vrot.lane.b32.xlu0 %v5740, 64
        %v5744 = vpop.permute.xlu0 %5743
        %5745 = vrot.lane.b32.xlu0 %v5742, 64
        %v5746 = vpop.permute.xlu0 %5745
        %v5749 = vrot.slane %v3970, 6
        %v5750 = vrot.slane %v3954, 6
        %v5751 = vsel %vm937, %v5749, %v5750
        %v5752 = vrot.slane %v3974, 6
        %v5753 = vsel %vm937, %v5750, %v5752
        %v5756 = vrot.slane %v3970, 7
        %v5757 = vrot.slane %v3954, 7
        %v5758 = vsel %vm945, %v5756, %v5757
        %v5759 = vrot.slane %v3974, 7
        %v5760 = vsel %vm945, %v5757, %v5759
        %5761 = vrot.lane.b32.xlu0 %v5758, 64
        %v5762 = vpop.permute.xlu0 %5761
        %5763 = vrot.lane.b32.xlu0 %v5760, 64
        %v5764 = vpop.permute.xlu0 %5763
        %v5767 = vsel %vm957, %v3970, %v5708
        %v5768 = vsel %vm957, %v3954, %v5710
        %v5769 = vsel %vm957, %v5715, %v5726
        %v5770 = vsel %vm957, %v5717, %v5728
        %v5771 = vsel %vm957, %v5733, %v5744
        %v5772 = vsel %vm957, %v5735, %v5746
        %v5773 = vsel %vm957, %v5751, %v5762
        %v5774 = vsel %vm957, %v5753, %v5764
        %v5775 = vsel %vm957, %v3954, 0
        %v5777 = vsel %vm957, %v3974, 0
        %5779 = vmatprep.subr.mxu0 0.0
        %5780 = vmatpush1.msra.mxu0 %v3525
        %5781 = vmatprep.subr.mxu0 0.0
        %5782 = vmatpush1.msra.mxu0 %v3526
        %5783 = vmatprep.subr.mxu0 0.0
        %5784 = vmatpush1.msra.mxu0 %v3527
        %5785 = vmatprep.subr.mxu0 0.0
        %5786 = vmatpush1.msra.mxu0 %v3528
        %5787 = vmatprep.subr.mxu0 0.0
        %5788 = vmatpush1.msra.mxu0 %v3529
        %5789 = vmatprep.subr.mxu0 0.0
        %5790 = vmatpush1.msra.mxu0 %v3530
        %5791 = vmatprep.subr.mxu0 0.0
        %5792 = vmatpush1.msra.mxu0 %v3531
        %5793 = vmatprep.subr.mxu0 0.0
        %5794 = vmatpush1.msra.mxu0 %v3532
        %5795 = vmatprep.subr.mxu0 0.0
        %5796 = vmatpush1.msra.mxu0 %v3533
        %5797 = vmatprep.subr.mxu0 0.0
        %5798 = vmatpush1.msra.mxu0 %v3534
        %5799 = vmatprep.subr.mxu0 0.0
        %5800 = vmatpush1.msra.mxu0 %v3535
        %5801 = vmatprep.subr.mxu0 0.0
        %5802 = vmatpush1.msra.mxu0 %v3536
        %5803 = vmatprep.subr.mxu0 0.0
        %5804 = vmatpush1.msra.mxu0 %v3537
        %5805 = vmatprep.subr.mxu0 0.0
        %5806 = vmatpush1.msra.mxu0 %v3538
        %5807 = vmatprep.subr.mxu0 0.0
        %5808 = vmatpush1.msra.mxu0 %v3539
        %5809 = vmatprep.subr.mxu0 0.0
        %5810 = vmatpush1.msra.mxu0 %v3540
        %5811 = vmatprep.subr.mxu0 0.0
        %5812 = vmatpush1.msra.mxu0 %v3541
        %5813 = vmatprep.subr.mxu0 0.0
        %5814 = vmatpush1.msra.mxu0 %v3542
        %5815 = vmatprep.subr.mxu0 0.0
        %5816 = vmatpush1.msra.mxu0 %v3543
        %5817 = vmatprep.subr.mxu0 0.0
        %5818 = vmatpush1.msra.mxu0 %v3544
        %5819 = vmatprep.subr.mxu0 0.0
        %5820 = vmatpush1.msra.mxu0 %v3545
        %5821 = vmatprep.subr.mxu0 0.0
        %5822 = vmatpush1.msra.mxu0 %v3546
        %5823 = vmatprep.subr.mxu0 0.0
        %5824 = vmatpush1.msra.mxu0 %v3547
        %5825 = vmatprep.subr.mxu0 0.0
        %5826 = vmatpush1.msra.mxu0 %v3548
        %5827 = vmatprep.subr.mxu0 0.0
        %5828 = vmatpush1.msra.mxu0 %v3549
        %5829 = vmatprep.subr.mxu0 0.0
        %5830 = vmatpush1.msra.mxu0 %v3550
        %5831 = vmatprep.subr.mxu0 0.0
        %5832 = vmatpush1.msra.mxu0 %v3551
        %5833 = vmatprep.subr.mxu0 0.0
        %5834 = vmatpush1.msra.mxu0 %v3552
        %5835 = vmatprep.subr.mxu0 0.0
        %5836 = vmatpush1.msra.mxu0 %v3553
        %5837 = vmatprep.subr.mxu0 0.0
        %5838 = vmatpush1.msra.mxu0 %v3554
        %5839 = vmatprep.subr.mxu0 0.0
        %5840 = vmatpush1.msra.mxu0 %v3555
        %5841 = vmatprep.subr.mxu0 0.0
        %5842 = vmatpush1.msra.mxu0 %v3556
        %5843 = vmatprep.mubr.f32.mxu0 %v5769
        %5844 = vmatmul.mubr.f32.gmra.mrb[0].mxu0 %v5767
        %v5845 = vpop.f32.mrb[0].mxu0
        %v5846 = vadd.f32 0.0, %v5845
        %v5847 = vpop.f32.mrb[0].mxu0
        %5848 = vmatprep.mubr.f32.mxu0 %v5770
        %5849 = vmatmul.mubr.f32.gmra.mrb[0].mxu0 %v5768
        %v5850 = vpop.f32.mrb[0].mxu0
        %v5851 = vadd.f32 0.0, %v5850
        %v5852 = vpop.f32.mrb[0].mxu0
        %5853 = vdwg.mxu0
        %5854 = vmatprep.subr.mxu0 0.0
        %5855 = vmatpush1.msra.mxu0 %v3557
        %5856 = vmatprep.subr.mxu0 0.0
        %5857 = vmatpush1.msra.mxu0 %v3558
        %5858 = vmatprep.subr.mxu0 0.0
        %5859 = vmatpush1.msra.mxu0 %v3559
        %5860 = vmatprep.subr.mxu0 0.0
        %5861 = vmatpush1.msra.mxu0 %v3560
        %5862 = vmatprep.subr.mxu0 0.0
        %5863 = vmatpush1.msra.mxu0 %v3561
        %5864 = vmatprep.subr.mxu0 0.0
        %5865 = vmatpush1.msra.mxu0 %v3562
        %5866 = vmatprep.subr.mxu0 0.0
        %5867 = vmatpush1.msra.mxu0 %v3563
        %5868 = vmatprep.subr.mxu0 0.0
        %5869 = vmatpush1.msra.mxu0 %v3564
        %5870 = vmatprep.subr.mxu0 0.0
        %5871 = vmatpush1.msra.mxu0 %v3565
        %5872 = vmatprep.subr.mxu0 0.0
        %5873 = vmatpush1.msra.mxu0 %v3566
        %5874 = vmatprep.subr.mxu0 0.0
        %5875 = vmatpush1.msra.mxu0 %v3567
        %5876 = vmatprep.subr.mxu0 0.0
        %5877 = vmatpush1.msra.mxu0 %v3568
        %5878 = vmatprep.subr.mxu0 0.0
        %5879 = vmatpush1.msra.mxu0 %v3569
        %5880 = vmatprep.subr.mxu0 0.0
        %5881 = vmatpush1.msra.mxu0 %v3570
        %5882 = vmatprep.subr.mxu0 0.0
        %5883 = vmatpush1.msra.mxu0 %v3571
        %5884 = vmatprep.subr.mxu0 0.0
        %5885 = vmatpush1.msra.mxu0 %v3572
        %5886 = vmatprep.subr.mxu0 0.0
        %5887 = vmatpush1.msra.mxu0 %v3573
        %5888 = vmatprep.subr.mxu0 0.0
        %5889 = vmatpush1.msra.mxu0 %v3574
        %5890 = vmatprep.subr.mxu0 0.0
        %5891 = vmatpush1.msra.mxu0 %v3575
        %5892 = vmatprep.subr.mxu0 0.0
        %5893 = vmatpush1.msra.mxu0 %v3576
        %5894 = vmatprep.subr.mxu0 0.0
        %5895 = vmatpush1.msra.mxu0 %v3577
        %5896 = vmatprep.subr.mxu0 0.0
        %5897 = vmatpush1.msra.mxu0 %v3578
        %5898 = vmatprep.subr.mxu0 0.0
        %5899 = vmatpush1.msra.mxu0 %v3579
        %5900 = vmatprep.subr.mxu0 0.0
        %5901 = vmatpush1.msra.mxu0 %v3580
        %5902 = vmatprep.subr.mxu0 0.0
        %5903 = vmatpush1.msra.mxu0 %v3581
        %5904 = vmatprep.subr.mxu0 0.0
        %5905 = vmatpush1.msra.mxu0 %v3582
        %5906 = vmatprep.subr.mxu0 0.0
        %5907 = vmatpush1.msra.mxu0 %v3583
        %5908 = vmatprep.subr.mxu0 0.0
        %5909 = vmatpush1.msra.mxu0 %v3584
        %5910 = vmatprep.subr.mxu0 0.0
        %5911 = vmatpush1.msra.mxu0 %v3585
        %5912 = vmatprep.subr.mxu0 0.0
        %5913 = vmatpush1.msra.mxu0 %v3586
        %5914 = vmatprep.subr.mxu0 0.0
        %5915 = vmatpush1.msra.mxu0 %v3587
        %5916 = vmatprep.subr.mxu0 0.0
        %5917 = vmatpush1.msra.mxu0 %v3588
        %5918 = vmatprep.mubr.f32.mxu0 %v5773
        %5919 = vmatmul.mubr.f32.gmra.mrb[0].mxu0 %v5771
        %v5920 = vpop.f32.mrb[0].mxu0
        %v5921 = vadd.f32 %v5846, %v5920
        %v5922 = vpop.f32.mrb[0].mxu0
        %5923 = vmatprep.mubr.f32.mxu0 %v5774
        %5924 = vmatmul.mubr.f32.gmra.mrb[0].mxu0 %v5772
        %v5925 = vpop.f32.mrb[0].mxu0
        %v5926 = vadd.f32 %v5851, %v5925
        %v5927 = vpop.f32.mrb[0].mxu0
        %5928 = vdwg.mxu0
        %5929 = vmatprep.subr.mxu0 0.0
        %5930 = vmatpush1.msra.mxu0 %v3589
        %5931 = vmatprep.subr.mxu0 0.0
        %5932 = vmatpush1.msra.mxu0 %v3590
        %5933 = vmatprep.subr.mxu0 0.0
        %5934 = vmatpush1.msra.mxu0 %v3591
        %5935 = vmatprep.subr.mxu0 0.0
        %5936 = vmatpush1.msra.mxu0 %v3592
        %5937 = vmatprep.subr.mxu0 0.0
        %5938 = vmatpush1.msra.mxu0 %v3593
        %5939 = vmatprep.subr.mxu0 0.0
        %5940 = vmatpush1.msra.mxu0 %v3594
        %5941 = vmatprep.subr.mxu0 0.0
        %5942 = vmatpush1.msra.mxu0 %v3595
        %5943 = vmatprep.subr.mxu0 0.0
        %5944 = vmatpush1.msra.mxu0 %v3596
        %5945 = vmatprep.subr.mxu0 0.0
        %5946 = vmatpush1.msra.mxu0 0.0
        %5947 = vmatprep.subr.mxu0 0.0
        %5948 = vmatpush1.msra.mxu0 0.0
        %5949 = vmatprep.subr.mxu0 0.0
        %5950 = vmatpush1.msra.mxu0 0.0
        %5951 = vmatprep.subr.mxu0 0.0
        %5952 = vmatpush1.msra.mxu0 0.0
        %5953 = vmatprep.subr.mxu0 0.0
        %5954 = vmatpush1.msra.mxu0 0.0
        %5955 = vmatprep.subr.mxu0 0.0
        %5956 = vmatpush1.msra.mxu0 0.0
        %5957 = vmatprep.subr.mxu0 0.0
        %5958 = vmatpush1.msra.mxu0 0.0
        %5959 = vmatprep.subr.mxu0 0.0
        %5960 = vmatpush1.msra.mxu0 0.0
        %5961 = vmatprep.subr.mxu0 0.0
        %5962 = vmatpush1.msra.mxu0 0.0
        %5963 = vmatprep.subr.mxu0 0.0
        %5964 = vmatpush1.msra.mxu0 0.0
        %5965 = vmatprep.subr.mxu0 0.0
        %5966 = vmatpush1.msra.mxu0 0.0
        %5967 = vmatprep.subr.mxu0 0.0
        %5968 = vmatpush1.msra.mxu0 0.0
        %5969 = vmatprep.subr.mxu0 0.0
        %5970 = vmatpush1.msra.mxu0 0.0
        %5971 = vmatprep.subr.mxu0 0.0
        %5972 = vmatpush1.msra.mxu0 0.0
        %5973 = vmatprep.subr.mxu0 0.0
        %5974 = vmatpush1.msra.mxu0 0.0
        %5975 = vmatprep.subr.mxu0 0.0
        %5976 = vmatpush1.msra.mxu0 0.0
        %5977 = vmatprep.subr.mxu0 0.0
        %5978 = vmatpush1.msra.mxu0 0.0
        %5979 = vmatprep.subr.mxu0 0.0
        %5980 = vmatpush1.msra.mxu0 0.0
        %5981 = vmatprep.subr.mxu0 0.0
        %5982 = vmatpush1.msra.mxu0 0.0
        %5983 = vmatprep.subr.mxu0 0.0
        %5984 = vmatpush1.msra.mxu0 0.0
        %5985 = vmatprep.subr.mxu0 0.0
        %5986 = vmatpush1.msra.mxu0 0.0
        %5987 = vmatprep.subr.mxu0 0.0
        %5988 = vmatpush1.msra.mxu0 0.0
        %5989 = vmatprep.subr.mxu0 0.0
        %5990 = vmatpush1.msra.mxu0 0.0
        %5991 = vmatprep.subr.mxu0 0.0
        %5992 = vmatpush1.msra.mxu0 0.0
        %5993 = vmatprep.mubr.f32.mxu0 0.0
        %5994 = vmatmul.mubr.f32.gmra.mrb[0].mxu0 %v5775
        %v5995 = vpop.f32.mrb[0].mxu0
        %v5996 = vadd.f32 %v5921, %v5995
        %v5997 = vpop.f32.mrb[0].mxu0
        %5998 = vmatprep.mubr.f32.mxu0 0.0
        %5999 = vmatmul.mubr.f32.gmra.mrb[0].mxu0 %v5777
        %v6000 = vpop.f32.mrb[0].mxu0
        %v6001 = vadd.f32 %v5926, %v6000
        %v6002 = vpop.f32.mrb[0].mxu0
        %6003 = vdwg.mxu0
        %6004 = vrot.lane.b32.xlu0 %v3970, 64
        %v6005 = vpop.permute.xlu0 %6004
        %6006 = vrot.lane.b32.xlu0 %v3954, 64
        %v6007 = vpop.permute.xlu0 %6006
        %6012 = vrot.lane.b32.xlu0 %v5715, 64
        %v6013 = vpop.permute.xlu0 %6012
        %6014 = vrot.lane.b32.xlu0 %v5717, 64
        %v6015 = vpop.permute.xlu0 %6014
        %6020 = vrot.lane.b32.xlu0 %v5733, 64
        %v6021 = vpop.permute.xlu0 %6020
        %6022 = vrot.lane.b32.xlu0 %v5735, 64
        %v6023 = vpop.permute.xlu0 %6022
        %6028 = vrot.lane.b32.xlu0 %v5751, 64
        %v6029 = vpop.permute.xlu0 %6028
        %6030 = vrot.lane.b32.xlu0 %v5753, 64
        %v6031 = vpop.permute.xlu0 %6030
        %6036 = vrot.lane.b32.xlu0 %v3974, 64
        %v6037 = vpop.permute.xlu0 %6036
        %v6038 = vsel %vm957, %v6005, %v5704
        %v6039 = vsel %vm957, %v6007, %v5706
        %v6040 = vsel %vm957, %v6013, %v5722
        %v6041 = vsel %vm957, %v6015, %v5724
        %v6042 = vsel %vm957, %v6021, %v5740
        %v6043 = vsel %vm957, %v6023, %v5742
        %v6044 = vsel %vm957, %v6029, %v5758
        %v6045 = vsel %vm957, %v6031, %v5760
        %v6046 = vsel %vm957, %v6007, 0
        %v6048 = vsel %vm957, %v6037, 0
        %6050 = vmatprep.subr.mxu0 0.0
        %6051 = vmatpush1.msra.mxu0 %v3525
        %6052 = vmatprep.subr.mxu0 0.0
        %6053 = vmatpush1.msra.mxu0 %v3526
        %6054 = vmatprep.subr.mxu0 0.0
        %6055 = vmatpush1.msra.mxu0 %v3527
        %6056 = vmatprep.subr.mxu0 0.0
        %6057 = vmatpush1.msra.mxu0 %v3528
        %6058 = vmatprep.subr.mxu0 0.0
        %6059 = vmatpush1.msra.mxu0 %v3529
        %6060 = vmatprep.subr.mxu0 0.0
        %6061 = vmatpush1.msra.mxu0 %v3530
        %6062 = vmatprep.subr.mxu0 0.0
        %6063 = vmatpush1.msra.mxu0 %v3531
        %6064 = vmatprep.subr.mxu0 0.0
        %6065 = vmatpush1.msra.mxu0 %v3532
        %6066 = vmatprep.subr.mxu0 0.0
        %6067 = vmatpush1.msra.mxu0 %v3533
        %6068 = vmatprep.subr.mxu0 0.0
        %6069 = vmatpush1.msra.mxu0 %v3534
        %6070 = vmatprep.subr.mxu0 0.0
        %6071 = vmatpush1.msra.mxu0 %v3535
        %6072 = vmatprep.subr.mxu0 0.0
        %6073 = vmatpush1.msra.mxu0 %v3536
        %6074 = vmatprep.subr.mxu0 0.0
        %6075 = vmatpush1.msra.mxu0 %v3537
        %6076 = vmatprep.subr.mxu0 0.0
        %6077 = vmatpush1.msra.mxu0 %v3538
        %6078 = vmatprep.subr.mxu0 0.0
        %6079 = vmatpush1.msra.mxu0 %v3539
        %6080 = vmatprep.subr.mxu0 0.0
        %6081 = vmatpush1.msra.mxu0 %v3540
        %6082 = vmatprep.subr.mxu0 0.0
        %6083 = vmatpush1.msra.mxu0 %v3541
        %6084 = vmatprep.subr.mxu0 0.0
        %6085 = vmatpush1.msra.mxu0 %v3542
        %6086 = vmatprep.subr.mxu0 0.0
        %6087 = vmatpush1.msra.mxu0 %v3543
        %6088 = vmatprep.subr.mxu0 0.0
        %6089 = vmatpush1.msra.mxu0 %v3544
        %6090 = vmatprep.subr.mxu0 0.0
        %6091 = vmatpush1.msra.mxu0 %v3545
        %6092 = vmatprep.subr.mxu0 0.0
        %6093 = vmatpush1.msra.mxu0 %v3546
        %6094 = vmatprep.subr.mxu0 0.0
        %6095 = vmatpush1.msra.mxu0 %v3547
        %6096 = vmatprep.subr.mxu0 0.0
        %6097 = vmatpush1.msra.mxu0 %v3548
        %6098 = vmatprep.subr.mxu0 0.0
        %6099 = vmatpush1.msra.mxu0 %v3549
        %6100 = vmatprep.subr.mxu0 0.0
        %6101 = vmatpush1.msra.mxu0 %v3550
        %6102 = vmatprep.subr.mxu0 0.0
        %6103 = vmatpush1.msra.mxu0 %v3551
        %6104 = vmatprep.subr.mxu0 0.0
        %6105 = vmatpush1.msra.mxu0 %v3552
        %6106 = vmatprep.subr.mxu0 0.0
        %6107 = vmatpush1.msra.mxu0 %v3553
        %6108 = vmatprep.subr.mxu0 0.0
        %6109 = vmatpush1.msra.mxu0 %v3554
        %6110 = vmatprep.subr.mxu0 0.0
        %6111 = vmatpush1.msra.mxu0 %v3555
        %6112 = vmatprep.subr.mxu0 0.0
        %6113 = vmatpush1.msra.mxu0 %v3556
        %6114 = vmatprep.mubr.f32.mxu0 %v6040
        %6115 = vmatmul.mubr.f32.gmra.mrb[0].mxu0 %v6038
        %v6116 = vpop.f32.mrb[0].mxu0
        %v6117 = vadd.f32 0.0, %v6116
        %v6118 = vpop.f32.mrb[0].mxu0
        %6119 = vmatprep.mubr.f32.mxu0 %v6041
        %6120 = vmatmul.mubr.f32.gmra.mrb[0].mxu0 %v6039
        %v6121 = vpop.f32.mrb[0].mxu0
        %v6122 = vadd.f32 0.0, %v6121
        %v6123 = vpop.f32.mrb[0].mxu0
        %6124 = vdwg.mxu0
        %6125 = vmatprep.subr.mxu0 0.0
        %6126 = vmatpush1.msra.mxu0 %v3557
        %6127 = vmatprep.subr.mxu0 0.0
        %6128 = vmatpush1.msra.mxu0 %v3558
        %6129 = vmatprep.subr.mxu0 0.0
        %6130 = vmatpush1.msra.mxu0 %v3559
        %6131 = vmatprep.subr.mxu0 0.0
        %6132 = vmatpush1.msra.mxu0 %v3560
        %6133 = vmatprep.subr.mxu0 0.0
        %6134 = vmatpush1.msra.mxu0 %v3561
        %6135 = vmatprep.subr.mxu0 0.0
        %6136 = vmatpush1.msra.mxu0 %v3562
        %6137 = vmatprep.subr.mxu0 0.0
        %6138 = vmatpush1.msra.mxu0 %v3563
        %6139 = vmatprep.subr.mxu0 0.0
        %6140 = vmatpush1.msra.mxu0 %v3564
        %6141 = vmatprep.subr.mxu0 0.0
        %6142 = vmatpush1.msra.mxu0 %v3565
        %6143 = vmatprep.subr.mxu0 0.0
        %6144 = vmatpush1.msra.mxu0 %v3566
        %6145 = vmatprep.subr.mxu0 0.0
        %6146 = vmatpush1.msra.mxu0 %v3567
        %6147 = vmatprep.subr.mxu0 0.0
        %6148 = vmatpush1.msra.mxu0 %v3568
        %6149 = vmatprep.subr.mxu0 0.0
        %6150 = vmatpush1.msra.mxu0 %v3569
        %6151 = vmatprep.subr.mxu0 0.0
        %6152 = vmatpush1.msra.mxu0 %v3570
        %6153 = vmatprep.subr.mxu0 0.0
        %6154 = vmatpush1.msra.mxu0 %v3571
        %6155 = vmatprep.subr.mxu0 0.0
        %6156 = vmatpush1.msra.mxu0 %v3572
        %6157 = vmatprep.subr.mxu0 0.0
        %6158 = vmatpush1.msra.mxu0 %v3573
        %6159 = vmatprep.subr.mxu0 0.0
        %6160 = vmatpush1.msra.mxu0 %v3574
        %6161 = vmatprep.subr.mxu0 0.0
        %6162 = vmatpush1.msra.mxu0 %v3575
        %6163 = vmatprep.subr.mxu0 0.0
        %6164 = vmatpush1.msra.mxu0 %v3576
        %6165 = vmatprep.subr.mxu0 0.0
        %6166 = vmatpush1.msra.mxu0 %v3577
        %6167 = vmatprep.subr.mxu0 0.0
        %6168 = vmatpush1.msra.mxu0 %v3578
        %6169 = vmatprep.subr.mxu0 0.0
        %6170 = vmatpush1.msra.mxu0 %v3579
        %6171 = vmatprep.subr.mxu0 0.0
        %6172 = vmatpush1.msra.mxu0 %v3580
        %6173 = vmatprep.subr.mxu0 0.0
        %6174 = vmatpush1.msra.mxu0 %v3581
        %6175 = vmatprep.subr.mxu0 0.0
        %6176 = vmatpush1.msra.mxu0 %v3582
        %6177 = vmatprep.subr.mxu0 0.0
        %6178 = vmatpush1.msra.mxu0 %v3583
        %6179 = vmatprep.subr.mxu0 0.0
        %6180 = vmatpush1.msra.mxu0 %v3584
        %6181 = vmatprep.subr.mxu0 0.0
        %6182 = vmatpush1.msra.mxu0 %v3585
        %6183 = vmatprep.subr.mxu0 0.0
        %6184 = vmatpush1.msra.mxu0 %v3586
        %6185 = vmatprep.subr.mxu0 0.0
        %6186 = vmatpush1.msra.mxu0 %v3587
        %6187 = vmatprep.subr.mxu0 0.0
        %6188 = vmatpush1.msra.mxu0 %v3588
        %6189 = vmatprep.mubr.f32.mxu0 %v6044
        %6190 = vmatmul.mubr.f32.gmra.mrb[0].mxu0 %v6042
        %v6191 = vpop.f32.mrb[0].mxu0
        %v6192 = vadd.f32 %v6117, %v6191
        %v6193 = vpop.f32.mrb[0].mxu0
        %6194 = vmatprep.mubr.f32.mxu0 %v6045
        %6195 = vmatmul.mubr.f32.gmra.mrb[0].mxu0 %v6043
        %v6196 = vpop.f32.mrb[0].mxu0
        %v6197 = vadd.f32 %v6122, %v6196
        %v6198 = vpop.f32.mrb[0].mxu0
        %6199 = vdwg.mxu0
        %6200 = vmatprep.subr.mxu0 0.0
        %6201 = vmatpush1.msra.mxu0 %v3589
        %6202 = vmatprep.subr.mxu0 0.0
        %6203 = vmatpush1.msra.mxu0 %v3590
        %6204 = vmatprep.subr.mxu0 0.0
        %6205 = vmatpush1.msra.mxu0 %v3591
        %6206 = vmatprep.subr.mxu0 0.0
        %6207 = vmatpush1.msra.mxu0 %v3592
        %6208 = vmatprep.subr.mxu0 0.0
        %6209 = vmatpush1.msra.mxu0 %v3593
        %6210 = vmatprep.subr.mxu0 0.0
        %6211 = vmatpush1.msra.mxu0 %v3594
        %6212 = vmatprep.subr.mxu0 0.0
        %6213 = vmatpush1.msra.mxu0 %v3595
        %6214 = vmatprep.subr.mxu0 0.0
        %6215 = vmatpush1.msra.mxu0 %v3596
        %6216 = vmatprep.subr.mxu0 0.0
        %6217 = vmatpush1.msra.mxu0 0.0
        %6218 = vmatprep.subr.mxu0 0.0
        %6219 = vmatpush1.msra.mxu0 0.0
        %6220 = vmatprep.subr.mxu0 0.0
        %6221 = vmatpush1.msra.mxu0 0.0
        %6222 = vmatprep.subr.mxu0 0.0
        %6223 = vmatpush1.msra.mxu0 0.0
        %6224 = vmatprep.subr.mxu0 0.0
        %6225 = vmatpush1.msra.mxu0 0.0
        %6226 = vmatprep.subr.mxu0 0.0
        %6227 = vmatpush1.msra.mxu0 0.0
        %6228 = vmatprep.subr.mxu0 0.0
        %6229 = vmatpush1.msra.mxu0 0.0
        %6230 = vmatprep.subr.mxu0 0.0
        %6231 = vmatpush1.msra.mxu0 0.0
        %6232 = vmatprep.subr.mxu0 0.0
        %6233 = vmatpush1.msra.mxu0 0.0
        %6234 = vmatprep.subr.mxu0 0.0
        %6235 = vmatpush1.msra.mxu0 0.0
        %6236 = vmatprep.subr.mxu0 0.0
        %6237 = vmatpush1.msra.mxu0 0.0
        %6238 = vmatprep.subr.mxu0 0.0
        %6239 = vmatpush1.msra.mxu0 0.0
        %6240 = vmatprep.subr.mxu0 0.0
        %6241 = vmatpush1.msra.mxu0 0.0
        %6242 = vmatprep.subr.mxu0 0.0
        %6243 = vmatpush1.msra.mxu0 0.0
        %6244 = vmatprep.subr.mxu0 0.0
        %6245 = vmatpush1.msra.mxu0 0.0
        %6246 = vmatprep.subr.mxu0 0.0
        %6247 = vmatpush1.msra.mxu0 0.0
        %6248 = vmatprep.subr.mxu0 0.0
        %6249 = vmatpush1.msra.mxu0 0.0
        %6250 = vmatprep.subr.mxu0 0.0
        %6251 = vmatpush1.msra.mxu0 0.0
        %6252 = vmatprep.subr.mxu0 0.0
        %6253 = vmatpush1.msra.mxu0 0.0
        %6254 = vmatprep.subr.mxu0 0.0
        %6255 = vmatpush1.msra.mxu0 0.0
        %6256 = vmatprep.subr.mxu0 0.0
        %6257 = vmatpush1.msra.mxu0 0.0
        %6258 = vmatprep.subr.mxu0 0.0
        %6259 = vmatpush1.msra.mxu0 0.0
        %6260 = vmatprep.subr.mxu0 0.0
        %6261 = vmatpush1.msra.mxu0 0.0
        %6262 = vmatprep.subr.mxu0 0.0
        %6263 = vmatpush1.msra.mxu0 0.0
        %6264 = vmatprep.mubr.f32.mxu0 0.0
        %6265 = vmatmul.mubr.f32.gmra.mrb[0].mxu0 %v6046
        %v6266 = vpop.f32.mrb[0].mxu0
        %v6267 = vadd.f32 %v6192, %v6266
        %v6268 = vpop.f32.mrb[0].mxu0
        %6269 = vmatprep.mubr.f32.mxu0 0.0
        %6270 = vmatmul.mubr.f32.gmra.mrb[0].mxu0 %v6048
        %v6271 = vpop.f32.mrb[0].mxu0
        %v6272 = vadd.f32 %v6197, %v6271
        %v6273 = vpop.f32.mrb[0].mxu0
        %6274 = vdwg.mxu0
        %6277 = vrot.lane.b32.xlu0 %v4542, 64
        %v6278 = vpop.permute.xlu0 %6277
        %6279 = vrot.lane.b32.xlu0 %v4547, 64
        %v6280 = vpop.permute.xlu0 %6279
        %6285 = vrot.lane.b32.xlu0 %v5117, 64
        %v6286 = vpop.permute.xlu0 %6285
        %6287 = vrot.lane.b32.xlu0 %v5122, 64
        %v6288 = vpop.permute.xlu0 %6287
        %6293 = vrot.lane.b32.xlu0 %v5692, 64
        %v6294 = vpop.permute.xlu0 %6293
        %6295 = vrot.lane.b32.xlu0 %v5697, 64
        %v6296 = vpop.permute.xlu0 %6295
        %6301 = vrot.lane.b32.xlu0 %v6267, 64
        %v6302 = vpop.permute.xlu0 %6301
        %6303 = vrot.lane.b32.xlu0 %v6272, 64
        %v6304 = vpop.permute.xlu0 %6303
        %v6307 = vsel %vm957, %v4271, %v6278
        %v6308 = vsel %vm957, %v4276, %v6280
        %v6309 = vsel %vm957, %v4846, %v6286
        %v6310 = vsel %vm957, %v4851, %v6288
        %v6311 = vsel %vm957, %v5421, %v6294
        %v6312 = vsel %vm957, %v5426, %v6296
        %v6313 = vsel %vm957, %v5996, %v6302
        %v6314 = vsel %vm957, %v6001, %v6304
        %v6315 = vadd.f32 %v6307, %v3260
        %v6316 = vadd.f32 %v6309, %v3261
        %v6317 = vadd.f32 %v6311, %v3262
        %v6318 = vadd.f32 %v6313, %v3263
        %v6319 = vadd.f32 %v6308, %v3264
        %v6320 = vadd.f32 %v6310, %v3265
        %v6321 = vadd.f32 %v6312, %v3266
        %v6322 = vadd.f32 %v6314, %v3267
        %v6324 = vlaneseq
        %v6325 = vshrl.u32 %v6324, 7
        %v6326 = vsub.s32 0, %v6325
        %v6327 = vrot.slane %v3597, %v6326
        %v6328 = vlaneseq
        %v6329 = vshrl.u32 %v6328, 7
        %v6330 = vsub.s32 1, %v6329
        %v6331 = vrot.slane %v3597, %v6330
        %v6332 = vlaneseq
        %v6333 = vshrl.u32 %v6332, 7
        %v6334 = vsub.s32 2, %v6333
        %v6335 = vrot.slane %v3597, %v6334
        %v6336 = vlaneseq
        %v6337 = vshrl.u32 %v6336, 7
        %v6338 = vsub.s32 3, %v6337
        %v6339 = vrot.slane %v3597, %v6338
        %v6344 = vadd.f32 %v6315, %v6327
        %v6345 = vadd.f32 %v6316, %v6331
        %v6346 = vadd.f32 %v6317, %v6335
        %v6347 = vadd.f32 %v6318, %v6339
        %v6348 = vadd.f32 %v6319, %v6327
        %v6349 = vadd.f32 %v6320, %v6331
        %v6350 = vadd.f32 %v6321, %v6335
        %v6351 = vadd.f32 %v6322, %v6339
        %v6352 = vmax.f32 %v6344, 0.0
        %v6353 = vmax.f32 %v6345, 0.0
        %v6354 = vmax.f32 %v6346, 0.0
        %v6355 = vmax.f32 %v6347, 0.0
        %v6356 = vmax.f32 %v6348, 0.0
        %v6357 = vmax.f32 %v6349, 0.0
        %v6358 = vmax.f32 %v6350, 0.0
        %v6359 = vmax.f32 %v6351, 0.0
        %v6360 = vld [vmem:[#allocation9] sm:$0xff]
        %v6361 = vld [vmem:[#allocation9 + $0x8] sm:$0xff]
        %v6362 = vld [vmem:[#allocation9 + $0x10] sm:$0xff]
        %v6363 = vld [vmem:[#allocation9 + $0x18] sm:$0xff]
        %v6364 = vld [vmem:[#allocation9 + $0x20] sm:$0xff]
        %v6365 = vld [vmem:[#allocation9 + $0x28] sm:$0xff]
        %v6366 = vld [vmem:[#allocation9 + $0x30] sm:$0xff]
        %v6367 = vld [vmem:[#allocation9 + $0x38] sm:$0xff]
        %v6368 = vld [vmem:[#allocation9 + $0x40] sm:$0xff]
        %v6369 = vld [vmem:[#allocation9 + $0x48] sm:$0xff]
        %v6370 = vld [vmem:[#allocation9 + $0x50] sm:$0xff]
        %v6371 = vld [vmem:[#allocation9 + $0x58] sm:$0xff]
        %v6372 = vld [vmem:[#allocation9 + $0x60] sm:$0xff]
        %v6373 = vld [vmem:[#allocation9 + $0x68] sm:$0xff]
        %v6374 = vld [vmem:[#allocation9 + $0x70] sm:$0xff]
        %v6375 = vld [vmem:[#allocation9 + $0x78] sm:$0xff]
        %v6376 = vld [vmem:[#allocation9 + $0x80] sm:$0xff]
        %v6377 = vld [vmem:[#allocation9 + $0x88] sm:$0xff]
        %v6378 = vld [vmem:[#allocation9 + $0x90] sm:$0xff]
        %v6379 = vld [vmem:[#allocation9 + $0x98] sm:$0xff]
        %v6380 = vld [vmem:[#allocation9 + $0xa0] sm:$0xff]
        %v6381 = vld [vmem:[#allocation9 + $0xa8] sm:$0xff]
        %v6382 = vld [vmem:[#allocation9 + $0xb0] sm:$0xff]
        %v6383 = vld [vmem:[#allocation9 + $0xb8] sm:$0xff]
        %v6384 = vld [vmem:[#allocation9 + $0xc0] sm:$0xff]
        %v6385 = vld [vmem:[#allocation9 + $0xc8] sm:$0xff]
        %v6386 = vld [vmem:[#allocation9 + $0xd0] sm:$0xff]
        %v6387 = vld [vmem:[#allocation9 + $0xd8] sm:$0xff]
        %v6388 = vld [vmem:[#allocation9 + $0xe0] sm:$0xff]
        %v6389 = vld [vmem:[#allocation9 + $0xe8] sm:$0xff]
        %v6390 = vld [vmem:[#allocation9 + $0xf0] sm:$0xff]
        %v6391 = vld [vmem:[#allocation9 + $0xf8] sm:$0xff]
        %v6392 = vld [vmem:[#allocation9 + $0x100] sm:$0xff]
        %v6393 = vld [vmem:[#allocation9 + $0x108] sm:$0xff]
        %v6394 = vld [vmem:[#allocation9 + $0x110] sm:$0xff]
        %v6395 = vld [vmem:[#allocation9 + $0x118] sm:$0xff]
        %v6396 = vld [vmem:[#allocation9 + $0x120] sm:$0xff]
        %v6397 = vld [vmem:[#allocation9 + $0x128] sm:$0xff]
        %v6398 = vld [vmem:[#allocation9 + $0x130] sm:$0xff]
        %v6399 = vld [vmem:[#allocation9 + $0x138] sm:$0xff]
        %v6400 = vld [vmem:[#allocation9 + $0x140] sm:$0xff]
        %v6401 = vld [vmem:[#allocation9 + $0x148] sm:$0xff]
        %v6402 = vld [vmem:[#allocation9 + $0x150] sm:$0xff]
        %v6403 = vld [vmem:[#allocation9 + $0x158] sm:$0xff]
        %v6404 = vld [vmem:[#allocation9 + $0x160] sm:$0xff]
        %v6405 = vld [vmem:[#allocation9 + $0x168] sm:$0xff]
        %v6406 = vld [vmem:[#allocation9 + $0x170] sm:$0xff]
        %v6407 = vld [vmem:[#allocation9 + $0x178] sm:$0xff]
        %v6408 = vld [vmem:[#allocation9 + $0x180] sm:$0xff]
        %v6409 = vld [vmem:[#allocation9 + $0x188] sm:$0xff]
        %v6410 = vld [vmem:[#allocation9 + $0x190] sm:$0xff]
        %v6411 = vld [vmem:[#allocation9 + $0x198] sm:$0xff]
        %v6412 = vld [vmem:[#allocation9 + $0x1a0] sm:$0xff]
        %v6413 = vld [vmem:[#allocation9 + $0x1a8] sm:$0xff]
        %v6414 = vld [vmem:[#allocation9 + $0x1b0] sm:$0xff]
        %v6415 = vld [vmem:[#allocation9 + $0x1b8] sm:$0xff]
        %v6416 = vld [vmem:[#allocation9 + $0x1c0] sm:$0xff]
        %v6417 = vld [vmem:[#allocation9 + $0x1c8] sm:$0xff]
        %v6418 = vld [vmem:[#allocation9 + $0x1d0] sm:$0xff]
        %v6419 = vld [vmem:[#allocation9 + $0x1d8] sm:$0xff]
        %v6420 = vld [vmem:[#allocation9 + $0x1e0] sm:$0xff]
        %v6421 = vld [vmem:[#allocation9 + $0x1e8] sm:$0xff]
        %v6422 = vld [vmem:[#allocation9 + $0x1f0] sm:$0xff]
        %v6423 = vld [vmem:[#allocation9 + $0x1f8] sm:$0xff]
        %v6424 = vld [vmem:[#allocation9 + $0x200] sm:$0xff]
        %v6425 = vld [vmem:[#allocation9 + $0x208] sm:$0xff]
        %v6426 = vld [vmem:[#allocation9 + $0x210] sm:$0xff]
        %v6427 = vld [vmem:[#allocation9 + $0x218] sm:$0xff]
        %v6428 = vld [vmem:[#allocation9 + $0x220] sm:$0xff]
        %v6429 = vld [vmem:[#allocation9 + $0x228] sm:$0xff]
        %v6430 = vld [vmem:[#allocation9 + $0x230] sm:$0xff]
        %v6431 = vld [vmem:[#allocation9 + $0x238] sm:$0xff]
        %v6432 = vld [vmem:[#allocation9 + $0x240] sm:$0xff]
        %v6433 = vld [vmem:[#allocation9 + $0x248] sm:$0xff]
        %v6434 = vld [vmem:[#allocation9 + $0x250] sm:$0xff]
        %v6435 = vld [vmem:[#allocation9 + $0x258] sm:$0xff]
        %v6436 = vld [vmem:[#allocation9 + $0x260] sm:$0xff]
        %v6437 = vld [vmem:[#allocation9 + $0x268] sm:$0xff]
        %v6438 = vld [vmem:[#allocation9 + $0x270] sm:$0xff]
        %v6439 = vld [vmem:[#allocation9 + $0x278] sm:$0xff]
        %v6440 = vld [vmem:[#allocation9 + $0x280] sm:$0xff]
        %v6441 = vld [vmem:[#allocation9 + $0x288] sm:$0xff]
        %v6442 = vld [vmem:[#allocation9 + $0x290] sm:$0xff]
        %v6443 = vld [vmem:[#allocation9 + $0x298] sm:$0xff]
        %v6444 = vld [vmem:[#allocation9 + $0x2a0] sm:$0xff]
        %v6445 = vld [vmem:[#allocation9 + $0x2a8] sm:$0xff]
        %v6446 = vld [vmem:[#allocation9 + $0x2b0] sm:$0xff]
        %v6447 = vld [vmem:[#allocation9 + $0x2b8] sm:$0xff]
        %v6448 = vld [vmem:[#allocation9 + $0x2c0] sm:$0xff]
        %v6449 = vld [vmem:[#allocation9 + $0x2c8] sm:$0xff]
        %v6450 = vld [vmem:[#allocation9 + $0x2d0] sm:$0xff]
        %v6451 = vld [vmem:[#allocation9 + $0x2d8] sm:$0xff]
        %v6452 = vld [vmem:[#allocation9 + $0x2e0] sm:$0xff]
        %v6453 = vld [vmem:[#allocation9 + $0x2e8] sm:$0xff]
        %v6454 = vld [vmem:[#allocation9 + $0x2f0] sm:$0xff]
        %v6455 = vld [vmem:[#allocation9 + $0x2f8] sm:$0xff]
        %v6456 = vld [vmem:[#allocation9 + $0x300] sm:$0xff]
        %v6457 = vld [vmem:[#allocation9 + $0x308] sm:$0xff]
        %v6458 = vld [vmem:[#allocation9 + $0x310] sm:$0xff]
        %v6459 = vld [vmem:[#allocation9 + $0x318] sm:$0xff]
        %v6460 = vld [vmem:[#allocation9 + $0x320] sm:$0xff]
        %v6461 = vld [vmem:[#allocation9 + $0x328] sm:$0xff]
        %v6462 = vld [vmem:[#allocation9 + $0x330] sm:$0xff]
        %v6463 = vld [vmem:[#allocation9 + $0x338] sm:$0xff]
        %v6464 = vld [vmem:[#allocation9 + $0x340] sm:$0xff]
        %v6465 = vld [vmem:[#allocation9 + $0x348] sm:$0xff]
        %v6466 = vld [vmem:[#allocation9 + $0x350] sm:$0xff]
        %v6467 = vld [vmem:[#allocation9 + $0x358] sm:$0xff]
        %v6468 = vld [vmem:[#allocation9 + $0x360] sm:$0xff]
        %v6469 = vld [vmem:[#allocation9 + $0x368] sm:$0xff]
        %v6470 = vld [vmem:[#allocation9 + $0x370] sm:$0xff]
        %v6471 = vld [vmem:[#allocation9 + $0x378] sm:$0xff]
        %v6472 = vld [vmem:[#allocation9 + $0x380] sm:$0xff]
        %v6473 = vld [vmem:[#allocation9 + $0x388] sm:$0xff]
        %v6474 = vld [vmem:[#allocation9 + $0x390] sm:$0xff]
        %v6475 = vld [vmem:[#allocation9 + $0x398] sm:$0xff]
        %v6476 = vld [vmem:[#allocation9 + $0x3a0] sm:$0xff]
        %v6477 = vld [vmem:[#allocation9 + $0x3a8] sm:$0xff]
        %v6478 = vld [vmem:[#allocation9 + $0x3b0] sm:$0xff]
        %v6479 = vld [vmem:[#allocation9 + $0x3b8] sm:$0xff]
        %v6480 = vld [vmem:[#allocation9 + $0x3c0] sm:$0xff]
        %v6481 = vld [vmem:[#allocation9 + $0x3c8] sm:$0xff]
        %v6482 = vld [vmem:[#allocation9 + $0x3d0] sm:$0xff]
        %v6483 = vld [vmem:[#allocation9 + $0x3d8] sm:$0xff]
        %v6484 = vld [vmem:[#allocation9 + $0x3e0] sm:$0xff]
        %v6485 = vld [vmem:[#allocation9 + $0x3e8] sm:$0xff]
        %v6486 = vld [vmem:[#allocation9 + $0x3f0] sm:$0xff]
        %v6487 = vld [vmem:[#allocation9 + $0x3f8] sm:$0xff]
        %v6488 = vld [vmem:[%s10] sm:$0x3]
        %v6489 = vld [vmem:[%s11] sm:$0xff]
        %v6490 = vld [vmem:[%s11 + $0x8] sm:$0xff]
        %v6491 = vld [vmem:[%s11 + $0x10] sm:$0xff]
        %v6492 = vld [vmem:[%s11 + $0x18] sm:$0xff]
        %v6493 = vld [vmem:[%s11 + $0x20] sm:$0xff]
        %v6494 = vld [vmem:[%s11 + $0x28] sm:$0xff]
        %v6495 = vld [vmem:[%s11 + $0x30] sm:$0xff]
        %v6496 = vld [vmem:[%s11 + $0x38] sm:$0xff]
        %v6497 = vld [vmem:[%s11 + $0x40] sm:$0xff]
        %v6498 = vld [vmem:[%s11 + $0x48] sm:$0xff]
        %v6499 = vld [vmem:[%s11 + $0x50] sm:$0xff]
        %v6500 = vld [vmem:[%s11 + $0x58] sm:$0xff]
        %v6501 = vld [vmem:[%s11 + $0x60] sm:$0xff]
        %v6502 = vld [vmem:[%s11 + $0x68] sm:$0xff]
        %v6503 = vld [vmem:[%s11 + $0x70] sm:$0xff]
        %v6504 = vld [vmem:[%s11 + $0x78] sm:$0xff]
        %v6505 = vld [vmem:[%s11 + $0x80] sm:$0xff]
        %v6506 = vld [vmem:[%s11 + $0x88] sm:$0xff]
        %v6507 = vld [vmem:[%s11 + $0x90] sm:$0xff]
        %v6508 = vld [vmem:[%s11 + $0x98] sm:$0xff]
        %v6509 = vld [vmem:[%s11 + $0xa0] sm:$0xff]
        %v6510 = vld [vmem:[%s11 + $0xa8] sm:$0xff]
        %v6511 = vld [vmem:[%s11 + $0xb0] sm:$0xff]
        %v6512 = vld [vmem:[%s11 + $0xb8] sm:$0xff]
        %v6513 = vld [vmem:[%s11 + $0xc0] sm:$0xff]
        %v6514 = vld [vmem:[%s11 + $0xc8] sm:$0xff]
        %v6515 = vld [vmem:[%s11 + $0xd0] sm:$0xff]
        %v6516 = vld [vmem:[%s11 + $0xd8] sm:$0xff]
        %v6517 = vld [vmem:[%s11 + $0xe0] sm:$0xff]
        %v6518 = vld [vmem:[%s11 + $0xe8] sm:$0xff]
        %v6519 = vld [vmem:[%s11 + $0xf0] sm:$0xff]
        %v6520 = vld [vmem:[%s11 + $0xf8] sm:$0xff]
        %v6521 = vld [vmem:[%s11 + $0x100] sm:$0xff]
        %v6522 = vld [vmem:[%s11 + $0x108] sm:$0xff]
        %v6523 = vld [vmem:[%s11 + $0x110] sm:$0xff]
        %v6524 = vld [vmem:[%s11 + $0x118] sm:$0xff]
        %v6525 = vld [vmem:[%s12] sm:$0x3]
        %v6526 = vld [vmem:[#allocation10] sm:$0xff]
        %v6527 = vld [vmem:[#allocation10 + $0x8] sm:$0xff]
        %v6528 = vld [vmem:[#allocation10 + $0x10] sm:$0xff]
        %v6529 = vld [vmem:[#allocation10 + $0x18] sm:$0xff]
        %v6530 = vld [vmem:[#allocation10 + $0x20] sm:$0xff]
        %v6531 = vld [vmem:[#allocation10 + $0x28] sm:$0xff]
        %v6532 = vld [vmem:[#allocation10 + $0x30] sm:$0xff]
        %v6533 = vld [vmem:[#allocation10 + $0x38] sm:$0xff]
        %v6534 = vld [vmem:[#allocation10 + $0x40] sm:$0xff]
        %v6535 = vld [vmem:[#allocation10 + $0x48] sm:$0xff]
        %v6536 = vld [vmem:[#allocation10 + $0x50] sm:$0xff]
        %v6537 = vld [vmem:[#allocation10 + $0x58] sm:$0xff]
        %v6538 = vld [vmem:[#allocation10 + $0x60] sm:$0xff]
        %v6539 = vld [vmem:[#allocation10 + $0x68] sm:$0xff]
        %v6540 = vld [vmem:[#allocation10 + $0x70] sm:$0xff]
        %v6541 = vld [vmem:[#allocation10 + $0x78] sm:$0xff]
        %v6542 = vld [vmem:[#allocation10 + $0x80] sm:$0xff]
        %v6543 = vld [vmem:[#allocation10 + $0x88] sm:$0xff]
        %v6544 = vld [vmem:[#allocation10 + $0x90] sm:$0xff]
        %v6545 = vld [vmem:[#allocation10 + $0x98] sm:$0xff]
        %v6546 = vld [vmem:[#allocation10 + $0xa0] sm:$0xff]
        %v6547 = vld [vmem:[#allocation10 + $0xa8] sm:$0xff]
        %v6548 = vld [vmem:[#allocation10 + $0xb0] sm:$0xff]
        %v6549 = vld [vmem:[#allocation10 + $0xb8] sm:$0xff]
        %v6550 = vld [vmem:[#allocation10 + $0xc0] sm:$0xff]
        %v6551 = vld [vmem:[#allocation10 + $0xc8] sm:$0xff]
        %v6552 = vld [vmem:[#allocation10 + $0xd0] sm:$0xff]
        %v6553 = vld [vmem:[#allocation10 + $0xd8] sm:$0xff]
        %v6554 = vld [vmem:[#allocation10 + $0xe0] sm:$0xff]
        %v6555 = vld [vmem:[#allocation10 + $0xe8] sm:$0xff]
        %v6556 = vld [vmem:[#allocation10 + $0xf0] sm:$0xff]
        %v6557 = vld [vmem:[#allocation10 + $0xf8] sm:$0xff]
        %v6558 = vld [vmem:[#allocation10 + $0x100] sm:$0xff]
        %v6559 = vld [vmem:[#allocation10 + $0x108] sm:$0xff]
        %v6560 = vld [vmem:[#allocation10 + $0x110] sm:$0xff]
        %v6561 = vld [vmem:[#allocation10 + $0x118] sm:$0xff]
        %v6562 = vld [vmem:[#allocation10 + $0x120] sm:$0xff]
        %v6563 = vld [vmem:[#allocation10 + $0x128] sm:$0xff]
        %v6564 = vld [vmem:[#allocation10 + $0x130] sm:$0xff]
        %v6565 = vld [vmem:[#allocation10 + $0x138] sm:$0xff]
        %v6566 = vld [vmem:[#allocation10 + $0x140] sm:$0xff]
        %v6567 = vld [vmem:[#allocation10 + $0x148] sm:$0xff]
        %v6568 = vld [vmem:[#allocation10 + $0x150] sm:$0xff]
        %v6569 = vld [vmem:[#allocation10 + $0x158] sm:$0xff]
        %v6570 = vld [vmem:[#allocation10 + $0x160] sm:$0xff]
        %v6571 = vld [vmem:[#allocation10 + $0x168] sm:$0xff]
        %v6572 = vld [vmem:[#allocation10 + $0x170] sm:$0xff]
        %v6573 = vld [vmem:[#allocation10 + $0x178] sm:$0xff]
        %v6574 = vld [vmem:[#allocation10 + $0x180] sm:$0xff]
        %v6575 = vld [vmem:[#allocation10 + $0x188] sm:$0xff]
        %v6576 = vld [vmem:[#allocation10 + $0x190] sm:$0xff]
        %v6577 = vld [vmem:[#allocation10 + $0x198] sm:$0xff]
        %v6578 = vld [vmem:[#allocation10 + $0x1a0] sm:$0xff]
        %v6579 = vld [vmem:[#allocation10 + $0x1a8] sm:$0xff]
        %v6580 = vld [vmem:[#allocation10 + $0x1b0] sm:$0xff]
        %v6581 = vld [vmem:[#allocation10 + $0x1b8] sm:$0xff]
        %v6582 = vld [vmem:[#allocation10 + $0x1c0] sm:$0xff]
        %v6583 = vld [vmem:[#allocation10 + $0x1c8] sm:$0xff]
        %v6584 = vld [vmem:[#allocation10 + $0x1d0] sm:$0xff]
        %v6585 = vld [vmem:[#allocation10 + $0x1d8] sm:$0xff]
        %v6586 = vld [vmem:[#allocation10 + $0x1e0] sm:$0xff]
        %v6587 = vld [vmem:[#allocation10 + $0x1e8] sm:$0xff]
        %v6588 = vld [vmem:[#allocation10 + $0x1f0] sm:$0xff]
        %v6589 = vld [vmem:[#allocation10 + $0x1f8] sm:$0xff]
        %v6590 = vld [vmem:[#allocation10 + $0x200] sm:$0xff]
        %v6591 = vld [vmem:[#allocation10 + $0x208] sm:$0xff]
        %v6592 = vld [vmem:[#allocation10 + $0x210] sm:$0xff]
        %v6593 = vld [vmem:[#allocation10 + $0x218] sm:$0xff]
        %v6594 = vld [vmem:[#allocation10 + $0x220] sm:$0xff]
        %v6595 = vld [vmem:[#allocation10 + $0x228] sm:$0xff]
        %v6596 = vld [vmem:[#allocation10 + $0x230] sm:$0xff]
        %v6597 = vld [vmem:[#allocation10 + $0x238] sm:$0xff]
        %v6598 = vld [vmem:[#allocation10 + $0x240] sm:$0xff]
        %v6599 = vld [vmem:[#allocation10 + $0x248] sm:$0xff]
        %v6600 = vld [vmem:[#allocation10 + $0x250] sm:$0xff]
        %v6601 = vld [vmem:[#allocation10 + $0x258] sm:$0xff]
        %v6602 = vld [vmem:[#allocation10 + $0x260] sm:$0xff]
        %v6603 = vld [vmem:[#allocation10 + $0x268] sm:$0xff]
        %v6604 = vld [vmem:[#allocation10 + $0x270] sm:$0xff]
        %v6605 = vld [vmem:[#allocation10 + $0x278] sm:$0xff]
        %v6606 = vld [vmem:[#allocation10 + $0x280] sm:$0xff]
        %v6607 = vld [vmem:[#allocation10 + $0x288] sm:$0xff]
        %v6608 = vld [vmem:[#allocation10 + $0x290] sm:$0xff]
        %v6609 = vld [vmem:[#allocation10 + $0x298] sm:$0xff]
        %v6610 = vld [vmem:[#allocation10 + $0x2a0] sm:$0xff]
        %v6611 = vld [vmem:[#allocation10 + $0x2a8] sm:$0xff]
        %v6612 = vld [vmem:[#allocation10 + $0x2b0] sm:$0xff]
        %v6613 = vld [vmem:[#allocation10 + $0x2b8] sm:$0xff]
        %v6614 = vld [vmem:[#allocation10 + $0x2c0] sm:$0xff]
        %v6615 = vld [vmem:[#allocation10 + $0x2c8] sm:$0xff]
        %v6616 = vld [vmem:[#allocation10 + $0x2d0] sm:$0xff]
        %v6617 = vld [vmem:[#allocation10 + $0x2d8] sm:$0xff]
        %v6618 = vld [vmem:[#allocation10 + $0x2e0] sm:$0xff]
        %v6619 = vld [vmem:[#allocation10 + $0x2e8] sm:$0xff]
        %v6620 = vld [vmem:[#allocation10 + $0x2f0] sm:$0xff]
        %v6621 = vld [vmem:[#allocation10 + $0x2f8] sm:$0xff]
        %v6622 = vld [vmem:[#allocation10 + $0x300] sm:$0xff]
        %v6623 = vld [vmem:[#allocation10 + $0x308] sm:$0xff]
        %v6624 = vld [vmem:[#allocation10 + $0x310] sm:$0xff]
        %v6625 = vld [vmem:[#allocation10 + $0x318] sm:$0xff]
        %v6626 = vld [vmem:[#allocation10 + $0x320] sm:$0xff]
        %v6627 = vld [vmem:[#allocation10 + $0x328] sm:$0xff]
        %v6628 = vld [vmem:[#allocation10 + $0x330] sm:$0xff]
        %v6629 = vld [vmem:[#allocation10 + $0x338] sm:$0xff]
        %v6630 = vld [vmem:[#allocation10 + $0x340] sm:$0xff]
        %v6631 = vld [vmem:[#allocation10 + $0x348] sm:$0xff]
        %v6632 = vld [vmem:[#allocation10 + $0x350] sm:$0xff]
        %v6633 = vld [vmem:[#allocation10 + $0x358] sm:$0xff]
        %v6634 = vld [vmem:[#allocation10 + $0x360] sm:$0xff]
        %v6635 = vld [vmem:[#allocation10 + $0x368] sm:$0xff]
        %v6636 = vld [vmem:[#allocation10 + $0x370] sm:$0xff]
        %v6637 = vld [vmem:[#allocation10 + $0x378] sm:$0xff]
        %v6638 = vld [vmem:[#allocation10 + $0x380] sm:$0xff]
        %v6639 = vld [vmem:[#allocation10 + $0x388] sm:$0xff]
        %v6640 = vld [vmem:[#allocation10 + $0x390] sm:$0xff]
        %v6641 = vld [vmem:[#allocation10 + $0x398] sm:$0xff]
        %v6642 = vld [vmem:[#allocation10 + $0x3a0] sm:$0xff]
        %v6643 = vld [vmem:[#allocation10 + $0x3a8] sm:$0xff]
        %v6644 = vld [vmem:[#allocation10 + $0x3b0] sm:$0xff]
        %v6645 = vld [vmem:[#allocation10 + $0x3b8] sm:$0xff]
        %v6646 = vld [vmem:[#allocation10 + $0x3c0] sm:$0xff]
        %v6647 = vld [vmem:[#allocation10 + $0x3c8] sm:$0xff]
        %v6648 = vld [vmem:[#allocation10 + $0x3d0] sm:$0xff]
        %v6649 = vld [vmem:[#allocation10 + $0x3d8] sm:$0xff]
        %v6650 = vld [vmem:[#allocation10 + $0x3e0] sm:$0xff]
        %v6651 = vld [vmem:[#allocation10 + $0x3e8] sm:$0xff]
        %v6652 = vld [vmem:[#allocation10 + $0x3f0] sm:$0xff]
        %v6653 = vld [vmem:[#allocation10 + $0x3f8] sm:$0xff]
        %v6655 = vlaneseq
        %v6656 = vshrl.u32 %v6655, 7
        %v6657 = vsub.s32 0, %v6656
        %v6658 = vrot.slane %v6488, %v6657
        %v6659 = vlaneseq
        %v6660 = vshrl.u32 %v6659, 7
        %v6661 = vsub.s32 1, %v6660
        %v6662 = vrot.slane %v6488, %v6661
        %6665 = vmatprep.subr.mxu0 %v6361
        %6666 = vmatpush1.msra.mxu0 %v6360
        %6667 = vmatprep.subr.mxu0 %v6363
        %6668 = vmatpush1.msra.mxu0 %v6362
        %6669 = vmatprep.subr.mxu0 %v6365
        %6670 = vmatpush1.msra.mxu0 %v6364
        %6671 = vmatprep.subr.mxu0 %v6367
        %6672 = vmatpush1.msra.mxu0 %v6366
        %6673 = vmatprep.subr.mxu0 %v6369
        %6674 = vmatpush1.msra.mxu0 %v6368
        %6675 = vmatprep.subr.mxu0 %v6371
        %6676 = vmatpush1.msra.mxu0 %v6370
        %6677 = vmatprep.subr.mxu0 %v6373
        %6678 = vmatpush1.msra.mxu0 %v6372
        %6679 = vmatprep.subr.mxu0 %v6375
        %6680 = vmatpush1.msra.mxu0 %v6374
        %6681 = vmatprep.subr.mxu0 %v6377
        %6682 = vmatpush1.msra.mxu0 %v6376
        %6683 = vmatprep.subr.mxu0 %v6379
        %6684 = vmatpush1.msra.mxu0 %v6378
        %6685 = vmatprep.subr.mxu0 %v6381
        %6686 = vmatpush1.msra.mxu0 %v6380
        %6687 = vmatprep.subr.mxu0 %v6383
        %6688 = vmatpush1.msra.mxu0 %v6382
        %6689 = vmatprep.subr.mxu0 %v6385
        %6690 = vmatpush1.msra.mxu0 %v6384
        %6691 = vmatprep.subr.mxu0 %v6387
        %6692 = vmatpush1.msra.mxu0 %v6386
        %6693 = vmatprep.subr.mxu0 %v6389
        %6694 = vmatpush1.msra.mxu0 %v6388
        %6695 = vmatprep.subr.mxu0 %v6391
        %6696 = vmatpush1.msra.mxu0 %v6390
        %6697 = vmatprep.subr.mxu0 %v6393
        %6698 = vmatpush1.msra.mxu0 %v6392
        %6699 = vmatprep.subr.mxu0 %v6395
        %6700 = vmatpush1.msra.mxu0 %v6394
        %6701 = vmatprep.subr.mxu0 %v6397
        %6702 = vmatpush1.msra.mxu0 %v6396
        %6703 = vmatprep.subr.mxu0 %v6399
        %6704 = vmatpush1.msra.mxu0 %v6398
        %6705 = vmatprep.subr.mxu0 %v6401
        %6706 = vmatpush1.msra.mxu0 %v6400
        %6707 = vmatprep.subr.mxu0 %v6403
        %6708 = vmatpush1.msra.mxu0 %v6402
        %6709 = vmatprep.subr.mxu0 %v6405
        %6710 = vmatpush1.msra.mxu0 %v6404
        %6711 = vmatprep.subr.mxu0 %v6407
        %6712 = vmatpush1.msra.mxu0 %v6406
        %6713 = vmatprep.subr.mxu0 %v6409
        %6714 = vmatpush1.msra.mxu0 %v6408
        %6715 = vmatprep.subr.mxu0 %v6411
        %6716 = vmatpush1.msra.mxu0 %v6410
        %6717 = vmatprep.subr.mxu0 %v6413
        %6718 = vmatpush1.msra.mxu0 %v6412
        %6719 = vmatprep.subr.mxu0 %v6415
        %6720 = vmatpush1.msra.mxu0 %v6414
        %6721 = vmatprep.subr.mxu0 %v6417
        %6722 = vmatpush1.msra.mxu0 %v6416
        %6723 = vmatprep.subr.mxu0 %v6419
        %6724 = vmatpush1.msra.mxu0 %v6418
        %6725 = vmatprep.subr.mxu0 %v6421
        %6726 = vmatpush1.msra.mxu0 %v6420
        %6727 = vmatprep.subr.mxu0 %v6423
        %6728 = vmatpush1.msra.mxu0 %v6422
        %6729 = vmatprep.mubr.f32.mxu0 %v6353
        %6730 = vmatmul.mubr.f32.gmra.mrb[0].mxu0 %v6352
        %v6731 = vpop.f32.mrb[0].mxu0
        %v6732 = vadd.f32 %v6658, %v6731
        %v6733 = vpop.f32.mrb[0].mxu0
        %v6734 = vadd.f32 %v6662, %v6733
        %6735 = vmatprep.mubr.f32.mxu0 %v6357
        %6736 = vmatmul.mubr.f32.gmra.mrb[0].mxu0 %v6356
        %v6737 = vpop.f32.mrb[0].mxu0
        %v6738 = vadd.f32 %v6658, %v6737
        %v6739 = vpop.f32.mrb[0].mxu0
        %v6740 = vadd.f32 %v6662, %v6739
        %6741 = vdwg.mxu0
        %6742 = vmatprep.subr.mxu0 %v6425
        %6743 = vmatpush1.msra.mxu0 %v6424
        %6744 = vmatprep.subr.mxu0 %v6427
        %6745 = vmatpush1.msra.mxu0 %v6426
        %6746 = vmatprep.subr.mxu0 %v6429
        %6747 = vmatpush1.msra.mxu0 %v6428
        %6748 = vmatprep.subr.mxu0 %v6431
        %6749 = vmatpush1.msra.mxu0 %v6430
        %6750 = vmatprep.subr.mxu0 %v6433
        %6751 = vmatpush1.msra.mxu0 %v6432
        %6752 = vmatprep.subr.mxu0 %v6435
        %6753 = vmatpush1.msra.mxu0 %v6434
        %6754 = vmatprep.subr.mxu0 %v6437
        %6755 = vmatpush1.msra.mxu0 %v6436
        %6756 = vmatprep.subr.mxu0 %v6439
        %6757 = vmatpush1.msra.mxu0 %v6438
        %6758 = vmatprep.subr.mxu0 %v6441
        %6759 = vmatpush1.msra.mxu0 %v6440
        %6760 = vmatprep.subr.mxu0 %v6443
        %6761 = vmatpush1.msra.mxu0 %v6442
        %6762 = vmatprep.subr.mxu0 %v6445
        %6763 = vmatpush1.msra.mxu0 %v6444
        %6764 = vmatprep.subr.mxu0 %v6447
        %6765 = vmatpush1.msra.mxu0 %v6446
        %6766 = vmatprep.subr.mxu0 %v6449
        %6767 = vmatpush1.msra.mxu0 %v6448
        %6768 = vmatprep.subr.mxu0 %v6451
        %6769 = vmatpush1.msra.mxu0 %v6450
        %6770 = vmatprep.subr.mxu0 %v6453
        %6771 = vmatpush1.msra.mxu0 %v6452
        %6772 = vmatprep.subr.mxu0 %v6455
        %6773 = vmatpush1.msra.mxu0 %v6454
        %6774 = vmatprep.subr.mxu0 %v6457
        %6775 = vmatpush1.msra.mxu0 %v6456
        %6776 = vmatprep.subr.mxu0 %v6459
        %6777 = vmatpush1.msra.mxu0 %v6458
        %6778 = vmatprep.subr.mxu0 %v6461
        %6779 = vmatpush1.msra.mxu0 %v6460
        %6780 = vmatprep.subr.mxu0 %v6463
        %6781 = vmatpush1.msra.mxu0 %v6462
        %6782 = vmatprep.subr.mxu0 %v6465
        %6783 = vmatpush1.msra.mxu0 %v6464
        %6784 = vmatprep.subr.mxu0 %v6467
        %6785 = vmatpush1.msra.mxu0 %v6466
        %6786 = vmatprep.subr.mxu0 %v6469
        %6787 = vmatpush1.msra.mxu0 %v6468
        %6788 = vmatprep.subr.mxu0 %v6471
        %6789 = vmatpush1.msra.mxu0 %v6470
        %6790 = vmatprep.subr.mxu0 %v6473
        %6791 = vmatpush1.msra.mxu0 %v6472
        %6792 = vmatprep.subr.mxu0 %v6475
        %6793 = vmatpush1.msra.mxu0 %v6474
        %6794 = vmatprep.subr.mxu0 %v6477
        %6795 = vmatpush1.msra.mxu0 %v6476
        %6796 = vmatprep.subr.mxu0 %v6479
        %6797 = vmatpush1.msra.mxu0 %v6478
        %6798 = vmatprep.subr.mxu0 %v6481
        %6799 = vmatpush1.msra.mxu0 %v6480
        %6800 = vmatprep.subr.mxu0 %v6483
        %6801 = vmatpush1.msra.mxu0 %v6482
        %6802 = vmatprep.subr.mxu0 %v6485
        %6803 = vmatpush1.msra.mxu0 %v6484
        %6804 = vmatprep.subr.mxu0 %v6487
        %6805 = vmatpush1.msra.mxu0 %v6486
        %6806 = vmatprep.mubr.f32.mxu0 %v6355
        %6807 = vmatmul.mubr.f32.gmra.mrb[0].mxu0 %v6354
        %v6808 = vpop.f32.mrb[0].mxu0
        %v6809 = vadd.f32 %v6732, %v6808
        %v6810 = vpop.f32.mrb[0].mxu0
        %v6811 = vadd.f32 %v6734, %v6810
        %6812 = vmatprep.mubr.f32.mxu0 %v6359
        %6813 = vmatmul.mubr.f32.gmra.mrb[0].mxu0 %v6358
        %v6814 = vpop.f32.mrb[0].mxu0
        %v6815 = vadd.f32 %v6738, %v6814
        %v6816 = vpop.f32.mrb[0].mxu0
        %v6817 = vadd.f32 %v6740, %v6816
        %6818 = vdwg.mxu0
        %v6819 = vmax.f32 %v6809, 0.0
        %v6820 = vmax.f32 %v6811, 0.0
        %v6821 = vmax.f32 %v6815, 0.0
        %v6822 = vmax.f32 %v6817, 0.0
        %v6827 = vrot.slane %v6819, 4
        %v6828 = vrot.slane %v6820, 4
        %v6829 = vrot.slane %v6821, 4
        %v6830 = vsel %vm851, %v6827, %v6829
        %v6831 = vrot.slane %v6822, 4
        %v6832 = vsel %vm851, %v6828, %v6831
        %v6839 = vsel %vm851, 0.0, %v6827
        %v6840 = vsel %vm851, 0.0, %v6828
        %v6841 = vsel %vm851, %v6829, 0.0
        %v6842 = vsel %vm851, %v6831, 0.0
        %v6845 = vrot.slane %v6839, 1
        %v6846 = vrot.slane %v6830, 1
        %v6847 = vsel %vm886, %v6845, %v6846
        %v6848 = vrot.slane %v6841, 1
        %v6849 = vsel %vm886, %v6846, %v6848
        %6850 = vrot.lane.b32.xlu0 %v6847, 32
        %v6851 = vpop.permute.xlu0 %6850
        %6852 = vrot.lane.b32.xlu0 %v6849, 32
        %v6853 = vpop.permute.xlu0 %6852
        %v6856 = vrot.slane %v6839, 2
        %v6857 = vrot.slane %v6830, 2
        %v6858 = vsel %vm898, %v6856, %v6857
        %v6859 = vrot.slane %v6841, 2
        %v6860 = vsel %vm898, %v6857, %v6859
        %6861 = vrot.lane.b32.xlu0 %v6858, 64
        %v6862 = vpop.permute.xlu0 %6861
        %6863 = vrot.lane.b32.xlu0 %v6860, 64
        %v6864 = vpop.permute.xlu0 %6863
        %v6867 = vrot.slane %v6839, 3
        %v6868 = vrot.slane %v6830, 3
        %v6869 = vsel %vm906, %v6867, %v6868
        %v6870 = vrot.slane %v6841, 3
        %v6871 = vsel %vm906, %v6868, %v6870
        %6872 = vrot.lane.b32.xlu0 %v6869, 96
        %v6873 = vpop.permute.xlu0 %6872
        %6874 = vrot.lane.b32.xlu0 %v6871, 96
        %v6875 = vpop.permute.xlu0 %6874
        %v6878 = vrot.slane %v6839, 4
        %v6879 = vrot.slane %v6830, 4
        %v6880 = vsel %vm851, %v6878, %v6879
        %v6881 = vrot.slane %v6841, 4
        %v6882 = vsel %vm851, %v6879, %v6881
        %v6885 = vrot.slane %v6839, 5
        %v6886 = vrot.slane %v6830, 5
        %v6887 = vsel %vm925, %v6885, %v6886
        %v6888 = vrot.slane %v6841, 5
        %v6889 = vsel %vm925, %v6886, %v6888
        %6890 = vrot.lane.b32.xlu0 %v6887, 32
        %v6891 = vpop.permute.xlu0 %6890
        %6892 = vrot.lane.b32.xlu0 %v6889, 32
        %v6893 = vpop.permute.xlu0 %6892
        %v6896 = vrot.slane %v6839, 6
        %v6897 = vrot.slane %v6830, 6
        %v6898 = vsel %vm937, %v6896, %v6897
        %v6899 = vrot.slane %v6841, 6
        %v6900 = vsel %vm937, %v6897, %v6899
        %6901 = vrot.lane.b32.xlu0 %v6898, 64
        %v6902 = vpop.permute.xlu0 %6901
        %6903 = vrot.lane.b32.xlu0 %v6900, 64
        %v6904 = vpop.permute.xlu0 %6903
        %v6907 = vrot.slane %v6839, 7
        %v6908 = vrot.slane %v6830, 7
        %v6909 = vsel %vm945, %v6907, %v6908
        %v6910 = vrot.slane %v6841, 7
        %v6911 = vsel %vm945, %v6908, %v6910
        %6912 = vrot.lane.b32.xlu0 %v6909, 96
        %v6913 = vpop.permute.xlu0 %6912
        %6914 = vrot.lane.b32.xlu0 %v6911, 96
        %v6915 = vpop.permute.xlu0 %6914
        %v6918 = vsel %vm674, %v6839, %v6851
        %v6919 = vsel %vm674, %v6830, %v6853
        %v6920 = vsel %vm957, %v6918, %v6862
        %v6921 = vsel %vm957, %v6919, %v6864
        %vm6922 = vcmask 785408
        %v6923 = vsel %vm6922, %v6920, %v6873
        %v6924 = vsel %vm6922, %v6921, %v6875
        %v6925 = vsel %vm674, %v6880, %v6891
        %v6926 = vsel %vm674, %v6882, %v6893
        %v6927 = vsel %vm957, %v6925, %v6902
        %v6928 = vsel %vm957, %v6926, %v6904
        %v6929 = vsel %vm6922, %v6927, %v6913
        %v6930 = vsel %vm6922, %v6928, %v6915
        %v6931 = vsel %vm674, %v6830, 0
        %v6933 = vsel %vm674, %v6841, 0
        %6935 = vmatprep.subr.mxu0 0.0
        %6936 = vmatpush1.msra.mxu0 %v6489
        %6937 = vmatprep.subr.mxu0 0.0
        %6938 = vmatpush1.msra.mxu0 %v6490
        %6939 = vmatprep.subr.mxu0 0.0
        %6940 = vmatpush1.msra.mxu0 %v6491
        %6941 = vmatprep.subr.mxu0 0.0
        %6942 = vmatpush1.msra.mxu0 %v6492
        %6943 = vmatprep.subr.mxu0 0.0
        %6944 = vmatpush1.msra.mxu0 %v6493
        %6945 = vmatprep.subr.mxu0 0.0
        %6946 = vmatpush1.msra.mxu0 %v6494
        %6947 = vmatprep.subr.mxu0 0.0
        %6948 = vmatpush1.msra.mxu0 %v6495
        %6949 = vmatprep.subr.mxu0 0.0
        %6950 = vmatpush1.msra.mxu0 %v6496
        %6951 = vmatprep.subr.mxu0 0.0
        %6952 = vmatpush1.msra.mxu0 %v6497
        %6953 = vmatprep.subr.mxu0 0.0
        %6954 = vmatpush1.msra.mxu0 %v6498
        %6955 = vmatprep.subr.mxu0 0.0
        %6956 = vmatpush1.msra.mxu0 %v6499
        %6957 = vmatprep.subr.mxu0 0.0
        %6958 = vmatpush1.msra.mxu0 %v6500
        %6959 = vmatprep.subr.mxu0 0.0
        %6960 = vmatpush1.msra.mxu0 %v6501
        %6961 = vmatprep.subr.mxu0 0.0
        %6962 = vmatpush1.msra.mxu0 %v6502
        %6963 = vmatprep.subr.mxu0 0.0
        %6964 = vmatpush1.msra.mxu0 %v6503
        %6965 = vmatprep.subr.mxu0 0.0
        %6966 = vmatpush1.msra.mxu0 %v6504
        %6967 = vmatprep.subr.mxu0 0.0
        %6968 = vmatpush1.msra.mxu0 %v6505
        %6969 = vmatprep.subr.mxu0 0.0
        %6970 = vmatpush1.msra.mxu0 %v6506
        %6971 = vmatprep.subr.mxu0 0.0
        %6972 = vmatpush1.msra.mxu0 %v6507
        %6973 = vmatprep.subr.mxu0 0.0
        %6974 = vmatpush1.msra.mxu0 %v6508
        %6975 = vmatprep.subr.mxu0 0.0
        %6976 = vmatpush1.msra.mxu0 %v6509
        %6977 = vmatprep.subr.mxu0 0.0
        %6978 = vmatpush1.msra.mxu0 %v6510
        %6979 = vmatprep.subr.mxu0 0.0
        %6980 = vmatpush1.msra.mxu0 %v6511
        %6981 = vmatprep.subr.mxu0 0.0
        %6982 = vmatpush1.msra.mxu0 %v6512
        %6983 = vmatprep.subr.mxu0 0.0
        %6984 = vmatpush1.msra.mxu0 %v6513
        %6985 = vmatprep.subr.mxu0 0.0
        %6986 = vmatpush1.msra.mxu0 %v6514
        %6987 = vmatprep.subr.mxu0 0.0
        %6988 = vmatpush1.msra.mxu0 %v6515
        %6989 = vmatprep.subr.mxu0 0.0
        %6990 = vmatpush1.msra.mxu0 %v6516
        %6991 = vmatprep.subr.mxu0 0.0
        %6992 = vmatpush1.msra.mxu0 %v6517
        %6993 = vmatprep.subr.mxu0 0.0
        %6994 = vmatpush1.msra.mxu0 %v6518
        %6995 = vmatprep.subr.mxu0 0.0
        %6996 = vmatpush1.msra.mxu0 %v6519
        %6997 = vmatprep.subr.mxu0 0.0
        %6998 = vmatpush1.msra.mxu0 %v6520
        %6999 = vmatprep.mubr.f32.mxu0 %v6929
        %7000 = vmatmul.mubr.f32.gmra.mrb[0].mxu0 %v6923
        %v7001 = vpop.f32.mrb[0].mxu0
        %v7002 = vadd.f32 0.0, %v7001
        %v7003 = vpop.f32.mrb[0].mxu0
        %7004 = vmatprep.mubr.f32.mxu0 %v6930
        %7005 = vmatmul.mubr.f32.gmra.mrb[0].mxu0 %v6924
        %v7006 = vpop.f32.mrb[0].mxu0
        %v7007 = vadd.f32 0.0, %v7006
        %v7008 = vpop.f32.mrb[0].mxu0
        %7009 = vdwg.mxu0
        %7010 = vmatprep.subr.mxu0 0.0
        %7011 = vmatpush1.msra.mxu0 %v6521
        %7012 = vmatprep.subr.mxu0 0.0
        %7013 = vmatpush1.msra.mxu0 %v6522
        %7014 = vmatprep.subr.mxu0 0.0
        %7015 = vmatpush1.msra.mxu0 %v6523
        %7016 = vmatprep.subr.mxu0 0.0
        %7017 = vmatpush1.msra.mxu0 %v6524
        %7018 = vmatprep.subr.mxu0 0.0
        %7019 = vmatpush1.msra.mxu0 0.0
        %7020 = vmatprep.subr.mxu0 0.0
        %7021 = vmatpush1.msra.mxu0 0.0
        %7022 = vmatprep.subr.mxu0 0.0
        %7023 = vmatpush1.msra.mxu0 0.0
        %7024 = vmatprep.subr.mxu0 0.0
        %7025 = vmatpush1.msra.mxu0 0.0
        %7026 = vmatprep.subr.mxu0 0.0
        %7027 = vmatpush1.msra.mxu0 0.0
        %7028 = vmatprep.subr.mxu0 0.0
        %7029 = vmatpush1.msra.mxu0 0.0
        %7030 = vmatprep.subr.mxu0 0.0
        %7031 = vmatpush1.msra.mxu0 0.0
        %7032 = vmatprep.subr.mxu0 0.0
        %7033 = vmatpush1.msra.mxu0 0.0
        %7034 = vmatprep.subr.mxu0 0.0
        %7035 = vmatpush1.msra.mxu0 0.0
        %7036 = vmatprep.subr.mxu0 0.0
        %7037 = vmatpush1.msra.mxu0 0.0
        %7038 = vmatprep.subr.mxu0 0.0
        %7039 = vmatpush1.msra.mxu0 0.0
        %7040 = vmatprep.subr.mxu0 0.0
        %7041 = vmatpush1.msra.mxu0 0.0
        %7042 = vmatprep.subr.mxu0 0.0
        %7043 = vmatpush1.msra.mxu0 0.0
        %7044 = vmatprep.subr.mxu0 0.0
        %7045 = vmatpush1.msra.mxu0 0.0
        %7046 = vmatprep.subr.mxu0 0.0
        %7047 = vmatpush1.msra.mxu0 0.0
        %7048 = vmatprep.subr.mxu0 0.0
        %7049 = vmatpush1.msra.mxu0 0.0
        %7050 = vmatprep.subr.mxu0 0.0
        %7051 = vmatpush1.msra.mxu0 0.0
        %7052 = vmatprep.subr.mxu0 0.0
        %7053 = vmatpush1.msra.mxu0 0.0
        %7054 = vmatprep.subr.mxu0 0.0
        %7055 = vmatpush1.msra.mxu0 0.0
        %7056 = vmatprep.subr.mxu0 0.0
        %7057 = vmatpush1.msra.mxu0 0.0
        %7058 = vmatprep.subr.mxu0 0.0
        %7059 = vmatpush1.msra.mxu0 0.0
        %7060 = vmatprep.subr.mxu0 0.0
        %7061 = vmatpush1.msra.mxu0 0.0
        %7062 = vmatprep.subr.mxu0 0.0
        %7063 = vmatpush1.msra.mxu0 0.0
        %7064 = vmatprep.subr.mxu0 0.0
        %7065 = vmatpush1.msra.mxu0 0.0
        %7066 = vmatprep.subr.mxu0 0.0
        %7067 = vmatpush1.msra.mxu0 0.0
        %7068 = vmatprep.subr.mxu0 0.0
        %7069 = vmatpush1.msra.mxu0 0.0
        %7070 = vmatprep.subr.mxu0 0.0
        %7071 = vmatpush1.msra.mxu0 0.0
        %7072 = vmatprep.subr.mxu0 0.0
        %7073 = vmatpush1.msra.mxu0 0.0
        %7074 = vmatprep.mubr.f32.mxu0 0.0
        %7075 = vmatmul.mubr.f32.gmra.mrb[0].mxu0 %v6931
        %v7076 = vpop.f32.mrb[0].mxu0
        %v7077 = vadd.f32 %v7002, %v7076
        %v7078 = vpop.f32.mrb[0].mxu0
        %7079 = vmatprep.mubr.f32.mxu0 0.0
        %7080 = vmatmul.mubr.f32.gmra.mrb[0].mxu0 %v6933
        %v7081 = vpop.f32.mrb[0].mxu0
        %v7082 = vadd.f32 %v7007, %v7081
        %v7083 = vpop.f32.mrb[0].mxu0
        %7084 = vdwg.mxu0
        %7085 = vrot.lane.b32.xlu0 %v6839, 96
        %v7086 = vpop.permute.xlu0 %7085
        %7087 = vrot.lane.b32.xlu0 %v6830, 96
        %v7088 = vpop.permute.xlu0 %7087
        %7093 = vrot.lane.b32.xlu0 %v6858, 32
        %v7094 = vpop.permute.xlu0 %7093
        %7095 = vrot.lane.b32.xlu0 %v6860, 32
        %v7096 = vpop.permute.xlu0 %7095
        %7099 = vrot.lane.b32.xlu0 %v6869, 64
        %v7100 = vpop.permute.xlu0 %7099
        %7101 = vrot.lane.b32.xlu0 %v6871, 64
        %v7102 = vpop.permute.xlu0 %7101
        %7105 = vrot.lane.b32.xlu0 %v6880, 96
        %v7106 = vpop.permute.xlu0 %7105
        %7107 = vrot.lane.b32.xlu0 %v6882, 96
        %v7108 = vpop.permute.xlu0 %7107
        %7113 = vrot.lane.b32.xlu0 %v6898, 32
        %v7114 = vpop.permute.xlu0 %7113
        %7115 = vrot.lane.b32.xlu0 %v6900, 32
        %v7116 = vpop.permute.xlu0 %7115
        %7119 = vrot.lane.b32.xlu0 %v6909, 64
        %v7120 = vpop.permute.xlu0 %7119
        %7121 = vrot.lane.b32.xlu0 %v6911, 64
        %v7122 = vpop.permute.xlu0 %7121
        %7125 = vrot.lane.b32.xlu0 %v6841, 96
        %v7126 = vpop.permute.xlu0 %7125
        %v7127 = vsel %vm674, %v7086, %v6847
        %v7128 = vsel %vm674, %v7088, %v6849
        %v7129 = vsel %vm957, %v7127, %v7094
        %v7130 = vsel %vm957, %v7128, %v7096
        %v7131 = vsel %vm6922, %v7129, %v7100
        %v7132 = vsel %vm6922, %v7130, %v7102
        %v7133 = vsel %vm674, %v7106, %v6887
        %v7134 = vsel %vm674, %v7108, %v6889
        %v7135 = vsel %vm957, %v7133, %v7114
        %v7136 = vsel %vm957, %v7134, %v7116
        %v7137 = vsel %vm6922, %v7135, %v7120
        %v7138 = vsel %vm6922, %v7136, %v7122
        %v7139 = vsel %vm674, %v7088, 0
        %v7141 = vsel %vm674, %v7126, 0
        %7143 = vmatprep.subr.mxu0 0.0
        %7144 = vmatpush1.msra.mxu0 %v6489
        %7145 = vmatprep.subr.mxu0 0.0
        %7146 = vmatpush1.msra.mxu0 %v6490
        %7147 = vmatprep.subr.mxu0 0.0
        %7148 = vmatpush1.msra.mxu0 %v6491
        %7149 = vmatprep.subr.mxu0 0.0
        %7150 = vmatpush1.msra.mxu0 %v6492
        %7151 = vmatprep.subr.mxu0 0.0
        %7152 = vmatpush1.msra.mxu0 %v6493
        %7153 = vmatprep.subr.mxu0 0.0
        %7154 = vmatpush1.msra.mxu0 %v6494
        %7155 = vmatprep.subr.mxu0 0.0
        %7156 = vmatpush1.msra.mxu0 %v6495
        %7157 = vmatprep.subr.mxu0 0.0
        %7158 = vmatpush1.msra.mxu0 %v6496
        %7159 = vmatprep.subr.mxu0 0.0
        %7160 = vmatpush1.msra.mxu0 %v6497
        %7161 = vmatprep.subr.mxu0 0.0
        %7162 = vmatpush1.msra.mxu0 %v6498
        %7163 = vmatprep.subr.mxu0 0.0
        %7164 = vmatpush1.msra.mxu0 %v6499
        %7165 = vmatprep.subr.mxu0 0.0
        %7166 = vmatpush1.msra.mxu0 %v6500
        %7167 = vmatprep.subr.mxu0 0.0
        %7168 = vmatpush1.msra.mxu0 %v6501
        %7169 = vmatprep.subr.mxu0 0.0
        %7170 = vmatpush1.msra.mxu0 %v6502
        %7171 = vmatprep.subr.mxu0 0.0
        %7172 = vmatpush1.msra.mxu0 %v6503
        %7173 = vmatprep.subr.mxu0 0.0
        %7174 = vmatpush1.msra.mxu0 %v6504
        %7175 = vmatprep.subr.mxu0 0.0
        %7176 = vmatpush1.msra.mxu0 %v6505
        %7177 = vmatprep.subr.mxu0 0.0
        %7178 = vmatpush1.msra.mxu0 %v6506
        %7179 = vmatprep.subr.mxu0 0.0
        %7180 = vmatpush1.msra.mxu0 %v6507
        %7181 = vmatprep.subr.mxu0 0.0
        %7182 = vmatpush1.msra.mxu0 %v6508
        %7183 = vmatprep.subr.mxu0 0.0
        %7184 = vmatpush1.msra.mxu0 %v6509
        %7185 = vmatprep.subr.mxu0 0.0
        %7186 = vmatpush1.msra.mxu0 %v6510
        %7187 = vmatprep.subr.mxu0 0.0
        %7188 = vmatpush1.msra.mxu0 %v6511
        %7189 = vmatprep.subr.mxu0 0.0
        %7190 = vmatpush1.msra.mxu0 %v6512
        %7191 = vmatprep.subr.mxu0 0.0
        %7192 = vmatpush1.msra.mxu0 %v6513
        %7193 = vmatprep.subr.mxu0 0.0
        %7194 = vmatpush1.msra.mxu0 %v6514
        %7195 = vmatprep.subr.mxu0 0.0
        %7196 = vmatpush1.msra.mxu0 %v6515
        %7197 = vmatprep.subr.mxu0 0.0
        %7198 = vmatpush1.msra.mxu0 %v6516
        %7199 = vmatprep.subr.mxu0 0.0
        %7200 = vmatpush1.msra.mxu0 %v6517
        %7201 = vmatprep.subr.mxu0 0.0
        %7202 = vmatpush1.msra.mxu0 %v6518
        %7203 = vmatprep.subr.mxu0 0.0
        %7204 = vmatpush1.msra.mxu0 %v6519
        %7205 = vmatprep.subr.mxu0 0.0
        %7206 = vmatpush1.msra.mxu0 %v6520
        %7207 = vmatprep.mubr.f32.mxu0 %v7137
        %7208 = vmatmul.mubr.f32.gmra.mrb[0].mxu0 %v7131
        %v7209 = vpop.f32.mrb[0].mxu0
        %v7210 = vadd.f32 0.0, %v7209
        %v7211 = vpop.f32.mrb[0].mxu0
        %7212 = vmatprep.mubr.f32.mxu0 %v7138
        %7213 = vmatmul.mubr.f32.gmra.mrb[0].mxu0 %v7132
        %v7214 = vpop.f32.mrb[0].mxu0
        %v7215 = vadd.f32 0.0, %v7214
        %v7216 = vpop.f32.mrb[0].mxu0
        %7217 = vdwg.mxu0
        %7218 = vmatprep.subr.mxu0 0.0
        %7219 = vmatpush1.msra.mxu0 %v6521
        %7220 = vmatprep.subr.mxu0 0.0
        %7221 = vmatpush1.msra.mxu0 %v6522
        %7222 = vmatprep.subr.mxu0 0.0
        %7223 = vmatpush1.msra.mxu0 %v6523
        %7224 = vmatprep.subr.mxu0 0.0
        %7225 = vmatpush1.msra.mxu0 %v6524
        %7226 = vmatprep.subr.mxu0 0.0
        %7227 = vmatpush1.msra.mxu0 0.0
        %7228 = vmatprep.subr.mxu0 0.0
        %7229 = vmatpush1.msra.mxu0 0.0
        %7230 = vmatprep.subr.mxu0 0.0
        %7231 = vmatpush1.msra.mxu0 0.0
        %7232 = vmatprep.subr.mxu0 0.0
        %7233 = vmatpush1.msra.mxu0 0.0
        %7234 = vmatprep.subr.mxu0 0.0
        %7235 = vmatpush1.msra.mxu0 0.0
        %7236 = vmatprep.subr.mxu0 0.0
        %7237 = vmatpush1.msra.mxu0 0.0
        %7238 = vmatprep.subr.mxu0 0.0
        %7239 = vmatpush1.msra.mxu0 0.0
        %7240 = vmatprep.subr.mxu0 0.0
        %7241 = vmatpush1.msra.mxu0 0.0
        %7242 = vmatprep.subr.mxu0 0.0
        %7243 = vmatpush1.msra.mxu0 0.0
        %7244 = vmatprep.subr.mxu0 0.0
        %7245 = vmatpush1.msra.mxu0 0.0
        %7246 = vmatprep.subr.mxu0 0.0
        %7247 = vmatpush1.msra.mxu0 0.0
        %7248 = vmatprep.subr.mxu0 0.0
        %7249 = vmatpush1.msra.mxu0 0.0
        %7250 = vmatprep.subr.mxu0 0.0
        %7251 = vmatpush1.msra.mxu0 0.0
        %7252 = vmatprep.subr.mxu0 0.0
        %7253 = vmatpush1.msra.mxu0 0.0
        %7254 = vmatprep.subr.mxu0 0.0
        %7255 = vmatpush1.msra.mxu0 0.0
        %7256 = vmatprep.subr.mxu0 0.0
        %7257 = vmatpush1.msra.mxu0 0.0
        %7258 = vmatprep.subr.mxu0 0.0
        %7259 = vmatpush1.msra.mxu0 0.0
        %7260 = vmatprep.subr.mxu0 0.0
        %7261 = vmatpush1.msra.mxu0 0.0
        %7262 = vmatprep.subr.mxu0 0.0
        %7263 = vmatpush1.msra.mxu0 0.0
        %7264 = vmatprep.subr.mxu0 0.0
        %7265 = vmatpush1.msra.mxu0 0.0
        %7266 = vmatprep.subr.mxu0 0.0
        %7267 = vmatpush1.msra.mxu0 0.0
        %7268 = vmatprep.subr.mxu0 0.0
        %7269 = vmatpush1.msra.mxu0 0.0
        %7270 = vmatprep.subr.mxu0 0.0
        %7271 = vmatpush1.msra.mxu0 0.0
        %7272 = vmatprep.subr.mxu0 0.0
        %7273 = vmatpush1.msra.mxu0 0.0
        %7274 = vmatprep.subr.mxu0 0.0
        %7275 = vmatpush1.msra.mxu0 0.0
        %7276 = vmatprep.subr.mxu0 0.0
        %7277 = vmatpush1.msra.mxu0 0.0
        %7278 = vmatprep.subr.mxu0 0.0
        %7279 = vmatpush1.msra.mxu0 0.0
        %7280 = vmatprep.subr.mxu0 0.0
        %7281 = vmatpush1.msra.mxu0 0.0
        %7282 = vmatprep.mubr.f32.mxu0 0.0
        %7283 = vmatmul.mubr.f32.gmra.mrb[0].mxu0 %v7139
        %v7284 = vpop.f32.mrb[0].mxu0
        %v7285 = vadd.f32 %v7210, %v7284
        %v7286 = vpop.f32.mrb[0].mxu0
        %7287 = vmatprep.mubr.f32.mxu0 0.0
        %7288 = vmatmul.mubr.f32.gmra.mrb[0].mxu0 %v7141
        %v7289 = vpop.f32.mrb[0].mxu0
        %v7290 = vadd.f32 %v7215, %v7289
        %v7291 = vpop.f32.mrb[0].mxu0
        %7292 = vdwg.mxu0
        %7293 = vrot.lane.b32.xlu0 %v6839, 64
        %v7294 = vpop.permute.xlu0 %7293
        %7295 = vrot.lane.b32.xlu0 %v6830, 64
        %v7296 = vpop.permute.xlu0 %7295
        %7299 = vrot.lane.b32.xlu0 %v6847, 96
        %v7300 = vpop.permute.xlu0 %7299
        %7301 = vrot.lane.b32.xlu0 %v6849, 96
        %v7302 = vpop.permute.xlu0 %7301
        %7307 = vrot.lane.b32.xlu0 %v6869, 32
        %v7308 = vpop.permute.xlu0 %7307
        %7309 = vrot.lane.b32.xlu0 %v6871, 32
        %v7310 = vpop.permute.xlu0 %7309
        %7313 = vrot.lane.b32.xlu0 %v6880, 64
        %v7314 = vpop.permute.xlu0 %7313
        %7315 = vrot.lane.b32.xlu0 %v6882, 64
        %v7316 = vpop.permute.xlu0 %7315
        %7319 = vrot.lane.b32.xlu0 %v6887, 96
        %v7320 = vpop.permute.xlu0 %7319
        %7321 = vrot.lane.b32.xlu0 %v6889, 96
        %v7322 = vpop.permute.xlu0 %7321
        %7327 = vrot.lane.b32.xlu0 %v6909, 32
        %v7328 = vpop.permute.xlu0 %7327
        %7329 = vrot.lane.b32.xlu0 %v6911, 32
        %v7330 = vpop.permute.xlu0 %7329
        %7333 = vrot.lane.b32.xlu0 %v6841, 64
        %v7334 = vpop.permute.xlu0 %7333
        %v7335 = vsel %vm674, %v7294, %v7300
        %v7336 = vsel %vm674, %v7296, %v7302
        %v7337 = vsel %vm957, %v7335, %v6858
        %v7338 = vsel %vm957, %v7336, %v6860
        %v7339 = vsel %vm6922, %v7337, %v7308
        %v7340 = vsel %vm6922, %v7338, %v7310
        %v7341 = vsel %vm674, %v7314, %v7320
        %v7342 = vsel %vm674, %v7316, %v7322
        %v7343 = vsel %vm957, %v7341, %v6898
        %v7344 = vsel %vm957, %v7342, %v6900
        %v7345 = vsel %vm6922, %v7343, %v7328
        %v7346 = vsel %vm6922, %v7344, %v7330
        %v7347 = vsel %vm674, %v7296, 0
        %v7349 = vsel %vm674, %v7334, 0
        %7351 = vmatprep.subr.mxu0 0.0
        %7352 = vmatpush1.msra.mxu0 %v6489
        %7353 = vmatprep.subr.mxu0 0.0
        %7354 = vmatpush1.msra.mxu0 %v6490
        %7355 = vmatprep.subr.mxu0 0.0
        %7356 = vmatpush1.msra.mxu0 %v6491
        %7357 = vmatprep.subr.mxu0 0.0
        %7358 = vmatpush1.msra.mxu0 %v6492
        %7359 = vmatprep.subr.mxu0 0.0
        %7360 = vmatpush1.msra.mxu0 %v6493
        %7361 = vmatprep.subr.mxu0 0.0
        %7362 = vmatpush1.msra.mxu0 %v6494
        %7363 = vmatprep.subr.mxu0 0.0
        %7364 = vmatpush1.msra.mxu0 %v6495
        %7365 = vmatprep.subr.mxu0 0.0
        %7366 = vmatpush1.msra.mxu0 %v6496
        %7367 = vmatprep.subr.mxu0 0.0
        %7368 = vmatpush1.msra.mxu0 %v6497
        %7369 = vmatprep.subr.mxu0 0.0
        %7370 = vmatpush1.msra.mxu0 %v6498
        %7371 = vmatprep.subr.mxu0 0.0
        %7372 = vmatpush1.msra.mxu0 %v6499
        %7373 = vmatprep.subr.mxu0 0.0
        %7374 = vmatpush1.msra.mxu0 %v6500
        %7375 = vmatprep.subr.mxu0 0.0
        %7376 = vmatpush1.msra.mxu0 %v6501
        %7377 = vmatprep.subr.mxu0 0.0
        %7378 = vmatpush1.msra.mxu0 %v6502
        %7379 = vmatprep.subr.mxu0 0.0
        %7380 = vmatpush1.msra.mxu0 %v6503
        %7381 = vmatprep.subr.mxu0 0.0
        %7382 = vmatpush1.msra.mxu0 %v6504
        %7383 = vmatprep.subr.mxu0 0.0
        %7384 = vmatpush1.msra.mxu0 %v6505
        %7385 = vmatprep.subr.mxu0 0.0
        %7386 = vmatpush1.msra.mxu0 %v6506
        %7387 = vmatprep.subr.mxu0 0.0
        %7388 = vmatpush1.msra.mxu0 %v6507
        %7389 = vmatprep.subr.mxu0 0.0
        %7390 = vmatpush1.msra.mxu0 %v6508
        %7391 = vmatprep.subr.mxu0 0.0
        %7392 = vmatpush1.msra.mxu0 %v6509
        %7393 = vmatprep.subr.mxu0 0.0
        %7394 = vmatpush1.msra.mxu0 %v6510
        %7395 = vmatprep.subr.mxu0 0.0
        %7396 = vmatpush1.msra.mxu0 %v6511
        %7397 = vmatprep.subr.mxu0 0.0
        %7398 = vmatpush1.msra.mxu0 %v6512
        %7399 = vmatprep.subr.mxu0 0.0
        %7400 = vmatpush1.msra.mxu0 %v6513
        %7401 = vmatprep.subr.mxu0 0.0
        %7402 = vmatpush1.msra.mxu0 %v6514
        %7403 = vmatprep.subr.mxu0 0.0
        %7404 = vmatpush1.msra.mxu0 %v6515
        %7405 = vmatprep.subr.mxu0 0.0
        %7406 = vmatpush1.msra.mxu0 %v6516
        %7407 = vmatprep.subr.mxu0 0.0
        %7408 = vmatpush1.msra.mxu0 %v6517
        %7409 = vmatprep.subr.mxu0 0.0
        %7410 = vmatpush1.msra.mxu0 %v6518
        %7411 = vmatprep.subr.mxu0 0.0
        %7412 = vmatpush1.msra.mxu0 %v6519
        %7413 = vmatprep.subr.mxu0 0.0
        %7414 = vmatpush1.msra.mxu0 %v6520
        %7415 = vmatprep.mubr.f32.mxu0 %v7345
        %7416 = vmatmul.mubr.f32.gmra.mrb[0].mxu0 %v7339
        %v7417 = vpop.f32.mrb[0].mxu0
        %v7418 = vadd.f32 0.0, %v7417
        %v7419 = vpop.f32.mrb[0].mxu0
        %7420 = vmatprep.mubr.f32.mxu0 %v7346
        %7421 = vmatmul.mubr.f32.gmra.mrb[0].mxu0 %v7340
        %v7422 = vpop.f32.mrb[0].mxu0
        %v7423 = vadd.f32 0.0, %v7422
        %v7424 = vpop.f32.mrb[0].mxu0
        %7425 = vdwg.mxu0
        %7426 = vmatprep.subr.mxu0 0.0
        %7427 = vmatpush1.msra.mxu0 %v6521
        %7428 = vmatprep.subr.mxu0 0.0
        %7429 = vmatpush1.msra.mxu0 %v6522
        %7430 = vmatprep.subr.mxu0 0.0
        %7431 = vmatpush1.msra.mxu0 %v6523
        %7432 = vmatprep.subr.mxu0 0.0
        %7433 = vmatpush1.msra.mxu0 %v6524
        %7434 = vmatprep.subr.mxu0 0.0
        %7435 = vmatpush1.msra.mxu0 0.0
        %7436 = vmatprep.subr.mxu0 0.0
        %7437 = vmatpush1.msra.mxu0 0.0
        %7438 = vmatprep.subr.mxu0 0.0
        %7439 = vmatpush1.msra.mxu0 0.0
        %7440 = vmatprep.subr.mxu0 0.0
        %7441 = vmatpush1.msra.mxu0 0.0
        %7442 = vmatprep.subr.mxu0 0.0
        %7443 = vmatpush1.msra.mxu0 0.0
        %7444 = vmatprep.subr.mxu0 0.0
        %7445 = vmatpush1.msra.mxu0 0.0
        %7446 = vmatprep.subr.mxu0 0.0
        %7447 = vmatpush1.msra.mxu0 0.0
        %7448 = vmatprep.subr.mxu0 0.0
        %7449 = vmatpush1.msra.mxu0 0.0
        %7450 = vmatprep.subr.mxu0 0.0
        %7451 = vmatpush1.msra.mxu0 0.0
        %7452 = vmatprep.subr.mxu0 0.0
        %7453 = vmatpush1.msra.mxu0 0.0
        %7454 = vmatprep.subr.mxu0 0.0
        %7455 = vmatpush1.msra.mxu0 0.0
        %7456 = vmatprep.subr.mxu0 0.0
        %7457 = vmatpush1.msra.mxu0 0.0
        %7458 = vmatprep.subr.mxu0 0.0
        %7459 = vmatpush1.msra.mxu0 0.0
        %7460 = vmatprep.subr.mxu0 0.0
        %7461 = vmatpush1.msra.mxu0 0.0
        %7462 = vmatprep.subr.mxu0 0.0
        %7463 = vmatpush1.msra.mxu0 0.0
        %7464 = vmatprep.subr.mxu0 0.0
        %7465 = vmatpush1.msra.mxu0 0.0
        %7466 = vmatprep.subr.mxu0 0.0
        %7467 = vmatpush1.msra.mxu0 0.0
        %7468 = vmatprep.subr.mxu0 0.0
        %7469 = vmatpush1.msra.mxu0 0.0
        %7470 = vmatprep.subr.mxu0 0.0
        %7471 = vmatpush1.msra.mxu0 0.0
        %7472 = vmatprep.subr.mxu0 0.0
        %7473 = vmatpush1.msra.mxu0 0.0
        %7474 = vmatprep.subr.mxu0 0.0
        %7475 = vmatpush1.msra.mxu0 0.0
        %7476 = vmatprep.subr.mxu0 0.0
        %7477 = vmatpush1.msra.mxu0 0.0
        %7478 = vmatprep.subr.mxu0 0.0
        %7479 = vmatpush1.msra.mxu0 0.0
        %7480 = vmatprep.subr.mxu0 0.0
        %7481 = vmatpush1.msra.mxu0 0.0
        %7482 = vmatprep.subr.mxu0 0.0
        %7483 = vmatpush1.msra.mxu0 0.0
        %7484 = vmatprep.subr.mxu0 0.0
        %7485 = vmatpush1.msra.mxu0 0.0
        %7486 = vmatprep.subr.mxu0 0.0
        %7487 = vmatpush1.msra.mxu0 0.0
        %7488 = vmatprep.subr.mxu0 0.0
        %7489 = vmatpush1.msra.mxu0 0.0
        %7490 = vmatprep.mubr.f32.mxu0 0.0
        %7491 = vmatmul.mubr.f32.gmra.mrb[0].mxu0 %v7347
        %v7492 = vpop.f32.mrb[0].mxu0
        %v7493 = vadd.f32 %v7418, %v7492
        %v7494 = vpop.f32.mrb[0].mxu0
        %7495 = vmatprep.mubr.f32.mxu0 0.0
        %7496 = vmatmul.mubr.f32.gmra.mrb[0].mxu0 %v7349
        %v7497 = vpop.f32.mrb[0].mxu0
        %v7498 = vadd.f32 %v7423, %v7497
        %v7499 = vpop.f32.mrb[0].mxu0
        %7500 = vdwg.mxu0
        %7501 = vrot.lane.b32.xlu0 %v6839, 32
        %v7502 = vpop.permute.xlu0 %7501
        %7503 = vrot.lane.b32.xlu0 %v6830, 32
        %v7504 = vpop.permute.xlu0 %7503
        %7507 = vrot.lane.b32.xlu0 %v6847, 64
        %v7508 = vpop.permute.xlu0 %7507
        %7509 = vrot.lane.b32.xlu0 %v6849, 64
        %v7510 = vpop.permute.xlu0 %7509
        %7513 = vrot.lane.b32.xlu0 %v6858, 96
        %v7514 = vpop.permute.xlu0 %7513
        %7515 = vrot.lane.b32.xlu0 %v6860, 96
        %v7516 = vpop.permute.xlu0 %7515
        %7521 = vrot.lane.b32.xlu0 %v6880, 32
        %v7522 = vpop.permute.xlu0 %7521
        %7523 = vrot.lane.b32.xlu0 %v6882, 32
        %v7524 = vpop.permute.xlu0 %7523
        %7527 = vrot.lane.b32.xlu0 %v6887, 64
        %v7528 = vpop.permute.xlu0 %7527
        %7529 = vrot.lane.b32.xlu0 %v6889, 64
        %v7530 = vpop.permute.xlu0 %7529
        %7533 = vrot.lane.b32.xlu0 %v6898, 96
        %v7534 = vpop.permute.xlu0 %7533
        %7535 = vrot.lane.b32.xlu0 %v6900, 96
        %v7536 = vpop.permute.xlu0 %7535
        %7541 = vrot.lane.b32.xlu0 %v6841, 32
        %v7542 = vpop.permute.xlu0 %7541
        %v7543 = vsel %vm674, %v7502, %v7508
        %v7544 = vsel %vm674, %v7504, %v7510
        %v7545 = vsel %vm957, %v7543, %v7514
        %v7546 = vsel %vm957, %v7544, %v7516
        %v7547 = vsel %vm6922, %v7545, %v6869
        %v7548 = vsel %vm6922, %v7546, %v6871
        %v7549 = vsel %vm674, %v7522, %v7528
        %v7550 = vsel %vm674, %v7524, %v7530
        %v7551 = vsel %vm957, %v7549, %v7534
        %v7552 = vsel %vm957, %v7550, %v7536
        %v7553 = vsel %vm6922, %v7551, %v6909
        %v7554 = vsel %vm6922, %v7552, %v6911
        %v7555 = vsel %vm674, %v7504, 0
        %v7557 = vsel %vm674, %v7542, 0
        %7559 = vmatprep.subr.mxu0 0.0
        %7560 = vmatpush1.msra.mxu0 %v6489
        %7561 = vmatprep.subr.mxu0 0.0
        %7562 = vmatpush1.msra.mxu0 %v6490
        %7563 = vmatprep.subr.mxu0 0.0
        %7564 = vmatpush1.msra.mxu0 %v6491
        %7565 = vmatprep.subr.mxu0 0.0
        %7566 = vmatpush1.msra.mxu0 %v6492
        %7567 = vmatprep.subr.mxu0 0.0
        %7568 = vmatpush1.msra.mxu0 %v6493
        %7569 = vmatprep.subr.mxu0 0.0
        %7570 = vmatpush1.msra.mxu0 %v6494
        %7571 = vmatprep.subr.mxu0 0.0
        %7572 = vmatpush1.msra.mxu0 %v6495
        %7573 = vmatprep.subr.mxu0 0.0
        %7574 = vmatpush1.msra.mxu0 %v6496
        %7575 = vmatprep.subr.mxu0 0.0
        %7576 = vmatpush1.msra.mxu0 %v6497
        %7577 = vmatprep.subr.mxu0 0.0
        %7578 = vmatpush1.msra.mxu0 %v6498
        %7579 = vmatprep.subr.mxu0 0.0
        %7580 = vmatpush1.msra.mxu0 %v6499
        %7581 = vmatprep.subr.mxu0 0.0
        %7582 = vmatpush1.msra.mxu0 %v6500
        %7583 = vmatprep.subr.mxu0 0.0
        %7584 = vmatpush1.msra.mxu0 %v6501
        %7585 = vmatprep.subr.mxu0 0.0
        %7586 = vmatpush1.msra.mxu0 %v6502
        %7587 = vmatprep.subr.mxu0 0.0
        %7588 = vmatpush1.msra.mxu0 %v6503
        %7589 = vmatprep.subr.mxu0 0.0
        %7590 = vmatpush1.msra.mxu0 %v6504
        %7591 = vmatprep.subr.mxu0 0.0
        %7592 = vmatpush1.msra.mxu0 %v6505
        %7593 = vmatprep.subr.mxu0 0.0
        %7594 = vmatpush1.msra.mxu0 %v6506
        %7595 = vmatprep.subr.mxu0 0.0
        %7596 = vmatpush1.msra.mxu0 %v6507
        %7597 = vmatprep.subr.mxu0 0.0
        %7598 = vmatpush1.msra.mxu0 %v6508
        %7599 = vmatprep.subr.mxu0 0.0
        %7600 = vmatpush1.msra.mxu0 %v6509
        %7601 = vmatprep.subr.mxu0 0.0
        %7602 = vmatpush1.msra.mxu0 %v6510
        %7603 = vmatprep.subr.mxu0 0.0
        %7604 = vmatpush1.msra.mxu0 %v6511
        %7605 = vmatprep.subr.mxu0 0.0
        %7606 = vmatpush1.msra.mxu0 %v6512
        %7607 = vmatprep.subr.mxu0 0.0
        %7608 = vmatpush1.msra.mxu0 %v6513
        %7609 = vmatprep.subr.mxu0 0.0
        %7610 = vmatpush1.msra.mxu0 %v6514
        %7611 = vmatprep.subr.mxu0 0.0
        %7612 = vmatpush1.msra.mxu0 %v6515
        %7613 = vmatprep.subr.mxu0 0.0
        %7614 = vmatpush1.msra.mxu0 %v6516
        %7615 = vmatprep.subr.mxu0 0.0
        %7616 = vmatpush1.msra.mxu0 %v6517
        %7617 = vmatprep.subr.mxu0 0.0
        %7618 = vmatpush1.msra.mxu0 %v6518
        %7619 = vmatprep.subr.mxu0 0.0
        %7620 = vmatpush1.msra.mxu0 %v6519
        %7621 = vmatprep.subr.mxu0 0.0
        %7622 = vmatpush1.msra.mxu0 %v6520
        %7623 = vmatprep.mubr.f32.mxu0 %v7553
        %7624 = vmatmul.mubr.f32.gmra.mrb[0].mxu0 %v7547
        %v7625 = vpop.f32.mrb[0].mxu0
        %v7626 = vadd.f32 0.0, %v7625
        %v7627 = vpop.f32.mrb[0].mxu0
        %7628 = vmatprep.mubr.f32.mxu0 %v7554
        %7629 = vmatmul.mubr.f32.gmra.mrb[0].mxu0 %v7548
        %v7630 = vpop.f32.mrb[0].mxu0
        %v7631 = vadd.f32 0.0, %v7630
        %v7632 = vpop.f32.mrb[0].mxu0
        %7633 = vdwg.mxu0
        %7634 = vmatprep.subr.mxu0 0.0
        %7635 = vmatpush1.msra.mxu0 %v6521
        %7636 = vmatprep.subr.mxu0 0.0
        %7637 = vmatpush1.msra.mxu0 %v6522
        %7638 = vmatprep.subr.mxu0 0.0
        %7639 = vmatpush1.msra.mxu0 %v6523
        %7640 = vmatprep.subr.mxu0 0.0
        %7641 = vmatpush1.msra.mxu0 %v6524
        %7642 = vmatprep.subr.mxu0 0.0
        %7643 = vmatpush1.msra.mxu0 0.0
        %7644 = vmatprep.subr.mxu0 0.0
        %7645 = vmatpush1.msra.mxu0 0.0
        %7646 = vmatprep.subr.mxu0 0.0
        %7647 = vmatpush1.msra.mxu0 0.0
        %7648 = vmatprep.subr.mxu0 0.0
        %7649 = vmatpush1.msra.mxu0 0.0
        %7650 = vmatprep.subr.mxu0 0.0
        %7651 = vmatpush1.msra.mxu0 0.0
        %7652 = vmatprep.subr.mxu0 0.0
        %7653 = vmatpush1.msra.mxu0 0.0
        %7654 = vmatprep.subr.mxu0 0.0
        %7655 = vmatpush1.msra.mxu0 0.0
        %7656 = vmatprep.subr.mxu0 0.0
        %7657 = vmatpush1.msra.mxu0 0.0
        %7658 = vmatprep.subr.mxu0 0.0
        %7659 = vmatpush1.msra.mxu0 0.0
        %7660 = vmatprep.subr.mxu0 0.0
        %7661 = vmatpush1.msra.mxu0 0.0
        %7662 = vmatprep.subr.mxu0 0.0
        %7663 = vmatpush1.msra.mxu0 0.0
        %7664 = vmatprep.subr.mxu0 0.0
        %7665 = vmatpush1.msra.mxu0 0.0
        %7666 = vmatprep.subr.mxu0 0.0
        %7667 = vmatpush1.msra.mxu0 0.0
        %7668 = vmatprep.subr.mxu0 0.0
        %7669 = vmatpush1.msra.mxu0 0.0
        %7670 = vmatprep.subr.mxu0 0.0
        %7671 = vmatpush1.msra.mxu0 0.0
        %7672 = vmatprep.subr.mxu0 0.0
        %7673 = vmatpush1.msra.mxu0 0.0
        %7674 = vmatprep.subr.mxu0 0.0
        %7675 = vmatpush1.msra.mxu0 0.0
        %7676 = vmatprep.subr.mxu0 0.0
        %7677 = vmatpush1.msra.mxu0 0.0
        %7678 = vmatprep.subr.mxu0 0.0
        %7679 = vmatpush1.msra.mxu0 0.0
        %7680 = vmatprep.subr.mxu0 0.0
        %7681 = vmatpush1.msra.mxu0 0.0
        %7682 = vmatprep.subr.mxu0 0.0
        %7683 = vmatpush1.msra.mxu0 0.0
        %7684 = vmatprep.subr.mxu0 0.0
        %7685 = vmatpush1.msra.mxu0 0.0
        %7686 = vmatprep.subr.mxu0 0.0
        %7687 = vmatpush1.msra.mxu0 0.0
        %7688 = vmatprep.subr.mxu0 0.0
        %7689 = vmatpush1.msra.mxu0 0.0
        %7690 = vmatprep.subr.mxu0 0.0
        %7691 = vmatpush1.msra.mxu0 0.0
        %7692 = vmatprep.subr.mxu0 0.0
        %7693 = vmatpush1.msra.mxu0 0.0
        %7694 = vmatprep.subr.mxu0 0.0
        %7695 = vmatpush1.msra.mxu0 0.0
        %7696 = vmatprep.subr.mxu0 0.0
        %7697 = vmatpush1.msra.mxu0 0.0
        %7698 = vmatprep.mubr.f32.mxu0 0.0
        %7699 = vmatmul.mubr.f32.gmra.mrb[0].mxu0 %v7555
        %v7700 = vpop.f32.mrb[0].mxu0
        %v7701 = vadd.f32 %v7626, %v7700
        %v7702 = vpop.f32.mrb[0].mxu0
        %7703 = vmatprep.mubr.f32.mxu0 0.0
        %7704 = vmatmul.mubr.f32.gmra.mrb[0].mxu0 %v7557
        %v7705 = vpop.f32.mrb[0].mxu0
        %v7706 = vadd.f32 %v7631, %v7705
        %v7707 = vpop.f32.mrb[0].mxu0
        %7708 = vdwg.mxu0
        %v7711 = vrot.slane %v6840, 1
        %v7712 = vrot.slane %v6832, 1
        %v7713 = vsel %vm886, %v7711, %v7712
        %v7714 = vrot.slane %v6842, 1
        %v7715 = vsel %vm886, %v7712, %v7714
        %7716 = vrot.lane.b32.xlu0 %v7713, 32
        %v7717 = vpop.permute.xlu0 %7716
        %7718 = vrot.lane.b32.xlu0 %v7715, 32
        %v7719 = vpop.permute.xlu0 %7718
        %v7722 = vrot.slane %v6840, 2
        %v7723 = vrot.slane %v6832, 2
        %v7724 = vsel %vm898, %v7722, %v7723
        %v7725 = vrot.slane %v6842, 2
        %v7726 = vsel %vm898, %v7723, %v7725
        %7727 = vrot.lane.b32.xlu0 %v7724, 64
        %v7728 = vpop.permute.xlu0 %7727
        %7729 = vrot.lane.b32.xlu0 %v7726, 64
        %v7730 = vpop.permute.xlu0 %7729
        %v7733 = vrot.slane %v6840, 3
        %v7734 = vrot.slane %v6832, 3
        %v7735 = vsel %vm906, %v7733, %v7734
        %v7736 = vrot.slane %v6842, 3
        %v7737 = vsel %vm906, %v7734, %v7736
        %7738 = vrot.lane.b32.xlu0 %v7735, 96
        %v7739 = vpop.permute.xlu0 %7738
        %7740 = vrot.lane.b32.xlu0 %v7737, 96
        %v7741 = vpop.permute.xlu0 %7740
        %v7744 = vrot.slane %v6840, 4
        %v7745 = vrot.slane %v6832, 4
        %v7746 = vsel %vm851, %v7744, %v7745
        %v7747 = vrot.slane %v6842, 4
        %v7748 = vsel %vm851, %v7745, %v7747
        %v7751 = vrot.slane %v6840, 5
        %v7752 = vrot.slane %v6832, 5
        %v7753 = vsel %vm925, %v7751, %v7752
        %v7754 = vrot.slane %v6842, 5
        %v7755 = vsel %vm925, %v7752, %v7754
        %7756 = vrot.lane.b32.xlu0 %v7753, 32
        %v7757 = vpop.permute.xlu0 %7756
        %7758 = vrot.lane.b32.xlu0 %v7755, 32
        %v7759 = vpop.permute.xlu0 %7758
        %v7762 = vrot.slane %v6840, 6
        %v7763 = vrot.slane %v6832, 6
        %v7764 = vsel %vm937, %v7762, %v7763
        %v7765 = vrot.slane %v6842, 6
        %v7766 = vsel %vm937, %v7763, %v7765
        %7767 = vrot.lane.b32.xlu0 %v7764, 64
        %v7768 = vpop.permute.xlu0 %7767
        %7769 = vrot.lane.b32.xlu0 %v7766, 64
        %v7770 = vpop.permute.xlu0 %7769
        %v7773 = vrot.slane %v6840, 7
        %v7774 = vrot.slane %v6832, 7
        %v7775 = vsel %vm945, %v7773, %v7774
        %v7776 = vrot.slane %v6842, 7
        %v7777 = vsel %vm945, %v7774, %v7776
        %7778 = vrot.lane.b32.xlu0 %v7775, 96
        %v7779 = vpop.permute.xlu0 %7778
        %7780 = vrot.lane.b32.xlu0 %v7777, 96
        %v7781 = vpop.permute.xlu0 %7780
        %v7784 = vsel %vm674, %v6840, %v7717
        %v7785 = vsel %vm674, %v6832, %v7719
        %v7786 = vsel %vm957, %v7784, %v7728
        %v7787 = vsel %vm957, %v7785, %v7730
        %v7788 = vsel %vm6922, %v7786, %v7739
        %v7789 = vsel %vm6922, %v7787, %v7741
        %v7790 = vsel %vm674, %v7746, %v7757
        %v7791 = vsel %vm674, %v7748, %v7759
        %v7792 = vsel %vm957, %v7790, %v7768
        %v7793 = vsel %vm957, %v7791, %v7770
        %v7794 = vsel %vm6922, %v7792, %v7779
        %v7795 = vsel %vm6922, %v7793, %v7781
        %v7796 = vsel %vm674, %v6832, 0
        %v7798 = vsel %vm674, %v6842, 0
        %7800 = vmatprep.subr.mxu0 0.0
        %7801 = vmatpush1.msra.mxu0 %v6489
        %7802 = vmatprep.subr.mxu0 0.0
        %7803 = vmatpush1.msra.mxu0 %v6490
        %7804 = vmatprep.subr.mxu0 0.0
        %7805 = vmatpush1.msra.mxu0 %v6491
        %7806 = vmatprep.subr.mxu0 0.0
        %7807 = vmatpush1.msra.mxu0 %v6492
        %7808 = vmatprep.subr.mxu0 0.0
        %7809 = vmatpush1.msra.mxu0 %v6493
        %7810 = vmatprep.subr.mxu0 0.0
        %7811 = vmatpush1.msra.mxu0 %v6494
        %7812 = vmatprep.subr.mxu0 0.0
        %7813 = vmatpush1.msra.mxu0 %v6495
        %7814 = vmatprep.subr.mxu0 0.0
        %7815 = vmatpush1.msra.mxu0 %v6496
        %7816 = vmatprep.subr.mxu0 0.0
        %7817 = vmatpush1.msra.mxu0 %v6497
        %7818 = vmatprep.subr.mxu0 0.0
        %7819 = vmatpush1.msra.mxu0 %v6498
        %7820 = vmatprep.subr.mxu0 0.0
        %7821 = vmatpush1.msra.mxu0 %v6499
        %7822 = vmatprep.subr.mxu0 0.0
        %7823 = vmatpush1.msra.mxu0 %v6500
        %7824 = vmatprep.subr.mxu0 0.0
        %7825 = vmatpush1.msra.mxu0 %v6501
        %7826 = vmatprep.subr.mxu0 0.0
        %7827 = vmatpush1.msra.mxu0 %v6502
        %7828 = vmatprep.subr.mxu0 0.0
        %7829 = vmatpush1.msra.mxu0 %v6503
        %7830 = vmatprep.subr.mxu0 0.0
        %7831 = vmatpush1.msra.mxu0 %v6504
        %7832 = vmatprep.subr.mxu0 0.0
        %7833 = vmatpush1.msra.mxu0 %v6505
        %7834 = vmatprep.subr.mxu0 0.0
        %7835 = vmatpush1.msra.mxu0 %v6506
        %7836 = vmatprep.subr.mxu0 0.0
        %7837 = vmatpush1.msra.mxu0 %v6507
        %7838 = vmatprep.subr.mxu0 0.0
        %7839 = vmatpush1.msra.mxu0 %v6508
        %7840 = vmatprep.subr.mxu0 0.0
        %7841 = vmatpush1.msra.mxu0 %v6509
        %7842 = vmatprep.subr.mxu0 0.0
        %7843 = vmatpush1.msra.mxu0 %v6510
        %7844 = vmatprep.subr.mxu0 0.0
        %7845 = vmatpush1.msra.mxu0 %v6511
        %7846 = vmatprep.subr.mxu0 0.0
        %7847 = vmatpush1.msra.mxu0 %v6512
        %7848 = vmatprep.subr.mxu0 0.0
        %7849 = vmatpush1.msra.mxu0 %v6513
        %7850 = vmatprep.subr.mxu0 0.0
        %7851 = vmatpush1.msra.mxu0 %v6514
        %7852 = vmatprep.subr.mxu0 0.0
        %7853 = vmatpush1.msra.mxu0 %v6515
        %7854 = vmatprep.subr.mxu0 0.0
        %7855 = vmatpush1.msra.mxu0 %v6516
        %7856 = vmatprep.subr.mxu0 0.0
        %7857 = vmatpush1.msra.mxu0 %v6517
        %7858 = vmatprep.subr.mxu0 0.0
        %7859 = vmatpush1.msra.mxu0 %v6518
        %7860 = vmatprep.subr.mxu0 0.0
        %7861 = vmatpush1.msra.mxu0 %v6519
        %7862 = vmatprep.subr.mxu0 0.0
        %7863 = vmatpush1.msra.mxu0 %v6520
        %7864 = vmatprep.mubr.f32.mxu0 %v7794
        %7865 = vmatmul.mubr.f32.gmra.mrb[0].mxu0 %v7788
        %v7866 = vpop.f32.mrb[0].mxu0
        %v7867 = vadd.f32 0.0, %v7866
        %v7868 = vpop.f32.mrb[0].mxu0
        %7869 = vmatprep.mubr.f32.mxu0 %v7795
        %7870 = vmatmul.mubr.f32.gmra.mrb[0].mxu0 %v7789
        %v7871 = vpop.f32.mrb[0].mxu0
        %v7872 = vadd.f32 0.0, %v7871
        %v7873 = vpop.f32.mrb[0].mxu0
        %7874 = vdwg.mxu0
        %7875 = vmatprep.subr.mxu0 0.0
        %7876 = vmatpush1.msra.mxu0 %v6521
        %7877 = vmatprep.subr.mxu0 0.0
        %7878 = vmatpush1.msra.mxu0 %v6522
        %7879 = vmatprep.subr.mxu0 0.0
        %7880 = vmatpush1.msra.mxu0 %v6523
        %7881 = vmatprep.subr.mxu0 0.0
        %7882 = vmatpush1.msra.mxu0 %v6524
        %7883 = vmatprep.subr.mxu0 0.0
        %7884 = vmatpush1.msra.mxu0 0.0
        %7885 = vmatprep.subr.mxu0 0.0
        %7886 = vmatpush1.msra.mxu0 0.0
        %7887 = vmatprep.subr.mxu0 0.0
        %7888 = vmatpush1.msra.mxu0 0.0
        %7889 = vmatprep.subr.mxu0 0.0
        %7890 = vmatpush1.msra.mxu0 0.0
        %7891 = vmatprep.subr.mxu0 0.0
        %7892 = vmatpush1.msra.mxu0 0.0
        %7893 = vmatprep.subr.mxu0 0.0
        %7894 = vmatpush1.msra.mxu0 0.0
        %7895 = vmatprep.subr.mxu0 0.0
        %7896 = vmatpush1.msra.mxu0 0.0
        %7897 = vmatprep.subr.mxu0 0.0
        %7898 = vmatpush1.msra.mxu0 0.0
        %7899 = vmatprep.subr.mxu0 0.0
        %7900 = vmatpush1.msra.mxu0 0.0
        %7901 = vmatprep.subr.mxu0 0.0
        %7902 = vmatpush1.msra.mxu0 0.0
        %7903 = vmatprep.subr.mxu0 0.0
        %7904 = vmatpush1.msra.mxu0 0.0
        %7905 = vmatprep.subr.mxu0 0.0
        %7906 = vmatpush1.msra.mxu0 0.0
        %7907 = vmatprep.subr.mxu0 0.0
        %7908 = vmatpush1.msra.mxu0 0.0
        %7909 = vmatprep.subr.mxu0 0.0
        %7910 = vmatpush1.msra.mxu0 0.0
        %7911 = vmatprep.subr.mxu0 0.0
        %7912 = vmatpush1.msra.mxu0 0.0
        %7913 = vmatprep.subr.mxu0 0.0
        %7914 = vmatpush1.msra.mxu0 0.0
        %7915 = vmatprep.subr.mxu0 0.0
        %7916 = vmatpush1.msra.mxu0 0.0
        %7917 = vmatprep.subr.mxu0 0.0
        %7918 = vmatpush1.msra.mxu0 0.0
        %7919 = vmatprep.subr.mxu0 0.0
        %7920 = vmatpush1.msra.mxu0 0.0
        %7921 = vmatprep.subr.mxu0 0.0
        %7922 = vmatpush1.msra.mxu0 0.0
        %7923 = vmatprep.subr.mxu0 0.0
        %7924 = vmatpush1.msra.mxu0 0.0
        %7925 = vmatprep.subr.mxu0 0.0
        %7926 = vmatpush1.msra.mxu0 0.0
        %7927 = vmatprep.subr.mxu0 0.0
        %7928 = vmatpush1.msra.mxu0 0.0
        %7929 = vmatprep.subr.mxu0 0.0
        %7930 = vmatpush1.msra.mxu0 0.0
        %7931 = vmatprep.subr.mxu0 0.0
        %7932 = vmatpush1.msra.mxu0 0.0
        %7933 = vmatprep.subr.mxu0 0.0
        %7934 = vmatpush1.msra.mxu0 0.0
        %7935 = vmatprep.subr.mxu0 0.0
        %7936 = vmatpush1.msra.mxu0 0.0
        %7937 = vmatprep.subr.mxu0 0.0
        %7938 = vmatpush1.msra.mxu0 0.0
        %7939 = vmatprep.mubr.f32.mxu0 0.0
        %7940 = vmatmul.mubr.f32.gmra.mrb[0].mxu0 %v7796
        %v7941 = vpop.f32.mrb[0].mxu0
        %v7942 = vadd.f32 %v7867, %v7941
        %v7943 = vpop.f32.mrb[0].mxu0
        %7944 = vmatprep.mubr.f32.mxu0 0.0
        %7945 = vmatmul.mubr.f32.gmra.mrb[0].mxu0 %v7798
        %v7946 = vpop.f32.mrb[0].mxu0
        %v7947 = vadd.f32 %v7872, %v7946
        %v7948 = vpop.f32.mrb[0].mxu0
        %7949 = vdwg.mxu0
        %7950 = vrot.lane.b32.xlu0 %v6840, 96
        %v7951 = vpop.permute.xlu0 %7950
        %7952 = vrot.lane.b32.xlu0 %v6832, 96
        %v7953 = vpop.permute.xlu0 %7952
        %7958 = vrot.lane.b32.xlu0 %v7724, 32
        %v7959 = vpop.permute.xlu0 %7958
        %7960 = vrot.lane.b32.xlu0 %v7726, 32
        %v7961 = vpop.permute.xlu0 %7960
        %7964 = vrot.lane.b32.xlu0 %v7735, 64
        %v7965 = vpop.permute.xlu0 %7964
        %7966 = vrot.lane.b32.xlu0 %v7737, 64
        %v7967 = vpop.permute.xlu0 %7966
        %7970 = vrot.lane.b32.xlu0 %v7746, 96
        %v7971 = vpop.permute.xlu0 %7970
        %7972 = vrot.lane.b32.xlu0 %v7748, 96
        %v7973 = vpop.permute.xlu0 %7972
        %7978 = vrot.lane.b32.xlu0 %v7764, 32
        %v7979 = vpop.permute.xlu0 %7978
        %7980 = vrot.lane.b32.xlu0 %v7766, 32
        %v7981 = vpop.permute.xlu0 %7980
        %7984 = vrot.lane.b32.xlu0 %v7775, 64
        %v7985 = vpop.permute.xlu0 %7984
        %7986 = vrot.lane.b32.xlu0 %v7777, 64
        %v7987 = vpop.permute.xlu0 %7986
        %7990 = vrot.lane.b32.xlu0 %v6842, 96
        %v7991 = vpop.permute.xlu0 %7990
        %v7992 = vsel %vm674, %v7951, %v7713
        %v7993 = vsel %vm674, %v7953, %v7715
        %v7994 = vsel %vm957, %v7992, %v7959
        %v7995 = vsel %vm957, %v7993, %v7961
        %v7996 = vsel %vm6922, %v7994, %v7965
        %v7997 = vsel %vm6922, %v7995, %v7967
        %v7998 = vsel %vm674, %v7971, %v7753
        %v7999 = vsel %vm674, %v7973, %v7755
        %v8000 = vsel %vm957, %v7998, %v7979
        %v8001 = vsel %vm957, %v7999, %v7981
        %v8002 = vsel %vm6922, %v8000, %v7985
        %v8003 = vsel %vm6922, %v8001, %v7987
        %v8004 = vsel %vm674, %v7953, 0
        %v8006 = vsel %vm674, %v7991, 0
        %8008 = vmatprep.subr.mxu0 0.0
        %8009 = vmatpush1.msra.mxu0 %v6489
        %8010 = vmatprep.subr.mxu0 0.0
        %8011 = vmatpush1.msra.mxu0 %v6490
        %8012 = vmatprep.subr.mxu0 0.0
        %8013 = vmatpush1.msra.mxu0 %v6491
        %8014 = vmatprep.subr.mxu0 0.0
        %8015 = vmatpush1.msra.mxu0 %v6492
        %8016 = vmatprep.subr.mxu0 0.0
        %8017 = vmatpush1.msra.mxu0 %v6493
        %8018 = vmatprep.subr.mxu0 0.0
        %8019 = vmatpush1.msra.mxu0 %v6494
        %8020 = vmatprep.subr.mxu0 0.0
        %8021 = vmatpush1.msra.mxu0 %v6495
        %8022 = vmatprep.subr.mxu0 0.0
        %8023 = vmatpush1.msra.mxu0 %v6496
        %8024 = vmatprep.subr.mxu0 0.0
        %8025 = vmatpush1.msra.mxu0 %v6497
        %8026 = vmatprep.subr.mxu0 0.0
        %8027 = vmatpush1.msra.mxu0 %v6498
        %8028 = vmatprep.subr.mxu0 0.0
        %8029 = vmatpush1.msra.mxu0 %v6499
        %8030 = vmatprep.subr.mxu0 0.0
        %8031 = vmatpush1.msra.mxu0 %v6500
        %8032 = vmatprep.subr.mxu0 0.0
        %8033 = vmatpush1.msra.mxu0 %v6501
        %8034 = vmatprep.subr.mxu0 0.0
        %8035 = vmatpush1.msra.mxu0 %v6502
        %8036 = vmatprep.subr.mxu0 0.0
        %8037 = vmatpush1.msra.mxu0 %v6503
        %8038 = vmatprep.subr.mxu0 0.0
        %8039 = vmatpush1.msra.mxu0 %v6504
        %8040 = vmatprep.subr.mxu0 0.0
        %8041 = vmatpush1.msra.mxu0 %v6505
        %8042 = vmatprep.subr.mxu0 0.0
        %8043 = vmatpush1.msra.mxu0 %v6506
        %8044 = vmatprep.subr.mxu0 0.0
        %8045 = vmatpush1.msra.mxu0 %v6507
        %8046 = vmatprep.subr.mxu0 0.0
        %8047 = vmatpush1.msra.mxu0 %v6508
        %8048 = vmatprep.subr.mxu0 0.0
        %8049 = vmatpush1.msra.mxu0 %v6509
        %8050 = vmatprep.subr.mxu0 0.0
        %8051 = vmatpush1.msra.mxu0 %v6510
        %8052 = vmatprep.subr.mxu0 0.0
        %8053 = vmatpush1.msra.mxu0 %v6511
        %8054 = vmatprep.subr.mxu0 0.0
        %8055 = vmatpush1.msra.mxu0 %v6512
        %8056 = vmatprep.subr.mxu0 0.0
        %8057 = vmatpush1.msra.mxu0 %v6513
        %8058 = vmatprep.subr.mxu0 0.0
        %8059 = vmatpush1.msra.mxu0 %v6514
        %8060 = vmatprep.subr.mxu0 0.0
        %8061 = vmatpush1.msra.mxu0 %v6515
        %8062 = vmatprep.subr.mxu0 0.0
        %8063 = vmatpush1.msra.mxu0 %v6516
        %8064 = vmatprep.subr.mxu0 0.0
        %8065 = vmatpush1.msra.mxu0 %v6517
        %8066 = vmatprep.subr.mxu0 0.0
        %8067 = vmatpush1.msra.mxu0 %v6518
        %8068 = vmatprep.subr.mxu0 0.0
        %8069 = vmatpush1.msra.mxu0 %v6519
        %8070 = vmatprep.subr.mxu0 0.0
        %8071 = vmatpush1.msra.mxu0 %v6520
        %8072 = vmatprep.mubr.f32.mxu0 %v8002
        %8073 = vmatmul.mubr.f32.gmra.mrb[0].mxu0 %v7996
        %v8074 = vpop.f32.mrb[0].mxu0
        %v8075 = vadd.f32 0.0, %v8074
        %v8076 = vpop.f32.mrb[0].mxu0
        %8077 = vmatprep.mubr.f32.mxu0 %v8003
        %8078 = vmatmul.mubr.f32.gmra.mrb[0].mxu0 %v7997
        %v8079 = vpop.f32.mrb[0].mxu0
        %v8080 = vadd.f32 0.0, %v8079
        %v8081 = vpop.f32.mrb[0].mxu0
        %8082 = vdwg.mxu0
        %8083 = vmatprep.subr.mxu0 0.0
        %8084 = vmatpush1.msra.mxu0 %v6521
        %8085 = vmatprep.subr.mxu0 0.0
        %8086 = vmatpush1.msra.mxu0 %v6522
        %8087 = vmatprep.subr.mxu0 0.0
        %8088 = vmatpush1.msra.mxu0 %v6523
        %8089 = vmatprep.subr.mxu0 0.0
        %8090 = vmatpush1.msra.mxu0 %v6524
        %8091 = vmatprep.subr.mxu0 0.0
        %8092 = vmatpush1.msra.mxu0 0.0
        %8093 = vmatprep.subr.mxu0 0.0
        %8094 = vmatpush1.msra.mxu0 0.0
        %8095 = vmatprep.subr.mxu0 0.0
        %8096 = vmatpush1.msra.mxu0 0.0
        %8097 = vmatprep.subr.mxu0 0.0
        %8098 = vmatpush1.msra.mxu0 0.0
        %8099 = vmatprep.subr.mxu0 0.0
        %8100 = vmatpush1.msra.mxu0 0.0
        %8101 = vmatprep.subr.mxu0 0.0
        %8102 = vmatpush1.msra.mxu0 0.0
        %8103 = vmatprep.subr.mxu0 0.0
        %8104 = vmatpush1.msra.mxu0 0.0
        %8105 = vmatprep.subr.mxu0 0.0
        %8106 = vmatpush1.msra.mxu0 0.0
        %8107 = vmatprep.subr.mxu0 0.0
        %8108 = vmatpush1.msra.mxu0 0.0
        %8109 = vmatprep.subr.mxu0 0.0
        %8110 = vmatpush1.msra.mxu0 0.0
        %8111 = vmatprep.subr.mxu0 0.0
        %8112 = vmatpush1.msra.mxu0 0.0
        %8113 = vmatprep.subr.mxu0 0.0
        %8114 = vmatpush1.msra.mxu0 0.0
        %8115 = vmatprep.subr.mxu0 0.0
        %8116 = vmatpush1.msra.mxu0 0.0
        %8117 = vmatprep.subr.mxu0 0.0
        %8118 = vmatpush1.msra.mxu0 0.0
        %8119 = vmatprep.subr.mxu0 0.0
        %8120 = vmatpush1.msra.mxu0 0.0
        %8121 = vmatprep.subr.mxu0 0.0
        %8122 = vmatpush1.msra.mxu0 0.0
        %8123 = vmatprep.subr.mxu0 0.0
        %8124 = vmatpush1.msra.mxu0 0.0
        %8125 = vmatprep.subr.mxu0 0.0
        %8126 = vmatpush1.msra.mxu0 0.0
        %8127 = vmatprep.subr.mxu0 0.0
        %8128 = vmatpush1.msra.mxu0 0.0
        %8129 = vmatprep.subr.mxu0 0.0
        %8130 = vmatpush1.msra.mxu0 0.0
        %8131 = vmatprep.subr.mxu0 0.0
        %8132 = vmatpush1.msra.mxu0 0.0
        %8133 = vmatprep.subr.mxu0 0.0
        %8134 = vmatpush1.msra.mxu0 0.0
        %8135 = vmatprep.subr.mxu0 0.0
        %8136 = vmatpush1.msra.mxu0 0.0
        %8137 = vmatprep.subr.mxu0 0.0
        %8138 = vmatpush1.msra.mxu0 0.0
        %8139 = vmatprep.subr.mxu0 0.0
        %8140 = vmatpush1.msra.mxu0 0.0
        %8141 = vmatprep.subr.mxu0 0.0
        %8142 = vmatpush1.msra.mxu0 0.0
        %8143 = vmatprep.subr.mxu0 0.0
        %8144 = vmatpush1.msra.mxu0 0.0
        %8145 = vmatprep.subr.mxu0 0.0
        %8146 = vmatpush1.msra.mxu0 0.0
        %8147 = vmatprep.mubr.f32.mxu0 0.0
        %8148 = vmatmul.mubr.f32.gmra.mrb[0].mxu0 %v8004
        %v8149 = vpop.f32.mrb[0].mxu0
        %v8150 = vadd.f32 %v8075, %v8149
        %v8151 = vpop.f32.mrb[0].mxu0
        %8152 = vmatprep.mubr.f32.mxu0 0.0
        %8153 = vmatmul.mubr.f32.gmra.mrb[0].mxu0 %v8006
        %v8154 = vpop.f32.mrb[0].mxu0
        %v8155 = vadd.f32 %v8080, %v8154
        %v8156 = vpop.f32.mrb[0].mxu0
        %8157 = vdwg.mxu0
        %8158 = vrot.lane.b32.xlu0 %v6840, 64
        %v8159 = vpop.permute.xlu0 %8158
        %8160 = vrot.lane.b32.xlu0 %v6832, 64
        %v8161 = vpop.permute.xlu0 %8160
        %8164 = vrot.lane.b32.xlu0 %v7713, 96
        %v8165 = vpop.permute.xlu0 %8164
        %8166 = vrot.lane.b32.xlu0 %v7715, 96
        %v8167 = vpop.permute.xlu0 %8166
        %8172 = vrot.lane.b32.xlu0 %v7735, 32
        %v8173 = vpop.permute.xlu0 %8172
        %8174 = vrot.lane.b32.xlu0 %v7737, 32
        %v8175 = vpop.permute.xlu0 %8174
        %8178 = vrot.lane.b32.xlu0 %v7746, 64
        %v8179 = vpop.permute.xlu0 %8178
        %8180 = vrot.lane.b32.xlu0 %v7748, 64
        %v8181 = vpop.permute.xlu0 %8180
        %8184 = vrot.lane.b32.xlu0 %v7753, 96
        %v8185 = vpop.permute.xlu0 %8184
        %8186 = vrot.lane.b32.xlu0 %v7755, 96
        %v8187 = vpop.permute.xlu0 %8186
        %8192 = vrot.lane.b32.xlu0 %v7775, 32
        %v8193 = vpop.permute.xlu0 %8192
        %8194 = vrot.lane.b32.xlu0 %v7777, 32
        %v8195 = vpop.permute.xlu0 %8194
        %8198 = vrot.lane.b32.xlu0 %v6842, 64
        %v8199 = vpop.permute.xlu0 %8198
        %v8200 = vsel %vm674, %v8159, %v8165
        %v8201 = vsel %vm674, %v8161, %v8167
        %v8202 = vsel %vm957, %v8200, %v7724
        %v8203 = vsel %vm957, %v8201, %v7726
        %v8204 = vsel %vm6922, %v8202, %v8173
        %v8205 = vsel %vm6922, %v8203, %v8175
        %v8206 = vsel %vm674, %v8179, %v8185
        %v8207 = vsel %vm674, %v8181, %v8187
        %v8208 = vsel %vm957, %v8206, %v7764
        %v8209 = vsel %vm957, %v8207, %v7766
        %v8210 = vsel %vm6922, %v8208, %v8193
        %v8211 = vsel %vm6922, %v8209, %v8195
        %v8212 = vsel %vm674, %v8161, 0
        %v8214 = vsel %vm674, %v8199, 0
        %8216 = vmatprep.subr.mxu0 0.0
        %8217 = vmatpush1.msra.mxu0 %v6489
        %8218 = vmatprep.subr.mxu0 0.0
        %8219 = vmatpush1.msra.mxu0 %v6490
        %8220 = vmatprep.subr.mxu0 0.0
        %8221 = vmatpush1.msra.mxu0 %v6491
        %8222 = vmatprep.subr.mxu0 0.0
        %8223 = vmatpush1.msra.mxu0 %v6492
        %8224 = vmatprep.subr.mxu0 0.0
        %8225 = vmatpush1.msra.mxu0 %v6493
        %8226 = vmatprep.subr.mxu0 0.0
        %8227 = vmatpush1.msra.mxu0 %v6494
        %8228 = vmatprep.subr.mxu0 0.0
        %8229 = vmatpush1.msra.mxu0 %v6495
        %8230 = vmatprep.subr.mxu0 0.0
        %8231 = vmatpush1.msra.mxu0 %v6496
        %8232 = vmatprep.subr.mxu0 0.0
        %8233 = vmatpush1.msra.mxu0 %v6497
        %8234 = vmatprep.subr.mxu0 0.0
        %8235 = vmatpush1.msra.mxu0 %v6498
        %8236 = vmatprep.subr.mxu0 0.0
        %8237 = vmatpush1.msra.mxu0 %v6499
        %8238 = vmatprep.subr.mxu0 0.0
        %8239 = vmatpush1.msra.mxu0 %v6500
        %8240 = vmatprep.subr.mxu0 0.0
        %8241 = vmatpush1.msra.mxu0 %v6501
        %8242 = vmatprep.subr.mxu0 0.0
        %8243 = vmatpush1.msra.mxu0 %v6502
        %8244 = vmatprep.subr.mxu0 0.0
        %8245 = vmatpush1.msra.mxu0 %v6503
        %8246 = vmatprep.subr.mxu0 0.0
        %8247 = vmatpush1.msra.mxu0 %v6504
        %8248 = vmatprep.subr.mxu0 0.0
        %8249 = vmatpush1.msra.mxu0 %v6505
        %8250 = vmatprep.subr.mxu0 0.0
        %8251 = vmatpush1.msra.mxu0 %v6506
        %8252 = vmatprep.subr.mxu0 0.0
        %8253 = vmatpush1.msra.mxu0 %v6507
        %8254 = vmatprep.subr.mxu0 0.0
        %8255 = vmatpush1.msra.mxu0 %v6508
        %8256 = vmatprep.subr.mxu0 0.0
        %8257 = vmatpush1.msra.mxu0 %v6509
        %8258 = vmatprep.subr.mxu0 0.0
        %8259 = vmatpush1.msra.mxu0 %v6510
        %8260 = vmatprep.subr.mxu0 0.0
        %8261 = vmatpush1.msra.mxu0 %v6511
        %8262 = vmatprep.subr.mxu0 0.0
        %8263 = vmatpush1.msra.mxu0 %v6512
        %8264 = vmatprep.subr.mxu0 0.0
        %8265 = vmatpush1.msra.mxu0 %v6513
        %8266 = vmatprep.subr.mxu0 0.0
        %8267 = vmatpush1.msra.mxu0 %v6514
        %8268 = vmatprep.subr.mxu0 0.0
        %8269 = vmatpush1.msra.mxu0 %v6515
        %8270 = vmatprep.subr.mxu0 0.0
        %8271 = vmatpush1.msra.mxu0 %v6516
        %8272 = vmatprep.subr.mxu0 0.0
        %8273 = vmatpush1.msra.mxu0 %v6517
        %8274 = vmatprep.subr.mxu0 0.0
        %8275 = vmatpush1.msra.mxu0 %v6518
        %8276 = vmatprep.subr.mxu0 0.0
        %8277 = vmatpush1.msra.mxu0 %v6519
        %8278 = vmatprep.subr.mxu0 0.0
        %8279 = vmatpush1.msra.mxu0 %v6520
        %8280 = vmatprep.mubr.f32.mxu0 %v8210
        %8281 = vmatmul.mubr.f32.gmra.mrb[0].mxu0 %v8204
        %v8282 = vpop.f32.mrb[0].mxu0
        %v8283 = vadd.f32 0.0, %v8282
        %v8284 = vpop.f32.mrb[0].mxu0
        %8285 = vmatprep.mubr.f32.mxu0 %v8211
        %8286 = vmatmul.mubr.f32.gmra.mrb[0].mxu0 %v8205
        %v8287 = vpop.f32.mrb[0].mxu0
        %v8288 = vadd.f32 0.0, %v8287
        %v8289 = vpop.f32.mrb[0].mxu0
        %8290 = vdwg.mxu0
        %8291 = vmatprep.subr.mxu0 0.0
        %8292 = vmatpush1.msra.mxu0 %v6521
        %8293 = vmatprep.subr.mxu0 0.0
        %8294 = vmatpush1.msra.mxu0 %v6522
        %8295 = vmatprep.subr.mxu0 0.0
        %8296 = vmatpush1.msra.mxu0 %v6523
        %8297 = vmatprep.subr.mxu0 0.0
        %8298 = vmatpush1.msra.mxu0 %v6524
        %8299 = vmatprep.subr.mxu0 0.0
        %8300 = vmatpush1.msra.mxu0 0.0
        %8301 = vmatprep.subr.mxu0 0.0
        %8302 = vmatpush1.msra.mxu0 0.0
        %8303 = vmatprep.subr.mxu0 0.0
        %8304 = vmatpush1.msra.mxu0 0.0
        %8305 = vmatprep.subr.mxu0 0.0
        %8306 = vmatpush1.msra.mxu0 0.0
        %8307 = vmatprep.subr.mxu0 0.0
        %8308 = vmatpush1.msra.mxu0 0.0
        %8309 = vmatprep.subr.mxu0 0.0
        %8310 = vmatpush1.msra.mxu0 0.0
        %8311 = vmatprep.subr.mxu0 0.0
        %8312 = vmatpush1.msra.mxu0 0.0
        %8313 = vmatprep.subr.mxu0 0.0
        %8314 = vmatpush1.msra.mxu0 0.0
        %8315 = vmatprep.subr.mxu0 0.0
        %8316 = vmatpush1.msra.mxu0 0.0
        %8317 = vmatprep.subr.mxu0 0.0
        %8318 = vmatpush1.msra.mxu0 0.0
        %8319 = vmatprep.subr.mxu0 0.0
        %8320 = vmatpush1.msra.mxu0 0.0
        %8321 = vmatprep.subr.mxu0 0.0
        %8322 = vmatpush1.msra.mxu0 0.0
        %8323 = vmatprep.subr.mxu0 0.0
        %8324 = vmatpush1.msra.mxu0 0.0
        %8325 = vmatprep.subr.mxu0 0.0
        %8326 = vmatpush1.msra.mxu0 0.0
        %8327 = vmatprep.subr.mxu0 0.0
        %8328 = vmatpush1.msra.mxu0 0.0
        %8329 = vmatprep.subr.mxu0 0.0
        %8330 = vmatpush1.msra.mxu0 0.0
        %8331 = vmatprep.subr.mxu0 0.0
        %8332 = vmatpush1.msra.mxu0 0.0
        %8333 = vmatprep.subr.mxu0 0.0
        %8334 = vmatpush1.msra.mxu0 0.0
        %8335 = vmatprep.subr.mxu0 0.0
        %8336 = vmatpush1.msra.mxu0 0.0
        %8337 = vmatprep.subr.mxu0 0.0
        %8338 = vmatpush1.msra.mxu0 0.0
        %8339 = vmatprep.subr.mxu0 0.0
        %8340 = vmatpush1.msra.mxu0 0.0
        %8341 = vmatprep.subr.mxu0 0.0
        %8342 = vmatpush1.msra.mxu0 0.0
        %8343 = vmatprep.subr.mxu0 0.0
        %8344 = vmatpush1.msra.mxu0 0.0
        %8345 = vmatprep.subr.mxu0 0.0
        %8346 = vmatpush1.msra.mxu0 0.0
        %8347 = vmatprep.subr.mxu0 0.0
        %8348 = vmatpush1.msra.mxu0 0.0
        %8349 = vmatprep.subr.mxu0 0.0
        %8350 = vmatpush1.msra.mxu0 0.0
        %8351 = vmatprep.subr.mxu0 0.0
        %8352 = vmatpush1.msra.mxu0 0.0
        %8353 = vmatprep.subr.mxu0 0.0
        %8354 = vmatpush1.msra.mxu0 0.0
        %8355 = vmatprep.mubr.f32.mxu0 0.0
        %8356 = vmatmul.mubr.f32.gmra.mrb[0].mxu0 %v8212
        %v8357 = vpop.f32.mrb[0].mxu0
        %v8358 = vadd.f32 %v8283, %v8357
        %v8359 = vpop.f32.mrb[0].mxu0
        %8360 = vmatprep.mubr.f32.mxu0 0.0
        %8361 = vmatmul.mubr.f32.gmra.mrb[0].mxu0 %v8214
        %v8362 = vpop.f32.mrb[0].mxu0
        %v8363 = vadd.f32 %v8288, %v8362
        %v8364 = vpop.f32.mrb[0].mxu0
        %8365 = vdwg.mxu0
        %8366 = vrot.lane.b32.xlu0 %v6840, 32
        %v8367 = vpop.permute.xlu0 %8366
        %8368 = vrot.lane.b32.xlu0 %v6832, 32
        %v8369 = vpop.permute.xlu0 %8368
        %8372 = vrot.lane.b32.xlu0 %v7713, 64
        %v8373 = vpop.permute.xlu0 %8372
        %8374 = vrot.lane.b32.xlu0 %v7715, 64
        %v8375 = vpop.permute.xlu0 %8374
        %8378 = vrot.lane.b32.xlu0 %v7724, 96
        %v8379 = vpop.permute.xlu0 %8378
        %8380 = vrot.lane.b32.xlu0 %v7726, 96
        %v8381 = vpop.permute.xlu0 %8380
        %8386 = vrot.lane.b32.xlu0 %v7746, 32
        %v8387 = vpop.permute.xlu0 %8386
        %8388 = vrot.lane.b32.xlu0 %v7748, 32
        %v8389 = vpop.permute.xlu0 %8388
        %8392 = vrot.lane.b32.xlu0 %v7753, 64
        %v8393 = vpop.permute.xlu0 %8392
        %8394 = vrot.lane.b32.xlu0 %v7755, 64
        %v8395 = vpop.permute.xlu0 %8394
        %8398 = vrot.lane.b32.xlu0 %v7764, 96
        %v8399 = vpop.permute.xlu0 %8398
        %8400 = vrot.lane.b32.xlu0 %v7766, 96
        %v8401 = vpop.permute.xlu0 %8400
        %8406 = vrot.lane.b32.xlu0 %v6842, 32
        %v8407 = vpop.permute.xlu0 %8406
        %v8408 = vsel %vm674, %v8367, %v8373
        %v8409 = vsel %vm674, %v8369, %v8375
        %v8410 = vsel %vm957, %v8408, %v8379
        %v8411 = vsel %vm957, %v8409, %v8381
        %v8412 = vsel %vm6922, %v8410, %v7735
        %v8413 = vsel %vm6922, %v8411, %v7737
        %v8414 = vsel %vm674, %v8387, %v8393
        %v8415 = vsel %vm674, %v8389, %v8395
        %v8416 = vsel %vm957, %v8414, %v8399
        %v8417 = vsel %vm957, %v8415, %v8401
        %v8418 = vsel %vm6922, %v8416, %v7775
        %v8419 = vsel %vm6922, %v8417, %v7777
        %v8420 = vsel %vm674, %v8369, 0
        %v8422 = vsel %vm674, %v8407, 0
        %8424 = vmatprep.subr.mxu0 0.0
        %8425 = vmatpush1.msra.mxu0 %v6489
        %8426 = vmatprep.subr.mxu0 0.0
        %8427 = vmatpush1.msra.mxu0 %v6490
        %8428 = vmatprep.subr.mxu0 0.0
        %8429 = vmatpush1.msra.mxu0 %v6491
        %8430 = vmatprep.subr.mxu0 0.0
        %8431 = vmatpush1.msra.mxu0 %v6492
        %8432 = vmatprep.subr.mxu0 0.0
        %8433 = vmatpush1.msra.mxu0 %v6493
        %8434 = vmatprep.subr.mxu0 0.0
        %8435 = vmatpush1.msra.mxu0 %v6494
        %8436 = vmatprep.subr.mxu0 0.0
        %8437 = vmatpush1.msra.mxu0 %v6495
        %8438 = vmatprep.subr.mxu0 0.0
        %8439 = vmatpush1.msra.mxu0 %v6496
        %8440 = vmatprep.subr.mxu0 0.0
        %8441 = vmatpush1.msra.mxu0 %v6497
        %8442 = vmatprep.subr.mxu0 0.0
        %8443 = vmatpush1.msra.mxu0 %v6498
        %8444 = vmatprep.subr.mxu0 0.0
        %8445 = vmatpush1.msra.mxu0 %v6499
        %8446 = vmatprep.subr.mxu0 0.0
        %8447 = vmatpush1.msra.mxu0 %v6500
        %8448 = vmatprep.subr.mxu0 0.0
        %8449 = vmatpush1.msra.mxu0 %v6501
        %8450 = vmatprep.subr.mxu0 0.0
        %8451 = vmatpush1.msra.mxu0 %v6502
        %8452 = vmatprep.subr.mxu0 0.0
        %8453 = vmatpush1.msra.mxu0 %v6503
        %8454 = vmatprep.subr.mxu0 0.0
        %8455 = vmatpush1.msra.mxu0 %v6504
        %8456 = vmatprep.subr.mxu0 0.0
        %8457 = vmatpush1.msra.mxu0 %v6505
        %8458 = vmatprep.subr.mxu0 0.0
        %8459 = vmatpush1.msra.mxu0 %v6506
        %8460 = vmatprep.subr.mxu0 0.0
        %8461 = vmatpush1.msra.mxu0 %v6507
        %8462 = vmatprep.subr.mxu0 0.0
        %8463 = vmatpush1.msra.mxu0 %v6508
        %8464 = vmatprep.subr.mxu0 0.0
        %8465 = vmatpush1.msra.mxu0 %v6509
        %8466 = vmatprep.subr.mxu0 0.0
        %8467 = vmatpush1.msra.mxu0 %v6510
        %8468 = vmatprep.subr.mxu0 0.0
        %8469 = vmatpush1.msra.mxu0 %v6511
        %8470 = vmatprep.subr.mxu0 0.0
        %8471 = vmatpush1.msra.mxu0 %v6512
        %8472 = vmatprep.subr.mxu0 0.0
        %8473 = vmatpush1.msra.mxu0 %v6513
        %8474 = vmatprep.subr.mxu0 0.0
        %8475 = vmatpush1.msra.mxu0 %v6514
        %8476 = vmatprep.subr.mxu0 0.0
        %8477 = vmatpush1.msra.mxu0 %v6515
        %8478 = vmatprep.subr.mxu0 0.0
        %8479 = vmatpush1.msra.mxu0 %v6516
        %8480 = vmatprep.subr.mxu0 0.0
        %8481 = vmatpush1.msra.mxu0 %v6517
        %8482 = vmatprep.subr.mxu0 0.0
        %8483 = vmatpush1.msra.mxu0 %v6518
        %8484 = vmatprep.subr.mxu0 0.0
        %8485 = vmatpush1.msra.mxu0 %v6519
        %8486 = vmatprep.subr.mxu0 0.0
        %8487 = vmatpush1.msra.mxu0 %v6520
        %8488 = vmatprep.mubr.f32.mxu0 %v8418
        %8489 = vmatmul.mubr.f32.gmra.mrb[0].mxu0 %v8412
        %v8490 = vpop.f32.mrb[0].mxu0
        %v8491 = vadd.f32 0.0, %v8490
        %v8492 = vpop.f32.mrb[0].mxu0
        %8493 = vmatprep.mubr.f32.mxu0 %v8419
        %8494 = vmatmul.mubr.f32.gmra.mrb[0].mxu0 %v8413
        %v8495 = vpop.f32.mrb[0].mxu0
        %v8496 = vadd.f32 0.0, %v8495
        %v8497 = vpop.f32.mrb[0].mxu0
        %8498 = vdwg.mxu0
        %8499 = vmatprep.subr.mxu0 0.0
        %8500 = vmatpush1.msra.mxu0 %v6521
        %8501 = vmatprep.subr.mxu0 0.0
        %8502 = vmatpush1.msra.mxu0 %v6522
        %8503 = vmatprep.subr.mxu0 0.0
        %8504 = vmatpush1.msra.mxu0 %v6523
        %8505 = vmatprep.subr.mxu0 0.0
        %8506 = vmatpush1.msra.mxu0 %v6524
        %8507 = vmatprep.subr.mxu0 0.0
        %8508 = vmatpush1.msra.mxu0 0.0
        %8509 = vmatprep.subr.mxu0 0.0
        %8510 = vmatpush1.msra.mxu0 0.0
        %8511 = vmatprep.subr.mxu0 0.0
        %8512 = vmatpush1.msra.mxu0 0.0
        %8513 = vmatprep.subr.mxu0 0.0
        %8514 = vmatpush1.msra.mxu0 0.0
        %8515 = vmatprep.subr.mxu0 0.0
        %8516 = vmatpush1.msra.mxu0 0.0
        %8517 = vmatprep.subr.mxu0 0.0
        %8518 = vmatpush1.msra.mxu0 0.0
        %8519 = vmatprep.subr.mxu0 0.0
        %8520 = vmatpush1.msra.mxu0 0.0
        %8521 = vmatprep.subr.mxu0 0.0
        %8522 = vmatpush1.msra.mxu0 0.0
        %8523 = vmatprep.subr.mxu0 0.0
        %8524 = vmatpush1.msra.mxu0 0.0
        %8525 = vmatprep.subr.mxu0 0.0
        %8526 = vmatpush1.msra.mxu0 0.0
        %8527 = vmatprep.subr.mxu0 0.0
        %8528 = vmatpush1.msra.mxu0 0.0
        %8529 = vmatprep.subr.mxu0 0.0
        %8530 = vmatpush1.msra.mxu0 0.0
        %8531 = vmatprep.subr.mxu0 0.0
        %8532 = vmatpush1.msra.mxu0 0.0
        %8533 = vmatprep.subr.mxu0 0.0
        %8534 = vmatpush1.msra.mxu0 0.0
        %8535 = vmatprep.subr.mxu0 0.0
        %8536 = vmatpush1.msra.mxu0 0.0
        %8537 = vmatprep.subr.mxu0 0.0
        %8538 = vmatpush1.msra.mxu0 0.0
        %8539 = vmatprep.subr.mxu0 0.0
        %8540 = vmatpush1.msra.mxu0 0.0
        %8541 = vmatprep.subr.mxu0 0.0
        %8542 = vmatpush1.msra.mxu0 0.0
        %8543 = vmatprep.subr.mxu0 0.0
        %8544 = vmatpush1.msra.mxu0 0.0
        %8545 = vmatprep.subr.mxu0 0.0
        %8546 = vmatpush1.msra.mxu0 0.0
        %8547 = vmatprep.subr.mxu0 0.0
        %8548 = vmatpush1.msra.mxu0 0.0
        %8549 = vmatprep.subr.mxu0 0.0
        %8550 = vmatpush1.msra.mxu0 0.0
        %8551 = vmatprep.subr.mxu0 0.0
        %8552 = vmatpush1.msra.mxu0 0.0
        %8553 = vmatprep.subr.mxu0 0.0
        %8554 = vmatpush1.msra.mxu0 0.0
        %8555 = vmatprep.subr.mxu0 0.0
        %8556 = vmatpush1.msra.mxu0 0.0
        %8557 = vmatprep.subr.mxu0 0.0
        %8558 = vmatpush1.msra.mxu0 0.0
        %8559 = vmatprep.subr.mxu0 0.0
        %8560 = vmatpush1.msra.mxu0 0.0
        %8561 = vmatprep.subr.mxu0 0.0
        %8562 = vmatpush1.msra.mxu0 0.0
        %8563 = vmatprep.mubr.f32.mxu0 0.0
        %8564 = vmatmul.mubr.f32.gmra.mrb[0].mxu0 %v8420
        %v8565 = vpop.f32.mrb[0].mxu0
        %v8566 = vadd.f32 %v8491, %v8565
        %v8567 = vpop.f32.mrb[0].mxu0
        %8568 = vmatprep.mubr.f32.mxu0 0.0
        %8569 = vmatmul.mubr.f32.gmra.mrb[0].mxu0 %v8422
        %v8570 = vpop.f32.mrb[0].mxu0
        %v8571 = vadd.f32 %v8496, %v8570
        %v8572 = vpop.f32.mrb[0].mxu0
        %8573 = vdwg.mxu0
        %8576 = vrot.lane.b32.xlu0 %v7285, 32
        %v8577 = vpop.permute.xlu0 %8576
        %8578 = vrot.lane.b32.xlu0 %v7290, 32
        %v8579 = vpop.permute.xlu0 %8578
        %8584 = vrot.lane.b32.xlu0 %v7493, 64
        %v8585 = vpop.permute.xlu0 %8584
        %8586 = vrot.lane.b32.xlu0 %v7498, 64
        %v8587 = vpop.permute.xlu0 %8586
        %8592 = vrot.lane.b32.xlu0 %v7701, 96
        %v8593 = vpop.permute.xlu0 %8592
        %8594 = vrot.lane.b32.xlu0 %v7706, 96
        %v8595 = vpop.permute.xlu0 %8594
        %8600 = vrot.lane.b32.xlu0 %v8150, 32
        %v8601 = vpop.permute.xlu0 %8600
        %8602 = vrot.lane.b32.xlu0 %v8155, 32
        %v8603 = vpop.permute.xlu0 %8602
        %8608 = vrot.lane.b32.xlu0 %v8358, 64
        %v8609 = vpop.permute.xlu0 %8608
        %8610 = vrot.lane.b32.xlu0 %v8363, 64
        %v8611 = vpop.permute.xlu0 %8610
        %8616 = vrot.lane.b32.xlu0 %v8566, 96
        %v8617 = vpop.permute.xlu0 %8616
        %8618 = vrot.lane.b32.xlu0 %v8571, 96
        %v8619 = vpop.permute.xlu0 %8618
        %v8622 = vsel %vm674, %v7077, %v8577
        %v8623 = vsel %vm674, %v7082, %v8579
        %v8624 = vsel %vm957, %v8622, %v8585
        %v8625 = vsel %vm957, %v8623, %v8587
        %v8626 = vsel %vm6922, %v8624, %v8593
        %v8627 = vsel %vm6922, %v8625, %v8595
        %v8628 = vsel %vm674, %v7942, %v8601
        %v8629 = vsel %vm674, %v7947, %v8603
        %v8630 = vsel %vm957, %v8628, %v8609
        %v8631 = vsel %vm957, %v8629, %v8611
        %v8632 = vsel %vm6922, %v8630, %v8617
        %v8633 = vsel %vm6922, %v8631, %v8619
        %8634 = vmatprep.subr.mxu0 %v6527
        %8635 = vmatpush1.msra.mxu0 %v6526
        %8636 = vmatprep.subr.mxu0 %v6529
        %8637 = vmatpush1.msra.mxu0 %v6528
        %8638 = vmatprep.subr.mxu0 %v6531
        %8639 = vmatpush1.msra.mxu0 %v6530
        %8640 = vmatprep.subr.mxu0 %v6533
        %8641 = vmatpush1.msra.mxu0 %v6532
        %8642 = vmatprep.subr.mxu0 %v6535
        %8643 = vmatpush1.msra.mxu0 %v6534
        %8644 = vmatprep.subr.mxu0 %v6537
        %8645 = vmatpush1.msra.mxu0 %v6536
        %8646 = vmatprep.subr.mxu0 %v6539
        %8647 = vmatpush1.msra.mxu0 %v6538
        %8648 = vmatprep.subr.mxu0 %v6541
        %8649 = vmatpush1.msra.mxu0 %v6540
        %8650 = vmatprep.subr.mxu0 %v6543
        %8651 = vmatpush1.msra.mxu0 %v6542
        %8652 = vmatprep.subr.mxu0 %v6545
        %8653 = vmatpush1.msra.mxu0 %v6544
        %8654 = vmatprep.subr.mxu0 %v6547
        %8655 = vmatpush1.msra.mxu0 %v6546
        %8656 = vmatprep.subr.mxu0 %v6549
        %8657 = vmatpush1.msra.mxu0 %v6548
        %8658 = vmatprep.subr.mxu0 %v6551
        %8659 = vmatpush1.msra.mxu0 %v6550
        %8660 = vmatprep.subr.mxu0 %v6553
        %8661 = vmatpush1.msra.mxu0 %v6552
        %8662 = vmatprep.subr.mxu0 %v6555
        %8663 = vmatpush1.msra.mxu0 %v6554
        %8664 = vmatprep.subr.mxu0 %v6557
        %8665 = vmatpush1.msra.mxu0 %v6556
        %8666 = vmatprep.subr.mxu0 %v6559
        %8667 = vmatpush1.msra.mxu0 %v6558
        %8668 = vmatprep.subr.mxu0 %v6561
        %8669 = vmatpush1.msra.mxu0 %v6560
        %8670 = vmatprep.subr.mxu0 %v6563
        %8671 = vmatpush1.msra.mxu0 %v6562
        %8672 = vmatprep.subr.mxu0 %v6565
        %8673 = vmatpush1.msra.mxu0 %v6564
        %8674 = vmatprep.subr.mxu0 %v6567
        %8675 = vmatpush1.msra.mxu0 %v6566
        %8676 = vmatprep.subr.mxu0 %v6569
        %8677 = vmatpush1.msra.mxu0 %v6568
        %8678 = vmatprep.subr.mxu0 %v6571
        %8679 = vmatpush1.msra.mxu0 %v6570
        %8680 = vmatprep.subr.mxu0 %v6573
        %8681 = vmatpush1.msra.mxu0 %v6572
        %8682 = vmatprep.subr.mxu0 %v6575
        %8683 = vmatpush1.msra.mxu0 %v6574
        %8684 = vmatprep.subr.mxu0 %v6577
        %8685 = vmatpush1.msra.mxu0 %v6576
        %8686 = vmatprep.subr.mxu0 %v6579
        %8687 = vmatpush1.msra.mxu0 %v6578
        %8688 = vmatprep.subr.mxu0 %v6581
        %8689 = vmatpush1.msra.mxu0 %v6580
        %8690 = vmatprep.subr.mxu0 %v6583
        %8691 = vmatpush1.msra.mxu0 %v6582
        %8692 = vmatprep.subr.mxu0 %v6585
        %8693 = vmatpush1.msra.mxu0 %v6584
        %8694 = vmatprep.subr.mxu0 %v6587
        %8695 = vmatpush1.msra.mxu0 %v6586
        %8696 = vmatprep.subr.mxu0 %v6589
        %8697 = vmatpush1.msra.mxu0 %v6588
        %8698 = vmatprep.mubr.f32.mxu0 %v6353
        %8699 = vmatmul.mubr.f32.gmra.mrb[0].mxu0 %v6352
        %v8700 = vpop.f32.mrb[0].mxu0
        %v8701 = vadd.f32 0.0, %v8700
        %v8702 = vpop.f32.mrb[0].mxu0
        %v8703 = vadd.f32 0.0, %v8702
        %8704 = vmatprep.mubr.f32.mxu0 %v6357
        %8705 = vmatmul.mubr.f32.gmra.mrb[0].mxu0 %v6356
        %v8706 = vpop.f32.mrb[0].mxu0
        %v8707 = vadd.f32 0.0, %v8706
        %v8708 = vpop.f32.mrb[0].mxu0
        %v8709 = vadd.f32 0.0, %v8708
        %8710 = vdwg.mxu0
        %8711 = vmatprep.subr.mxu0 %v6591
        %8712 = vmatpush1.msra.mxu0 %v6590
        %8713 = vmatprep.subr.mxu0 %v6593
        %8714 = vmatpush1.msra.mxu0 %v6592
        %8715 = vmatprep.subr.mxu0 %v6595
        %8716 = vmatpush1.msra.mxu0 %v6594
        %8717 = vmatprep.subr.mxu0 %v6597
        %8718 = vmatpush1.msra.mxu0 %v6596
        %8719 = vmatprep.subr.mxu0 %v6599
        %8720 = vmatpush1.msra.mxu0 %v6598
        %8721 = vmatprep.subr.mxu0 %v6601
        %8722 = vmatpush1.msra.mxu0 %v6600
        %8723 = vmatprep.subr.mxu0 %v6603
        %8724 = vmatpush1.msra.mxu0 %v6602
        %8725 = vmatprep.subr.mxu0 %v6605
        %8726 = vmatpush1.msra.mxu0 %v6604
        %8727 = vmatprep.subr.mxu0 %v6607
        %8728 = vmatpush1.msra.mxu0 %v6606
        %8729 = vmatprep.subr.mxu0 %v6609
        %8730 = vmatpush1.msra.mxu0 %v6608
        %8731 = vmatprep.subr.mxu0 %v6611
        %8732 = vmatpush1.msra.mxu0 %v6610
        %8733 = vmatprep.subr.mxu0 %v6613
        %8734 = vmatpush1.msra.mxu0 %v6612
        %8735 = vmatprep.subr.mxu0 %v6615
        %8736 = vmatpush1.msra.mxu0 %v6614
        %8737 = vmatprep.subr.mxu0 %v6617
        %8738 = vmatpush1.msra.mxu0 %v6616
        %8739 = vmatprep.subr.mxu0 %v6619
        %8740 = vmatpush1.msra.mxu0 %v6618
        %8741 = vmatprep.subr.mxu0 %v6621
        %8742 = vmatpush1.msra.mxu0 %v6620
        %8743 = vmatprep.subr.mxu0 %v6623
        %8744 = vmatpush1.msra.mxu0 %v6622
        %8745 = vmatprep.subr.mxu0 %v6625
        %8746 = vmatpush1.msra.mxu0 %v6624
        %8747 = vmatprep.subr.mxu0 %v6627
        %8748 = vmatpush1.msra.mxu0 %v6626
        %8749 = vmatprep.subr.mxu0 %v6629
        %8750 = vmatpush1.msra.mxu0 %v6628
        %8751 = vmatprep.subr.mxu0 %v6631
        %8752 = vmatpush1.msra.mxu0 %v6630
        %8753 = vmatprep.subr.mxu0 %v6633
        %8754 = vmatpush1.msra.mxu0 %v6632
        %8755 = vmatprep.subr.mxu0 %v6635
        %8756 = vmatpush1.msra.mxu0 %v6634
        %8757 = vmatprep.subr.mxu0 %v6637
        %8758 = vmatpush1.msra.mxu0 %v6636
        %8759 = vmatprep.subr.mxu0 %v6639
        %8760 = vmatpush1.msra.mxu0 %v6638
        %8761 = vmatprep.subr.mxu0 %v6641
        %8762 = vmatpush1.msra.mxu0 %v6640
        %8763 = vmatprep.subr.mxu0 %v6643
        %8764 = vmatpush1.msra.mxu0 %v6642
        %8765 = vmatprep.subr.mxu0 %v6645
        %8766 = vmatpush1.msra.mxu0 %v6644
        %8767 = vmatprep.subr.mxu0 %v6647
        %8768 = vmatpush1.msra.mxu0 %v6646
        %8769 = vmatprep.subr.mxu0 %v6649
        %8770 = vmatpush1.msra.mxu0 %v6648
        %8771 = vmatprep.subr.mxu0 %v6651
        %8772 = vmatpush1.msra.mxu0 %v6650
        %8773 = vmatprep.subr.mxu0 %v6653
        %8774 = vmatpush1.msra.mxu0 %v6652
        %8775 = vmatprep.mubr.f32.mxu0 %v6355
        %8776 = vmatmul.mubr.f32.gmra.mrb[0].mxu0 %v6354
        %v8777 = vpop.f32.mrb[0].mxu0
        %v8778 = vadd.f32 %v8701, %v8777
        %v8779 = vpop.f32.mrb[0].mxu0
        %v8780 = vadd.f32 %v8703, %v8779
        %8781 = vmatprep.mubr.f32.mxu0 %v6359
        %8782 = vmatmul.mubr.f32.gmra.mrb[0].mxu0 %v6358
        %v8783 = vpop.f32.mrb[0].mxu0
        %v8784 = vadd.f32 %v8707, %v8783
        %v8785 = vpop.f32.mrb[0].mxu0
        %v8786 = vadd.f32 %v8709, %v8785
        %8787 = vdwg.mxu0
        %v8788 = vadd.f32 %v8626, %v8778
        %v8789 = vadd.f32 %v8632, %v8780
        %v8790 = vadd.f32 %v8627, %v8784
        %v8791 = vadd.f32 %v8633, %v8786
        %v8793 = vlaneseq
        %v8794 = vshrl.u32 %v8793, 7
        %v8795 = vsub.s32 0, %v8794
        %v8796 = vrot.slane %v6525, %v8795
        %v8797 = vlaneseq
        %v8798 = vshrl.u32 %v8797, 7
        %v8799 = vsub.s32 1, %v8798
        %v8800 = vrot.slane %v6525, %v8799
        %v8803 = vadd.f32 %v8788, %v8796
        %v8804 = vadd.f32 %v8789, %v8800
        %v8805 = vadd.f32 %v8790, %v8796
        %v8806 = vadd.f32 %v8791, %v8800
        %v8807 = vmax.f32 %v8803, 0.0
        %v8808 = vmax.f32 %v8804, 0.0
        %v8809 = vmax.f32 %v8805, 0.0
        %v8810 = vmax.f32 %v8806, 0.0
        %8811 = vst [vmem:[%s559] sm:$0xff] %v8807
        %8812 = vst [vmem:[%s559 + $0x8] sm:$0xff] %v8808
        %8813 = vst [vmem:[%s559 + $0x10] sm:$0xff] %v8809
        %8814 = vst [vmem:[%s559 + $0x18] sm:$0xff] %v8810
        %s8815 = smul.u32 2, %s29
        %p8816 = scmp.lt.s32.totalorder %s8815, 3
        %s8817 = scalar_select %p8816, %s8815, 3
        %s8818 = smul.addr %s8817, 2
        %s8819 = smul.addr %s8818, 8
        %s8820 = scalar_lea.vmem %s14, %s8819
        // Predicated region
        $region101: #{_lambda_.1} parent=75 // pred_check
          %p8821 = pneg %p346
        $region102: #{_lambda_.1} parent=75 // pred_check_branch
          %8823 = sbr.rel (%p8821) target = $region104
        $region103: #{_lambda_.1} parent=75 // pred_region
          %s8824 = smul.u32 2, %s29
        $region104: #{_lambda_.1} parent=75 // pred_fallthru
          _
      $region76: #{_lambda_.1} parent=5 // pred_fallthru
        _
      %p8825 = scmp.le.s32.totalorder 2, %s24
      // Predicated region
      $region105: #{_lambda_.1} parent=5 // pred_check
        %p8826 = pneg %p8825
      $region106: #{_lambda_.1} parent=5 // pred_check_branch
        %8828 = sbr.rel (%p8826) target = $region108
      $region107: #{_lambda_.1} parent=5 // pred_region
        %s8829 = ssub.s32 %s24, 2
        // Predicated region
        $region109: #{_lambda_.1} parent=107 // pred_check
          %p8830 = pneg %p352
        $region110: #{_lambda_.1} parent=107 // pred_check_branch
          %8832 = sbr.rel (%p8830) target = $region112
        $region111: #{_lambda_.1} parent=107 // pred_region
          %s8833 = smul.u32 2, %s30
          %p8834 = scmp.lt.s32.totalorder %s8833, 3
          %s8835 = scalar_select %p8834, %s8833, 3
          %s8836 = smul.addr %s8835, 2
          %s8837 = smul.addr %s8836, 8
          %s8838 = scalar_lea.vmem %s14, %s8837
        $region112: #{_lambda_.1} parent=107 // pred_fallthru
          _
      $region108: #{_lambda_.1} parent=5 // pred_fallthru
        _
    $region6: #{_lambda_.1} parent=1 // loop_footer
      %s28 = sadd.s32 1, %s24
    $region7: #{_lambda_.1} parent=1 // loop_footer_branch
      %23 = sbr.rel target = $region3
    $region8: #{_lambda_.1} parent=1 // loop_exit
      _
    %8839 = vsyncpa [#allocation3], 1
    %s8840 = scalar_lea.sflag [#allocation3], 1
    %8841 = vsyncpa %s8840, 1
    %8842 = vsyncpa [#allocation5], 1
    %8843 = vsyncpa [#allocation8], 1
    %8844 = vsyncpa [#allocation11], 1

</llo_original>
